<compile_context>
chip_gen: v6e
topology: v6e:2x2x1
jax: 0.10.0
libtpu: 0.0.40
codegen_flags: <defaults>
</compile_context>

<pallas_src>
import functools

import jax
import jax.numpy as jnp
import numpy as np
from jax import lax
from jax.experimental import pallas as pl
from jax.experimental.pallas import tpu as pltpu

LEAK = 0.2
BN_EPS = 1e-5
LANE = 128
VMEM_LIMIT = 32 * 1024 * 1024


def _cpad(c):
    return ((c + LANE - 1) // LANE) * LANE


# ----------------------------- in-kernel helpers -----------------------------

def _lrelu(y):
    return jnp.where(y > 0, y, LEAK * y)


def _bn_lrelu(y, gamma, beta):
    # Batch stats over rows (rows = N*H*W  =>  BatchNorm2d batch statistics), biased variance.
    m = y.shape[0]
    s1 = jnp.sum(y, axis=0, keepdims=True)
    s2 = jnp.sum(y * y, axis=0, keepdims=True)
    mean = s1 * (1.0 / m)
    var = jnp.maximum(s2 * (1.0 / m) - mean * mean, 0.0)
    y = (y - mean) * lax.rsqrt(var + BN_EPS)
    return _lrelu(y * gamma + beta)


# ----------------------------- Pallas kernels -----------------------------

def _conv_lrelu_kernel(p_ref, w_ref, o_ref):
    # Layer 1: (tm, K) bf16 patches @ (K, Cpad) bf16 weights, f32 acc, LeakyReLU epilogue.
    y = jnp.dot(p_ref[...], w_ref[...], preferred_element_type=jnp.float32)
    o_ref[...] = _lrelu(y).astype(o_ref.dtype)


def _conv_bn_lrelu_tiled_kernel(p_ref, w_ref, g_ref, b_ref, o_ref, s1_ref, s2_ref, *, m_total):
    # Two-phase M-tiled conv + BatchNorm(batch stats) + LeakyReLU.
    #   grid = (2, M_tiles); phase 0 accumulates per-channel sums in persistent VMEM scratch,
    #   phase 1 recomputes the conv tile and applies normalize + affine + LeakyReLU.
    phase = pl.program_id(0)
    i = pl.program_id(1)
    y = jnp.dot(p_ref[...], w_ref[...], preferred_element_type=jnp.float32)

    @pl.when((phase == 0) & (i == 0))
    def _():
        s1_ref[...] = jnp.zeros_like(s1_ref)
        s2_ref[...] = jnp.zeros_like(s2_ref)

    @pl.when(phase == 0)
    def _():
        s1_ref[...] += jnp.sum(y, axis=0, keepdims=True)
        s2_ref[...] += jnp.sum(y * y, axis=0, keepdims=True)
        o_ref[...] = jnp.zeros_like(o_ref)          # placeholder; phase 1 rewrites this block

    @pl.when(phase == 1)
    def _():
        mean = s1_ref[...] * (1.0 / m_total)
        var = jnp.maximum(s2_ref[...] * (1.0 / m_total) - mean * mean, 0.0)
        yn = (y - mean) * lax.rsqrt(var + BN_EPS)
        o_ref[...] = _lrelu(yn * g_ref[...] + b_ref[...]).astype(o_ref.dtype)


def _fused_tail_kernel(p3_ref, w3_ref, g3_ref, b3_ref, sel_ref, w4_ref, g4_ref, b4_ref,
                       w5_ref, gm_ref, o_ref):
    # Layers 3 + 4 + final 4x4/valid head fused in one block (everything stays in VMEM).
    # --- layer 3: conv + BN + LeakyReLU ---
    y3 = jnp.dot(p3_ref[...], w3_ref[...], preferred_element_type=jnp.float32)
    y3 = _bn_lrelu(y3, g3_ref[...], b3_ref[...]).astype(jnp.bfloat16)        # (M3, C3p)

    # --- layer 4: in-VMEM im2col via 0/1 selection matmul + 16 accumulating tap matmuls ---
    m4 = w5_ref.shape[0]
    c4p = w4_ref.shape[2]
    z = jnp.dot(sel_ref[...], y3, preferred_element_type=jnp.float32)        # (16*M4, C3p)
    z = z.astype(jnp.bfloat16)                                               # exact (0/1 gather)
    acc = jnp.zeros((m4, c4p), jnp.float32)
    for t in range(16):
        acc = acc + jnp.dot(z[t * m4:(t + 1) * m4, :], w4_ref[t],
                            preferred_element_type=jnp.float32)
    y4 = _bn_lrelu(acc, g4_ref[...], b4_ref[...])                            # (M4, C4p) f32

    # --- head: final 4x4/valid conv folded in (tiled w5 multiply, group-sum matmul, lane sum) ---
    s = jnp.dot(gm_ref[...], y4 * w5_ref[...], preferred_element_type=jnp.float32)   # (N, C4p)
    o_ref[...] = jnp.sum(s, axis=1, keepdims=True)                           # (N, 1)


# ----------------------------- pallas_call wrappers -------------------------

def _full_spec(shape):
    nd = len(shape)
    return pl.BlockSpec(shape, lambda i, _nd=nd: (0,) * _nd)


def conv_lrelu(patches, w_mat):
    # Layer 1: no BN -> rows independent; tile M and mark it parallel (v7x 2-TC friendly).
    M, K = patches.shape
    C = w_mat.shape[1]
    tm = 1024 if M % 1024 == 0 else M
    cost = pl.CostEstimate(flops=2 * M * K * C, transcendentals=0,
                           bytes_accessed=2 * (M * K + K * C + M * C))
    return pl.pallas_call(
        _conv_lrelu_kernel,
        out_shape=jax.ShapeDtypeStruct((M, C), jnp.bfloat16),
        grid=(M // tm,),
        in_specs=[pl.BlockSpec((tm, K), lambda i: (i, 0)),
                  pl.BlockSpec((K, C), lambda i: (0, 0))],
        out_specs=pl.BlockSpec((tm, C), lambda i: (i, 0)),
        compiler_params=pltpu.CompilerParams(dimension_semantics=("parallel",),
                                             vmem_limit_bytes=VMEM_LIMIT),
        cost_estimate=cost,
    )(patches, w_mat)


def conv_bn_lrelu(patches, w_mat, gamma, beta, tm_target=1024):
    # Layer 2: M-tiled two-phase BN (stats pass + normalize pass), single pallas_call.
    M, K = patches.shape
    C = w_mat.shape[1]
    nm = max(2, -(-M // tm_target))      # >= 2 tiles -> phase-0/phase-1 writebacks cannot race
    assert M % nm == 0 and (M // nm) % 8 == 0, "M tile must be a multiple of 8 and divide M"
    tm = M // nm
    kernel = functools.partial(_conv_bn_lrelu_tiled_kernel, m_total=M)
    cost = pl.CostEstimate(flops=2 * (2 * M * K * C) + 8 * M * C, transcendentals=C,
                           bytes_accessed=2 * (2 * M * K + K * C + 2 * M * C))
    return pl.pallas_call(
        kernel,
        out_shape=jax.ShapeDtypeStruct((M, C), jnp.bfloat16),
        grid=(2, nm),                    # (phase, M tile)
        in_specs=[pl.BlockSpec((tm, K), lambda p, i: (i, 0)),
                  pl.BlockSpec((K, C), lambda p, i: (0, 0)),
                  pl.BlockSpec((1, C), lambda p, i: (0, 0)),
                  pl.BlockSpec((1, C), lambda p, i: (0, 0))],
        out_specs=pl.BlockSpec((tm, C), lambda p, i: (i, 0)),
        scratch_shapes=[pltpu.VMEM((1, C), jnp.float32),
                        pltpu.VMEM((1, C), jnp.float32)],
        compiler_params=pltpu.CompilerParams(dimension_semantics=("arbitrary", "arbitrary"),
                                             vmem_limit_bytes=VMEM_LIMIT),
        cost_estimate=cost,
    )(patches, w_mat, gamma, beta)


def fused_tail(p3, w3, g3, b3, sel, w4_taps, g4, b4, w5_tiled, gmat):
    n = gmat.shape[0]
    M3, K3 = p3.shape
    C3p = w3.shape[1]
    m4 = w5_tiled.shape[0]
    c4p = w4_taps.shape[2]
    flops = 2 * (M3 * K3 * C3p + sel.shape[0] * M3 * C3p + 16 * m4 * C3p * c4p + n * m4 * c4p)
    nbytes = int(2 * (p3.size + w3.size + sel.size + w4_taps.size)
                 + 4 * (w5_tiled.size + gmat.size + g3.size + b3.size + g4.size + b4.size + n))
    cost = pl.CostEstimate(flops=flops, transcendentals=2 * C3p, bytes_accessed=nbytes)
    inputs = (p3, w3, g3, b3, sel, w4_taps, g4, b4, w5_tiled, gmat)
    return pl.pallas_call(
        _fused_tail_kernel,
        out_shape=jax.ShapeDtypeStruct((n, 1), jnp.float32),
        grid=(1,),
        in_specs=[_full_spec(x.shape) for x in inputs],
        out_specs=_full_spec((n, 1)),
        compiler_params=pltpu.CompilerParams(dimension_semantics=("arbitrary",),
                                             vmem_limit_bytes=VMEM_LIMIT),
        cost_estimate=cost,
    )(*inputs)


# ----------------------------- JAX / numpy glue -----------------------------

def im2col(x_nhwc, k, stride, pad):
    """x: (N, H, W, C_real) -> (N*Ho*Wo, k*k*C_real) with (kh, kw, Cin) flattening order."""
    N, H, W, C = x_nhwc.shape
    xp = jnp.pad(x_nhwc, ((0, 0), (pad, pad), (pad, pad), (0, 0)))
    Ho = (H + 2 * pad - k) // stride + 1
    Wo = (W + 2 * pad - k) // stride + 1
    cols = []
    for i in range(k):
        for j in range(k):
            cols.append(xp[:, i:i + stride * Ho:stride, j:j + stride * Wo:stride, :])
    p = jnp.stack(cols, axis=3)                      # (N, Ho, Wo, k*k, C)
    return p.reshape(N * Ho * Wo, k * k * C), Ho, Wo


def build_tap_selection(n, h_in, w_in, h_out, w_out, k=4, stride=2, pad=1):
    """0/1 matrices that gather, per conv tap, the input rows of a k4/s2/p1 conv. (host numpy)"""
    m_in, m_out = n * h_in * w_in, n * h_out * w_out
    sel = np.zeros((k * k, m_out, m_in), np.float32)
    for kh in range(k):
        for kw in range(k):
            t = kh * k + kw
            for nn in range(n):
                for ho in range(h_out):
                    for wo in range(w_out):
                        h = stride * ho + kh - pad
                        w = stride * wo + kw - pad
                        if 0 <= h < h_in and 0 <= w < w_in:
                            sel[t, (nn * h_out + ho) * w_out + wo,
                                (nn * h_in + h) * w_in + w] = 1.0
    return sel.reshape(k * k * m_out, m_in)


def spectral_normalize(w_oihw, key, n_iter=50):
    """W / sigma_max(W.reshape(Cout, -1)) via converged power iteration (parameter setup glue)."""
    cout = w_oihw.shape[0]
    w2d = w_oihw.reshape(cout, -1)
    u = jax.random.normal(key, (cout,), dtype=jnp.float32)
    u = u / (jnp.linalg.norm(u) + 1e-12)
    v = None
    for _ in range(n_iter):
        v = w2d.T @ u
        v = v / (jnp.linalg.norm(v) + 1e-12)
        u = w2d @ v
        u = u / (jnp.linalg.norm(u) + 1e-12)
    sigma = u @ (w2d @ v)
    return w_oihw / sigma


def prepare_params(w_list, gammas, betas, batch, h_img, w_img):
    """Per-layer lane padding, bf16 matmul weights, selection matrices, folded head layout."""
    couts = [w.shape[0] for w in w_list]
    cpads = [_cpad(c) for c in couts]

    # Layers 1-3: (K = 16*Cin_real, CoutPad) matmul weights (no padded-K carry).
    w_mats = []
    for li in range(3):
        cout, cin, kh, kw = w_list[li].shape
        wt = jnp.transpose(w_list[li], (2, 3, 1, 0))                  # (kh, kw, cin, cout)
        wt = jnp.pad(wt, ((0, 0), (0, 0), (0, 0), (0, cpads[li] - cout)))
        w_mats.append(wt.reshape(kh * kw * cin, cpads[li]).astype(jnp.bfloat16))

    # Layer 4: 16 per-tap (C3pad, C4pad) weights (zero rows/cols for padded channels).
    c4, c3 = w_list[3].shape[0], w_list[3].shape[1]
    w4t = jnp.transpose(w_list[3], (2, 3, 1, 0)).reshape(16, c3, c4)
    w4_taps = jnp.pad(w4t, ((0, 0), (0, cpads[2] - c3), (0, cpads[3] - c4))).astype(jnp.bfloat16)

    # Selection matrices gathering layer-4's conv taps from the layer-3 activation rows.
    h3, w3_sp = h_img // 8, w_img // 8
    h4, w4_sp = h_img // 16, w_img // 16
    assert h4 == 4 and w4_sp == 4, "architecture requires 64x64 input (final conv is 4x4/valid)"
    sel = jnp.asarray(build_tap_selection(batch, h3, w3_sp, h4, w4_sp), dtype=jnp.bfloat16)

    # Final 4x4/valid head, folded into the fused tail kernel.
    w5 = w_list[4]                                                    # (1, c4, 4, 4) OIHW
    w5f = jnp.transpose(w5, (2, 3, 1, 0))[..., 0]                     # (4, 4, c4)
    w5f = jnp.pad(w5f, ((0, 0), (0, 0), (0, cpads[3] - c4)))
    w5_tiled = jnp.tile(w5f.reshape(h4 * w4_sp, cpads[3]), (batch, 1)).astype(jnp.float32)
    gmat = jnp.asarray(np.repeat(np.eye(batch, dtype=np.float32), h4 * w4_sp, axis=1))

    gam = [jnp.pad(g, (0, cpads[i + 1] - g.shape[0])).reshape(1, -1).astype(jnp.float32)
           for i, g in enumerate(gammas)]
    bet = [jnp.pad(b, (0, cpads[i + 1] - b.shape[0])).reshape(1, -1).astype(jnp.float32)
           for i, b in enumerate(betas)]

    params = {"w_mat": w_mats, "w4_taps": w4_taps, "sel": sel,
              "w5_tiled": w5_tiled, "gmat": gmat, "gamma": gam, "beta": bet}
    return params, (couts[0], couts[1])


def discriminator_forward(x_nchw, params, couts):
    """Pallas forward. Returns shape (N,) like PyTorch's .view(-1)."""
    c1, c2 = couts
    x = jnp.transpose(x_nchw, (0, 2, 3, 1)).astype(jnp.bfloat16)      # NCHW -> NHWC, bf16 operands
    n = x.shape[0]

    # layer 1: conv(4,2,1) + LeakyReLU — M-tiled "parallel" grid
    p1, h1, w1 = im2col(x, 4, 2, 1)
    a1 = conv_lrelu(p1, params["w_mat"][0]).reshape(n, h1, w1, -1)[..., :c1]

    # layer 2: conv + BatchNorm(batch stats) + LeakyReLU — M-tiled two-phase grid
    p2, h2, w2 = im2col(a1, 4, 2, 1)
    a2 = conv_bn_lrelu(p2, params["w_mat"][1], params["gamma"][0],
                       params["beta"][0]).reshape(n, h2, w2, -1)[..., :c2]

    # layers 3 + 4 + head fused into one pallas_call (layer-4 im2col done in VMEM)
    p3, _, _ = im2col(a2, 4, 2, 1)
    out = fused_tail(p3, params["w_mat"][2], params["gamma"][1], params["beta"][1],
                     params["sel"], params["w4_taps"], params["gamma"][2], params["beta"][2],
                     params["w5_tiled"], params["gmat"])
    return out.reshape(-1)


# ----------------------------- pure-JAX reference ---------------------------

def reference_forward(x_nchw, w_list, gammas, betas):
    def conv_bf16(x, w, s, p):
        return lax.conv_general_dilated(
            x.astype(jnp.bfloat16), w.astype(jnp.bfloat16), (s, s), [(p, p), (p, p)],
            dimension_numbers=("NCHW", "OIHW", "NCHW"),
            preferred_element_type=jnp.float32)

    def lrelu(x):
        return jnp.where(x > 0, x, LEAK * x)

    y = lrelu(conv_bf16(x_nchw, w_list[0], 2, 1))
    for li in range(1, 4):
        y = conv_bf16(y, w_list[li], 2, 1)
        mean = jnp.mean(y, axis=(0, 2, 3), keepdims=True)
        var = jnp.mean((y - mean) ** 2, axis=(0, 2, 3), keepdims=True)
        y = (y - mean) / jnp.sqrt(var + BN_EPS)
        y = y * gammas[li - 1].reshape(1, -1, 1, 1) + betas[li - 1].reshape(1, -1, 1, 1)
        y = lrelu(y)
    y = lax.conv_general_dilated(y, w_list[4], (1, 1), [(0, 0), (0, 0)],
                                 dimension_numbers=("NCHW", "OIHW", "NCHW"),
                                 precision=lax.Precision.HIGHEST)
    return y.reshape(-1)


# ----------------------------- main ----------------------------------------

if __name__ == "__main__":
    channels, features_d = 3, 8          # small features_d; architecture requires 64x64 input
    N, H, W = 2, 64, 64

    conv_cfg = [
        (channels, features_d),
        (features_d, features_d * 2),
        (features_d * 2, features_d * 4),
        (features_d * 4, features_d * 8),
        (features_d * 8, 1),
    ]

    key = jax.random.PRNGKey(0)
    keys = jax.random.split(key, 17)

    w_list = []
    for li, (cin, cout) in enumerate(conv_cfg):
        w = 0.02 * jax.random.normal(keys[2 * li], (cout, cin, 4, 4), dtype=jnp.float32)  # OIHW
        w_list.append(spectral_normalize(w, keys[2 * li + 1]))

    bn_channels = (features_d * 2, features_d * 4, features_d * 8)
    gammas = [1.0 + 0.1 * jax.random.normal(keys[10 + i], (c,), dtype=jnp.float32)
              for i, c in enumerate(bn_channels)]
    betas = [0.1 * jax.random.normal(keys[13 + i], (c,), dtype=jnp.float32)
             for i, c in enumerate(bn_channels)]

    params, couts = prepare_params(w_list, gammas, betas, N, H, W)
    x = jax.random.normal(keys[16], (N, channels, H, W), dtype=jnp.float32)

    fwd = jax.jit(functools.partial(discriminator_forward, couts=couts))
    out = jax.block_until_ready(fwd(x, params))

    ref = reference_forward(x, w_list, gammas, betas)
    # bf16 operands + different accumulation/reduction orderings -> loosened tolerance.
    np.testing.assert_allclose(np.asarray(out), np.asarray(ref), rtol=2e-2, atol=2e-2)
    assert out.shape == (N,)
    print("KERNEL_OK")
</pallas_src>

<mosaic_0001>
module attributes {stable_mosaic.version = 11 : i64} {
  func.func @_conv_lrelu_kernel(%arg0: i32, %arg1: memref<1024x48xbf16, #tpu.memory_space<vmem>>, %arg2: memref<48x128xbf16, #tpu.memory_space<vmem>>, %arg3: memref<1024x128xbf16, #tpu.memory_space<vmem>>) attributes {dimension_semantics = [#tpu.dimension_semantics<parallel>], iteration_bounds = array<i64: 2>, scalar_prefetch = 0 : i64, scratch_operands = 0 : i64, tpu.core_type = #tpu.core_type<tc>, window_params = [{transform_indices = @transform_0, window_bounds = array<i64: 1024, 48>}, {pipeline_mode = #tpu.pipeline_mode<synchronous>, transform_indices = @transform_1, window_bounds = array<i64: 48, 128>}, {transform_indices = @transform_2, window_bounds = array<i64: 1024, 128>}]} {
    %c0 = arith.constant 0 : index
    %c0_0 = arith.constant 0 : index
    %0 = vector.load %arg1[%c0, %c0_0] : memref<1024x48xbf16, #tpu.memory_space<vmem>>, vector<1024x48xbf16>
    %c0_1 = arith.constant 0 : index
    %c0_2 = arith.constant 0 : index
    %1 = vector.load %arg2[%c0_1, %c0_2] : memref<48x128xbf16, #tpu.memory_space<vmem>>, vector<48x128xbf16>
    %cst = arith.constant dense<0.000000e+00> : vector<1024x128xf32>
    %2 = tpu.matmul %0, %1, %cst {dimension_numbers = #tpu.dot_dimension_numbers<[1], [0], [0], [1], [0, 0, 1, 1], [], []>} : vector<1024x48xbf16>, vector<48x128xbf16>, vector<1024x128xf32> -> vector<1024x128xf32>
    %cst_3 = arith.constant 0.000000e+00 : f32
    %3 = vector.broadcast %cst_3 : f32 to vector<1024x128xf32>
    %4 = arith.cmpf ogt, %2, %3 : vector<1024x128xf32>
    %cst_4 = arith.constant 2.000000e-01 : f32
    %5 = vector.broadcast %cst_4 : f32 to vector<1024x128xf32>
    %6 = arith.mulf %5, %2 : vector<1024x128xf32>
    %7 = arith.select %4, %2, %6 : vector<1024x128xi1>, vector<1024x128xf32>
    %8 = arith.truncf %7 : vector<1024x128xf32> to vector<1024x128xbf16>
    %c0_5 = arith.constant 0 : index
    %c0_6 = arith.constant 0 : index
    %9 = vector.load %arg3[%c0_5, %c0_6] : memref<1024x128xbf16, #tpu.memory_space<vmem>>, vector<1024x128xbf16>
    tpu.vector_store %arg3[%c0_5, %c0_6], %8 {strides = array<i32>} : memref<1024x128xbf16, #tpu.memory_space<vmem>>, vector<1024x128xbf16>,
    return
  }
  func.func @transform_0(%arg0: i32) -> (i32, i32) {
    %c0_i32 = arith.constant 0 : i32
    %c0_i32_0 = arith.constant 0 : i32
    return %arg0, %c0_i32 : i32, i32
  }
  func.func @transform_1(%arg0: i32) -> (i32, i32) {
    %c0_i32 = arith.constant 0 : i32
    %c0_i32_0 = arith.constant 0 : i32
    %c0_i32_1 = arith.constant 0 : i32
    return %c0_i32, %c0_i32_0 : i32, i32
  }
  func.func @transform_2(%arg0: i32) -> (i32, i32) {
    %c0_i32 = arith.constant 0 : i32
    %c0_i32_0 = arith.constant 0 : i32
    return %arg0, %c0_i32 : i32, i32
  }
}

module attributes {stable_mosaic.version = 11 : i64} {
  func.func @_conv_bn_lrelu_tiled_kernel(%arg0: i32, %arg1: i32, %arg2: memref<256x128xbf16, #tpu.memory_space<vmem>>, %arg3: memref<128x128xbf16, #tpu.memory_space<vmem>>, %arg4: memref<1x128xf32, #tpu.memory_space<vmem>>, %arg5: memref<1x128xf32, #tpu.memory_space<vmem>>, %arg6: memref<256x128xbf16, #tpu.memory_space<vmem>>, %arg7: memref<1x128xf32, #tpu.memory_space<vmem>>, %arg8: memref<1x128xf32, #tpu.memory_space<vmem>>) attributes {dimension_semantics = [#tpu.dimension_semantics<arbitrary>, #tpu.dimension_semantics<arbitrary>], iteration_bounds = array<i64: 2, 2>, scalar_prefetch = 0 : i64, scratch_operands = 2 : i64, tpu.core_type = #tpu.core_type<tc>, window_params = [{transform_indices = @transform_0, window_bounds = array<i64: 256, 128>}, {pipeline_mode = #tpu.pipeline_mode<synchronous>, transform_indices = @transform_1, window_bounds = array<i64: 128, 128>}, {pipeline_mode = #tpu.pipeline_mode<synchronous>, transform_indices = @transform_2, window_bounds = array<i64: 1, 128>}, {pipeline_mode = #tpu.pipeline_mode<synchronous>, transform_indices = @transform_3, window_bounds = array<i64: 1, 128>}, {transform_indices = @transform_4, window_bounds = array<i64: 256, 128>}]} {
    %c0 = arith.constant 0 : index
    %c0_0 = arith.constant 0 : index
    %0 = vector.load %arg2[%c0, %c0_0] : memref<256x128xbf16, #tpu.memory_space<vmem>>, vector<256x128xbf16>
    %c0_1 = arith.constant 0 : index
    %c0_2 = arith.constant 0 : index
    %1 = vector.load %arg3[%c0_1, %c0_2] : memref<128x128xbf16, #tpu.memory_space<vmem>>, vector<128x128xbf16>
    %cst = arith.constant dense<0.000000e+00> : vector<256x128xf32>
    %2 = tpu.matmul %0, %1, %cst {dimension_numbers = #tpu.dot_dimension_numbers<[1], [0], [0], [1], [0, 0, 1, 1], [], []>} : vector<256x128xbf16>, vector<128x128xbf16>, vector<256x128xf32> -> vector<256x128xf32>
    %c0_i32 = arith.constant 0 : i32
    %3 = arith.cmpi eq, %arg0, %c0_i32 : i32
    %c0_i32_3 = arith.constant 0 : i32
    %4 = arith.cmpi eq, %arg1, %c0_i32_3 : i32
    %5 = arith.andi %3, %4 : i1
    %6 = arith.extui %5 : i1 to i32
    %c0_i32_4 = arith.constant 0 : i32
    %7 = arith.cmpi ne, %6, %c0_i32_4 : i32
    scf.if %7 {
      %cst_8 = arith.constant 0.000000e+00 : f32
      %14 = vector.broadcast %cst_8 : f32 to vector<1x128xf32>
      %c0_9 = arith.constant 0 : index
      %c0_10 = arith.constant 0 : index
      %15 = vector.load %arg7[%c0_9, %c0_10] : memref<1x128xf32, #tpu.memory_space<vmem>>, vector<1x128xf32>
      tpu.vector_store %arg7[%c0_9, %c0_10], %14 {strides = array<i32>} : memref<1x128xf32, #tpu.memory_space<vmem>>, vector<1x128xf32>,
      %cst_11 = arith.constant 0.000000e+00 : f32
      %16 = vector.broadcast %cst_11 : f32 to vector<1x128xf32>
      %c0_12 = arith.constant 0 : index
      %c0_13 = arith.constant 0 : index
      %17 = vector.load %arg8[%c0_12, %c0_13] : memref<1x128xf32, #tpu.memory_space<vmem>>, vector<1x128xf32>
      tpu.vector_store %arg8[%c0_12, %c0_13], %16 {strides = array<i32>} : memref<1x128xf32, #tpu.memory_space<vmem>>, vector<1x128xf32>,
    } else {
    }
    %c0_i32_5 = arith.constant 0 : i32
    %8 = arith.cmpi eq, %arg0, %c0_i32_5 : i32
    %9 = arith.extui %8 : i1 to i32
    %c0_i32_6 = arith.constant 0 : i32
    %10 = arith.cmpi ne, %9, %c0_i32_6 : i32
    scf.if %10 {
      %c0_8 = arith.constant 0 : index
      %c0_9 = arith.constant 0 : index
      %14 = vector.load %arg7[%c0_8, %c0_9] : memref<1x128xf32, #tpu.memory_space<vmem>>, vector<1x128xf32>
      %cst_10 = arith.constant dense<0.000000e+00> : vector<128xf32>
      %15 = vector.multi_reduction <add>, %2, %cst_10 [0] : vector<256x128xf32> to vector<128xf32>
      %16 = vector.shape_cast %15 : vector<128xf32> to vector<1x128xf32>
      %17 = arith.addf %14, %16 : vector<1x128xf32>
      %c0_11 = arith.constant 0 : index
      %c0_12 = arith.constant 0 : index
      %18 = vector.load %arg7[%c0_11, %c0_12] : memref<1x128xf32, #tpu.memory_space<vmem>>, vector<1x128xf32>
      tpu.vector_store %arg7[%c0_11, %c0_12], %17 {strides = array<i32>} : memref<1x128xf32, #tpu.memory_space<vmem>>, vector<1x128xf32>,
      %c0_13 = arith.constant 0 : index
      %c0_14 = arith.constant 0 : index
      %19 = vector.load %arg8[%c0_13, %c0_14] : memref<1x128xf32, #tpu.memory_space<vmem>>, vector<1x128xf32>
      %20 = arith.mulf %2, %2 : vector<256x128xf32>
      %cst_15 = arith.constant dense<0.000000e+00> : vector<128xf32>
      %21 = vector.multi_reduction <add>, %20, %cst_15 [0] : vector<256x128xf32> to vector<128xf32>
      %22 = vector.shape_cast %21 : vector<128xf32> to vector<1x128xf32>
      %23 = arith.addf %19, %22 : vector<1x128xf32>
      %c0_16 = arith.constant 0 : index
      %c0_17 = arith.constant 0 : index
      %24 = vector.load %arg8[%c0_16, %c0_17] : memref<1x128xf32, #tpu.memory_space<vmem>>, vector<1x128xf32>
      tpu.vector_store %arg8[%c0_16, %c0_17], %23 {strides = array<i32>} : memref<1x128xf32, #tpu.memory_space<vmem>>, vector<1x128xf32>,
      %cst_18 = arith.constant 0.000000e+00 : bf16
      %25 = vector.broadcast %cst_18 : bf16 to vector<256x128xbf16>
      %c0_19 = arith.constant 0 : index
      %c0_20 = arith.constant 0 : index
      %26 = vector.load %arg6[%c0_19, %c0_20] : memref<256x128xbf16, #tpu.memory_space<vmem>>, vector<256x128xbf16>
      tpu.vector_store %arg6[%c0_19, %c0_20], %25 {strides = array<i32>} : memref<256x128xbf16, #tpu.memory_space<vmem>>, vector<256x128xbf16>,
    } else {
    }
    %c1_i32 = arith.constant 1 : i32
    %11 = arith.cmpi eq, %arg0, %c1_i32 : i32
    %12 = arith.extui %11 : i1 to i32
    %c0_i32_7 = arith.constant 0 : i32
    %13 = arith.cmpi ne, %12, %c0_i32_7 : i32
    scf.if %13 {
      %c0_8 = arith.constant 0 : index
      %c0_9 = arith.constant 0 : index
      %14 = vector.load %arg7[%c0_8, %c0_9] : memref<1x128xf32, #tpu.memory_space<vmem>>, vector<1x128xf32>
      %cst_10 = arith.constant 0.001953125 : f32
      %15 = vector.broadcast %cst_10 : f32 to vector<1x128xf32>
      %16 = arith.mulf %14, %15 : vector<1x128xf32>
      %c0_11 = arith.constant 0 : index
      %c0_12 = arith.constant 0 : index
      %17 = vector.load %arg8[%c0_11, %c0_12] : memref<1x128xf32, #tpu.memory_space<vmem>>, vector<1x128xf32>
      %cst_13 = arith.constant 0.001953125 : f32
      %18 = vector.broadcast %cst_13 : f32 to vector<1x128xf32>
      %19 = arith.mulf %17, %18 : vector<1x128xf32>
      %20 = arith.mulf %16, %16 : vector<1x128xf32>
      %21 = arith.subf %19, %20 : vector<1x128xf32>
      %cst_14 = arith.constant 0.000000e+00 : f32
      %22 = vector.broadcast %cst_14 : f32 to vector<1x128xf32>
      %23 = arith.maximumf %21, %22 : vector<1x128xf32>
      %24 = vector.broadcast %16 : vector<1x128xf32> to vector<256x128xf32>
      %25 = arith.subf %2, %24 : vector<256x128xf32>
      %cst_15 = arith.constant 9.99999974E-6 : f32
      %26 = vector.broadcast %cst_15 : f32 to vector<1x128xf32>
      %27 = arith.addf %23, %26 : vector<1x128xf32>
      %28 = math.rsqrt %27 : vector<1x128xf32>
      %29 = vector.broadcast %28 : vector<1x128xf32> to vector<256x128xf32>
      %30 = arith.mulf %25, %29 : vector<256x128xf32>
      %c0_16 = arith.constant 0 : index
      %c0_17 = arith.constant 0 : index
      %31 = vector.load %arg4[%c0_16, %c0_17] : memref<1x128xf32, #tpu.memory_space<vmem>>, vector<1x128xf32>
      %32 = vector.broadcast %31 : vector<1x128xf32> to vector<256x128xf32>
      %33 = arith.mulf %30, %32 : vector<256x128xf32>
      %c0_18 = arith.constant 0 : index
      %c0_19 = arith.constant 0 : index
      %34 = vector.load %arg5[%c0_18, %c0_19] : memref<1x128xf32, #tpu.memory_space<vmem>>, vector<1x128xf32>
      %35 = vector.broadcast %34 : vector<1x128xf32> to vector<256x128xf32>
      %36 = arith.addf %33, %35 : vector<256x128xf32>
      %cst_20 = arith.constant 0.000000e+00 : f32
      %37 = vector.broadcast %cst_20 : f32 to vector<256x128xf32>
      %38 = arith.cmpf ogt, %36, %37 : vector<256x128xf32>
      %cst_21 = arith.constant 2.000000e-01 : f32
      %39 = vector.broadcast %cst_21 : f32 to vector<256x128xf32>
      %40 = arith.mulf %39, %36 : vector<256x128xf32>
      %41 = arith.select %38, %36, %40 : vector<256x128xi1>, vector<256x128xf32>
      %42 = arith.truncf %41 : vector<256x128xf32> to vector<256x128xbf16>
      %c0_22 = arith.constant 0 : index
      %c0_23 = arith.constant 0 : index
      %43 = vector.load %arg6[%c0_22, %c0_23] : memref<256x128xbf16, #tpu.memory_space<vmem>>, vector<256x128xbf16>
      tpu.vector_store %arg6[%c0_22, %c0_23], %42 {strides = array<i32>} : memref<256x128xbf16, #tpu.memory_space<vmem>>, vector<256x128xbf16>,
    } else {
    }
    return
  }
  func.func @transform_0(%arg0: i32, %arg1: i32) -> (i32, i32) {
    %c0_i32 = arith.constant 0 : i32
    %c0_i32_0 = arith.constant 0 : i32
    return %arg1, %c0_i32 : i32, i32
  }
  func.func @transform_1(%arg0: i32, %arg1: i32) -> (i32, i32) {
    %c0_i32 = arith.constant 0 : i32
    %c0_i32_0 = arith.constant 0 : i32
    %c0_i32_1 = arith.constant 0 : i32
    return %c0_i32, %c0_i32_0 : i32, i32
  }
  func.func @transform_2(%arg0: i32, %arg1: i32) -> (i32, i32) {
    %c0_i32 = arith.constant 0 : i32
    %c0_i32_0 = arith.constant 0 : i32
    %c0_i32_1 = arith.constant 0 : i32
    return %c0_i32, %c0_i32_0 : i32, i32
  }
  func.func @transform_3(%arg0: i32, %arg1: i32) -> (i32, i32) {
    %c0_i32 = arith.constant 0 : i32
    %c0_i32_0 = arith.constant 0 : i32
    %c0_i32_1 = arith.constant 0 : i32
    return %c0_i32, %c0_i32_0 : i32, i32
  }
  func.func @transform_4(%arg0: i32, %arg1: i32) -> (i32, i32) {
    %c0_i32 = arith.constant 0 : i32
    %c0_i32_0 = arith.constant 0 : i32
    return %arg1, %c0_i32 : i32, i32
  }
}

module attributes {stable_mosaic.version = 11 : i64} {
  func.func @_fused_tail_kernel(%arg0: i32, %arg1: memref<128x256xbf16, #tpu.memory_space<vmem>>, %arg2: memref<256x128xbf16, #tpu.memory_space<vmem>>, %arg3: memref<1x128xf32, #tpu.memory_space<vmem>>, %arg4: memref<1x128xf32, #tpu.memory_space<vmem>>, %arg5: memref<512x128xbf16, #tpu.memory_space<vmem>>, %arg6: memref<16x128x128xbf16, #tpu.memory_space<vmem>>, %arg7: memref<1x128xf32, #tpu.memory_space<vmem>>, %arg8: memref<1x128xf32, #tpu.memory_space<vmem>>, %arg9: memref<32x128xf32, #tpu.memory_space<vmem>>, %arg10: memref<2x32xf32, #tpu.memory_space<vmem>>, %arg11: memref<2x1xf32, #tpu.memory_space<vmem>>) attributes {dimension_semantics = [#tpu.dimension_semantics<arbitrary>], iteration_bounds = array<i64: 1>, scalar_prefetch = 0 : i64, scratch_operands = 0 : i64, tpu.core_type = #tpu.core_type<tc>, window_params = [{pipeline_mode = #tpu.pipeline_mode<synchronous>, transform_indices = @transform_0, window_bounds = array<i64: 128, 256>}, {pipeline_mode = #tpu.pipeline_mode<synchronous>, transform_indices = @transform_1, window_bounds = array<i64: 256, 128>}, {pipeline_mode = #tpu.pipeline_mode<synchronous>, transform_indices = @transform_2, window_bounds = array<i64: 1, 128>}, {pipeline_mode = #tpu.pipeline_mode<synchronous>, transform_indices = @transform_3, window_bounds = array<i64: 1, 128>}, {pipeline_mode = #tpu.pipeline_mode<synchronous>, transform_indices = @transform_4, window_bounds = array<i64: 512, 128>}, {pipeline_mode = #tpu.pipeline_mode<synchronous>, transform_indices = @transform_5, window_bounds = array<i64: 16, 128, 128>}, {pipeline_mode = #tpu.pipeline_mode<synchronous>, transform_indices = @transform_6, window_bounds = array<i64: 1, 128>}, {pipeline_mode = #tpu.pipeline_mode<synchronous>, transform_indices = @transform_7, window_bounds = array<i64: 1, 128>}, {pipeline_mode = #tpu.pipeline_mode<synchronous>, transform_indices = @transform_8, window_bounds = array<i64: 32, 128>}, {pipeline_mode = #tpu.pipeline_mode<synchronous>, transform_indices = @transform_9, window_bounds = array<i64: 2, 32>}, {pipeline_mode = #tpu.pipeline_mode<synchronous>, transform_indices = @transform_10, window_bounds = array<i64: 2, 1>}]} {
    %c0 = arith.constant 0 : index
    %c0_0 = arith.constant 0 : index
    %0 = vector.load %arg1[%c0, %c0_0] : memref<128x256xbf16, #tpu.memory_space<vmem>>, vector<128x256xbf16>
    %c0_1 = arith.constant 0 : index
    %c0_2 = arith.constant 0 : index
    %1 = vector.load %arg2[%c0_1, %c0_2] : memref<256x128xbf16, #tpu.memory_space<vmem>>, vector<256x128xbf16>
    %cst = arith.constant dense<0.000000e+00> : vector<128x128xf32>
    %2 = tpu.matmul %0, %1, %cst {dimension_numbers = #tpu.dot_dimension_numbers<[1], [0], [0], [1], [0, 0, 1, 1], [], []>} : vector<128x256xbf16>, vector<256x128xbf16>, vector<128x128xf32> -> vector<128x128xf32>
    %c0_3 = arith.constant 0 : index
    %c0_4 = arith.constant 0 : index
    %3 = vector.load %arg3[%c0_3, %c0_4] : memref<1x128xf32, #tpu.memory_space<vmem>>, vector<1x128xf32>
    %c0_5 = arith.constant 0 : index
    %c0_6 = arith.constant 0 : index
    %4 = vector.load %arg4[%c0_5, %c0_6] : memref<1x128xf32, #tpu.memory_space<vmem>>, vector<1x128xf32>
    %cst_7 = arith.constant dense<0.000000e+00> : vector<128xf32>
    %5 = vector.multi_reduction <add>, %2, %cst_7 [0] : vector<128x128xf32> to vector<128xf32>
    %6 = vector.shape_cast %5 : vector<128xf32> to vector<1x128xf32>
    %7 = arith.mulf %2, %2 : vector<128x128xf32>
    %cst_8 = arith.constant dense<0.000000e+00> : vector<128xf32>
    %8 = vector.multi_reduction <add>, %7, %cst_8 [0] : vector<128x128xf32> to vector<128xf32>
    %9 = vector.shape_cast %8 : vector<128xf32> to vector<1x128xf32>
    %cst_9 = arith.constant 7.812500e-03 : f32
    %10 = vector.broadcast %cst_9 : f32 to vector<1x128xf32>
    %11 = arith.mulf %6, %10 : vector<1x128xf32>
    %cst_10 = arith.constant 7.812500e-03 : f32
    %12 = vector.broadcast %cst_10 : f32 to vector<1x128xf32>
    %13 = arith.mulf %9, %12 : vector<1x128xf32>
    %14 = arith.mulf %11, %11 : vector<1x128xf32>
    %15 = arith.subf %13, %14 : vector<1x128xf32>
    %cst_11 = arith.constant 0.000000e+00 : f32
    %16 = vector.broadcast %cst_11 : f32 to vector<1x128xf32>
    %17 = arith.maximumf %15, %16 : vector<1x128xf32>
    %18 = vector.broadcast %11 : vector<1x128xf32> to vector<128x128xf32>
    %19 = arith.subf %2, %18 : vector<128x128xf32>
    %cst_12 = arith.constant 9.99999974E-6 : f32
    %20 = vector.broadcast %cst_12 : f32 to vector<1x128xf32>
    %21 = arith.addf %17, %20 : vector<1x128xf32>
    %22 = math.rsqrt %21 : vector<1x128xf32>
    %23 = vector.broadcast %22 : vector<1x128xf32> to vector<128x128xf32>
    %24 = arith.mulf %19, %23 : vector<128x128xf32>
    %25 = vector.broadcast %3 : vector<1x128xf32> to vector<128x128xf32>
    %26 = arith.mulf %24, %25 : vector<128x128xf32>
    %27 = vector.broadcast %4 : vector<1x128xf32> to vector<128x128xf32>
    %28 = arith.addf %26, %27 : vector<128x128xf32>
    %cst_13 = arith.constant 0.000000e+00 : f32
    %29 = vector.broadcast %cst_13 : f32 to vector<128x128xf32>
    %30 = arith.cmpf ogt, %28, %29 : vector<128x128xf32>
    %cst_14 = arith.constant 2.000000e-01 : f32
    %31 = vector.broadcast %cst_14 : f32 to vector<128x128xf32>
    %32 = arith.mulf %31, %28 : vector<128x128xf32>
    %33 = arith.select %30, %28, %32 : vector<128x128xi1>, vector<128x128xf32>
    %34 = arith.truncf %33 : vector<128x128xf32> to vector<128x128xbf16>
    %c0_15 = arith.constant 0 : index
    %c0_16 = arith.constant 0 : index
    %35 = vector.load %arg5[%c0_15, %c0_16] : memref<512x128xbf16, #tpu.memory_space<vmem>>, vector<512x128xbf16>
    %cst_17 = arith.constant dense<0.000000e+00> : vector<512x128xf32>
    %36 = tpu.matmul %35, %34, %cst_17 {dimension_numbers = #tpu.dot_dimension_numbers<[1], [0], [0], [1], [0, 0, 1, 1], [], []>} : vector<512x128xbf16>, vector<128x128xbf16>, vector<512x128xf32> -> vector<512x128xf32>
    %37 = arith.truncf %36 : vector<512x128xf32> to vector<512x128xbf16>
    %cst_18 = arith.constant 0.000000e+00 : f32
    %38 = vector.broadcast %cst_18 : f32 to vector<32x128xf32>
    %39 = vector.extract_strided_slice %37 {offsets = [0, 0], sizes = [32, 128], strides = [1, 1]} : vector<512x128xbf16> to vector<32x128xbf16>
    %c0_19 = arith.constant 0 : index
    %c0_20 = arith.constant 0 : index
    %c0_21 = arith.constant 0 : index
    %40 = vector.load %arg6[%c0_19, %c0_20, %c0_21] : memref<16x128x128xbf16, #tpu.memory_space<vmem>>, vector<1x128x128xbf16>
    %41 = vector.shape_cast %40 : vector<1x128x128xbf16> to vector<128x128xbf16>
    %cst_22 = arith.constant dense<0.000000e+00> : vector<32x128xf32>
    %42 = tpu.matmul %39, %41, %cst_22 {dimension_numbers = #tpu.dot_dimension_numbers<[1], [0], [0], [1], [0, 0, 1, 1], [], []>} : vector<32x128xbf16>, vector<128x128xbf16>, vector<32x128xf32> -> vector<32x128xf32>
    %43 = arith.addf %38, %42 : vector<32x128xf32>
    %44 = vector.extract_strided_slice %37 {offsets = [32, 0], sizes = [32, 128], strides = [1, 1]} : vector<512x128xbf16> to vector<32x128xbf16>
    %c1 = arith.constant 1 : index
    %c0_23 = arith.constant 0 : index
    %c0_24 = arith.constant 0 : index
    %45 = vector.load %arg6[%c1, %c0_23, %c0_24] : memref<16x128x128xbf16, #tpu.memory_space<vmem>>, vector<1x128x128xbf16>
    %46 = vector.shape_cast %45 : vector<1x128x128xbf16> to vector<128x128xbf16>
    %cst_25 = arith.constant dense<0.000000e+00> : vector<32x128xf32>
    %47 = tpu.matmul %44, %46, %cst_25 {dimension_numbers = #tpu.dot_dimension_numbers<[1], [0], [0], [1], [0, 0, 1, 1], [], []>} : vector<32x128xbf16>, vector<128x128xbf16>, vector<32x128xf32> -> vector<32x128xf32>
    %48 = arith.addf %43, %47 : vector<32x128xf32>
    %49 = vector.extract_strided_slice %37 {offsets = [64, 0], sizes = [32, 128], strides = [1, 1]} : vector<512x128xbf16> to vector<32x128xbf16>
    %c2 = arith.constant 2 : index
    %c0_26 = arith.constant 0 : index
    %c0_27 = arith.constant 0 : index
    %50 = vector.load %arg6[%c2, %c0_26, %c0_27] : memref<16x128x128xbf16, #tpu.memory_space<vmem>>, vector<1x128x128xbf16>
    %51 = vector.shape_cast %50 : vector<1x128x128xbf16> to vector<128x128xbf16>
    %cst_28 = arith.constant dense<0.000000e+00> : vector<32x128xf32>
    %52 = tpu.matmul %49, %51, %cst_28 {dimension_numbers = #tpu.dot_dimension_numbers<[1], [0], [0], [1], [0, 0, 1, 1], [], []>} : vector<32x128xbf16>, vector<128x128xbf16>, vector<32x128xf32> -> vector<32x128xf32>
    %53 = arith.addf %48, %52 : vector<32x128xf32>
    %54 = vector.extract_strided_slice %37 {offsets = [96, 0], sizes = [32, 128], strides = [1, 1]} : vector<512x128xbf16> to vector<32x128xbf16>
    %c3 = arith.constant 3 : index
    %c0_29 = arith.constant 0 : index
    %c0_30 = arith.constant 0 : index
    %55 = vector.load %arg6[%c3, %c0_29, %c0_30] : memref<16x128x128xbf16, #tpu.memory_space<vmem>>, vector<1x128x128xbf16>
    %56 = vector.shape_cast %55 : vector<1x128x128xbf16> to vector<128x128xbf16>
    %cst_31 = arith.constant dense<0.000000e+00> : vector<32x128xf32>
    %57 = tpu.matmul %54, %56, %cst_31 {dimension_numbers = #tpu.dot_dimension_numbers<[1], [0], [0], [1], [0, 0, 1, 1], [], []>} : vector<32x128xbf16>, vector<128x128xbf16>, vector<32x128xf32> -> vector<32x128xf32>
    %58 = arith.addf %53, %57 : vector<32x128xf32>
    %59 = vector.extract_strided_slice %37 {offsets = [128, 0], sizes = [32, 128], strides = [1, 1]} : vector<512x128xbf16> to vector<32x128xbf16>
    %c4 = arith.constant 4 : index
    %c0_32 = arith.constant 0 : index
    %c0_33 = arith.constant 0 : index
    %60 = vector.load %arg6[%c4, %c0_32, %c0_33] : memref<16x128x128xbf16, #tpu.memory_space<vmem>>, vector<1x128x128xbf16>
    %61 = vector.shape_cast %60 : vector<1x128x128xbf16> to vector<128x128xbf16>
    %cst_34 = arith.constant dense<0.000000e+00> : vector<32x128xf32>
    %62 = tpu.matmul %59, %61, %cst_34 {dimension_numbers = #tpu.dot_dimension_numbers<[1], [0], [0], [1], [0, 0, 1, 1], [], []>} : vector<32x128xbf16>, vector<128x128xbf16>, vector<32x128xf32> -> vector<32x128xf32>
    %63 = arith.addf %58, %62 : vector<32x128xf32>
    %64 = vector.extract_strided_slice %37 {offsets = [160, 0], sizes = [32, 128], strides = [1, 1]} : vector<512x128xbf16> to vector<32x128xbf16>
    %c5 = arith.constant 5 : index
    %c0_35 = arith.constant 0 : index
    %c0_36 = arith.constant 0 : index
    %65 = vector.load %arg6[%c5, %c0_35, %c0_36] : memref<16x128x128xbf16, #tpu.memory_space<vmem>>, vector<1x128x128xbf16>
    %66 = vector.shape_cast %65 : vector<1x128x128xbf16> to vector<128x128xbf16>
    %cst_37 = arith.constant dense<0.000000e+00> : vector<32x128xf32>
    %67 = tpu.matmul %64, %66, %cst_37 {dimension_numbers = #tpu.dot_dimension_numbers<[1], [0], [0], [1], [0, 0, 1, 1], [], []>} : vector<32x128xbf16>, vector<128x128xbf16>, vector<32x128xf32> -> vector<32x128xf32>
    %68 = arith.addf %63, %67 : vector<32x128xf32>
    %69 = vector.extract_strided_slice %37 {offsets = [192, 0], sizes = [32, 128], strides = [1, 1]} : vector<512x128xbf16> to vector<32x128xbf16>
    %c6 = arith.constant 6 : index
    %c0_38 = arith.constant 0 : index
    %c0_39 = arith.constant 0 : index
    %70 = vector.load %arg6[%c6, %c0_38, %c0_39] : memref<16x128x128xbf16, #tpu.memory_space<vmem>>, vector<1x128x128xbf16>
    %71 = vector.shape_cast %70 : vector<1x128x128xbf16> to vector<128x128xbf16>
    %cst_40 = arith.constant dense<0.000000e+00> : vector<32x128xf32>
    %72 = tpu.matmul %69, %71, %cst_40 {dimension_numbers = #tpu.dot_dimension_numbers<[1], [0], [0], [1], [0, 0, 1, 1], [], []>} : vector<32x128xbf16>, vector<128x128xbf16>, vector<32x128xf32> -> vector<32x128xf32>
    %73 = arith.addf %68, %72 : vector<32x128xf32>
    %74 = vector.extract_strided_slice %37 {offsets = [224, 0], sizes = [32, 128], strides = [1, 1]} : vector<512x128xbf16> to vector<32x128xbf16>
    %c7 = arith.constant 7 : index
    %c0_41 = arith.constant 0 : index
    %c0_42 = arith.constant 0 : index
    %75 = vector.load %arg6[%c7, %c0_41, %c0_42] : memref<16x128x128xbf16, #tpu.memory_space<vmem>>, vector<1x128x128xbf16>
    %76 = vector.shape_cast %75 : vector<1x128x128xbf16> to vector<128x128xbf16>
    %cst_43 = arith.constant dense<0.000000e+00> : vector<32x128xf32>
    %77 = tpu.matmul %74, %76, %cst_43 {dimension_numbers = #tpu.dot_dimension_numbers<[1], [0], [0], [1], [0, 0, 1, 1], [], []>} : vector<32x128xbf16>, vector<128x128xbf16>, vector<32x128xf32> -> vector<32x128xf32>
    %78 = arith.addf %73, %77 : vector<32x128xf32>
    %79 = vector.extract_strided_slice %37 {offsets = [256, 0], sizes = [32, 128], strides = [1, 1]} : vector<512x128xbf16> to vector<32x128xbf16>
    %c8 = arith.constant 8 : index
    %c0_44 = arith.constant 0 : index
    %c0_45 = arith.constant 0 : index
    %80 = vector.load %arg6[%c8, %c0_44, %c0_45] : memref<16x128x128xbf16, #tpu.memory_space<vmem>>, vector<1x128x128xbf16>
    %81 = vector.shape_cast %80 : vector<1x128x128xbf16> to vector<128x128xbf16>
    %cst_46 = arith.constant dense<0.000000e+00> : vector<32x128xf32>
    %82 = tpu.matmul %79, %81, %cst_46 {dimension_numbers = #tpu.dot_dimension_numbers<[1], [0], [0], [1], [0, 0, 1, 1], [], []>} : vector<32x128xbf16>, vector<128x128xbf16>, vector<32x128xf32> -> vector<32x128xf32>
    %83 = arith.addf %78, %82 : vector<32x128xf32>
    %84 = vector.extract_strided_slice %37 {offsets = [288, 0], sizes = [32, 128], strides = [1, 1]} : vector<512x128xbf16> to vector<32x128xbf16>
    %c9 = arith.constant 9 : index
    %c0_47 = arith.constant 0 : index
    %c0_48 = arith.constant 0 : index
    %85 = vector.load %arg6[%c9, %c0_47, %c0_48] : memref<16x128x128xbf16, #tpu.memory_space<vmem>>, vector<1x128x128xbf16>
    %86 = vector.shape_cast %85 : vector<1x128x128xbf16> to vector<128x128xbf16>
    %cst_49 = arith.constant dense<0.000000e+00> : vector<32x128xf32>
    %87 = tpu.matmul %84, %86, %cst_49 {dimension_numbers = #tpu.dot_dimension_numbers<[1], [0], [0], [1], [0, 0, 1, 1], [], []>} : vector<32x128xbf16>, vector<128x128xbf16>, vector<32x128xf32> -> vector<32x128xf32>
    %88 = arith.addf %83, %87 : vector<32x128xf32>
    %89 = vector.extract_strided_slice %37 {offsets = [320, 0], sizes = [32, 128], strides = [1, 1]} : vector<512x128xbf16> to vector<32x128xbf16>
    %c10 = arith.constant 10 : index
    %c0_50 = arith.constant 0 : index
    %c0_51 = arith.constant 0 : index
    %90 = vector.load %arg6[%c10, %c0_50, %c0_51] : memref<16x128x128xbf16, #tpu.memory_space<vmem>>, vector<1x128x128xbf16>
    %91 = vector.shape_cast %90 : vector<1x128x128xbf16> to vector<128x128xbf16>
    %cst_52 = arith.constant dense<0.000000e+00> : vector<32x128xf32>
    %92 = tpu.matmul %89, %91, %cst_52 {dimension_numbers = #tpu.dot_dimension_numbers<[1], [0], [0], [1], [0, 0, 1, 1], [], []>} : vector<32x128xbf16>, vector<128x128xbf16>, vector<32x128xf32> -> vector<32x128xf32>
    %93 = arith.addf %88, %92 : vector<32x128xf32>
    %94 = vector.extract_strided_slice %37 {offsets = [352, 0], sizes = [32, 128], strides = [1, 1]} : vector<512x128xbf16> to vector<32x128xbf16>
    %c11 = arith.constant 11 : index
    %c0_53 = arith.constant 0 : index
    %c0_54 = arith.constant 0 : index
    %95 = vector.load %arg6[%c11, %c0_53, %c0_54] : memref<16x128x128xbf16, #tpu.memory_space<vmem>>, vector<1x128x128xbf16>
    %96 = vector.shape_cast %95 : vector<1x128x128xbf16> to vector<128x128xbf16>
    %cst_55 = arith.constant dense<0.000000e+00> : vector<32x128xf32>
    %97 = tpu.matmul %94, %96, %cst_55 {dimension_numbers = #tpu.dot_dimension_numbers<[1], [0], [0], [1], [0, 0, 1, 1], [], []>} : vector<32x128xbf16>, vector<128x128xbf16>, vector<32x128xf32> -> vector<32x128xf32>
    %98 = arith.addf %93, %97 : vector<32x128xf32>
    %99 = vector.extract_strided_slice %37 {offsets = [384, 0], sizes = [32, 128], strides = [1, 1]} : vector<512x128xbf16> to vector<32x128xbf16>
    %c12 = arith.constant 12 : index
    %c0_56 = arith.constant 0 : index
    %c0_57 = arith.constant 0 : index
    %100 = vector.load %arg6[%c12, %c0_56, %c0_57] : memref<16x128x128xbf16, #tpu.memory_space<vmem>>, vector<1x128x128xbf16>
    %101 = vector.shape_cast %100 : vector<1x128x128xbf16> to vector<128x128xbf16>
    %cst_58 = arith.constant dense<0.000000e+00> : vector<32x128xf32>
    %102 = tpu.matmul %99, %101, %cst_58 {dimension_numbers = #tpu.dot_dimension_numbers<[1], [0], [0], [1], [0, 0, 1, 1], [], []>} : vector<32x128xbf16>, vector<128x128xbf16>, vector<32x128xf32> -> vector<32x128xf32>
    %103 = arith.addf %98, %102 : vector<32x128xf32>
    %104 = vector.extract_strided_slice %37 {offsets = [416, 0], sizes = [32, 128], strides = [1, 1]} : vector<512x128xbf16> to vector<32x128xbf16>
    %c13 = arith.constant 13 : index
    %c0_59 = arith.constant 0 : index
    %c0_60 = arith.constant 0 : index
    %105 = vector.load %arg6[%c13, %c0_59, %c0_60] : memref<16x128x128xbf16, #tpu.memory_space<vmem>>, vector<1x128x128xbf16>
    %106 = vector.shape_cast %105 : vector<1x128x128xbf16> to vector<128x128xbf16>
    %cst_61 = arith.constant dense<0.000000e+00> : vector<32x128xf32>
    %107 = tpu.matmul %104, %106, %cst_61 {dimension_numbers = #tpu.dot_dimension_numbers<[1], [0], [0], [1], [0, 0, 1, 1], [], []>} : vector<32x128xbf16>, vector<128x128xbf16>, vector<32x128xf32> -> vector<32x128xf32>
    %108 = arith.addf %103, %107 : vector<32x128xf32>
    %109 = vector.extract_strided_slice %37 {offsets = [448, 0], sizes = [32, 128], strides = [1, 1]} : vector<512x128xbf16> to vector<32x128xbf16>
    %c14 = arith.constant 14 : index
    %c0_62 = arith.constant 0 : index
    %c0_63 = arith.constant 0 : index
    %110 = vector.load %arg6[%c14, %c0_62, %c0_63] : memref<16x128x128xbf16, #tpu.memory_space<vmem>>, vector<1x128x128xbf16>
    %111 = vector.shape_cast %110 : vector<1x128x128xbf16> to vector<128x128xbf16>
    %cst_64 = arith.constant dense<0.000000e+00> : vector<32x128xf32>
    %112 = tpu.matmul %109, %111, %cst_64 {dimension_numbers = #tpu.dot_dimension_numbers<[1], [0], [0], [1], [0, 0, 1, 1], [], []>} : vector<32x128xbf16>, vector<128x128xbf16>, vector<32x128xf32> -> vector<32x128xf32>
    %113 = arith.addf %108, %112 : vector<32x128xf32>
    %114 = vector.extract_strided_slice %37 {offsets = [480, 0], sizes = [32, 128], strides = [1, 1]} : vector<512x128xbf16> to vector<32x128xbf16>
    %c15 = arith.constant 15 : index
    %c0_65 = arith.constant 0 : index
    %c0_66 = arith.constant 0 : index
    %115 = vector.load %arg6[%c15, %c0_65, %c0_66] : memref<16x128x128xbf16, #tpu.memory_space<vmem>>, vector<1x128x128xbf16>
    %116 = vector.shape_cast %115 : vector<1x128x128xbf16> to vector<128x128xbf16>
    %cst_67 = arith.constant dense<0.000000e+00> : vector<32x128xf32>
    %117 = tpu.matmul %114, %116, %cst_67 {dimension_numbers = #tpu.dot_dimension_numbers<[1], [0], [0], [1], [0, 0, 1, 1], [], []>} : vector<32x128xbf16>, vector<128x128xbf16>, vector<32x128xf32> -> vector<32x128xf32>
    %118 = arith.addf %113, %117 : vector<32x128xf32>
    %c0_68 = arith.constant 0 : index
    %c0_69 = arith.constant 0 : index
    %119 = vector.load %arg7[%c0_68, %c0_69] : memref<1x128xf32, #tpu.memory_space<vmem>>, vector<1x128xf32>
    %c0_70 = arith.constant 0 : index
    %c0_71 = arith.constant 0 : index
    %120 = vector.load %arg8[%c0_70, %c0_71] : memref<1x128xf32, #tpu.memory_space<vmem>>, vector<1x128xf32>
    %cst_72 = arith.constant dense<0.000000e+00> : vector<128xf32>
    %121 = vector.multi_reduction <add>, %118, %cst_72 [0] : vector<32x128xf32> to vector<128xf32>
    %122 = vector.shape_cast %121 : vector<128xf32> to vector<1x128xf32>
    %123 = arith.mulf %118, %118 : vector<32x128xf32>
    %cst_73 = arith.constant dense<0.000000e+00> : vector<128xf32>
    %124 = vector.multi_reduction <add>, %123, %cst_73 [0] : vector<32x128xf32> to vector<128xf32>
    %125 = vector.shape_cast %124 : vector<128xf32> to vector<1x128xf32>
    %cst_74 = arith.constant 3.125000e-02 : f32
    %126 = vector.broadcast %cst_74 : f32 to vector<1x128xf32>
    %127 = arith.mulf %122, %126 : vector<1x128xf32>
    %cst_75 = arith.constant 3.125000e-02 : f32
    %128 = vector.broadcast %cst_75 : f32 to vector<1x128xf32>
    %129 = arith.mulf %125, %128 : vector<1x128xf32>
    %130 = arith.mulf %127, %127 : vector<1x128xf32>
    %131 = arith.subf %129, %130 : vector<1x128xf32>
    %cst_76 = arith.constant 0.000000e+00 : f32
    %132 = vector.broadcast %cst_76 : f32 to vector<1x128xf32>
    %133 = arith.maximumf %131, %132 : vector<1x128xf32>
    %134 = vector.broadcast %127 : vector<1x128xf32> to vector<32x128xf32>
    %135 = arith.subf %118, %134 : vector<32x128xf32>
    %cst_77 = arith.constant 9.99999974E-6 : f32
    %136 = vector.broadcast %cst_77 : f32 to vector<1x128xf32>
    %137 = arith.addf %133, %136 : vector<1x128xf32>
    %138 = math.rsqrt %137 : vector<1x128xf32>
    %139 = vector.broadcast %138 : vector<1x128xf32> to vector<32x128xf32>
    %140 = arith.mulf %135, %139 : vector<32x128xf32>
    %141 = vector.broadcast %119 : vector<1x128xf32> to vector<32x128xf32>
    %142 = arith.mulf %140, %141 : vector<32x128xf32>
    %143 = vector.broadcast %120 : vector<1x128xf32> to vector<32x128xf32>
    %144 = arith.addf %142, %143 : vector<32x128xf32>
    %cst_78 = arith.constant 0.000000e+00 : f32
    %145 = vector.broadcast %cst_78 : f32 to vector<32x128xf32>
    %146 = arith.cmpf ogt, %144, %145 : vector<32x128xf32>
    %cst_79 = arith.constant 2.000000e-01 : f32
    %147 = vector.broadcast %cst_79 : f32 to vector<32x128xf32>
    %148 = arith.mulf %147, %144 : vector<32x128xf32>
    %149 = arith.select %146, %144, %148 : vector<32x128xi1>, vector<32x128xf32>
    %c0_80 = arith.constant 0 : index
    %c0_81 = arith.constant 0 : index
    %150 = vector.load %arg10[%c0_80, %c0_81] : memref<2x32xf32, #tpu.memory_space<vmem>>, vector<2x32xf32>
    %c0_82 = arith.constant 0 : index
    %c0_83 = arith.constant 0 : index
    %151 = vector.load %arg9[%c0_82, %c0_83] : memref<32x128xf32, #tpu.memory_space<vmem>>, vector<32x128xf32>
    %152 = arith.mulf %149, %151 : vector<32x128xf32>
    %cst_84 = arith.constant dense<0.000000e+00> : vector<2x128xf32>
    %153 = tpu.matmul %150, %152, %cst_84 {dimension_numbers = #tpu.dot_dimension_numbers<[1], [0], [0], [1], [0, 0, 1, 1], [], []>} : vector<2x32xf32>, vector<32x128xf32>, vector<2x128xf32> -> vector<2x128xf32>
    %cst_85 = arith.constant dense<0.000000e+00> : vector<2xf32>
    %154 = vector.multi_reduction <add>, %153, %cst_85 [1] : vector<2x128xf32> to vector<2xf32>
    %155 = vector.shape_cast %154 : vector<2xf32> to vector<2x1xf32>
    %c0_86 = arith.constant 0 : index
    %c0_87 = arith.constant 0 : index
    %156 = vector.load %arg11[%c0_86, %c0_87] : memref<2x1xf32, #tpu.memory_space<vmem>>, vector<2x1xf32>
    tpu.vector_store %arg11[%c0_86, %c0_87], %155 {strides = array<i32>} : memref<2x1xf32, #tpu.memory_space<vmem>>, vector<2x1xf32>,
    return
  }
  func.func @transform_0(%arg0: i32) -> (i32, i32) {
    %c0_i32 = arith.constant 0 : i32
    %c0_i32_0 = arith.constant 0 : i32
    %c0_i32_1 = arith.constant 0 : i32
    return %c0_i32, %c0_i32_0 : i32, i32
  }
  func.func @transform_1(%arg0: i32) -> (i32, i32) {
    %c0_i32 = arith.constant 0 : i32
    %c0_i32_0 = arith.constant 0 : i32
    %c0_i32_1 = arith.constant 0 : i32
    return %c0_i32, %c0_i32_0 : i32, i32
  }
  func.func @transform_2(%arg0: i32) -> (i32, i32) {
    %c0_i32 = arith.constant 0 : i32
    %c0_i32_0 = arith.constant 0 : i32
    %c0_i32_1 = arith.constant 0 : i32
    return %c0_i32, %c0_i32_0 : i32, i32
  }
  func.func @transform_3(%arg0: i32) -> (i32, i32) {
    %c0_i32 = arith.constant 0 : i32
    %c0_i32_0 = arith.constant 0 : i32
    %c0_i32_1 = arith.constant 0 : i32
    return %c0_i32, %c0_i32_0 : i32, i32
  }
  func.func @transform_4(%arg0: i32) -> (i32, i32) {
    %c0_i32 = arith.constant 0 : i32
    %c0_i32_0 = arith.constant 0 : i32
    %c0_i32_1 = arith.constant 0 : i32
    return %c0_i32, %c0_i32_0 : i32, i32
  }
  func.func @transform_5(%arg0: i32) -> (i32, i32, i32) {
    %c0_i32 = arith.constant 0 : i32
    %c0_i32_0 = arith.constant 0 : i32
    %c0_i32_1 = arith.constant 0 : i32
    %c0_i32_2 = arith.constant 0 : i32
    return %c0_i32, %c0_i32_0, %c0_i32_1 : i32, i32, i32
  }
  func.func @transform_6(%arg0: i32) -> (i32, i32) {
    %c0_i32 = arith.constant 0 : i32
    %c0_i32_0 = arith.constant 0 : i32
    %c0_i32_1 = arith.constant 0 : i32
    return %c0_i32, %c0_i32_0 : i32, i32
  }
  func.func @transform_7(%arg0: i32) -> (i32, i32) {
    %c0_i32 = arith.constant 0 : i32
    %c0_i32_0 = arith.constant 0 : i32
    %c0_i32_1 = arith.constant 0 : i32
    return %c0_i32, %c0_i32_0 : i32, i32
  }
  func.func @transform_8(%arg0: i32) -> (i32, i32) {
    %c0_i32 = arith.constant 0 : i32
    %c0_i32_0 = arith.constant 0 : i32
    %c0_i32_1 = arith.constant 0 : i32
    return %c0_i32, %c0_i32_0 : i32, i32
  }
  func.func @transform_9(%arg0: i32) -> (i32, i32) {
    %c0_i32 = arith.constant 0 : i32
    %c0_i32_0 = arith.constant 0 : i32
    %c0_i32_1 = arith.constant 0 : i32
    return %c0_i32, %c0_i32_0 : i32, i32
  }
  func.func @transform_10(%arg0: i32) -> (i32, i32) {
    %c0_i32 = arith.constant 0 : i32
    %c0_i32_0 = arith.constant 0 : i32
    %c0_i32_1 = arith.constant 0 : i32
    return %c0_i32, %c0_i32_0 : i32, i32
  }
}

</mosaic_0001>

<llo_original>
// kernel: discriminator_forward.3
$region0: #{discriminator_forward.3}
  #allocation0 [shape = 'u32[]', space=smem, size = 0x4, offset = 0x4, fixed_abs, tag = 'smem constant byte address 0x4 - core index']
  #allocation1 [shape = 'u32[144,128]{1,0:T(1,128)}', space=vmem, size = 0x12000, scoped, tag = 'internal scratch']
  %s0 = inlined_call_operand.vmem [shape: bf16[2048,48], index: 0, kind: input, shape index: {}]
  %s1 = inlined_call_operand.vmem [shape: bf16[48,128], index: 1, kind: input, shape index: {}]
  %s2 = inlined_call_operand.vmem [shape: bf16[2048,128], index: 2, kind: output, shape index: {}]
  %s3 = sld [smem:[#allocation0]]
  $region41: #{discriminator_forward.3} parent=0
    _
  %s5 = ssub.s32 1, %s3
  %s6 = scalar_select 0, %s5, %s3
  loop: start=0, step=1, limit=4
  $region2: #{discriminator_forward.3} parent=0 // loop_pre_header
    _
  $region3: #{discriminator_forward.3} parent=0 // loop_header
    %s8 = sphi 0, %s12
    %p9 = scmp.ge.s32.totalorder %s8, 4
    %s18 = sphi 0, %s20
    %s21 = sphi 0, %s18
    %s22 = sphi 0, %s21
    %s38 = sphi 0, %s22
    %s42 = sphi 0, %s42
    %s44 = sphi 0, %s42
    %s45 = sphi 0, %s44
    %s59 = sphi 0, %s45
    %s65 = sphi 0, %s67
    %s68 = sphi 0, %s65
    %s69 = sphi 0, %s68
    %s85 = sphi 0, %s69
  $region4: #{discriminator_forward.3} parent=0 // loop_header_branch
    %11 = sbr.rel (%p9) target = $region8
  $region5: #{discriminator_forward.3} parent=0 // loop_body
    %s13 = ssub.s32 %s8, 1
    %s14 = ssub.s32 %s8, 2
    %s15 = sadd.s32 %s8, 1
    %s16 = ssub.s32 %s8, %s15
    %p17 = scmp.eq.s32.totalorder %s16, 0
    %s19 = sadd.s32 %s18, 1
    %s20 = scalar_select %p17, %s18, %s19
    %p23 = pneg %p17
    %p24 = scmp.eq.s32.totalorder %s8, 1
    %p25 = por %p23, %p24
    %p26 = scmp.ne.s32.totalorder %s18, %s21
    %p27 = scmp.eq.s32.totalorder %s8, 0
    %p28 = por %p26, %p27
    %p29 = scmp.ne.s32.totalorder %s18, %s21
    %p30 = scmp.eq.s32.totalorder %s13, 1
    %p31 = por %p29, %p30
    %p32 = scmp.ne.s32.totalorder %s21, %s22
    %p33 = scmp.eq.s32.totalorder %s13, 0
    %p34 = por %p32, %p33
    %p35 = scmp.ne.s32.totalorder %s21, %s22
    %p36 = scmp.eq.s32.totalorder %s14, 1
    %p37 = por %p35, %p36
    %p39 = scmp.ne.s32.totalorder %s22, %s38
    %p40 = scmp.eq.s32.totalorder %s14, 0
    %p41 = por %p39, %p40
    %s43 = sadd.s32 %s42, 1
    %p46 = scmp.eq.s32.totalorder %s8, 1
    %p47 = scmp.ne.s32.totalorder %s42, %s44
    %p48 = scmp.eq.s32.totalorder %s8, 0
    %p49 = por %p47, %p48
    %p50 = scmp.ne.s32.totalorder %s42, %s44
    %p51 = scmp.eq.s32.totalorder %s13, 1
    %p52 = por %p50, %p51
    %p53 = scmp.ne.s32.totalorder %s44, %s45
    %p54 = scmp.eq.s32.totalorder %s13, 0
    %p55 = por %p53, %p54
    %p56 = scmp.ne.s32.totalorder %s44, %s45
    %p57 = scmp.eq.s32.totalorder %s14, 1
    %p58 = por %p56, %p57
    %p60 = scmp.ne.s32.totalorder %s45, %s59
    %p61 = scmp.eq.s32.totalorder %s14, 0
    %p62 = por %p60, %p61
    %s63 = ssub.s32 %s8, %s15
    %p64 = scmp.eq.s32.totalorder %s63, 0
    %s66 = sadd.s32 %s65, 1
    %s67 = scalar_select %p64, %s65, %s66
    %p70 = pneg %p64
    %p71 = scmp.eq.s32.totalorder %s8, 1
    %p72 = por %p70, %p71
    %p73 = scmp.ne.s32.totalorder %s65, %s68
    %p74 = scmp.eq.s32.totalorder %s8, 0
    %p75 = por %p73, %p74
    %p76 = scmp.ne.s32.totalorder %s65, %s68
    %p77 = scmp.eq.s32.totalorder %s13, 1
    %p78 = por %p76, %p77
    %p79 = scmp.ne.s32.totalorder %s68, %s69
    %p80 = scmp.eq.s32.totalorder %s13, 0
    %p81 = por %p79, %p80
    %p82 = scmp.ne.s32.totalorder %s68, %s69
    %p83 = scmp.eq.s32.totalorder %s14, 1
    %p84 = por %p82, %p83
    %p86 = scmp.ne.s32.totalorder %s69, %s85
    %p87 = scmp.eq.s32.totalorder %s14, 0
    %p88 = por %p86, %p87
    %p89 = scmp.le.s32.totalorder 1, %s8
    %p90 = scmp.lt.s32.totalorder %s8, 3
    %p91 = pnand %p89, %p90
    %p92 = pneg %p91
    // Predicated region
    $region9: #{discriminator_forward.3} parent=5 // pred_check
      _
    $region10: #{discriminator_forward.3} parent=5 // pred_check_branch
      %94 = sbr.rel (%p91) target = $region12
    $region11: #{discriminator_forward.3} parent=5 // pred_region
      %s95 = ssub.s32 %s8, 1
      // Predicated region
      $region13: #{discriminator_forward.3} parent=11 // pred_check
        %p96 = pneg %p55
      $region14: #{discriminator_forward.3} parent=11 // pred_check_branch
        %98 = sbr.rel (%p96) target = $region16
      $region15: #{discriminator_forward.3} parent=11 // pred_region
        _
      $region16: #{discriminator_forward.3} parent=11 // pred_fallthru
        _
    $region12: #{discriminator_forward.3} parent=5 // pred_fallthru
      _
    %p99 = scmp.lt.s32.totalorder %s8, 2
    // Predicated region
    $region17: #{discriminator_forward.3} parent=5 // pred_check
      %p100 = pneg %p99
    $region18: #{discriminator_forward.3} parent=5 // pred_check_branch
      %102 = sbr.rel (%p100) target = $region20
    $region19: #{discriminator_forward.3} parent=5 // pred_region
      // Predicated region
      $region21: #{discriminator_forward.3} parent=19 // pred_check
        %p103 = pneg %p28
      $region22: #{discriminator_forward.3} parent=19 // pred_check_branch
        %105 = sbr.rel (%p103) target = $region24
      $region23: #{discriminator_forward.3} parent=19 // pred_region
        %s106 = smul.u32 128, %s8
        %p107 = scmp.lt.s32.totalorder %s106, 255
        %s108 = scalar_select %p107, %s106, 255
        %s109 = smul.addr %s108, 4
        %s110 = scalar_lea.vmem %s0, %s109
        %s111 = smul.u32 128, %s8
      $region24: #{discriminator_forward.3} parent=19 // pred_fallthru
        _
    $region20: #{discriminator_forward.3} parent=5 // pred_fallthru
      _
    %p112 = scmp.le.s32.totalorder 1, %s8
    %p113 = scmp.lt.s32.totalorder %s8, 3
    %p114 = pnand %p112, %p113
    %p115 = pneg %p114
    // Predicated region
    $region25: #{discriminator_forward.3} parent=5 // pred_check
      _
    $region26: #{discriminator_forward.3} parent=5 // pred_check_branch
      %117 = sbr.rel (%p114) target = $region28
    $region27: #{discriminator_forward.3} parent=5 // pred_region
      %s118 = ssub.s32 %s8, 1
      %s119 = smul.u32 128, %s13
      %p120 = scmp.lt.s32.totalorder %s119, 255
      %s121 = scalar_select %p120, %s119, 255
      %s122 = smul.addr %s121, 4
      %s123 = scalar_lea.vmem %s0, %s122
      %p124 = pneg %p34
      %p125 = pneg %p31
      %p126 = pneg %p55
      %p127 = pneg %p52
      %p128 = pneg %p81
      %p129 = pneg %p78
      %s130 = smul.u32 128, %s13
      %p131 = scmp.lt.s32.totalorder %s130, 255
      %s132 = scalar_select %p131, %s130, 255
      %s133 = smul.addr %s132, 4
      %s134 = scalar_lea.vmem %s2, %s133
      %s135 = smul.u32 128, %s13
      %p136 = scmp.lt.s32.totalorder %s135, 255
      %s137 = scalar_select %p136, %s135, 255
      %s138 = smul.addr %s137, 4
      %s139 = scalar_lea.vmem %s0, %s138
      %s140 = smul.u32 128, %s13
      %s141 = smul.u32 128, %s13
      %p142 = scmp.lt.s32.totalorder %s141, 255
      %s143 = scalar_select %p142, %s141, 255
      %s144 = smul.addr %s143, 4
      %s145 = scalar_lea.vmem %s2, %s144
      %s146 = smul.u32 128, %s13
      %v148 = vld [vmem:[%s139] sm:$0xf]
      %v149 = vld [vmem:[%s139 + $0x4] sm:$0xf]
      %v150 = vld [vmem:[%s139 + $0x8] sm:$0xf]
      %v151 = vld [vmem:[%s139 + $0xc] sm:$0xf]
      %v152 = vld [vmem:[%s139 + $0x10] sm:$0xf]
      %v153 = vld [vmem:[%s139 + $0x14] sm:$0xf]
      %v154 = vld [vmem:[%s139 + $0x18] sm:$0xf]
      %v155 = vld [vmem:[%s139 + $0x1c] sm:$0xf]
      %v156 = vld [vmem:[%s139 + $0x20] sm:$0xf]
      %v157 = vld [vmem:[%s139 + $0x24] sm:$0xf]
      %v158 = vld [vmem:[%s139 + $0x28] sm:$0xf]
      %v159 = vld [vmem:[%s139 + $0x2c] sm:$0xf]
      %v160 = vld [vmem:[%s139 + $0x30] sm:$0xf]
      %v161 = vld [vmem:[%s139 + $0x34] sm:$0xf]
      %v162 = vld [vmem:[%s139 + $0x38] sm:$0xf]
      %v163 = vld [vmem:[%s139 + $0x3c] sm:$0xf]
      %v164 = vld [vmem:[%s139 + $0x40] sm:$0xf]
      %v165 = vld [vmem:[%s139 + $0x44] sm:$0xf]
      %v166 = vld [vmem:[%s139 + $0x48] sm:$0xf]
      %v167 = vld [vmem:[%s139 + $0x4c] sm:$0xf]
      %v168 = vld [vmem:[%s139 + $0x50] sm:$0xf]
      %v169 = vld [vmem:[%s139 + $0x54] sm:$0xf]
      %v170 = vld [vmem:[%s139 + $0x58] sm:$0xf]
      %v171 = vld [vmem:[%s139 + $0x5c] sm:$0xf]
      %v172 = vld [vmem:[%s139 + $0x60] sm:$0xf]
      %v173 = vld [vmem:[%s139 + $0x64] sm:$0xf]
      %v174 = vld [vmem:[%s139 + $0x68] sm:$0xf]
      %v175 = vld [vmem:[%s139 + $0x6c] sm:$0xf]
      %v176 = vld [vmem:[%s139 + $0x70] sm:$0xf]
      %v177 = vld [vmem:[%s139 + $0x74] sm:$0xf]
      %v178 = vld [vmem:[%s139 + $0x78] sm:$0xf]
      %v179 = vld [vmem:[%s139 + $0x7c] sm:$0xf]
      %v180 = vld [vmem:[%s139 + $0x80] sm:$0xf]
      %v181 = vld [vmem:[%s139 + $0x84] sm:$0xf]
      %v182 = vld [vmem:[%s139 + $0x88] sm:$0xf]
      %v183 = vld [vmem:[%s139 + $0x8c] sm:$0xf]
      %v184 = vld [vmem:[%s139 + $0x90] sm:$0xf]
      %v185 = vld [vmem:[%s139 + $0x94] sm:$0xf]
      %v186 = vld [vmem:[%s139 + $0x98] sm:$0xf]
      %v187 = vld [vmem:[%s139 + $0x9c] sm:$0xf]
      %v188 = vld [vmem:[%s139 + $0xa0] sm:$0xf]
      %v189 = vld [vmem:[%s139 + $0xa4] sm:$0xf]
      %v190 = vld [vmem:[%s139 + $0xa8] sm:$0xf]
      %v191 = vld [vmem:[%s139 + $0xac] sm:$0xf]
      %v192 = vld [vmem:[%s139 + $0xb0] sm:$0xf]
      %v193 = vld [vmem:[%s139 + $0xb4] sm:$0xf]
      %v194 = vld [vmem:[%s139 + $0xb8] sm:$0xf]
      %v195 = vld [vmem:[%s139 + $0xbc] sm:$0xf]
      %v196 = vld [vmem:[%s139 + $0xc0] sm:$0xf]
      %v197 = vld [vmem:[%s139 + $0xc4] sm:$0xf]
      %v198 = vld [vmem:[%s139 + $0xc8] sm:$0xf]
      %v199 = vld [vmem:[%s139 + $0xcc] sm:$0xf]
      %v200 = vld [vmem:[%s139 + $0xd0] sm:$0xf]
      %v201 = vld [vmem:[%s139 + $0xd4] sm:$0xf]
      %v202 = vld [vmem:[%s139 + $0xd8] sm:$0xf]
      %v203 = vld [vmem:[%s139 + $0xdc] sm:$0xf]
      %v204 = vld [vmem:[%s139 + $0xe0] sm:$0xf]
      %v205 = vld [vmem:[%s139 + $0xe4] sm:$0xf]
      %v206 = vld [vmem:[%s139 + $0xe8] sm:$0xf]
      %v207 = vld [vmem:[%s139 + $0xec] sm:$0xf]
      %v208 = vld [vmem:[%s139 + $0xf0] sm:$0xf]
      %v209 = vld [vmem:[%s139 + $0xf4] sm:$0xf]
      %v210 = vld [vmem:[%s139 + $0xf8] sm:$0xf]
      %v211 = vld [vmem:[%s139 + $0xfc] sm:$0xf]
      %v212 = vld [vmem:[%s139 + $0x100] sm:$0xf]
      %v213 = vld [vmem:[%s139 + $0x104] sm:$0xf]
      %v214 = vld [vmem:[%s139 + $0x108] sm:$0xf]
      %v215 = vld [vmem:[%s139 + $0x10c] sm:$0xf]
      %v216 = vld [vmem:[%s139 + $0x110] sm:$0xf]
      %v217 = vld [vmem:[%s139 + $0x114] sm:$0xf]
      %v218 = vld [vmem:[%s139 + $0x118] sm:$0xf]
      %v219 = vld [vmem:[%s139 + $0x11c] sm:$0xf]
      %v220 = vld [vmem:[%s139 + $0x120] sm:$0xf]
      %v221 = vld [vmem:[%s139 + $0x124] sm:$0xf]
      %v222 = vld [vmem:[%s139 + $0x128] sm:$0xf]
      %v223 = vld [vmem:[%s139 + $0x12c] sm:$0xf]
      %v224 = vld [vmem:[%s139 + $0x130] sm:$0xf]
      %v225 = vld [vmem:[%s139 + $0x134] sm:$0xf]
      %v226 = vld [vmem:[%s139 + $0x138] sm:$0xf]
      %v227 = vld [vmem:[%s139 + $0x13c] sm:$0xf]
      %v228 = vld [vmem:[%s139 + $0x140] sm:$0xf]
      %v229 = vld [vmem:[%s139 + $0x144] sm:$0xf]
      %v230 = vld [vmem:[%s139 + $0x148] sm:$0xf]
      %v231 = vld [vmem:[%s139 + $0x14c] sm:$0xf]
      %v232 = vld [vmem:[%s139 + $0x150] sm:$0xf]
      %v233 = vld [vmem:[%s139 + $0x154] sm:$0xf]
      %v234 = vld [vmem:[%s139 + $0x158] sm:$0xf]
      %v235 = vld [vmem:[%s139 + $0x15c] sm:$0xf]
      %v236 = vld [vmem:[%s139 + $0x160] sm:$0xf]
      %v237 = vld [vmem:[%s139 + $0x164] sm:$0xf]
      %v238 = vld [vmem:[%s139 + $0x168] sm:$0xf]
      %v239 = vld [vmem:[%s139 + $0x16c] sm:$0xf]
      %v240 = vld [vmem:[%s139 + $0x170] sm:$0xf]
      %v241 = vld [vmem:[%s139 + $0x174] sm:$0xf]
      %v242 = vld [vmem:[%s139 + $0x178] sm:$0xf]
      %v243 = vld [vmem:[%s139 + $0x17c] sm:$0xf]
      %v244 = vld [vmem:[%s139 + $0x180] sm:$0xf]
      %v245 = vld [vmem:[%s139 + $0x184] sm:$0xf]
      %v246 = vld [vmem:[%s139 + $0x188] sm:$0xf]
      %v247 = vld [vmem:[%s139 + $0x18c] sm:$0xf]
      %v248 = vld [vmem:[%s139 + $0x190] sm:$0xf]
      %v249 = vld [vmem:[%s139 + $0x194] sm:$0xf]
      %v250 = vld [vmem:[%s139 + $0x198] sm:$0xf]
      %v251 = vld [vmem:[%s139 + $0x19c] sm:$0xf]
      %v252 = vld [vmem:[%s139 + $0x1a0] sm:$0xf]
      %v253 = vld [vmem:[%s139 + $0x1a4] sm:$0xf]
      %v254 = vld [vmem:[%s139 + $0x1a8] sm:$0xf]
      %v255 = vld [vmem:[%s139 + $0x1ac] sm:$0xf]
      %v256 = vld [vmem:[%s139 + $0x1b0] sm:$0xf]
      %v257 = vld [vmem:[%s139 + $0x1b4] sm:$0xf]
      %v258 = vld [vmem:[%s139 + $0x1b8] sm:$0xf]
      %v259 = vld [vmem:[%s139 + $0x1bc] sm:$0xf]
      %v260 = vld [vmem:[%s139 + $0x1c0] sm:$0xf]
      %v261 = vld [vmem:[%s139 + $0x1c4] sm:$0xf]
      %v262 = vld [vmem:[%s139 + $0x1c8] sm:$0xf]
      %v263 = vld [vmem:[%s139 + $0x1cc] sm:$0xf]
      %v264 = vld [vmem:[%s139 + $0x1d0] sm:$0xf]
      %v265 = vld [vmem:[%s139 + $0x1d4] sm:$0xf]
      %v266 = vld [vmem:[%s139 + $0x1d8] sm:$0xf]
      %v267 = vld [vmem:[%s139 + $0x1dc] sm:$0xf]
      %v268 = vld [vmem:[%s139 + $0x1e0] sm:$0xf]
      %v269 = vld [vmem:[%s139 + $0x1e4] sm:$0xf]
      %v270 = vld [vmem:[%s139 + $0x1e8] sm:$0xf]
      %v271 = vld [vmem:[%s139 + $0x1ec] sm:$0xf]
      %v272 = vld [vmem:[%s139 + $0x1f0] sm:$0xf]
      %v273 = vld [vmem:[%s139 + $0x1f4] sm:$0xf]
      %v274 = vld [vmem:[%s139 + $0x1f8] sm:$0xf]
      %v275 = vld [vmem:[%s139 + $0x1fc] sm:$0xf]
      %v276 = vld [vmem:[%s1] sm:$0xf]
      %v277 = vld [vmem:[%s1 + $0x4] sm:$0xf]
      %v278 = vld [vmem:[%s1 + $0x8] sm:$0xf]
      %v279 = vld [vmem:[%s1 + $0xc] sm:$0xf]
      %v280 = vld [vmem:[%s1 + $0x10] sm:$0xf]
      %v281 = vld [vmem:[%s1 + $0x14] sm:$0xf]
      %v410 = vunpack.c.l.b16 %v148
      %v411 = vunpack.c.l.b16 %v149
      %v412 = vunpack.c.l.b16 %v150
      %v413 = vunpack.c.l.b16 %v151
      %v414 = vunpack.c.l.b16 %v152
      %v415 = vunpack.c.l.b16 %v153
      %v416 = vunpack.c.l.b16 %v154
      %v417 = vunpack.c.l.b16 %v155
      %v418 = vunpack.c.l.b16 %v156
      %v419 = vunpack.c.l.b16 %v157
      %v420 = vunpack.c.l.b16 %v158
      %v421 = vunpack.c.l.b16 %v159
      %v422 = vunpack.c.l.b16 %v160
      %v423 = vunpack.c.l.b16 %v161
      %v424 = vunpack.c.l.b16 %v162
      %v425 = vunpack.c.l.b16 %v163
      %v426 = vunpack.c.l.b16 %v164
      %v427 = vunpack.c.l.b16 %v165
      %v428 = vunpack.c.l.b16 %v166
      %v429 = vunpack.c.l.b16 %v167
      %v430 = vunpack.c.l.b16 %v168
      %v431 = vunpack.c.l.b16 %v169
      %v432 = vunpack.c.l.b16 %v170
      %v433 = vunpack.c.l.b16 %v171
      %v434 = vunpack.c.l.b16 %v172
      %v435 = vunpack.c.l.b16 %v173
      %v436 = vunpack.c.l.b16 %v174
      %v437 = vunpack.c.l.b16 %v175
      %v438 = vunpack.c.l.b16 %v176
      %v439 = vunpack.c.l.b16 %v177
      %v440 = vunpack.c.l.b16 %v178
      %v441 = vunpack.c.l.b16 %v179
      %v442 = vunpack.c.l.b16 %v180
      %v443 = vunpack.c.l.b16 %v181
      %v444 = vunpack.c.l.b16 %v182
      %v445 = vunpack.c.l.b16 %v183
      %v446 = vunpack.c.l.b16 %v184
      %v447 = vunpack.c.l.b16 %v185
      %v448 = vunpack.c.l.b16 %v186
      %v449 = vunpack.c.l.b16 %v187
      %v450 = vunpack.c.l.b16 %v188
      %v451 = vunpack.c.l.b16 %v189
      %v452 = vunpack.c.l.b16 %v190
      %v453 = vunpack.c.l.b16 %v191
      %v454 = vunpack.c.l.b16 %v192
      %v455 = vunpack.c.l.b16 %v193
      %v456 = vunpack.c.l.b16 %v194
      %v457 = vunpack.c.l.b16 %v195
      %v458 = vunpack.c.l.b16 %v196
      %v459 = vunpack.c.l.b16 %v197
      %v460 = vunpack.c.l.b16 %v198
      %v461 = vunpack.c.l.b16 %v199
      %v462 = vunpack.c.l.b16 %v200
      %v463 = vunpack.c.l.b16 %v201
      %v464 = vunpack.c.l.b16 %v202
      %v465 = vunpack.c.l.b16 %v203
      %v466 = vunpack.c.l.b16 %v204
      %v467 = vunpack.c.l.b16 %v205
      %v468 = vunpack.c.l.b16 %v206
      %v469 = vunpack.c.l.b16 %v207
      %v470 = vunpack.c.l.b16 %v208
      %v471 = vunpack.c.l.b16 %v209
      %v472 = vunpack.c.l.b16 %v210
      %v473 = vunpack.c.l.b16 %v211
      %v474 = vunpack.c.l.b16 %v212
      %v475 = vunpack.c.l.b16 %v213
      %v476 = vunpack.c.l.b16 %v214
      %v477 = vunpack.c.l.b16 %v215
      %v478 = vunpack.c.l.b16 %v216
      %v479 = vunpack.c.l.b16 %v217
      %v480 = vunpack.c.l.b16 %v218
      %v481 = vunpack.c.l.b16 %v219
      %v482 = vunpack.c.l.b16 %v220
      %v483 = vunpack.c.l.b16 %v221
      %v484 = vunpack.c.l.b16 %v222
      %v485 = vunpack.c.l.b16 %v223
      %v486 = vunpack.c.l.b16 %v224
      %v487 = vunpack.c.l.b16 %v225
      %v488 = vunpack.c.l.b16 %v226
      %v489 = vunpack.c.l.b16 %v227
      %v490 = vunpack.c.l.b16 %v228
      %v491 = vunpack.c.l.b16 %v229
      %v492 = vunpack.c.l.b16 %v230
      %v493 = vunpack.c.l.b16 %v231
      %v494 = vunpack.c.l.b16 %v232
      %v495 = vunpack.c.l.b16 %v233
      %v496 = vunpack.c.l.b16 %v234
      %v497 = vunpack.c.l.b16 %v235
      %v498 = vunpack.c.l.b16 %v236
      %v499 = vunpack.c.l.b16 %v237
      %v500 = vunpack.c.l.b16 %v238
      %v501 = vunpack.c.l.b16 %v239
      %v502 = vunpack.c.l.b16 %v240
      %v503 = vunpack.c.l.b16 %v241
      %v504 = vunpack.c.l.b16 %v242
      %v505 = vunpack.c.l.b16 %v243
      %v506 = vunpack.c.l.b16 %v244
      %v507 = vunpack.c.l.b16 %v245
      %v508 = vunpack.c.l.b16 %v246
      %v509 = vunpack.c.l.b16 %v247
      %v510 = vunpack.c.l.b16 %v248
      %v511 = vunpack.c.l.b16 %v249
      %v512 = vunpack.c.l.b16 %v250
      %v513 = vunpack.c.l.b16 %v251
      %v514 = vunpack.c.l.b16 %v252
      %v515 = vunpack.c.l.b16 %v253
      %v516 = vunpack.c.l.b16 %v254
      %v517 = vunpack.c.l.b16 %v255
      %v518 = vunpack.c.l.b16 %v256
      %v519 = vunpack.c.l.b16 %v257
      %v520 = vunpack.c.l.b16 %v258
      %v521 = vunpack.c.l.b16 %v259
      %v522 = vunpack.c.l.b16 %v260
      %v523 = vunpack.c.l.b16 %v261
      %v524 = vunpack.c.l.b16 %v262
      %v525 = vunpack.c.l.b16 %v263
      %v526 = vunpack.c.l.b16 %v264
      %v527 = vunpack.c.l.b16 %v265
      %v528 = vunpack.c.l.b16 %v266
      %v529 = vunpack.c.l.b16 %v267
      %v530 = vunpack.c.l.b16 %v268
      %v531 = vunpack.c.l.b16 %v269
      %v532 = vunpack.c.l.b16 %v270
      %v533 = vunpack.c.l.b16 %v271
      %v534 = vunpack.c.l.b16 %v272
      %v535 = vunpack.c.l.b16 %v273
      %v536 = vunpack.c.l.b16 %v274
      %v537 = vunpack.c.l.b16 %v275
      %v538 = vpack.c.b16 %v411, %v410
      %v539 = vpack.c.b16 %v413, %v412
      %v540 = vpack.c.b16 %v415, %v414
      %v541 = vpack.c.b16 %v417, %v416
      %v542 = vpack.c.b16 %v419, %v418
      %v543 = vpack.c.b16 %v421, %v420
      %v544 = vpack.c.b16 %v423, %v422
      %v545 = vpack.c.b16 %v425, %v424
      %v546 = vpack.c.b16 %v427, %v426
      %v547 = vpack.c.b16 %v429, %v428
      %v548 = vpack.c.b16 %v431, %v430
      %v549 = vpack.c.b16 %v433, %v432
      %v550 = vpack.c.b16 %v435, %v434
      %v551 = vpack.c.b16 %v437, %v436
      %v552 = vpack.c.b16 %v439, %v438
      %v553 = vpack.c.b16 %v441, %v440
      %v554 = vpack.c.b16 %v443, %v442
      %v555 = vpack.c.b16 %v445, %v444
      %v556 = vpack.c.b16 %v447, %v446
      %v557 = vpack.c.b16 %v449, %v448
      %v558 = vpack.c.b16 %v451, %v450
      %v559 = vpack.c.b16 %v453, %v452
      %v560 = vpack.c.b16 %v455, %v454
      %v561 = vpack.c.b16 %v457, %v456
      %v562 = vpack.c.b16 %v459, %v458
      %v563 = vpack.c.b16 %v461, %v460
      %v564 = vpack.c.b16 %v463, %v462
      %v565 = vpack.c.b16 %v465, %v464
      %v566 = vpack.c.b16 %v467, %v466
      %v567 = vpack.c.b16 %v469, %v468
      %v568 = vpack.c.b16 %v471, %v470
      %v569 = vpack.c.b16 %v473, %v472
      %v570 = vpack.c.b16 %v475, %v474
      %v571 = vpack.c.b16 %v477, %v476
      %v572 = vpack.c.b16 %v479, %v478
      %v573 = vpack.c.b16 %v481, %v480
      %v574 = vpack.c.b16 %v483, %v482
      %v575 = vpack.c.b16 %v485, %v484
      %v576 = vpack.c.b16 %v487, %v486
      %v577 = vpack.c.b16 %v489, %v488
      %v578 = vpack.c.b16 %v491, %v490
      %v579 = vpack.c.b16 %v493, %v492
      %v580 = vpack.c.b16 %v495, %v494
      %v581 = vpack.c.b16 %v497, %v496
      %v582 = vpack.c.b16 %v499, %v498
      %v583 = vpack.c.b16 %v501, %v500
      %v584 = vpack.c.b16 %v503, %v502
      %v585 = vpack.c.b16 %v505, %v504
      %v586 = vpack.c.b16 %v507, %v506
      %v587 = vpack.c.b16 %v509, %v508
      %v588 = vpack.c.b16 %v511, %v510
      %v589 = vpack.c.b16 %v513, %v512
      %v590 = vpack.c.b16 %v515, %v514
      %v591 = vpack.c.b16 %v517, %v516
      %v592 = vpack.c.b16 %v519, %v518
      %v593 = vpack.c.b16 %v521, %v520
      %v594 = vpack.c.b16 %v523, %v522
      %v595 = vpack.c.b16 %v525, %v524
      %v596 = vpack.c.b16 %v527, %v526
      %v597 = vpack.c.b16 %v529, %v528
      %v598 = vpack.c.b16 %v531, %v530
      %v599 = vpack.c.b16 %v533, %v532
      %v600 = vpack.c.b16 %v535, %v534
      %v601 = vpack.c.b16 %v537, %v536
      %v608 = vunpack.c.l.b16 %v276
      %v609 = vunpack.c.l.b16 %v277
      %v610 = vunpack.c.l.b16 %v278
      %v611 = vunpack.c.l.b16 %v279
      %v612 = vunpack.c.l.b16 %v280
      %v613 = vunpack.c.l.b16 %v281
      %v614 = vpack.c.b16 %v609, %v608
      %v615 = vpack.c.b16 %v611, %v610
      %v616 = vpack.c.b16 %v613, %v612
      %vm620 = vcmask 392192
      %v622 = vsel %vm620, %v538, 0
      %v625 = vsel %vm620, %v539, 0
      %v628 = vsel %vm620, %v540, 0
      %v631 = vsel %vm620, %v541, 0
      %v634 = vsel %vm620, %v542, 0
      %v637 = vsel %vm620, %v543, 0
      %v640 = vsel %vm620, %v544, 0
      %v643 = vsel %vm620, %v545, 0
      %v646 = vsel %vm620, %v546, 0
      %v649 = vsel %vm620, %v547, 0
      %v652 = vsel %vm620, %v548, 0
      %v655 = vsel %vm620, %v549, 0
      %v658 = vsel %vm620, %v550, 0
      %v661 = vsel %vm620, %v551, 0
      %v664 = vsel %vm620, %v552, 0
      %v667 = vsel %vm620, %v553, 0
      %v670 = vsel %vm620, %v554, 0
      %v673 = vsel %vm620, %v555, 0
      %v676 = vsel %vm620, %v556, 0
      %v679 = vsel %vm620, %v557, 0
      %v682 = vsel %vm620, %v558, 0
      %v685 = vsel %vm620, %v559, 0
      %v688 = vsel %vm620, %v560, 0
      %v691 = vsel %vm620, %v561, 0
      %v694 = vsel %vm620, %v562, 0
      %v697 = vsel %vm620, %v563, 0
      %v700 = vsel %vm620, %v564, 0
      %v703 = vsel %vm620, %v565, 0
      %v706 = vsel %vm620, %v566, 0
      %v709 = vsel %vm620, %v567, 0
      %v712 = vsel %vm620, %v568, 0
      %v715 = vsel %vm620, %v569, 0
      %v718 = vsel %vm620, %v570, 0
      %v721 = vsel %vm620, %v571, 0
      %v724 = vsel %vm620, %v572, 0
      %v727 = vsel %vm620, %v573, 0
      %v730 = vsel %vm620, %v574, 0
      %v733 = vsel %vm620, %v575, 0
      %v736 = vsel %vm620, %v576, 0
      %v739 = vsel %vm620, %v577, 0
      %v742 = vsel %vm620, %v578, 0
      %v745 = vsel %vm620, %v579, 0
      %v748 = vsel %vm620, %v580, 0
      %v751 = vsel %vm620, %v581, 0
      %v754 = vsel %vm620, %v582, 0
      %v757 = vsel %vm620, %v583, 0
      %v760 = vsel %vm620, %v584, 0
      %v763 = vsel %vm620, %v585, 0
      %v766 = vsel %vm620, %v586, 0
      %v769 = vsel %vm620, %v587, 0
      %v772 = vsel %vm620, %v588, 0
      %v775 = vsel %vm620, %v589, 0
      %v778 = vsel %vm620, %v590, 0
      %v781 = vsel %vm620, %v591, 0
      %v784 = vsel %vm620, %v592, 0
      %v787 = vsel %vm620, %v593, 0
      %v790 = vsel %vm620, %v594, 0
      %v793 = vsel %vm620, %v595, 0
      %v796 = vsel %vm620, %v596, 0
      %v799 = vsel %vm620, %v597, 0
      %v802 = vsel %vm620, %v598, 0
      %v805 = vsel %vm620, %v599, 0
      %v808 = vsel %vm620, %v600, 0
      %v811 = vsel %vm620, %v601, 0
      %813 = vmatprep.subr.bf16.mxu0 0
      %814 = vmatpush1.bf16.msra.mxu0 0
      %815 = vmatprep.subr.bf16.mxu0 0
      %816 = vmatpush1.bf16.msra.mxu0 0
      %817 = vmatprep.subr.bf16.mxu0 0
      %818 = vmatpush1.bf16.msra.mxu0 0
      %819 = vmatprep.subr.bf16.mxu0 0
      %820 = vmatpush1.bf16.msra.mxu0 0
      %821 = vmatprep.subr.bf16.mxu0 0
      %822 = vmatpush1.bf16.msra.mxu0 0
      %823 = vmatprep.subr.bf16.mxu0 0
      %824 = vmatpush1.bf16.msra.mxu0 %v616
      %825 = vmatprep.subr.bf16.mxu0 0
      %826 = vmatpush1.bf16.msra.mxu0 %v615
      %827 = vmatprep.subr.bf16.mxu0 0
      %828 = vmatpush1.bf16.msra.mxu0 %v614
      %829 = vmatprep.subr.bf16.mxu0 0
      %830 = vmatpush2.bf16.msra.mxu0 0
      %831 = vmatprep.subr.bf16.mxu0 0
      %832 = vmatpush2.bf16.msra.mxu0 0
      %833 = vmatprep.subr.bf16.mxu0 0
      %834 = vmatpush2.bf16.msra.mxu0 0
      %835 = vmatprep.subr.bf16.mxu0 0
      %836 = vmatpush2.bf16.msra.mxu0 0
      %837 = vmatprep.subr.bf16.mxu0 0
      %838 = vmatpush2.bf16.msra.mxu0 0
      %839 = vmatprep.subr.bf16.mxu0 0
      %840 = vmatpush2.bf16.msra.mxu0 0
      %841 = vmatprep.subr.bf16.mxu0 0
      %842 = vmatpush2.bf16.msra.mxu0 0
      %843 = vmatprep.subr.bf16.mxu0 0
      %844 = vmatpush2.bf16.msra.mxu0 0
      %845 = vmatprep.mubr.bf16.mxu0 0
      %846 = vmatmul.mubr.bf16.gmra.mxu0 %v622
      %v847 = vpop.f32.mrf.mxu0
      %v848 = vadd.f32 0.0, %v847
      %v849 = vpop.f32.mrf.mxu0
      %v850 = vpop.f32.mrf.mxu0
      %v851 = vadd.f32 0.0, %v850
      %v852 = vpop.f32.mrf.mxu0
      %853 = vmatprep.mubr.bf16.mxu0 0
      %854 = vmatmul.mubr.bf16.gmra.mxu0 %v625
      %v855 = vpop.f32.mrf.mxu0
      %v856 = vadd.f32 0.0, %v855
      %v857 = vpop.f32.mrf.mxu0
      %v858 = vpop.f32.mrf.mxu0
      %v859 = vadd.f32 0.0, %v858
      %v860 = vpop.f32.mrf.mxu0
      %861 = vmatprep.mubr.bf16.mxu0 0
      %862 = vmatmul.mubr.bf16.gmra.mxu0 %v628
      %v863 = vpop.f32.mrf.mxu0
      %v864 = vadd.f32 0.0, %v863
      %v865 = vpop.f32.mrf.mxu0
      %v866 = vpop.f32.mrf.mxu0
      %v867 = vadd.f32 0.0, %v866
      %v868 = vpop.f32.mrf.mxu0
      %869 = vmatprep.mubr.bf16.mxu0 0
      %870 = vmatmul.mubr.bf16.gmra.mxu0 %v631
      %v871 = vpop.f32.mrf.mxu0
      %v872 = vadd.f32 0.0, %v871
      %v873 = vpop.f32.mrf.mxu0
      %v874 = vpop.f32.mrf.mxu0
      %v875 = vadd.f32 0.0, %v874
      %v876 = vpop.f32.mrf.mxu0
      %877 = vmatprep.mubr.bf16.mxu0 0
      %878 = vmatmul.mubr.bf16.gmra.mxu0 %v634
      %v879 = vpop.f32.mrf.mxu0
      %v880 = vadd.f32 0.0, %v879
      %v881 = vpop.f32.mrf.mxu0
      %v882 = vpop.f32.mrf.mxu0
      %v883 = vadd.f32 0.0, %v882
      %v884 = vpop.f32.mrf.mxu0
      %885 = vmatprep.mubr.bf16.mxu0 0
      %886 = vmatmul.mubr.bf16.gmra.mxu0 %v637
      %v887 = vpop.f32.mrf.mxu0
      %v888 = vadd.f32 0.0, %v887
      %v889 = vpop.f32.mrf.mxu0
      %v890 = vpop.f32.mrf.mxu0
      %v891 = vadd.f32 0.0, %v890
      %v892 = vpop.f32.mrf.mxu0
      %893 = vmatprep.mubr.bf16.mxu0 0
      %894 = vmatmul.mubr.bf16.gmra.mxu0 %v640
      %v895 = vpop.f32.mrf.mxu0
      %v896 = vadd.f32 0.0, %v895
      %v897 = vpop.f32.mrf.mxu0
      %v898 = vpop.f32.mrf.mxu0
      %v899 = vadd.f32 0.0, %v898
      %v900 = vpop.f32.mrf.mxu0
      %901 = vmatprep.mubr.bf16.mxu0 0
      %902 = vmatmul.mubr.bf16.gmra.mxu0 %v643
      %v903 = vpop.f32.mrf.mxu0
      %v904 = vadd.f32 0.0, %v903
      %v905 = vpop.f32.mrf.mxu0
      %v906 = vpop.f32.mrf.mxu0
      %v907 = vadd.f32 0.0, %v906
      %v908 = vpop.f32.mrf.mxu0
      %909 = vmatprep.mubr.bf16.mxu0 0
      %910 = vmatmul.mubr.bf16.gmra.mxu0 %v646
      %v911 = vpop.f32.mrf.mxu0
      %v912 = vadd.f32 0.0, %v911
      %v913 = vpop.f32.mrf.mxu0
      %v914 = vpop.f32.mrf.mxu0
      %v915 = vadd.f32 0.0, %v914
      %v916 = vpop.f32.mrf.mxu0
      %917 = vmatprep.mubr.bf16.mxu0 0
      %918 = vmatmul.mubr.bf16.gmra.mxu0 %v649
      %v919 = vpop.f32.mrf.mxu0
      %v920 = vadd.f32 0.0, %v919
      %v921 = vpop.f32.mrf.mxu0
      %v922 = vpop.f32.mrf.mxu0
      %v923 = vadd.f32 0.0, %v922
      %v924 = vpop.f32.mrf.mxu0
      %925 = vmatprep.mubr.bf16.mxu0 0
      %926 = vmatmul.mubr.bf16.gmra.mxu0 %v652
      %v927 = vpop.f32.mrf.mxu0
      %v928 = vadd.f32 0.0, %v927
      %v929 = vpop.f32.mrf.mxu0
      %v930 = vpop.f32.mrf.mxu0
      %v931 = vadd.f32 0.0, %v930
      %v932 = vpop.f32.mrf.mxu0
      %933 = vmatprep.mubr.bf16.mxu0 0
      %934 = vmatmul.mubr.bf16.gmra.mxu0 %v655
      %v935 = vpop.f32.mrf.mxu0
      %v936 = vadd.f32 0.0, %v935
      %v937 = vpop.f32.mrf.mxu0
      %v938 = vpop.f32.mrf.mxu0
      %v939 = vadd.f32 0.0, %v938
      %v940 = vpop.f32.mrf.mxu0
      %941 = vmatprep.mubr.bf16.mxu0 0
      %942 = vmatmul.mubr.bf16.gmra.mxu0 %v658
      %v943 = vpop.f32.mrf.mxu0
      %v944 = vadd.f32 0.0, %v943
      %v945 = vpop.f32.mrf.mxu0
      %v946 = vpop.f32.mrf.mxu0
      %v947 = vadd.f32 0.0, %v946
      %v948 = vpop.f32.mrf.mxu0
      %949 = vmatprep.mubr.bf16.mxu0 0
      %950 = vmatmul.mubr.bf16.gmra.mxu0 %v661
      %v951 = vpop.f32.mrf.mxu0
      %v952 = vadd.f32 0.0, %v951
      %v953 = vpop.f32.mrf.mxu0
      %v954 = vpop.f32.mrf.mxu0
      %v955 = vadd.f32 0.0, %v954
      %v956 = vpop.f32.mrf.mxu0
      %957 = vmatprep.mubr.bf16.mxu0 0
      %958 = vmatmul.mubr.bf16.gmra.mxu0 %v664
      %v959 = vpop.f32.mrf.mxu0
      %v960 = vadd.f32 0.0, %v959
      %v961 = vpop.f32.mrf.mxu0
      %v962 = vpop.f32.mrf.mxu0
      %v963 = vadd.f32 0.0, %v962
      %v964 = vpop.f32.mrf.mxu0
      %965 = vmatprep.mubr.bf16.mxu0 0
      %966 = vmatmul.mubr.bf16.gmra.mxu0 %v667
      %v967 = vpop.f32.mrf.mxu0
      %v968 = vadd.f32 0.0, %v967
      %v969 = vpop.f32.mrf.mxu0
      %v970 = vpop.f32.mrf.mxu0
      %v971 = vadd.f32 0.0, %v970
      %v972 = vpop.f32.mrf.mxu0
      %973 = vmatprep.mubr.bf16.mxu0 0
      %974 = vmatmul.mubr.bf16.gmra.mxu0 %v670
      %v975 = vpop.f32.mrf.mxu0
      %v976 = vadd.f32 0.0, %v975
      %v977 = vpop.f32.mrf.mxu0
      %v978 = vpop.f32.mrf.mxu0
      %v979 = vadd.f32 0.0, %v978
      %v980 = vpop.f32.mrf.mxu0
      %981 = vmatprep.mubr.bf16.mxu0 0
      %982 = vmatmul.mubr.bf16.gmra.mxu0 %v673
      %v983 = vpop.f32.mrf.mxu0
      %v984 = vadd.f32 0.0, %v983
      %v985 = vpop.f32.mrf.mxu0
      %v986 = vpop.f32.mrf.mxu0
      %v987 = vadd.f32 0.0, %v986
      %v988 = vpop.f32.mrf.mxu0
      %989 = vmatprep.mubr.bf16.mxu0 0
      %990 = vmatmul.mubr.bf16.gmra.mxu0 %v676
      %v991 = vpop.f32.mrf.mxu0
      %v992 = vadd.f32 0.0, %v991
      %v993 = vpop.f32.mrf.mxu0
      %v994 = vpop.f32.mrf.mxu0
      %v995 = vadd.f32 0.0, %v994
      %v996 = vpop.f32.mrf.mxu0
      %997 = vmatprep.mubr.bf16.mxu0 0
      %998 = vmatmul.mubr.bf16.gmra.mxu0 %v679
      %v999 = vpop.f32.mrf.mxu0
      %v1000 = vadd.f32 0.0, %v999
      %v1001 = vpop.f32.mrf.mxu0
      %v1002 = vpop.f32.mrf.mxu0
      %v1003 = vadd.f32 0.0, %v1002
      %v1004 = vpop.f32.mrf.mxu0
      %1005 = vmatprep.mubr.bf16.mxu0 0
      %1006 = vmatmul.mubr.bf16.gmra.mxu0 %v682
      %v1007 = vpop.f32.mrf.mxu0
      %v1008 = vadd.f32 0.0, %v1007
      %v1009 = vpop.f32.mrf.mxu0
      %v1010 = vpop.f32.mrf.mxu0
      %v1011 = vadd.f32 0.0, %v1010
      %v1012 = vpop.f32.mrf.mxu0
      %1013 = vmatprep.mubr.bf16.mxu0 0
      %1014 = vmatmul.mubr.bf16.gmra.mxu0 %v685
      %v1015 = vpop.f32.mrf.mxu0
      %v1016 = vadd.f32 0.0, %v1015
      %v1017 = vpop.f32.mrf.mxu0
      %v1018 = vpop.f32.mrf.mxu0
      %v1019 = vadd.f32 0.0, %v1018
      %v1020 = vpop.f32.mrf.mxu0
      %1021 = vmatprep.mubr.bf16.mxu0 0
      %1022 = vmatmul.mubr.bf16.gmra.mxu0 %v688
      %v1023 = vpop.f32.mrf.mxu0
      %v1024 = vadd.f32 0.0, %v1023
      %v1025 = vpop.f32.mrf.mxu0
      %v1026 = vpop.f32.mrf.mxu0
      %v1027 = vadd.f32 0.0, %v1026
      %v1028 = vpop.f32.mrf.mxu0
      %1029 = vmatprep.mubr.bf16.mxu0 0
      %1030 = vmatmul.mubr.bf16.gmra.mxu0 %v691
      %v1031 = vpop.f32.mrf.mxu0
      %v1032 = vadd.f32 0.0, %v1031
      %v1033 = vpop.f32.mrf.mxu0
      %v1034 = vpop.f32.mrf.mxu0
      %v1035 = vadd.f32 0.0, %v1034
      %v1036 = vpop.f32.mrf.mxu0
      %1037 = vmatprep.mubr.bf16.mxu0 0
      %1038 = vmatmul.mubr.bf16.gmra.mxu0 %v694
      %v1039 = vpop.f32.mrf.mxu0
      %v1040 = vadd.f32 0.0, %v1039
      %v1041 = vpop.f32.mrf.mxu0
      %v1042 = vpop.f32.mrf.mxu0
      %v1043 = vadd.f32 0.0, %v1042
      %v1044 = vpop.f32.mrf.mxu0
      %1045 = vmatprep.mubr.bf16.mxu0 0
      %1046 = vmatmul.mubr.bf16.gmra.mxu0 %v697
      %v1047 = vpop.f32.mrf.mxu0
      %v1048 = vadd.f32 0.0, %v1047
      %v1049 = vpop.f32.mrf.mxu0
      %v1050 = vpop.f32.mrf.mxu0
      %v1051 = vadd.f32 0.0, %v1050
      %v1052 = vpop.f32.mrf.mxu0
      %1053 = vmatprep.mubr.bf16.mxu0 0
      %1054 = vmatmul.mubr.bf16.gmra.mxu0 %v700
      %v1055 = vpop.f32.mrf.mxu0
      %v1056 = vadd.f32 0.0, %v1055
      %v1057 = vpop.f32.mrf.mxu0
      %v1058 = vpop.f32.mrf.mxu0
      %v1059 = vadd.f32 0.0, %v1058
      %v1060 = vpop.f32.mrf.mxu0
      %1061 = vmatprep.mubr.bf16.mxu0 0
      %1062 = vmatmul.mubr.bf16.gmra.mxu0 %v703
      %v1063 = vpop.f32.mrf.mxu0
      %v1064 = vadd.f32 0.0, %v1063
      %v1065 = vpop.f32.mrf.mxu0
      %v1066 = vpop.f32.mrf.mxu0
      %v1067 = vadd.f32 0.0, %v1066
      %v1068 = vpop.f32.mrf.mxu0
      %1069 = vmatprep.mubr.bf16.mxu0 0
      %1070 = vmatmul.mubr.bf16.gmra.mxu0 %v706
      %v1071 = vpop.f32.mrf.mxu0
      %v1072 = vadd.f32 0.0, %v1071
      %v1073 = vpop.f32.mrf.mxu0
      %v1074 = vpop.f32.mrf.mxu0
      %v1075 = vadd.f32 0.0, %v1074
      %v1076 = vpop.f32.mrf.mxu0
      %1077 = vmatprep.mubr.bf16.mxu0 0
      %1078 = vmatmul.mubr.bf16.gmra.mxu0 %v709
      %v1079 = vpop.f32.mrf.mxu0
      %v1080 = vadd.f32 0.0, %v1079
      %v1081 = vpop.f32.mrf.mxu0
      %v1082 = vpop.f32.mrf.mxu0
      %v1083 = vadd.f32 0.0, %v1082
      %v1084 = vpop.f32.mrf.mxu0
      %1085 = vmatprep.mubr.bf16.mxu0 0
      %1086 = vmatmul.mubr.bf16.gmra.mxu0 %v712
      %v1087 = vpop.f32.mrf.mxu0
      %v1088 = vadd.f32 0.0, %v1087
      %v1089 = vpop.f32.mrf.mxu0
      %v1090 = vpop.f32.mrf.mxu0
      %v1091 = vadd.f32 0.0, %v1090
      %v1092 = vpop.f32.mrf.mxu0
      %1093 = vmatprep.mubr.bf16.mxu0 0
      %1094 = vmatmul.mubr.bf16.gmra.mxu0 %v715
      %v1095 = vpop.f32.mrf.mxu0
      %v1096 = vadd.f32 0.0, %v1095
      %v1097 = vpop.f32.mrf.mxu0
      %v1098 = vpop.f32.mrf.mxu0
      %v1099 = vadd.f32 0.0, %v1098
      %v1100 = vpop.f32.mrf.mxu0
      %1101 = vmatprep.mubr.bf16.mxu0 0
      %1102 = vmatmul.mubr.bf16.gmra.mxu0 %v718
      %v1103 = vpop.f32.mrf.mxu0
      %v1104 = vadd.f32 0.0, %v1103
      %v1105 = vpop.f32.mrf.mxu0
      %v1106 = vpop.f32.mrf.mxu0
      %v1107 = vadd.f32 0.0, %v1106
      %v1108 = vpop.f32.mrf.mxu0
      %1109 = vmatprep.mubr.bf16.mxu0 0
      %1110 = vmatmul.mubr.bf16.gmra.mxu0 %v721
      %v1111 = vpop.f32.mrf.mxu0
      %v1112 = vadd.f32 0.0, %v1111
      %v1113 = vpop.f32.mrf.mxu0
      %v1114 = vpop.f32.mrf.mxu0
      %v1115 = vadd.f32 0.0, %v1114
      %v1116 = vpop.f32.mrf.mxu0
      %1117 = vmatprep.mubr.bf16.mxu0 0
      %1118 = vmatmul.mubr.bf16.gmra.mxu0 %v724
      %v1119 = vpop.f32.mrf.mxu0
      %v1120 = vadd.f32 0.0, %v1119
      %v1121 = vpop.f32.mrf.mxu0
      %v1122 = vpop.f32.mrf.mxu0
      %v1123 = vadd.f32 0.0, %v1122
      %v1124 = vpop.f32.mrf.mxu0
      %1125 = vmatprep.mubr.bf16.mxu0 0
      %1126 = vmatmul.mubr.bf16.gmra.mxu0 %v727
      %v1127 = vpop.f32.mrf.mxu0
      %v1128 = vadd.f32 0.0, %v1127
      %v1129 = vpop.f32.mrf.mxu0
      %v1130 = vpop.f32.mrf.mxu0
      %v1131 = vadd.f32 0.0, %v1130
      %v1132 = vpop.f32.mrf.mxu0
      %1133 = vmatprep.mubr.bf16.mxu0 0
      %1134 = vmatmul.mubr.bf16.gmra.mxu0 %v730
      %v1135 = vpop.f32.mrf.mxu0
      %v1136 = vadd.f32 0.0, %v1135
      %v1137 = vpop.f32.mrf.mxu0
      %v1138 = vpop.f32.mrf.mxu0
      %v1139 = vadd.f32 0.0, %v1138
      %v1140 = vpop.f32.mrf.mxu0
      %1141 = vmatprep.mubr.bf16.mxu0 0
      %1142 = vmatmul.mubr.bf16.gmra.mxu0 %v733
      %v1143 = vpop.f32.mrf.mxu0
      %v1144 = vadd.f32 0.0, %v1143
      %v1145 = vpop.f32.mrf.mxu0
      %v1146 = vpop.f32.mrf.mxu0
      %v1147 = vadd.f32 0.0, %v1146
      %v1148 = vpop.f32.mrf.mxu0
      %1149 = vmatprep.mubr.bf16.mxu0 0
      %1150 = vmatmul.mubr.bf16.gmra.mxu0 %v736
      %v1151 = vpop.f32.mrf.mxu0
      %v1152 = vadd.f32 0.0, %v1151
      %v1153 = vpop.f32.mrf.mxu0
      %v1154 = vpop.f32.mrf.mxu0
      %v1155 = vadd.f32 0.0, %v1154
      %v1156 = vpop.f32.mrf.mxu0
      %1157 = vmatprep.mubr.bf16.mxu0 0
      %1158 = vmatmul.mubr.bf16.gmra.mxu0 %v739
      %v1159 = vpop.f32.mrf.mxu0
      %v1160 = vadd.f32 0.0, %v1159
      %v1161 = vpop.f32.mrf.mxu0
      %v1162 = vpop.f32.mrf.mxu0
      %v1163 = vadd.f32 0.0, %v1162
      %v1164 = vpop.f32.mrf.mxu0
      %1165 = vmatprep.mubr.bf16.mxu0 0
      %1166 = vmatmul.mubr.bf16.gmra.mxu0 %v742
      %v1167 = vpop.f32.mrf.mxu0
      %v1168 = vadd.f32 0.0, %v1167
      %v1169 = vpop.f32.mrf.mxu0
      %v1170 = vpop.f32.mrf.mxu0
      %v1171 = vadd.f32 0.0, %v1170
      %v1172 = vpop.f32.mrf.mxu0
      %1173 = vmatprep.mubr.bf16.mxu0 0
      %1174 = vmatmul.mubr.bf16.gmra.mxu0 %v745
      %v1175 = vpop.f32.mrf.mxu0
      %v1176 = vadd.f32 0.0, %v1175
      %v1177 = vpop.f32.mrf.mxu0
      %v1178 = vpop.f32.mrf.mxu0
      %v1179 = vadd.f32 0.0, %v1178
      %v1180 = vpop.f32.mrf.mxu0
      %1181 = vmatprep.mubr.bf16.mxu0 0
      %1182 = vmatmul.mubr.bf16.gmra.mxu0 %v748
      %v1183 = vpop.f32.mrf.mxu0
      %v1184 = vadd.f32 0.0, %v1183
      %v1185 = vpop.f32.mrf.mxu0
      %v1186 = vpop.f32.mrf.mxu0
      %v1187 = vadd.f32 0.0, %v1186
      %v1188 = vpop.f32.mrf.mxu0
      %1189 = vmatprep.mubr.bf16.mxu0 0
      %1190 = vmatmul.mubr.bf16.gmra.mxu0 %v751
      %v1191 = vpop.f32.mrf.mxu0
      %v1192 = vadd.f32 0.0, %v1191
      %v1193 = vpop.f32.mrf.mxu0
      %v1194 = vpop.f32.mrf.mxu0
      %v1195 = vadd.f32 0.0, %v1194
      %v1196 = vpop.f32.mrf.mxu0
      %1197 = vmatprep.mubr.bf16.mxu0 0
      %1198 = vmatmul.mubr.bf16.gmra.mxu0 %v754
      %v1199 = vpop.f32.mrf.mxu0
      %v1200 = vadd.f32 0.0, %v1199
      %v1201 = vpop.f32.mrf.mxu0
      %v1202 = vpop.f32.mrf.mxu0
      %v1203 = vadd.f32 0.0, %v1202
      %v1204 = vpop.f32.mrf.mxu0
      %1205 = vmatprep.mubr.bf16.mxu0 0
      %1206 = vmatmul.mubr.bf16.gmra.mxu0 %v757
      %v1207 = vpop.f32.mrf.mxu0
      %v1208 = vadd.f32 0.0, %v1207
      %v1209 = vpop.f32.mrf.mxu0
      %v1210 = vpop.f32.mrf.mxu0
      %v1211 = vadd.f32 0.0, %v1210
      %v1212 = vpop.f32.mrf.mxu0
      %1213 = vmatprep.mubr.bf16.mxu0 0
      %1214 = vmatmul.mubr.bf16.gmra.mxu0 %v760
      %v1215 = vpop.f32.mrf.mxu0
      %v1216 = vadd.f32 0.0, %v1215
      %v1217 = vpop.f32.mrf.mxu0
      %v1218 = vpop.f32.mrf.mxu0
      %v1219 = vadd.f32 0.0, %v1218
      %v1220 = vpop.f32.mrf.mxu0
      %1221 = vmatprep.mubr.bf16.mxu0 0
      %1222 = vmatmul.mubr.bf16.gmra.mxu0 %v763
      %v1223 = vpop.f32.mrf.mxu0
      %v1224 = vadd.f32 0.0, %v1223
      %v1225 = vpop.f32.mrf.mxu0
      %v1226 = vpop.f32.mrf.mxu0
      %v1227 = vadd.f32 0.0, %v1226
      %v1228 = vpop.f32.mrf.mxu0
      %1229 = vmatprep.mubr.bf16.mxu0 0
      %1230 = vmatmul.mubr.bf16.gmra.mxu0 %v766
      %v1231 = vpop.f32.mrf.mxu0
      %v1232 = vadd.f32 0.0, %v1231
      %v1233 = vpop.f32.mrf.mxu0
      %v1234 = vpop.f32.mrf.mxu0
      %v1235 = vadd.f32 0.0, %v1234
      %v1236 = vpop.f32.mrf.mxu0
      %1237 = vmatprep.mubr.bf16.mxu0 0
      %1238 = vmatmul.mubr.bf16.gmra.mxu0 %v769
      %v1239 = vpop.f32.mrf.mxu0
      %v1240 = vadd.f32 0.0, %v1239
      %v1241 = vpop.f32.mrf.mxu0
      %v1242 = vpop.f32.mrf.mxu0
      %v1243 = vadd.f32 0.0, %v1242
      %v1244 = vpop.f32.mrf.mxu0
      %1245 = vmatprep.mubr.bf16.mxu0 0
      %1246 = vmatmul.mubr.bf16.gmra.mxu0 %v772
      %v1247 = vpop.f32.mrf.mxu0
      %v1248 = vadd.f32 0.0, %v1247
      %v1249 = vpop.f32.mrf.mxu0
      %v1250 = vpop.f32.mrf.mxu0
      %v1251 = vadd.f32 0.0, %v1250
      %v1252 = vpop.f32.mrf.mxu0
      %1253 = vmatprep.mubr.bf16.mxu0 0
      %1254 = vmatmul.mubr.bf16.gmra.mxu0 %v775
      %v1255 = vpop.f32.mrf.mxu0
      %v1256 = vadd.f32 0.0, %v1255
      %v1257 = vpop.f32.mrf.mxu0
      %v1258 = vpop.f32.mrf.mxu0
      %v1259 = vadd.f32 0.0, %v1258
      %v1260 = vpop.f32.mrf.mxu0
      %1261 = vmatprep.mubr.bf16.mxu0 0
      %1262 = vmatmul.mubr.bf16.gmra.mxu0 %v778
      %v1263 = vpop.f32.mrf.mxu0
      %v1264 = vadd.f32 0.0, %v1263
      %v1265 = vpop.f32.mrf.mxu0
      %v1266 = vpop.f32.mrf.mxu0
      %v1267 = vadd.f32 0.0, %v1266
      %v1268 = vpop.f32.mrf.mxu0
      %1269 = vmatprep.mubr.bf16.mxu0 0
      %1270 = vmatmul.mubr.bf16.gmra.mxu0 %v781
      %v1271 = vpop.f32.mrf.mxu0
      %v1272 = vadd.f32 0.0, %v1271
      %v1273 = vpop.f32.mrf.mxu0
      %v1274 = vpop.f32.mrf.mxu0
      %v1275 = vadd.f32 0.0, %v1274
      %v1276 = vpop.f32.mrf.mxu0
      %1277 = vmatprep.mubr.bf16.mxu0 0
      %1278 = vmatmul.mubr.bf16.gmra.mxu0 %v784
      %v1279 = vpop.f32.mrf.mxu0
      %v1280 = vadd.f32 0.0, %v1279
      %v1281 = vpop.f32.mrf.mxu0
      %v1282 = vpop.f32.mrf.mxu0
      %v1283 = vadd.f32 0.0, %v1282
      %v1284 = vpop.f32.mrf.mxu0
      %1285 = vmatprep.mubr.bf16.mxu0 0
      %1286 = vmatmul.mubr.bf16.gmra.mxu0 %v787
      %v1287 = vpop.f32.mrf.mxu0
      %v1288 = vadd.f32 0.0, %v1287
      %v1289 = vpop.f32.mrf.mxu0
      %v1290 = vpop.f32.mrf.mxu0
      %v1291 = vadd.f32 0.0, %v1290
      %v1292 = vpop.f32.mrf.mxu0
      %1293 = vmatprep.mubr.bf16.mxu0 0
      %1294 = vmatmul.mubr.bf16.gmra.mxu0 %v790
      %v1295 = vpop.f32.mrf.mxu0
      %v1296 = vadd.f32 0.0, %v1295
      %v1297 = vpop.f32.mrf.mxu0
      %v1298 = vpop.f32.mrf.mxu0
      %v1299 = vadd.f32 0.0, %v1298
      %v1300 = vpop.f32.mrf.mxu0
      %1301 = vmatprep.mubr.bf16.mxu0 0
      %1302 = vmatmul.mubr.bf16.gmra.mxu0 %v793
      %v1303 = vpop.f32.mrf.mxu0
      %v1304 = vadd.f32 0.0, %v1303
      %v1305 = vpop.f32.mrf.mxu0
      %v1306 = vpop.f32.mrf.mxu0
      %v1307 = vadd.f32 0.0, %v1306
      %v1308 = vpop.f32.mrf.mxu0
      %1309 = vmatprep.mubr.bf16.mxu0 0
      %1310 = vmatmul.mubr.bf16.gmra.mxu0 %v796
      %v1311 = vpop.f32.mrf.mxu0
      %v1312 = vadd.f32 0.0, %v1311
      %v1313 = vpop.f32.mrf.mxu0
      %v1314 = vpop.f32.mrf.mxu0
      %v1315 = vadd.f32 0.0, %v1314
      %v1316 = vpop.f32.mrf.mxu0
      %1317 = vmatprep.mubr.bf16.mxu0 0
      %1318 = vmatmul.mubr.bf16.gmra.mxu0 %v799
      %v1319 = vpop.f32.mrf.mxu0
      %v1320 = vadd.f32 0.0, %v1319
      %v1321 = vpop.f32.mrf.mxu0
      %v1322 = vpop.f32.mrf.mxu0
      %v1323 = vadd.f32 0.0, %v1322
      %v1324 = vpop.f32.mrf.mxu0
      %1325 = vmatprep.mubr.bf16.mxu0 0
      %1326 = vmatmul.mubr.bf16.gmra.mxu0 %v802
      %v1327 = vpop.f32.mrf.mxu0
      %v1328 = vadd.f32 0.0, %v1327
      %v1329 = vpop.f32.mrf.mxu0
      %v1330 = vpop.f32.mrf.mxu0
      %v1331 = vadd.f32 0.0, %v1330
      %v1332 = vpop.f32.mrf.mxu0
      %1333 = vmatprep.mubr.bf16.mxu0 0
      %1334 = vmatmul.mubr.bf16.gmra.mxu0 %v805
      %v1335 = vpop.f32.mrf.mxu0
      %v1336 = vadd.f32 0.0, %v1335
      %v1337 = vpop.f32.mrf.mxu0
      %v1338 = vpop.f32.mrf.mxu0
      %v1339 = vadd.f32 0.0, %v1338
      %v1340 = vpop.f32.mrf.mxu0
      %1341 = vmatprep.mubr.bf16.mxu0 0
      %1342 = vmatmul.mubr.bf16.gmra.mxu0 %v808
      %v1343 = vpop.f32.mrf.mxu0
      %v1344 = vadd.f32 0.0, %v1343
      %v1345 = vpop.f32.mrf.mxu0
      %v1346 = vpop.f32.mrf.mxu0
      %v1347 = vadd.f32 0.0, %v1346
      %v1348 = vpop.f32.mrf.mxu0
      %1349 = vmatprep.mubr.bf16.mxu0 0
      %1350 = vmatmul.mubr.bf16.gmra.mxu0 %v811
      %v1351 = vpop.f32.mrf.mxu0
      %v1352 = vadd.f32 0.0, %v1351
      %v1353 = vpop.f32.mrf.mxu0
      %v1354 = vpop.f32.mrf.mxu0
      %v1355 = vadd.f32 0.0, %v1354
      %v1356 = vpop.f32.mrf.mxu0
      %1357 = vdwg.mxu0
      %vm1358 = vcmp.gt.f32.partialorder %v848, 0.0
      %vm1359 = vcmp.gt.f32.partialorder %v851, 0.0
      %vm1360 = vcmp.gt.f32.partialorder %v856, 0.0
      %vm1361 = vcmp.gt.f32.partialorder %v859, 0.0
      %vm1362 = vcmp.gt.f32.partialorder %v864, 0.0
      %vm1363 = vcmp.gt.f32.partialorder %v867, 0.0
      %vm1364 = vcmp.gt.f32.partialorder %v872, 0.0
      %vm1365 = vcmp.gt.f32.partialorder %v875, 0.0
      %vm1366 = vcmp.gt.f32.partialorder %v880, 0.0
      %vm1367 = vcmp.gt.f32.partialorder %v883, 0.0
      %vm1368 = vcmp.gt.f32.partialorder %v888, 0.0
      %vm1369 = vcmp.gt.f32.partialorder %v891, 0.0
      %vm1370 = vcmp.gt.f32.partialorder %v896, 0.0
      %vm1371 = vcmp.gt.f32.partialorder %v899, 0.0
      %vm1372 = vcmp.gt.f32.partialorder %v904, 0.0
      %vm1373 = vcmp.gt.f32.partialorder %v907, 0.0
      %vm1374 = vcmp.gt.f32.partialorder %v912, 0.0
      %vm1375 = vcmp.gt.f32.partialorder %v915, 0.0
      %vm1376 = vcmp.gt.f32.partialorder %v920, 0.0
      %vm1377 = vcmp.gt.f32.partialorder %v923, 0.0
      %vm1378 = vcmp.gt.f32.partialorder %v928, 0.0
      %vm1379 = vcmp.gt.f32.partialorder %v931, 0.0
      %vm1380 = vcmp.gt.f32.partialorder %v936, 0.0
      %vm1381 = vcmp.gt.f32.partialorder %v939, 0.0
      %vm1382 = vcmp.gt.f32.partialorder %v944, 0.0
      %vm1383 = vcmp.gt.f32.partialorder %v947, 0.0
      %vm1384 = vcmp.gt.f32.partialorder %v952, 0.0
      %vm1385 = vcmp.gt.f32.partialorder %v955, 0.0
      %vm1386 = vcmp.gt.f32.partialorder %v960, 0.0
      %vm1387 = vcmp.gt.f32.partialorder %v963, 0.0
      %vm1388 = vcmp.gt.f32.partialorder %v968, 0.0
      %vm1389 = vcmp.gt.f32.partialorder %v971, 0.0
      %vm1390 = vcmp.gt.f32.partialorder %v976, 0.0
      %vm1391 = vcmp.gt.f32.partialorder %v979, 0.0
      %vm1392 = vcmp.gt.f32.partialorder %v984, 0.0
      %vm1393 = vcmp.gt.f32.partialorder %v987, 0.0
      %vm1394 = vcmp.gt.f32.partialorder %v992, 0.0
      %vm1395 = vcmp.gt.f32.partialorder %v995, 0.0
      %vm1396 = vcmp.gt.f32.partialorder %v1000, 0.0
      %vm1397 = vcmp.gt.f32.partialorder %v1003, 0.0
      %vm1398 = vcmp.gt.f32.partialorder %v1008, 0.0
      %vm1399 = vcmp.gt.f32.partialorder %v1011, 0.0
      %vm1400 = vcmp.gt.f32.partialorder %v1016, 0.0
      %vm1401 = vcmp.gt.f32.partialorder %v1019, 0.0
      %vm1402 = vcmp.gt.f32.partialorder %v1024, 0.0
      %vm1403 = vcmp.gt.f32.partialorder %v1027, 0.0
      %vm1404 = vcmp.gt.f32.partialorder %v1032, 0.0
      %vm1405 = vcmp.gt.f32.partialorder %v1035, 0.0
      %vm1406 = vcmp.gt.f32.partialorder %v1040, 0.0
      %vm1407 = vcmp.gt.f32.partialorder %v1043, 0.0
      %vm1408 = vcmp.gt.f32.partialorder %v1048, 0.0
      %vm1409 = vcmp.gt.f32.partialorder %v1051, 0.0
      %vm1410 = vcmp.gt.f32.partialorder %v1056, 0.0
      %vm1411 = vcmp.gt.f32.partialorder %v1059, 0.0
      %vm1412 = vcmp.gt.f32.partialorder %v1064, 0.0
      %vm1413 = vcmp.gt.f32.partialorder %v1067, 0.0
      %vm1414 = vcmp.gt.f32.partialorder %v1072, 0.0
      %vm1415 = vcmp.gt.f32.partialorder %v1075, 0.0
      %vm1416 = vcmp.gt.f32.partialorder %v1080, 0.0
      %vm1417 = vcmp.gt.f32.partialorder %v1083, 0.0
      %vm1418 = vcmp.gt.f32.partialorder %v1088, 0.0
      %vm1419 = vcmp.gt.f32.partialorder %v1091, 0.0
      %vm1420 = vcmp.gt.f32.partialorder %v1096, 0.0
      %vm1421 = vcmp.gt.f32.partialorder %v1099, 0.0
      %vm1422 = vcmp.gt.f32.partialorder %v1104, 0.0
      %vm1423 = vcmp.gt.f32.partialorder %v1107, 0.0
      %vm1424 = vcmp.gt.f32.partialorder %v1112, 0.0
      %vm1425 = vcmp.gt.f32.partialorder %v1115, 0.0
      %vm1426 = vcmp.gt.f32.partialorder %v1120, 0.0
      %vm1427 = vcmp.gt.f32.partialorder %v1123, 0.0
      %vm1428 = vcmp.gt.f32.partialorder %v1128, 0.0
      %vm1429 = vcmp.gt.f32.partialorder %v1131, 0.0
      %vm1430 = vcmp.gt.f32.partialorder %v1136, 0.0
      %vm1431 = vcmp.gt.f32.partialorder %v1139, 0.0
      %vm1432 = vcmp.gt.f32.partialorder %v1144, 0.0
      %vm1433 = vcmp.gt.f32.partialorder %v1147, 0.0
      %vm1434 = vcmp.gt.f32.partialorder %v1152, 0.0
      %vm1435 = vcmp.gt.f32.partialorder %v1155, 0.0
      %vm1436 = vcmp.gt.f32.partialorder %v1160, 0.0
      %vm1437 = vcmp.gt.f32.partialorder %v1163, 0.0
      %vm1438 = vcmp.gt.f32.partialorder %v1168, 0.0
      %vm1439 = vcmp.gt.f32.partialorder %v1171, 0.0
      %vm1440 = vcmp.gt.f32.partialorder %v1176, 0.0
      %vm1441 = vcmp.gt.f32.partialorder %v1179, 0.0
      %vm1442 = vcmp.gt.f32.partialorder %v1184, 0.0
      %vm1443 = vcmp.gt.f32.partialorder %v1187, 0.0
      %vm1444 = vcmp.gt.f32.partialorder %v1192, 0.0
      %vm1445 = vcmp.gt.f32.partialorder %v1195, 0.0
      %vm1446 = vcmp.gt.f32.partialorder %v1200, 0.0
      %vm1447 = vcmp.gt.f32.partialorder %v1203, 0.0
      %vm1448 = vcmp.gt.f32.partialorder %v1208, 0.0
      %vm1449 = vcmp.gt.f32.partialorder %v1211, 0.0
      %vm1450 = vcmp.gt.f32.partialorder %v1216, 0.0
      %vm1451 = vcmp.gt.f32.partialorder %v1219, 0.0
      %vm1452 = vcmp.gt.f32.partialorder %v1224, 0.0
      %vm1453 = vcmp.gt.f32.partialorder %v1227, 0.0
      %vm1454 = vcmp.gt.f32.partialorder %v1232, 0.0
      %vm1455 = vcmp.gt.f32.partialorder %v1235, 0.0
      %vm1456 = vcmp.gt.f32.partialorder %v1240, 0.0
      %vm1457 = vcmp.gt.f32.partialorder %v1243, 0.0
      %vm1458 = vcmp.gt.f32.partialorder %v1248, 0.0
      %vm1459 = vcmp.gt.f32.partialorder %v1251, 0.0
      %vm1460 = vcmp.gt.f32.partialorder %v1256, 0.0
      %vm1461 = vcmp.gt.f32.partialorder %v1259, 0.0
      %vm1462 = vcmp.gt.f32.partialorder %v1264, 0.0
      %vm1463 = vcmp.gt.f32.partialorder %v1267, 0.0
      %vm1464 = vcmp.gt.f32.partialorder %v1272, 0.0
      %vm1465 = vcmp.gt.f32.partialorder %v1275, 0.0
      %vm1466 = vcmp.gt.f32.partialorder %v1280, 0.0
      %vm1467 = vcmp.gt.f32.partialorder %v1283, 0.0
      %vm1468 = vcmp.gt.f32.partialorder %v1288, 0.0
      %vm1469 = vcmp.gt.f32.partialorder %v1291, 0.0
      %vm1470 = vcmp.gt.f32.partialorder %v1296, 0.0
      %vm1471 = vcmp.gt.f32.partialorder %v1299, 0.0
      %vm1472 = vcmp.gt.f32.partialorder %v1304, 0.0
      %vm1473 = vcmp.gt.f32.partialorder %v1307, 0.0
      %vm1474 = vcmp.gt.f32.partialorder %v1312, 0.0
      %vm1475 = vcmp.gt.f32.partialorder %v1315, 0.0
      %vm1476 = vcmp.gt.f32.partialorder %v1320, 0.0
      %vm1477 = vcmp.gt.f32.partialorder %v1323, 0.0
      %vm1478 = vcmp.gt.f32.partialorder %v1328, 0.0
      %vm1479 = vcmp.gt.f32.partialorder %v1331, 0.0
      %vm1480 = vcmp.gt.f32.partialorder %v1336, 0.0
      %vm1481 = vcmp.gt.f32.partialorder %v1339, 0.0
      %vm1482 = vcmp.gt.f32.partialorder %v1344, 0.0
      %vm1483 = vcmp.gt.f32.partialorder %v1347, 0.0
      %vm1484 = vcmp.gt.f32.partialorder %v1352, 0.0
      %vm1485 = vcmp.gt.f32.partialorder %v1355, 0.0
      %v1486 = vmul.f32 %v848, 0.2
      %v1487 = vmul.f32 %v851, 0.2
      %v1488 = vmul.f32 %v856, 0.2
      %v1489 = vmul.f32 %v859, 0.2
      %v1490 = vmul.f32 %v864, 0.2
      %v1491 = vmul.f32 %v867, 0.2
      %v1492 = vmul.f32 %v872, 0.2
      %v1493 = vmul.f32 %v875, 0.2
      %v1494 = vmul.f32 %v880, 0.2
      %v1495 = vmul.f32 %v883, 0.2
      %v1496 = vmul.f32 %v888, 0.2
      %v1497 = vmul.f32 %v891, 0.2
      %v1498 = vmul.f32 %v896, 0.2
      %v1499 = vmul.f32 %v899, 0.2
      %v1500 = vmul.f32 %v904, 0.2
      %v1501 = vmul.f32 %v907, 0.2
      %v1502 = vmul.f32 %v912, 0.2
      %v1503 = vmul.f32 %v915, 0.2
      %v1504 = vmul.f32 %v920, 0.2
      %v1505 = vmul.f32 %v923, 0.2
      %v1506 = vmul.f32 %v928, 0.2
      %v1507 = vmul.f32 %v931, 0.2
      %v1508 = vmul.f32 %v936, 0.2
      %v1509 = vmul.f32 %v939, 0.2
      %v1510 = vmul.f32 %v944, 0.2
      %v1511 = vmul.f32 %v947, 0.2
      %v1512 = vmul.f32 %v952, 0.2
      %v1513 = vmul.f32 %v955, 0.2
      %v1514 = vmul.f32 %v960, 0.2
      %v1515 = vmul.f32 %v963, 0.2
      %v1516 = vmul.f32 %v968, 0.2
      %v1517 = vmul.f32 %v971, 0.2
      %v1518 = vmul.f32 %v976, 0.2
      %v1519 = vmul.f32 %v979, 0.2
      %v1520 = vmul.f32 %v984, 0.2
      %v1521 = vmul.f32 %v987, 0.2
      %v1522 = vmul.f32 %v992, 0.2
      %v1523 = vmul.f32 %v995, 0.2
      %v1524 = vmul.f32 %v1000, 0.2
      %v1525 = vmul.f32 %v1003, 0.2
      %v1526 = vmul.f32 %v1008, 0.2
      %v1527 = vmul.f32 %v1011, 0.2
      %v1528 = vmul.f32 %v1016, 0.2
      %v1529 = vmul.f32 %v1019, 0.2
      %v1530 = vmul.f32 %v1024, 0.2
      %v1531 = vmul.f32 %v1027, 0.2
      %v1532 = vmul.f32 %v1032, 0.2
      %v1533 = vmul.f32 %v1035, 0.2
      %v1534 = vmul.f32 %v1040, 0.2
      %v1535 = vmul.f32 %v1043, 0.2
      %v1536 = vmul.f32 %v1048, 0.2
      %v1537 = vmul.f32 %v1051, 0.2
      %v1538 = vmul.f32 %v1056, 0.2
      %v1539 = vmul.f32 %v1059, 0.2
      %v1540 = vmul.f32 %v1064, 0.2
      %v1541 = vmul.f32 %v1067, 0.2
      %v1542 = vmul.f32 %v1072, 0.2
      %v1543 = vmul.f32 %v1075, 0.2
      %v1544 = vmul.f32 %v1080, 0.2
      %v1545 = vmul.f32 %v1083, 0.2
      %v1546 = vmul.f32 %v1088, 0.2
      %v1547 = vmul.f32 %v1091, 0.2
      %v1548 = vmul.f32 %v1096, 0.2
      %v1549 = vmul.f32 %v1099, 0.2
      %v1550 = vmul.f32 %v1104, 0.2
      %v1551 = vmul.f32 %v1107, 0.2
      %v1552 = vmul.f32 %v1112, 0.2
      %v1553 = vmul.f32 %v1115, 0.2
      %v1554 = vmul.f32 %v1120, 0.2
      %v1555 = vmul.f32 %v1123, 0.2
      %v1556 = vmul.f32 %v1128, 0.2
      %v1557 = vmul.f32 %v1131, 0.2
      %v1558 = vmul.f32 %v1136, 0.2
      %v1559 = vmul.f32 %v1139, 0.2
      %v1560 = vmul.f32 %v1144, 0.2
      %v1561 = vmul.f32 %v1147, 0.2
      %v1562 = vmul.f32 %v1152, 0.2
      %v1563 = vmul.f32 %v1155, 0.2
      %v1564 = vmul.f32 %v1160, 0.2
      %v1565 = vmul.f32 %v1163, 0.2
      %v1566 = vmul.f32 %v1168, 0.2
      %v1567 = vmul.f32 %v1171, 0.2
      %v1568 = vmul.f32 %v1176, 0.2
      %v1569 = vmul.f32 %v1179, 0.2
      %v1570 = vmul.f32 %v1184, 0.2
      %v1571 = vmul.f32 %v1187, 0.2
      %v1572 = vmul.f32 %v1192, 0.2
      %v1573 = vmul.f32 %v1195, 0.2
      %v1574 = vmul.f32 %v1200, 0.2
      %v1575 = vmul.f32 %v1203, 0.2
      %v1576 = vmul.f32 %v1208, 0.2
      %v1577 = vmul.f32 %v1211, 0.2
      %v1578 = vmul.f32 %v1216, 0.2
      %v1579 = vmul.f32 %v1219, 0.2
      %v1580 = vmul.f32 %v1224, 0.2
      %v1581 = vmul.f32 %v1227, 0.2
      %v1582 = vmul.f32 %v1232, 0.2
      %v1583 = vmul.f32 %v1235, 0.2
      %v1584 = vmul.f32 %v1240, 0.2
      %v1585 = vmul.f32 %v1243, 0.2
      %v1586 = vmul.f32 %v1248, 0.2
      %v1587 = vmul.f32 %v1251, 0.2
      %v1588 = vmul.f32 %v1256, 0.2
      %v1589 = vmul.f32 %v1259, 0.2
      %v1590 = vmul.f32 %v1264, 0.2
      %v1591 = vmul.f32 %v1267, 0.2
      %v1592 = vmul.f32 %v1272, 0.2
      %v1593 = vmul.f32 %v1275, 0.2
      %v1594 = vmul.f32 %v1280, 0.2
      %v1595 = vmul.f32 %v1283, 0.2
      %v1596 = vmul.f32 %v1288, 0.2
      %v1597 = vmul.f32 %v1291, 0.2
      %v1598 = vmul.f32 %v1296, 0.2
      %v1599 = vmul.f32 %v1299, 0.2
      %v1600 = vmul.f32 %v1304, 0.2
      %v1601 = vmul.f32 %v1307, 0.2
      %v1602 = vmul.f32 %v1312, 0.2
      %v1603 = vmul.f32 %v1315, 0.2
      %v1604 = vmul.f32 %v1320, 0.2
      %v1605 = vmul.f32 %v1323, 0.2
      %v1606 = vmul.f32 %v1328, 0.2
      %v1607 = vmul.f32 %v1331, 0.2
      %v1608 = vmul.f32 %v1336, 0.2
      %v1609 = vmul.f32 %v1339, 0.2
      %v1610 = vmul.f32 %v1344, 0.2
      %v1611 = vmul.f32 %v1347, 0.2
      %v1612 = vmul.f32 %v1352, 0.2
      %v1613 = vmul.f32 %v1355, 0.2
      %v1614 = vsel %vm1358, %v848, %v1486
      %v1615 = vsel %vm1359, %v851, %v1487
      %v1616 = vsel %vm1360, %v856, %v1488
      %v1617 = vsel %vm1361, %v859, %v1489
      %v1618 = vsel %vm1362, %v864, %v1490
      %v1619 = vsel %vm1363, %v867, %v1491
      %v1620 = vsel %vm1364, %v872, %v1492
      %v1621 = vsel %vm1365, %v875, %v1493
      %v1622 = vsel %vm1366, %v880, %v1494
      %v1623 = vsel %vm1367, %v883, %v1495
      %v1624 = vsel %vm1368, %v888, %v1496
      %v1625 = vsel %vm1369, %v891, %v1497
      %v1626 = vsel %vm1370, %v896, %v1498
      %v1627 = vsel %vm1371, %v899, %v1499
      %v1628 = vsel %vm1372, %v904, %v1500
      %v1629 = vsel %vm1373, %v907, %v1501
      %v1630 = vsel %vm1374, %v912, %v1502
      %v1631 = vsel %vm1375, %v915, %v1503
      %v1632 = vsel %vm1376, %v920, %v1504
      %v1633 = vsel %vm1377, %v923, %v1505
      %v1634 = vsel %vm1378, %v928, %v1506
      %v1635 = vsel %vm1379, %v931, %v1507
      %v1636 = vsel %vm1380, %v936, %v1508
      %v1637 = vsel %vm1381, %v939, %v1509
      %v1638 = vsel %vm1382, %v944, %v1510
      %v1639 = vsel %vm1383, %v947, %v1511
      %v1640 = vsel %vm1384, %v952, %v1512
      %v1641 = vsel %vm1385, %v955, %v1513
      %v1642 = vsel %vm1386, %v960, %v1514
      %v1643 = vsel %vm1387, %v963, %v1515
      %v1644 = vsel %vm1388, %v968, %v1516
      %v1645 = vsel %vm1389, %v971, %v1517
      %v1646 = vsel %vm1390, %v976, %v1518
      %v1647 = vsel %vm1391, %v979, %v1519
      %v1648 = vsel %vm1392, %v984, %v1520
      %v1649 = vsel %vm1393, %v987, %v1521
      %v1650 = vsel %vm1394, %v992, %v1522
      %v1651 = vsel %vm1395, %v995, %v1523
      %v1652 = vsel %vm1396, %v1000, %v1524
      %v1653 = vsel %vm1397, %v1003, %v1525
      %v1654 = vsel %vm1398, %v1008, %v1526
      %v1655 = vsel %vm1399, %v1011, %v1527
      %v1656 = vsel %vm1400, %v1016, %v1528
      %v1657 = vsel %vm1401, %v1019, %v1529
      %v1658 = vsel %vm1402, %v1024, %v1530
      %v1659 = vsel %vm1403, %v1027, %v1531
      %v1660 = vsel %vm1404, %v1032, %v1532
      %v1661 = vsel %vm1405, %v1035, %v1533
      %v1662 = vsel %vm1406, %v1040, %v1534
      %v1663 = vsel %vm1407, %v1043, %v1535
      %v1664 = vsel %vm1408, %v1048, %v1536
      %v1665 = vsel %vm1409, %v1051, %v1537
      %v1666 = vsel %vm1410, %v1056, %v1538
      %v1667 = vsel %vm1411, %v1059, %v1539
      %v1668 = vsel %vm1412, %v1064, %v1540
      %v1669 = vsel %vm1413, %v1067, %v1541
      %v1670 = vsel %vm1414, %v1072, %v1542
      %v1671 = vsel %vm1415, %v1075, %v1543
      %v1672 = vsel %vm1416, %v1080, %v1544
      %v1673 = vsel %vm1417, %v1083, %v1545
      %v1674 = vsel %vm1418, %v1088, %v1546
      %v1675 = vsel %vm1419, %v1091, %v1547
      %v1676 = vsel %vm1420, %v1096, %v1548
      %v1677 = vsel %vm1421, %v1099, %v1549
      %v1678 = vsel %vm1422, %v1104, %v1550
      %v1679 = vsel %vm1423, %v1107, %v1551
      %v1680 = vsel %vm1424, %v1112, %v1552
      %v1681 = vsel %vm1425, %v1115, %v1553
      %v1682 = vsel %vm1426, %v1120, %v1554
      %v1683 = vsel %vm1427, %v1123, %v1555
      %v1684 = vsel %vm1428, %v1128, %v1556
      %v1685 = vsel %vm1429, %v1131, %v1557
      %v1686 = vsel %vm1430, %v1136, %v1558
      %v1687 = vsel %vm1431, %v1139, %v1559
      %v1688 = vsel %vm1432, %v1144, %v1560
      %v1689 = vsel %vm1433, %v1147, %v1561
      %v1690 = vsel %vm1434, %v1152, %v1562
      %v1691 = vsel %vm1435, %v1155, %v1563
      %v1692 = vsel %vm1436, %v1160, %v1564
      %v1693 = vsel %vm1437, %v1163, %v1565
      %v1694 = vsel %vm1438, %v1168, %v1566
      %v1695 = vsel %vm1439, %v1171, %v1567
      %v1696 = vsel %vm1440, %v1176, %v1568
      %v1697 = vsel %vm1441, %v1179, %v1569
      %v1698 = vsel %vm1442, %v1184, %v1570
      %v1699 = vsel %vm1443, %v1187, %v1571
      %v1700 = vsel %vm1444, %v1192, %v1572
      %v1701 = vsel %vm1445, %v1195, %v1573
      %v1702 = vsel %vm1446, %v1200, %v1574
      %v1703 = vsel %vm1447, %v1203, %v1575
      %v1704 = vsel %vm1448, %v1208, %v1576
      %v1705 = vsel %vm1449, %v1211, %v1577
      %v1706 = vsel %vm1450, %v1216, %v1578
      %v1707 = vsel %vm1451, %v1219, %v1579
      %v1708 = vsel %vm1452, %v1224, %v1580
      %v1709 = vsel %vm1453, %v1227, %v1581
      %v1710 = vsel %vm1454, %v1232, %v1582
      %v1711 = vsel %vm1455, %v1235, %v1583
      %v1712 = vsel %vm1456, %v1240, %v1584
      %v1713 = vsel %vm1457, %v1243, %v1585
      %v1714 = vsel %vm1458, %v1248, %v1586
      %v1715 = vsel %vm1459, %v1251, %v1587
      %v1716 = vsel %vm1460, %v1256, %v1588
      %v1717 = vsel %vm1461, %v1259, %v1589
      %v1718 = vsel %vm1462, %v1264, %v1590
      %v1719 = vsel %vm1463, %v1267, %v1591
      %v1720 = vsel %vm1464, %v1272, %v1592
      %v1721 = vsel %vm1465, %v1275, %v1593
      %v1722 = vsel %vm1466, %v1280, %v1594
      %v1723 = vsel %vm1467, %v1283, %v1595
      %v1724 = vsel %vm1468, %v1288, %v1596
      %v1725 = vsel %vm1469, %v1291, %v1597
      %v1726 = vsel %vm1470, %v1296, %v1598
      %v1727 = vsel %vm1471, %v1299, %v1599
      %v1728 = vsel %vm1472, %v1304, %v1600
      %v1729 = vsel %vm1473, %v1307, %v1601
      %v1730 = vsel %vm1474, %v1312, %v1602
      %v1731 = vsel %vm1475, %v1315, %v1603
      %v1732 = vsel %vm1476, %v1320, %v1604
      %v1733 = vsel %vm1477, %v1323, %v1605
      %v1734 = vsel %vm1478, %v1328, %v1606
      %v1735 = vsel %vm1479, %v1331, %v1607
      %v1736 = vsel %vm1480, %v1336, %v1608
      %v1737 = vsel %vm1481, %v1339, %v1609
      %v1738 = vsel %vm1482, %v1344, %v1610
      %v1739 = vsel %vm1483, %v1347, %v1611
      %v1740 = vsel %vm1484, %v1352, %v1612
      %v1741 = vsel %vm1485, %v1355, %v1613
      %v1742 = vpack.c.bf16 %v1615, %v1614
      %v1743 = vpack.c.bf16 %v1617, %v1616
      %v1744 = vpack.c.bf16 %v1619, %v1618
      %v1745 = vpack.c.bf16 %v1621, %v1620
      %v1746 = vpack.c.bf16 %v1623, %v1622
      %v1747 = vpack.c.bf16 %v1625, %v1624
      %v1748 = vpack.c.bf16 %v1627, %v1626
      %v1749 = vpack.c.bf16 %v1629, %v1628
      %v1750 = vpack.c.bf16 %v1631, %v1630
      %v1751 = vpack.c.bf16 %v1633, %v1632
      %v1752 = vpack.c.bf16 %v1635, %v1634
      %v1753 = vpack.c.bf16 %v1637, %v1636
      %v1754 = vpack.c.bf16 %v1639, %v1638
      %v1755 = vpack.c.bf16 %v1641, %v1640
      %v1756 = vpack.c.bf16 %v1643, %v1642
      %v1757 = vpack.c.bf16 %v1645, %v1644
      %v1758 = vpack.c.bf16 %v1647, %v1646
      %v1759 = vpack.c.bf16 %v1649, %v1648
      %v1760 = vpack.c.bf16 %v1651, %v1650
      %v1761 = vpack.c.bf16 %v1653, %v1652
      %v1762 = vpack.c.bf16 %v1655, %v1654
      %v1763 = vpack.c.bf16 %v1657, %v1656
      %v1764 = vpack.c.bf16 %v1659, %v1658
      %v1765 = vpack.c.bf16 %v1661, %v1660
      %v1766 = vpack.c.bf16 %v1663, %v1662
      %v1767 = vpack.c.bf16 %v1665, %v1664
      %v1768 = vpack.c.bf16 %v1667, %v1666
      %v1769 = vpack.c.bf16 %v1669, %v1668
      %v1770 = vpack.c.bf16 %v1671, %v1670
      %v1771 = vpack.c.bf16 %v1673, %v1672
      %v1772 = vpack.c.bf16 %v1675, %v1674
      %v1773 = vpack.c.bf16 %v1677, %v1676
      %v1774 = vpack.c.bf16 %v1679, %v1678
      %v1775 = vpack.c.bf16 %v1681, %v1680
      %v1776 = vpack.c.bf16 %v1683, %v1682
      %v1777 = vpack.c.bf16 %v1685, %v1684
      %v1778 = vpack.c.bf16 %v1687, %v1686
      %v1779 = vpack.c.bf16 %v1689, %v1688
      %v1780 = vpack.c.bf16 %v1691, %v1690
      %v1781 = vpack.c.bf16 %v1693, %v1692
      %v1782 = vpack.c.bf16 %v1695, %v1694
      %v1783 = vpack.c.bf16 %v1697, %v1696
      %v1784 = vpack.c.bf16 %v1699, %v1698
      %v1785 = vpack.c.bf16 %v1701, %v1700
      %v1786 = vpack.c.bf16 %v1703, %v1702
      %v1787 = vpack.c.bf16 %v1705, %v1704
      %v1788 = vpack.c.bf16 %v1707, %v1706
      %v1789 = vpack.c.bf16 %v1709, %v1708
      %v1790 = vpack.c.bf16 %v1711, %v1710
      %v1791 = vpack.c.bf16 %v1713, %v1712
      %v1792 = vpack.c.bf16 %v1715, %v1714
      %v1793 = vpack.c.bf16 %v1717, %v1716
      %v1794 = vpack.c.bf16 %v1719, %v1718
      %v1795 = vpack.c.bf16 %v1721, %v1720
      %v1796 = vpack.c.bf16 %v1723, %v1722
      %v1797 = vpack.c.bf16 %v1725, %v1724
      %v1798 = vpack.c.bf16 %v1727, %v1726
      %v1799 = vpack.c.bf16 %v1729, %v1728
      %v1800 = vpack.c.bf16 %v1731, %v1730
      %v1801 = vpack.c.bf16 %v1733, %v1732
      %v1802 = vpack.c.bf16 %v1735, %v1734
      %v1803 = vpack.c.bf16 %v1737, %v1736
      %v1804 = vpack.c.bf16 %v1739, %v1738
      %v1805 = vpack.c.bf16 %v1741, %v1740
      %v1870 = vunpack.c.l.b16 %v1742
      %v1871 = vunpack.c.h.b16 %v1742
      %v1872 = vunpack.c.l.b16 %v1743
      %v1873 = vunpack.c.h.b16 %v1743
      %v1874 = vunpack.c.l.b16 %v1744
      %v1875 = vunpack.c.h.b16 %v1744
      %v1876 = vunpack.c.l.b16 %v1745
      %v1877 = vunpack.c.h.b16 %v1745
      %v1878 = vunpack.c.l.b16 %v1746
      %v1879 = vunpack.c.h.b16 %v1746
      %v1880 = vunpack.c.l.b16 %v1747
      %v1881 = vunpack.c.h.b16 %v1747
      %v1882 = vunpack.c.l.b16 %v1748
      %v1883 = vunpack.c.h.b16 %v1748
      %v1884 = vunpack.c.l.b16 %v1749
      %v1885 = vunpack.c.h.b16 %v1749
      %v1886 = vunpack.c.l.b16 %v1750
      %v1887 = vunpack.c.h.b16 %v1750
      %v1888 = vunpack.c.l.b16 %v1751
      %v1889 = vunpack.c.h.b16 %v1751
      %v1890 = vunpack.c.l.b16 %v1752
      %v1891 = vunpack.c.h.b16 %v1752
      %v1892 = vunpack.c.l.b16 %v1753
      %v1893 = vunpack.c.h.b16 %v1753
      %v1894 = vunpack.c.l.b16 %v1754
      %v1895 = vunpack.c.h.b16 %v1754
      %v1896 = vunpack.c.l.b16 %v1755
      %v1897 = vunpack.c.h.b16 %v1755
      %v1898 = vunpack.c.l.b16 %v1756
      %v1899 = vunpack.c.h.b16 %v1756
      %v1900 = vunpack.c.l.b16 %v1757
      %v1901 = vunpack.c.h.b16 %v1757
      %v1902 = vunpack.c.l.b16 %v1758
      %v1903 = vunpack.c.h.b16 %v1758
      %v1904 = vunpack.c.l.b16 %v1759
      %v1905 = vunpack.c.h.b16 %v1759
      %v1906 = vunpack.c.l.b16 %v1760
      %v1907 = vunpack.c.h.b16 %v1760
      %v1908 = vunpack.c.l.b16 %v1761
      %v1909 = vunpack.c.h.b16 %v1761
      %v1910 = vunpack.c.l.b16 %v1762
      %v1911 = vunpack.c.h.b16 %v1762
      %v1912 = vunpack.c.l.b16 %v1763
      %v1913 = vunpack.c.h.b16 %v1763
      %v1914 = vunpack.c.l.b16 %v1764
      %v1915 = vunpack.c.h.b16 %v1764
      %v1916 = vunpack.c.l.b16 %v1765
      %v1917 = vunpack.c.h.b16 %v1765
      %v1918 = vunpack.c.l.b16 %v1766
      %v1919 = vunpack.c.h.b16 %v1766
      %v1920 = vunpack.c.l.b16 %v1767
      %v1921 = vunpack.c.h.b16 %v1767
      %v1922 = vunpack.c.l.b16 %v1768
      %v1923 = vunpack.c.h.b16 %v1768
      %v1924 = vunpack.c.l.b16 %v1769
      %v1925 = vunpack.c.h.b16 %v1769
      %v1926 = vunpack.c.l.b16 %v1770
      %v1927 = vunpack.c.h.b16 %v1770
      %v1928 = vunpack.c.l.b16 %v1771
      %v1929 = vunpack.c.h.b16 %v1771
      %v1930 = vunpack.c.l.b16 %v1772
      %v1931 = vunpack.c.h.b16 %v1772
      %v1932 = vunpack.c.l.b16 %v1773
      %v1933 = vunpack.c.h.b16 %v1773
      %v1934 = vunpack.c.l.b16 %v1774
      %v1935 = vunpack.c.h.b16 %v1774
      %v1936 = vunpack.c.l.b16 %v1775
      %v1937 = vunpack.c.h.b16 %v1775
      %v1938 = vunpack.c.l.b16 %v1776
      %v1939 = vunpack.c.h.b16 %v1776
      %v1940 = vunpack.c.l.b16 %v1777
      %v1941 = vunpack.c.h.b16 %v1777
      %v1942 = vunpack.c.l.b16 %v1778
      %v1943 = vunpack.c.h.b16 %v1778
      %v1944 = vunpack.c.l.b16 %v1779
      %v1945 = vunpack.c.h.b16 %v1779
      %v1946 = vunpack.c.l.b16 %v1780
      %v1947 = vunpack.c.h.b16 %v1780
      %v1948 = vunpack.c.l.b16 %v1781
      %v1949 = vunpack.c.h.b16 %v1781
      %v1950 = vunpack.c.l.b16 %v1782
      %v1951 = vunpack.c.h.b16 %v1782
      %v1952 = vunpack.c.l.b16 %v1783
      %v1953 = vunpack.c.h.b16 %v1783
      %v1954 = vunpack.c.l.b16 %v1784
      %v1955 = vunpack.c.h.b16 %v1784
      %v1956 = vunpack.c.l.b16 %v1785
      %v1957 = vunpack.c.h.b16 %v1785
      %v1958 = vunpack.c.l.b16 %v1786
      %v1959 = vunpack.c.h.b16 %v1786
      %v1960 = vunpack.c.l.b16 %v1787
      %v1961 = vunpack.c.h.b16 %v1787
      %v1962 = vunpack.c.l.b16 %v1788
      %v1963 = vunpack.c.h.b16 %v1788
      %v1964 = vunpack.c.l.b16 %v1789
      %v1965 = vunpack.c.h.b16 %v1789
      %v1966 = vunpack.c.l.b16 %v1790
      %v1967 = vunpack.c.h.b16 %v1790
      %v1968 = vunpack.c.l.b16 %v1791
      %v1969 = vunpack.c.h.b16 %v1791
      %v1970 = vunpack.c.l.b16 %v1792
      %v1971 = vunpack.c.h.b16 %v1792
      %v1972 = vunpack.c.l.b16 %v1793
      %v1973 = vunpack.c.h.b16 %v1793
      %v1974 = vunpack.c.l.b16 %v1794
      %v1975 = vunpack.c.h.b16 %v1794
      %v1976 = vunpack.c.l.b16 %v1795
      %v1977 = vunpack.c.h.b16 %v1795
      %v1978 = vunpack.c.l.b16 %v1796
      %v1979 = vunpack.c.h.b16 %v1796
      %v1980 = vunpack.c.l.b16 %v1797
      %v1981 = vunpack.c.h.b16 %v1797
      %v1982 = vunpack.c.l.b16 %v1798
      %v1983 = vunpack.c.h.b16 %v1798
      %v1984 = vunpack.c.l.b16 %v1799
      %v1985 = vunpack.c.h.b16 %v1799
      %v1986 = vunpack.c.l.b16 %v1800
      %v1987 = vunpack.c.h.b16 %v1800
      %v1988 = vunpack.c.l.b16 %v1801
      %v1989 = vunpack.c.h.b16 %v1801
      %v1990 = vunpack.c.l.b16 %v1802
      %v1991 = vunpack.c.h.b16 %v1802
      %v1992 = vunpack.c.l.b16 %v1803
      %v1993 = vunpack.c.h.b16 %v1803
      %v1994 = vunpack.c.l.b16 %v1804
      %v1995 = vunpack.c.h.b16 %v1804
      %v1996 = vunpack.c.l.b16 %v1805
      %v1997 = vunpack.c.h.b16 %v1805
      %v1998 = vpack.c.b16 %v1870, %v1870
      %v1999 = vpack.c.b16 %v1871, %v1871
      %v2000 = vpack.c.b16 %v1872, %v1872
      %v2001 = vpack.c.b16 %v1873, %v1873
      %v2002 = vpack.c.b16 %v1874, %v1874
      %v2003 = vpack.c.b16 %v1875, %v1875
      %v2004 = vpack.c.b16 %v1876, %v1876
      %v2005 = vpack.c.b16 %v1877, %v1877
      %v2006 = vpack.c.b16 %v1878, %v1878
      %v2007 = vpack.c.b16 %v1879, %v1879
      %v2008 = vpack.c.b16 %v1880, %v1880
      %v2009 = vpack.c.b16 %v1881, %v1881
      %v2010 = vpack.c.b16 %v1882, %v1882
      %v2011 = vpack.c.b16 %v1883, %v1883
      %v2012 = vpack.c.b16 %v1884, %v1884
      %v2013 = vpack.c.b16 %v1885, %v1885
      %v2014 = vpack.c.b16 %v1886, %v1886
      %v2015 = vpack.c.b16 %v1887, %v1887
      %v2016 = vpack.c.b16 %v1888, %v1888
      %v2017 = vpack.c.b16 %v1889, %v1889
      %v2018 = vpack.c.b16 %v1890, %v1890
      %v2019 = vpack.c.b16 %v1891, %v1891
      %v2020 = vpack.c.b16 %v1892, %v1892
      %v2021 = vpack.c.b16 %v1893, %v1893
      %v2022 = vpack.c.b16 %v1894, %v1894
      %v2023 = vpack.c.b16 %v1895, %v1895
      %v2024 = vpack.c.b16 %v1896, %v1896
      %v2025 = vpack.c.b16 %v1897, %v1897
      %v2026 = vpack.c.b16 %v1898, %v1898
      %v2027 = vpack.c.b16 %v1899, %v1899
      %v2028 = vpack.c.b16 %v1900, %v1900
      %v2029 = vpack.c.b16 %v1901, %v1901
      %v2030 = vpack.c.b16 %v1902, %v1902
      %v2031 = vpack.c.b16 %v1903, %v1903
      %v2032 = vpack.c.b16 %v1904, %v1904
      %v2033 = vpack.c.b16 %v1905, %v1905
      %v2034 = vpack.c.b16 %v1906, %v1906
      %v2035 = vpack.c.b16 %v1907, %v1907
      %v2036 = vpack.c.b16 %v1908, %v1908
      %v2037 = vpack.c.b16 %v1909, %v1909
      %v2038 = vpack.c.b16 %v1910, %v1910
      %v2039 = vpack.c.b16 %v1911, %v1911
      %v2040 = vpack.c.b16 %v1912, %v1912
      %v2041 = vpack.c.b16 %v1913, %v1913
      %v2042 = vpack.c.b16 %v1914, %v1914
      %v2043 = vpack.c.b16 %v1915, %v1915
      %v2044 = vpack.c.b16 %v1916, %v1916
      %v2045 = vpack.c.b16 %v1917, %v1917
      %v2046 = vpack.c.b16 %v1918, %v1918
      %v2047 = vpack.c.b16 %v1919, %v1919
      %v2048 = vpack.c.b16 %v1920, %v1920
      %v2049 = vpack.c.b16 %v1921, %v1921
      %v2050 = vpack.c.b16 %v1922, %v1922
      %v2051 = vpack.c.b16 %v1923, %v1923
      %v2052 = vpack.c.b16 %v1924, %v1924
      %v2053 = vpack.c.b16 %v1925, %v1925
      %v2054 = vpack.c.b16 %v1926, %v1926
      %v2055 = vpack.c.b16 %v1927, %v1927
      %v2056 = vpack.c.b16 %v1928, %v1928
      %v2057 = vpack.c.b16 %v1929, %v1929
      %v2058 = vpack.c.b16 %v1930, %v1930
      %v2059 = vpack.c.b16 %v1931, %v1931
      %v2060 = vpack.c.b16 %v1932, %v1932
      %v2061 = vpack.c.b16 %v1933, %v1933
      %v2062 = vpack.c.b16 %v1934, %v1934
      %v2063 = vpack.c.b16 %v1935, %v1935
      %v2064 = vpack.c.b16 %v1936, %v1936
      %v2065 = vpack.c.b16 %v1937, %v1937
      %v2066 = vpack.c.b16 %v1938, %v1938
      %v2067 = vpack.c.b16 %v1939, %v1939
      %v2068 = vpack.c.b16 %v1940, %v1940
      %v2069 = vpack.c.b16 %v1941, %v1941
      %v2070 = vpack.c.b16 %v1942, %v1942
      %v2071 = vpack.c.b16 %v1943, %v1943
      %v2072 = vpack.c.b16 %v1944, %v1944
      %v2073 = vpack.c.b16 %v1945, %v1945
      %v2074 = vpack.c.b16 %v1946, %v1946
      %v2075 = vpack.c.b16 %v1947, %v1947
      %v2076 = vpack.c.b16 %v1948, %v1948
      %v2077 = vpack.c.b16 %v1949, %v1949
      %v2078 = vpack.c.b16 %v1950, %v1950
      %v2079 = vpack.c.b16 %v1951, %v1951
      %v2080 = vpack.c.b16 %v1952, %v1952
      %v2081 = vpack.c.b16 %v1953, %v1953
      %v2082 = vpack.c.b16 %v1954, %v1954
      %v2083 = vpack.c.b16 %v1955, %v1955
      %v2084 = vpack.c.b16 %v1956, %v1956
      %v2085 = vpack.c.b16 %v1957, %v1957
      %v2086 = vpack.c.b16 %v1958, %v1958
      %v2087 = vpack.c.b16 %v1959, %v1959
      %v2088 = vpack.c.b16 %v1960, %v1960
      %v2089 = vpack.c.b16 %v1961, %v1961
      %v2090 = vpack.c.b16 %v1962, %v1962
      %v2091 = vpack.c.b16 %v1963, %v1963
      %v2092 = vpack.c.b16 %v1964, %v1964
      %v2093 = vpack.c.b16 %v1965, %v1965
      %v2094 = vpack.c.b16 %v1966, %v1966
      %v2095 = vpack.c.b16 %v1967, %v1967
      %v2096 = vpack.c.b16 %v1968, %v1968
      %v2097 = vpack.c.b16 %v1969, %v1969
      %v2098 = vpack.c.b16 %v1970, %v1970
      %v2099 = vpack.c.b16 %v1971, %v1971
      %v2100 = vpack.c.b16 %v1972, %v1972
      %v2101 = vpack.c.b16 %v1973, %v1973
      %v2102 = vpack.c.b16 %v1974, %v1974
      %v2103 = vpack.c.b16 %v1975, %v1975
      %v2104 = vpack.c.b16 %v1976, %v1976
      %v2105 = vpack.c.b16 %v1977, %v1977
      %v2106 = vpack.c.b16 %v1978, %v1978
      %v2107 = vpack.c.b16 %v1979, %v1979
      %v2108 = vpack.c.b16 %v1980, %v1980
      %v2109 = vpack.c.b16 %v1981, %v1981
      %v2110 = vpack.c.b16 %v1982, %v1982
      %v2111 = vpack.c.b16 %v1983, %v1983
      %v2112 = vpack.c.b16 %v1984, %v1984
      %v2113 = vpack.c.b16 %v1985, %v1985
      %v2114 = vpack.c.b16 %v1986, %v1986
      %v2115 = vpack.c.b16 %v1987, %v1987
      %v2116 = vpack.c.b16 %v1988, %v1988
      %v2117 = vpack.c.b16 %v1989, %v1989
      %v2118 = vpack.c.b16 %v1990, %v1990
      %v2119 = vpack.c.b16 %v1991, %v1991
      %v2120 = vpack.c.b16 %v1992, %v1992
      %v2121 = vpack.c.b16 %v1993, %v1993
      %v2122 = vpack.c.b16 %v1994, %v1994
      %v2123 = vpack.c.b16 %v1995, %v1995
      %v2124 = vpack.c.b16 %v1996, %v1996
      %v2125 = vpack.c.b16 %v1997, %v1997
      %2254 = vst [vmem:[%s145] sm:$0xf] %v1998
      %2255 = vst [vmem:[%s145 + $0x4] sm:$0xf] %v1999
      %2256 = vst [vmem:[%s145 + $0x8] sm:$0xf] %v2000
      %2257 = vst [vmem:[%s145 + $0xc] sm:$0xf] %v2001
      %2258 = vst [vmem:[%s145 + $0x10] sm:$0xf] %v2002
      %2259 = vst [vmem:[%s145 + $0x14] sm:$0xf] %v2003
      %2260 = vst [vmem:[%s145 + $0x18] sm:$0xf] %v2004
      %2261 = vst [vmem:[%s145 + $0x1c] sm:$0xf] %v2005
      %2262 = vst [vmem:[%s145 + $0x20] sm:$0xf] %v2006
      %2263 = vst [vmem:[%s145 + $0x24] sm:$0xf] %v2007
      %2264 = vst [vmem:[%s145 + $0x28] sm:$0xf] %v2008
      %2265 = vst [vmem:[%s145 + $0x2c] sm:$0xf] %v2009
      %2266 = vst [vmem:[%s145 + $0x30] sm:$0xf] %v2010
      %2267 = vst [vmem:[%s145 + $0x34] sm:$0xf] %v2011
      %2268 = vst [vmem:[%s145 + $0x38] sm:$0xf] %v2012
      %2269 = vst [vmem:[%s145 + $0x3c] sm:$0xf] %v2013
      %2270 = vst [vmem:[%s145 + $0x40] sm:$0xf] %v2014
      %2271 = vst [vmem:[%s145 + $0x44] sm:$0xf] %v2015
      %2272 = vst [vmem:[%s145 + $0x48] sm:$0xf] %v2016
      %2273 = vst [vmem:[%s145 + $0x4c] sm:$0xf] %v2017
      %2274 = vst [vmem:[%s145 + $0x50] sm:$0xf] %v2018
      %2275 = vst [vmem:[%s145 + $0x54] sm:$0xf] %v2019
      %2276 = vst [vmem:[%s145 + $0x58] sm:$0xf] %v2020
      %2277 = vst [vmem:[%s145 + $0x5c] sm:$0xf] %v2021
      %2278 = vst [vmem:[%s145 + $0x60] sm:$0xf] %v2022
      %2279 = vst [vmem:[%s145 + $0x64] sm:$0xf] %v2023
      %2280 = vst [vmem:[%s145 + $0x68] sm:$0xf] %v2024
      %2281 = vst [vmem:[%s145 + $0x6c] sm:$0xf] %v2025
      %2282 = vst [vmem:[%s145 + $0x70] sm:$0xf] %v2026
      %2283 = vst [vmem:[%s145 + $0x74] sm:$0xf] %v2027
      %2284 = vst [vmem:[%s145 + $0x78] sm:$0xf] %v2028
      %2285 = vst [vmem:[%s145 + $0x7c] sm:$0xf] %v2029
      %2286 = vst [vmem:[%s145 + $0x80] sm:$0xf] %v2030
      %2287 = vst [vmem:[%s145 + $0x84] sm:$0xf] %v2031
      %2288 = vst [vmem:[%s145 + $0x88] sm:$0xf] %v2032
      %2289 = vst [vmem:[%s145 + $0x8c] sm:$0xf] %v2033
      %2290 = vst [vmem:[%s145 + $0x90] sm:$0xf] %v2034
      %2291 = vst [vmem:[%s145 + $0x94] sm:$0xf] %v2035
      %2292 = vst [vmem:[%s145 + $0x98] sm:$0xf] %v2036
      %2293 = vst [vmem:[%s145 + $0x9c] sm:$0xf] %v2037
      %2294 = vst [vmem:[%s145 + $0xa0] sm:$0xf] %v2038
      %2295 = vst [vmem:[%s145 + $0xa4] sm:$0xf] %v2039
      %2296 = vst [vmem:[%s145 + $0xa8] sm:$0xf] %v2040
      %2297 = vst [vmem:[%s145 + $0xac] sm:$0xf] %v2041
      %2298 = vst [vmem:[%s145 + $0xb0] sm:$0xf] %v2042
      %2299 = vst [vmem:[%s145 + $0xb4] sm:$0xf] %v2043
      %2300 = vst [vmem:[%s145 + $0xb8] sm:$0xf] %v2044
      %2301 = vst [vmem:[%s145 + $0xbc] sm:$0xf] %v2045
      %2302 = vst [vmem:[%s145 + $0xc0] sm:$0xf] %v2046
      %2303 = vst [vmem:[%s145 + $0xc4] sm:$0xf] %v2047
      %2304 = vst [vmem:[%s145 + $0xc8] sm:$0xf] %v2048
      %2305 = vst [vmem:[%s145 + $0xcc] sm:$0xf] %v2049
      %2306 = vst [vmem:[%s145 + $0xd0] sm:$0xf] %v2050
      %2307 = vst [vmem:[%s145 + $0xd4] sm:$0xf] %v2051
      %2308 = vst [vmem:[%s145 + $0xd8] sm:$0xf] %v2052
      %2309 = vst [vmem:[%s145 + $0xdc] sm:$0xf] %v2053
      %2310 = vst [vmem:[%s145 + $0xe0] sm:$0xf] %v2054
      %2311 = vst [vmem:[%s145 + $0xe4] sm:$0xf] %v2055
      %2312 = vst [vmem:[%s145 + $0xe8] sm:$0xf] %v2056
      %2313 = vst [vmem:[%s145 + $0xec] sm:$0xf] %v2057
      %2314 = vst [vmem:[%s145 + $0xf0] sm:$0xf] %v2058
      %2315 = vst [vmem:[%s145 + $0xf4] sm:$0xf] %v2059
      %2316 = vst [vmem:[%s145 + $0xf8] sm:$0xf] %v2060
      %2317 = vst [vmem:[%s145 + $0xfc] sm:$0xf] %v2061
      %2318 = vst [vmem:[%s145 + $0x100] sm:$0xf] %v2062
      %2319 = vst [vmem:[%s145 + $0x104] sm:$0xf] %v2063
      %2320 = vst [vmem:[%s145 + $0x108] sm:$0xf] %v2064
      %2321 = vst [vmem:[%s145 + $0x10c] sm:$0xf] %v2065
      %2322 = vst [vmem:[%s145 + $0x110] sm:$0xf] %v2066
      %2323 = vst [vmem:[%s145 + $0x114] sm:$0xf] %v2067
      %2324 = vst [vmem:[%s145 + $0x118] sm:$0xf] %v2068
      %2325 = vst [vmem:[%s145 + $0x11c] sm:$0xf] %v2069
      %2326 = vst [vmem:[%s145 + $0x120] sm:$0xf] %v2070
      %2327 = vst [vmem:[%s145 + $0x124] sm:$0xf] %v2071
      %2328 = vst [vmem:[%s145 + $0x128] sm:$0xf] %v2072
      %2329 = vst [vmem:[%s145 + $0x12c] sm:$0xf] %v2073
      %2330 = vst [vmem:[%s145 + $0x130] sm:$0xf] %v2074
      %2331 = vst [vmem:[%s145 + $0x134] sm:$0xf] %v2075
      %2332 = vst [vmem:[%s145 + $0x138] sm:$0xf] %v2076
      %2333 = vst [vmem:[%s145 + $0x13c] sm:$0xf] %v2077
      %2334 = vst [vmem:[%s145 + $0x140] sm:$0xf] %v2078
      %2335 = vst [vmem:[%s145 + $0x144] sm:$0xf] %v2079
      %2336 = vst [vmem:[%s145 + $0x148] sm:$0xf] %v2080
      %2337 = vst [vmem:[%s145 + $0x14c] sm:$0xf] %v2081
      %2338 = vst [vmem:[%s145 + $0x150] sm:$0xf] %v2082
      %2339 = vst [vmem:[%s145 + $0x154] sm:$0xf] %v2083
      %2340 = vst [vmem:[%s145 + $0x158] sm:$0xf] %v2084
      %2341 = vst [vmem:[%s145 + $0x15c] sm:$0xf] %v2085
      %2342 = vst [vmem:[%s145 + $0x160] sm:$0xf] %v2086
      %2343 = vst [vmem:[%s145 + $0x164] sm:$0xf] %v2087
      %2344 = vst [vmem:[%s145 + $0x168] sm:$0xf] %v2088
      %2345 = vst [vmem:[%s145 + $0x16c] sm:$0xf] %v2089
      %2346 = vst [vmem:[%s145 + $0x170] sm:$0xf] %v2090
      %2347 = vst [vmem:[%s145 + $0x174] sm:$0xf] %v2091
      %2348 = vst [vmem:[%s145 + $0x178] sm:$0xf] %v2092
      %2349 = vst [vmem:[%s145 + $0x17c] sm:$0xf] %v2093
      %2350 = vst [vmem:[%s145 + $0x180] sm:$0xf] %v2094
      %2351 = vst [vmem:[%s145 + $0x184] sm:$0xf] %v2095
      %2352 = vst [vmem:[%s145 + $0x188] sm:$0xf] %v2096
      %2353 = vst [vmem:[%s145 + $0x18c] sm:$0xf] %v2097
      %2354 = vst [vmem:[%s145 + $0x190] sm:$0xf] %v2098
      %2355 = vst [vmem:[%s145 + $0x194] sm:$0xf] %v2099
      %2356 = vst [vmem:[%s145 + $0x198] sm:$0xf] %v2100
      %2357 = vst [vmem:[%s145 + $0x19c] sm:$0xf] %v2101
      %2358 = vst [vmem:[%s145 + $0x1a0] sm:$0xf] %v2102
      %2359 = vst [vmem:[%s145 + $0x1a4] sm:$0xf] %v2103
      %2360 = vst [vmem:[%s145 + $0x1a8] sm:$0xf] %v2104
      %2361 = vst [vmem:[%s145 + $0x1ac] sm:$0xf] %v2105
      %2362 = vst [vmem:[%s145 + $0x1b0] sm:$0xf] %v2106
      %2363 = vst [vmem:[%s145 + $0x1b4] sm:$0xf] %v2107
      %2364 = vst [vmem:[%s145 + $0x1b8] sm:$0xf] %v2108
      %2365 = vst [vmem:[%s145 + $0x1bc] sm:$0xf] %v2109
      %2366 = vst [vmem:[%s145 + $0x1c0] sm:$0xf] %v2110
      %2367 = vst [vmem:[%s145 + $0x1c4] sm:$0xf] %v2111
      %2368 = vst [vmem:[%s145 + $0x1c8] sm:$0xf] %v2112
      %2369 = vst [vmem:[%s145 + $0x1cc] sm:$0xf] %v2113
      %2370 = vst [vmem:[%s145 + $0x1d0] sm:$0xf] %v2114
      %2371 = vst [vmem:[%s145 + $0x1d4] sm:$0xf] %v2115
      %2372 = vst [vmem:[%s145 + $0x1d8] sm:$0xf] %v2116
      %2373 = vst [vmem:[%s145 + $0x1dc] sm:$0xf] %v2117
      %2374 = vst [vmem:[%s145 + $0x1e0] sm:$0xf] %v2118
      %2375 = vst [vmem:[%s145 + $0x1e4] sm:$0xf] %v2119
      %2376 = vst [vmem:[%s145 + $0x1e8] sm:$0xf] %v2120
      %2377 = vst [vmem:[%s145 + $0x1ec] sm:$0xf] %v2121
      %2378 = vst [vmem:[%s145 + $0x1f0] sm:$0xf] %v2122
      %2379 = vst [vmem:[%s145 + $0x1f4] sm:$0xf] %v2123
      %2380 = vst [vmem:[%s145 + $0x1f8] sm:$0xf] %v2124
      %2381 = vst [vmem:[%s145 + $0x1fc] sm:$0xf] %v2125
      %s2382 = smul.u32 128, %s13
      %p2383 = scmp.lt.s32.totalorder %s2382, 255
      %s2384 = scalar_select %p2383, %s2382, 255
      %s2385 = smul.addr %s2384, 4
      %s2386 = scalar_lea.vmem %s2, %s2385
      // Predicated region
      $region29: #{discriminator_forward.3} parent=27 // pred_check
        %p2387 = pneg %p78
      $region30: #{discriminator_forward.3} parent=27 // pred_check_branch
        %2389 = sbr.rel (%p2387) target = $region32
      $region31: #{discriminator_forward.3} parent=27 // pred_region
        %s2390 = smul.u32 128, %s13
      $region32: #{discriminator_forward.3} parent=27 // pred_fallthru
        _
    $region28: #{discriminator_forward.3} parent=5 // pred_fallthru
      _
    %p2391 = scmp.le.s32.totalorder 2, %s8
    // Predicated region
    $region33: #{discriminator_forward.3} parent=5 // pred_check
      %p2392 = pneg %p2391
    $region34: #{discriminator_forward.3} parent=5 // pred_check_branch
      %2394 = sbr.rel (%p2392) target = $region36
    $region35: #{discriminator_forward.3} parent=5 // pred_region
      %s2395 = ssub.s32 %s8, 2
      // Predicated region
      $region37: #{discriminator_forward.3} parent=35 // pred_check
        %p2396 = pneg %p84
      $region38: #{discriminator_forward.3} parent=35 // pred_check_branch
        %2398 = sbr.rel (%p2396) target = $region40
      $region39: #{discriminator_forward.3} parent=35 // pred_region
        %s2399 = smul.u32 128, %s14
        %p2400 = scmp.lt.s32.totalorder %s2399, 255
        %s2401 = scalar_select %p2400, %s2399, 255
        %s2402 = smul.addr %s2401, 4
        %s2403 = scalar_lea.vmem %s2, %s2402
      $region40: #{discriminator_forward.3} parent=35 // pred_fallthru
        _
    $region36: #{discriminator_forward.3} parent=5 // pred_fallthru
      _
  $region6: #{discriminator_forward.3} parent=0 // loop_footer
    %s12 = sadd.s32 1, %s8
  $region7: #{discriminator_forward.3} parent=0 // loop_footer_branch
    %7 = sbr.rel target = $region3
  $region8: #{discriminator_forward.3} parent=0 // loop_exit
    _

// kernel: discriminator_forward.4
$region0: #{discriminator_forward.4}
  #allocation0 [shape = 'u32[]', space=smem, size = 0x4, offset = 0x4, fixed_abs, tag = 'smem constant byte address 0x4 - core index']
  #allocation1 [shape = 'u32[144,128]{1,0:T(1,128)}', space=vmem, size = 0x12000, scoped, tag = 'internal scratch']
  #allocation2 [shape = 'f32[1,128]{1,0:T(1,128)}', space=vmem, size = 0x200, scoped, tag = 'scratch operand']
  #allocation3 [shape = 'f32[1,128]{1,0:T(1,128)}', space=vmem, size = 0x200, scoped, tag = 'scratch operand']
  %s0 = inlined_call_operand.vmem [shape: bf16[512,128], index: 0, kind: input, shape index: {}]
  %s1 = inlined_call_operand.vmem [shape: bf16[128,128], index: 1, kind: input, shape index: {}]
  %s2 = inlined_call_operand.vmem [shape: f32[1,128], index: 2, kind: input, shape index: {}]
  %s3 = inlined_call_operand.vmem [shape: f32[1,128], index: 3, kind: input, shape index: {}]
  %s4 = inlined_call_operand.vmem [shape: bf16[512,128], index: 4, kind: output, shape index: {}]
  %s5 = sld [smem:[#allocation0]]
  $region61: #{discriminator_forward.4} parent=0
    _
  %s7 = ssub.s32 1, %s5
  %s8 = scalar_select 0, %s7, %s5
  loop: start=0, step=1, limit=6
  $region2: #{discriminator_forward.4} parent=0 // loop_pre_header
    _
  $region3: #{discriminator_forward.4} parent=0 // loop_header
    %s10 = sphi 0, %s14
    %p11 = scmp.ge.s32.totalorder %s10, 6
    %s17 = sphi 0, %s29
    %s18 = sphi 0, %s25
    %s19 = sphi 0, %s17
    %s20 = sphi 0, %s18
    %s21 = sphi 0, %s19
    %s22 = sphi 0, %s20
    %s32 = sphi 0, %s34
    %s35 = sphi 0, %s32
    %s36 = sphi 0, %s35
    %s52 = sphi 0, %s36
    %s56 = sphi 0, %s56
    %s58 = sphi 0, %s56
    %s59 = sphi 0, %s58
    %s73 = sphi 0, %s59
    %s77 = sphi 0, %s77
    %s79 = sphi 0, %s77
    %s80 = sphi 0, %s79
    %s94 = sphi 0, %s80
    %s98 = sphi 0, %s98
    %s100 = sphi 0, %s98
    %s101 = sphi 0, %s100
    %s115 = sphi 0, %s101
    %s121 = sphi 0, %s123
    %s124 = sphi 0, %s121
    %s125 = sphi 0, %s124
    %s141 = sphi 0, %s125
  $region4: #{discriminator_forward.4} parent=0 // loop_header_branch
    %13 = sbr.rel (%p11) target = $region8
  $region5: #{discriminator_forward.4} parent=0 // loop_body
    %s15 = ssub.s32 %s10, 1
    %s16 = ssub.s32 %s10, 2
    %s23 = sadd.s32 1, %s18
    %p24 = scmp.ge.s32.totalorder %s23, 2
    %s25 = scalar_select %p24, 0, %s23
    %s26 = sadd.s32 1, %s17
    %s27 = scalar_select %p24, %s26, %s17
    %p28 = scmp.ge.s32.totalorder %s27, 2
    %s29 = scalar_select %p28, 0, %s27
    %s30 = ssub.s32 %s18, %s25
    %p31 = scmp.eq.s32.totalorder %s30, 0
    %s33 = sadd.s32 %s32, 1
    %s34 = scalar_select %p31, %s32, %s33
    %p37 = pneg %p31
    %p38 = scmp.eq.s32.totalorder %s10, 3
    %p39 = por %p37, %p38
    %p40 = scmp.ne.s32.totalorder %s32, %s35
    %p41 = scmp.eq.s32.totalorder %s10, 0
    %p42 = por %p40, %p41
    %p43 = scmp.ne.s32.totalorder %s32, %s35
    %p44 = scmp.eq.s32.totalorder %s15, 3
    %p45 = por %p43, %p44
    %p46 = scmp.ne.s32.totalorder %s35, %s36
    %p47 = scmp.eq.s32.totalorder %s15, 0
    %p48 = por %p46, %p47
    %p49 = scmp.ne.s32.totalorder %s35, %s36
    %p50 = scmp.eq.s32.totalorder %s16, 3
    %p51 = por %p49, %p50
    %p53 = scmp.ne.s32.totalorder %s36, %s52
    %p54 = scmp.eq.s32.totalorder %s16, 0
    %p55 = por %p53, %p54
    %s57 = sadd.s32 %s56, 1
    %p60 = scmp.eq.s32.totalorder %s10, 3
    %p61 = scmp.ne.s32.totalorder %s56, %s58
    %p62 = scmp.eq.s32.totalorder %s10, 0
    %p63 = por %p61, %p62
    %p64 = scmp.ne.s32.totalorder %s56, %s58
    %p65 = scmp.eq.s32.totalorder %s15, 3
    %p66 = por %p64, %p65
    %p67 = scmp.ne.s32.totalorder %s58, %s59
    %p68 = scmp.eq.s32.totalorder %s15, 0
    %p69 = por %p67, %p68
    %p70 = scmp.ne.s32.totalorder %s58, %s59
    %p71 = scmp.eq.s32.totalorder %s16, 3
    %p72 = por %p70, %p71
    %p74 = scmp.ne.s32.totalorder %s59, %s73
    %p75 = scmp.eq.s32.totalorder %s16, 0
    %p76 = por %p74, %p75
    %s78 = sadd.s32 %s77, 1
    %p81 = scmp.eq.s32.totalorder %s10, 3
    %p82 = scmp.ne.s32.totalorder %s77, %s79
    %p83 = scmp.eq.s32.totalorder %s10, 0
    %p84 = por %p82, %p83
    %p85 = scmp.ne.s32.totalorder %s77, %s79
    %p86 = scmp.eq.s32.totalorder %s15, 3
    %p87 = por %p85, %p86
    %p88 = scmp.ne.s32.totalorder %s79, %s80
    %p89 = scmp.eq.s32.totalorder %s15, 0
    %p90 = por %p88, %p89
    %p91 = scmp.ne.s32.totalorder %s79, %s80
    %p92 = scmp.eq.s32.totalorder %s16, 3
    %p93 = por %p91, %p92
    %p95 = scmp.ne.s32.totalorder %s80, %s94
    %p96 = scmp.eq.s32.totalorder %s16, 0
    %p97 = por %p95, %p96
    %s99 = sadd.s32 %s98, 1
    %p102 = scmp.eq.s32.totalorder %s10, 3
    %p103 = scmp.ne.s32.totalorder %s98, %s100
    %p104 = scmp.eq.s32.totalorder %s10, 0
    %p105 = por %p103, %p104
    %p106 = scmp.ne.s32.totalorder %s98, %s100
    %p107 = scmp.eq.s32.totalorder %s15, 3
    %p108 = por %p106, %p107
    %p109 = scmp.ne.s32.totalorder %s100, %s101
    %p110 = scmp.eq.s32.totalorder %s15, 0
    %p111 = por %p109, %p110
    %p112 = scmp.ne.s32.totalorder %s100, %s101
    %p113 = scmp.eq.s32.totalorder %s16, 3
    %p114 = por %p112, %p113
    %p116 = scmp.ne.s32.totalorder %s101, %s115
    %p117 = scmp.eq.s32.totalorder %s16, 0
    %p118 = por %p116, %p117
    %s119 = ssub.s32 %s18, %s25
    %p120 = scmp.eq.s32.totalorder %s119, 0
    %s122 = sadd.s32 %s121, 1
    %s123 = scalar_select %p120, %s121, %s122
    %p126 = pneg %p120
    %p127 = scmp.eq.s32.totalorder %s10, 3
    %p128 = por %p126, %p127
    %p129 = scmp.ne.s32.totalorder %s121, %s124
    %p130 = scmp.eq.s32.totalorder %s10, 0
    %p131 = por %p129, %p130
    %p132 = scmp.ne.s32.totalorder %s121, %s124
    %p133 = scmp.eq.s32.totalorder %s15, 3
    %p134 = por %p132, %p133
    %p135 = scmp.ne.s32.totalorder %s124, %s125
    %p136 = scmp.eq.s32.totalorder %s15, 0
    %p137 = por %p135, %p136
    %p138 = scmp.ne.s32.totalorder %s124, %s125
    %p139 = scmp.eq.s32.totalorder %s16, 3
    %p140 = por %p138, %p139
    %p142 = scmp.ne.s32.totalorder %s125, %s141
    %p143 = scmp.eq.s32.totalorder %s16, 0
    %p144 = por %p142, %p143
    %p145 = scmp.le.s32.totalorder 1, %s10
    %p146 = scmp.lt.s32.totalorder %s10, 5
    %p147 = pnand %p145, %p146
    %p148 = pneg %p147
    // Predicated region
    $region9: #{discriminator_forward.4} parent=5 // pred_check
      _
    $region10: #{discriminator_forward.4} parent=5 // pred_check_branch
      %150 = sbr.rel (%p147) target = $region12
    $region11: #{discriminator_forward.4} parent=5 // pred_region
      %s151 = ssub.s32 %s10, 1
      // Predicated region
      $region13: #{discriminator_forward.4} parent=11 // pred_check
        %p152 = pneg %p69
      $region14: #{discriminator_forward.4} parent=11 // pred_check_branch
        %154 = sbr.rel (%p152) target = $region16
      $region15: #{discriminator_forward.4} parent=11 // pred_region
        _
      $region16: #{discriminator_forward.4} parent=11 // pred_fallthru
        _
      // Predicated region
      $region17: #{discriminator_forward.4} parent=11 // pred_check
        %p155 = pneg %p90
      $region18: #{discriminator_forward.4} parent=11 // pred_check_branch
        %157 = sbr.rel (%p155) target = $region20
      $region19: #{discriminator_forward.4} parent=11 // pred_region
        _
      $region20: #{discriminator_forward.4} parent=11 // pred_fallthru
        _
      // Predicated region
      $region21: #{discriminator_forward.4} parent=11 // pred_check
        %p158 = pneg %p111
      $region22: #{discriminator_forward.4} parent=11 // pred_check_branch
        %160 = sbr.rel (%p158) target = $region24
      $region23: #{discriminator_forward.4} parent=11 // pred_region
        _
      $region24: #{discriminator_forward.4} parent=11 // pred_fallthru
        _
    $region12: #{discriminator_forward.4} parent=5 // pred_fallthru
      _
    %p161 = scmp.lt.s32.totalorder %s10, 4
    // Predicated region
    $region25: #{discriminator_forward.4} parent=5 // pred_check
      %p162 = pneg %p161
    $region26: #{discriminator_forward.4} parent=5 // pred_check_branch
      %164 = sbr.rel (%p162) target = $region28
    $region27: #{discriminator_forward.4} parent=5 // pred_region
      // Predicated region
      $region29: #{discriminator_forward.4} parent=27 // pred_check
        %p165 = pneg %p42
      $region30: #{discriminator_forward.4} parent=27 // pred_check_branch
        %167 = sbr.rel (%p165) target = $region32
      $region31: #{discriminator_forward.4} parent=27 // pred_region
        %s168 = smul.u32 32, %s18
        %p169 = scmp.lt.s32.totalorder %s168, 63
        %s170 = scalar_select %p169, %s168, 63
        %s171 = smul.addr %s170, 4
        %s172 = scalar_lea.vmem %s0, %s171
        %s173 = smul.u32 32, %s18
      $region32: #{discriminator_forward.4} parent=27 // pred_fallthru
        _
    $region28: #{discriminator_forward.4} parent=5 // pred_fallthru
      _
    %p174 = scmp.le.s32.totalorder 1, %s10
    %p175 = scmp.lt.s32.totalorder %s10, 5
    %p176 = pnand %p174, %p175
    %p177 = pneg %p176
    // Predicated region
    $region33: #{discriminator_forward.4} parent=5 // pred_check
      _
    $region34: #{discriminator_forward.4} parent=5 // pred_check_branch
      %179 = sbr.rel (%p176) target = $region36
    $region35: #{discriminator_forward.4} parent=5 // pred_region
      %s180 = ssub.s32 %s10, 1
      %s181 = smul.u32 32, %s20
      %p182 = scmp.lt.s32.totalorder %s181, 63
      %s183 = scalar_select %p182, %s181, 63
      %s184 = smul.addr %s183, 4
      %s185 = scalar_lea.vmem %s0, %s184
      %p186 = pneg %p48
      %p187 = pneg %p45
      %p188 = pneg %p69
      %p189 = pneg %p66
      %p190 = pneg %p90
      %p191 = pneg %p87
      %p192 = pneg %p111
      %p193 = pneg %p108
      %p194 = pneg %p137
      %p195 = pneg %p134
      %s196 = smul.u32 32, %s20
      %p197 = scmp.lt.s32.totalorder %s196, 63
      %s198 = scalar_select %p197, %s196, 63
      %s199 = smul.addr %s198, 4
      %s200 = scalar_lea.vmem %s4, %s199
      %s201 = smul.u32 32, %s20
      %p202 = scmp.lt.s32.totalorder %s201, 63
      %s203 = scalar_select %p202, %s201, 63
      %s204 = smul.addr %s203, 4
      %s205 = scalar_lea.vmem %s0, %s204
      %s206 = smul.u32 32, %s20
      %s207 = smul.u32 32, %s20
      %p208 = scmp.lt.s32.totalorder %s207, 63
      %s209 = scalar_select %p208, %s207, 63
      %s210 = smul.addr %s209, 4
      %s211 = scalar_lea.vmem %s4, %s210
      %s212 = smul.u32 32, %s20
      %v214 = vld [vmem:[%s205] sm:$0xf]
      %v215 = vld [vmem:[%s205 + $0x4] sm:$0xf]
      %v216 = vld [vmem:[%s205 + $0x8] sm:$0xf]
      %v217 = vld [vmem:[%s205 + $0xc] sm:$0xf]
      %v218 = vld [vmem:[%s205 + $0x10] sm:$0xf]
      %v219 = vld [vmem:[%s205 + $0x14] sm:$0xf]
      %v220 = vld [vmem:[%s205 + $0x18] sm:$0xf]
      %v221 = vld [vmem:[%s205 + $0x1c] sm:$0xf]
      %v222 = vld [vmem:[%s205 + $0x20] sm:$0xf]
      %v223 = vld [vmem:[%s205 + $0x24] sm:$0xf]
      %v224 = vld [vmem:[%s205 + $0x28] sm:$0xf]
      %v225 = vld [vmem:[%s205 + $0x2c] sm:$0xf]
      %v226 = vld [vmem:[%s205 + $0x30] sm:$0xf]
      %v227 = vld [vmem:[%s205 + $0x34] sm:$0xf]
      %v228 = vld [vmem:[%s205 + $0x38] sm:$0xf]
      %v229 = vld [vmem:[%s205 + $0x3c] sm:$0xf]
      %v230 = vld [vmem:[%s205 + $0x40] sm:$0xf]
      %v231 = vld [vmem:[%s205 + $0x44] sm:$0xf]
      %v232 = vld [vmem:[%s205 + $0x48] sm:$0xf]
      %v233 = vld [vmem:[%s205 + $0x4c] sm:$0xf]
      %v234 = vld [vmem:[%s205 + $0x50] sm:$0xf]
      %v235 = vld [vmem:[%s205 + $0x54] sm:$0xf]
      %v236 = vld [vmem:[%s205 + $0x58] sm:$0xf]
      %v237 = vld [vmem:[%s205 + $0x5c] sm:$0xf]
      %v238 = vld [vmem:[%s205 + $0x60] sm:$0xf]
      %v239 = vld [vmem:[%s205 + $0x64] sm:$0xf]
      %v240 = vld [vmem:[%s205 + $0x68] sm:$0xf]
      %v241 = vld [vmem:[%s205 + $0x6c] sm:$0xf]
      %v242 = vld [vmem:[%s205 + $0x70] sm:$0xf]
      %v243 = vld [vmem:[%s205 + $0x74] sm:$0xf]
      %v244 = vld [vmem:[%s205 + $0x78] sm:$0xf]
      %v245 = vld [vmem:[%s205 + $0x7c] sm:$0xf]
      %v246 = vld [vmem:[%s1] sm:$0xf]
      %v247 = vld [vmem:[%s1 + $0x4] sm:$0xf]
      %v248 = vld [vmem:[%s1 + $0x8] sm:$0xf]
      %v249 = vld [vmem:[%s1 + $0xc] sm:$0xf]
      %v250 = vld [vmem:[%s1 + $0x10] sm:$0xf]
      %v251 = vld [vmem:[%s1 + $0x14] sm:$0xf]
      %v252 = vld [vmem:[%s1 + $0x18] sm:$0xf]
      %v253 = vld [vmem:[%s1 + $0x1c] sm:$0xf]
      %v254 = vld [vmem:[%s1 + $0x20] sm:$0xf]
      %v255 = vld [vmem:[%s1 + $0x24] sm:$0xf]
      %v256 = vld [vmem:[%s1 + $0x28] sm:$0xf]
      %v257 = vld [vmem:[%s1 + $0x2c] sm:$0xf]
      %v258 = vld [vmem:[%s1 + $0x30] sm:$0xf]
      %v259 = vld [vmem:[%s1 + $0x34] sm:$0xf]
      %v260 = vld [vmem:[%s1 + $0x38] sm:$0xf]
      %v261 = vld [vmem:[%s1 + $0x3c] sm:$0xf]
      %v294 = vunpack.c.l.b16 %v214
      %v295 = vunpack.c.l.b16 %v215
      %v296 = vunpack.c.l.b16 %v216
      %v297 = vunpack.c.l.b16 %v217
      %v298 = vunpack.c.l.b16 %v218
      %v299 = vunpack.c.l.b16 %v219
      %v300 = vunpack.c.l.b16 %v220
      %v301 = vunpack.c.l.b16 %v221
      %v302 = vunpack.c.l.b16 %v222
      %v303 = vunpack.c.l.b16 %v223
      %v304 = vunpack.c.l.b16 %v224
      %v305 = vunpack.c.l.b16 %v225
      %v306 = vunpack.c.l.b16 %v226
      %v307 = vunpack.c.l.b16 %v227
      %v308 = vunpack.c.l.b16 %v228
      %v309 = vunpack.c.l.b16 %v229
      %v310 = vunpack.c.l.b16 %v230
      %v311 = vunpack.c.l.b16 %v231
      %v312 = vunpack.c.l.b16 %v232
      %v313 = vunpack.c.l.b16 %v233
      %v314 = vunpack.c.l.b16 %v234
      %v315 = vunpack.c.l.b16 %v235
      %v316 = vunpack.c.l.b16 %v236
      %v317 = vunpack.c.l.b16 %v237
      %v318 = vunpack.c.l.b16 %v238
      %v319 = vunpack.c.l.b16 %v239
      %v320 = vunpack.c.l.b16 %v240
      %v321 = vunpack.c.l.b16 %v241
      %v322 = vunpack.c.l.b16 %v242
      %v323 = vunpack.c.l.b16 %v243
      %v324 = vunpack.c.l.b16 %v244
      %v325 = vunpack.c.l.b16 %v245
      %v326 = vpack.c.b16 %v295, %v294
      %v327 = vpack.c.b16 %v297, %v296
      %v328 = vpack.c.b16 %v299, %v298
      %v329 = vpack.c.b16 %v301, %v300
      %v330 = vpack.c.b16 %v303, %v302
      %v331 = vpack.c.b16 %v305, %v304
      %v332 = vpack.c.b16 %v307, %v306
      %v333 = vpack.c.b16 %v309, %v308
      %v334 = vpack.c.b16 %v311, %v310
      %v335 = vpack.c.b16 %v313, %v312
      %v336 = vpack.c.b16 %v315, %v314
      %v337 = vpack.c.b16 %v317, %v316
      %v338 = vpack.c.b16 %v319, %v318
      %v339 = vpack.c.b16 %v321, %v320
      %v340 = vpack.c.b16 %v323, %v322
      %v341 = vpack.c.b16 %v325, %v324
      %v374 = vunpack.c.l.b16 %v246
      %v375 = vunpack.c.l.b16 %v247
      %v376 = vunpack.c.l.b16 %v248
      %v377 = vunpack.c.l.b16 %v249
      %v378 = vunpack.c.l.b16 %v250
      %v379 = vunpack.c.l.b16 %v251
      %v380 = vunpack.c.l.b16 %v252
      %v381 = vunpack.c.l.b16 %v253
      %v382 = vunpack.c.l.b16 %v254
      %v383 = vunpack.c.l.b16 %v255
      %v384 = vunpack.c.l.b16 %v256
      %v385 = vunpack.c.l.b16 %v257
      %v386 = vunpack.c.l.b16 %v258
      %v387 = vunpack.c.l.b16 %v259
      %v388 = vunpack.c.l.b16 %v260
      %v389 = vunpack.c.l.b16 %v261
      %v390 = vpack.c.b16 %v375, %v374
      %v391 = vpack.c.b16 %v377, %v376
      %v392 = vpack.c.b16 %v379, %v378
      %v393 = vpack.c.b16 %v381, %v380
      %v394 = vpack.c.b16 %v383, %v382
      %v395 = vpack.c.b16 %v385, %v384
      %v396 = vpack.c.b16 %v387, %v386
      %v397 = vpack.c.b16 %v389, %v388
      %406 = vmatprep.subr.bf16.mxu0 0
      %407 = vmatpush1.bf16.msra.mxu0 %v397
      %408 = vmatprep.subr.bf16.mxu0 0
      %409 = vmatpush1.bf16.msra.mxu0 %v396
      %410 = vmatprep.subr.bf16.mxu0 0
      %411 = vmatpush1.bf16.msra.mxu0 %v395
      %412 = vmatprep.subr.bf16.mxu0 0
      %413 = vmatpush1.bf16.msra.mxu0 %v394
      %414 = vmatprep.subr.bf16.mxu0 0
      %415 = vmatpush1.bf16.msra.mxu0 %v393
      %416 = vmatprep.subr.bf16.mxu0 0
      %417 = vmatpush1.bf16.msra.mxu0 %v392
      %418 = vmatprep.subr.bf16.mxu0 0
      %419 = vmatpush1.bf16.msra.mxu0 %v391
      %420 = vmatprep.subr.bf16.mxu0 0
      %421 = vmatpush1.bf16.msra.mxu0 %v390
      %422 = vmatprep.subr.bf16.mxu0 0
      %423 = vmatpush2.bf16.msra.mxu0 0
      %424 = vmatprep.subr.bf16.mxu0 0
      %425 = vmatpush2.bf16.msra.mxu0 0
      %426 = vmatprep.subr.bf16.mxu0 0
      %427 = vmatpush2.bf16.msra.mxu0 0
      %428 = vmatprep.subr.bf16.mxu0 0
      %429 = vmatpush2.bf16.msra.mxu0 0
      %430 = vmatprep.subr.bf16.mxu0 0
      %431 = vmatpush2.bf16.msra.mxu0 0
      %432 = vmatprep.subr.bf16.mxu0 0
      %433 = vmatpush2.bf16.msra.mxu0 0
      %434 = vmatprep.subr.bf16.mxu0 0
      %435 = vmatpush2.bf16.msra.mxu0 0
      %436 = vmatprep.subr.bf16.mxu0 0
      %437 = vmatpush2.bf16.msra.mxu0 0
      %438 = vmatprep.mubr.bf16.mxu0 0
      %439 = vmatmul.mubr.bf16.gmra.mxu0 %v326
      %v440 = vpop.f32.mrf.mxu0
      %v441 = vadd.f32 0.0, %v440
      %v442 = vpop.f32.mrf.mxu0
      %v443 = vpop.f32.mrf.mxu0
      %v444 = vadd.f32 0.0, %v443
      %v445 = vpop.f32.mrf.mxu0
      %446 = vmatprep.mubr.bf16.mxu0 0
      %447 = vmatmul.mubr.bf16.gmra.mxu0 %v327
      %v448 = vpop.f32.mrf.mxu0
      %v449 = vadd.f32 0.0, %v448
      %v450 = vpop.f32.mrf.mxu0
      %v451 = vpop.f32.mrf.mxu0
      %v452 = vadd.f32 0.0, %v451
      %v453 = vpop.f32.mrf.mxu0
      %454 = vmatprep.mubr.bf16.mxu0 0
      %455 = vmatmul.mubr.bf16.gmra.mxu0 %v328
      %v456 = vpop.f32.mrf.mxu0
      %v457 = vadd.f32 0.0, %v456
      %v458 = vpop.f32.mrf.mxu0
      %v459 = vpop.f32.mrf.mxu0
      %v460 = vadd.f32 0.0, %v459
      %v461 = vpop.f32.mrf.mxu0
      %462 = vmatprep.mubr.bf16.mxu0 0
      %463 = vmatmul.mubr.bf16.gmra.mxu0 %v329
      %v464 = vpop.f32.mrf.mxu0
      %v465 = vadd.f32 0.0, %v464
      %v466 = vpop.f32.mrf.mxu0
      %v467 = vpop.f32.mrf.mxu0
      %v468 = vadd.f32 0.0, %v467
      %v469 = vpop.f32.mrf.mxu0
      %470 = vmatprep.mubr.bf16.mxu0 0
      %471 = vmatmul.mubr.bf16.gmra.mxu0 %v330
      %v472 = vpop.f32.mrf.mxu0
      %v473 = vadd.f32 0.0, %v472
      %v474 = vpop.f32.mrf.mxu0
      %v475 = vpop.f32.mrf.mxu0
      %v476 = vadd.f32 0.0, %v475
      %v477 = vpop.f32.mrf.mxu0
      %478 = vmatprep.mubr.bf16.mxu0 0
      %479 = vmatmul.mubr.bf16.gmra.mxu0 %v331
      %v480 = vpop.f32.mrf.mxu0
      %v481 = vadd.f32 0.0, %v480
      %v482 = vpop.f32.mrf.mxu0
      %v483 = vpop.f32.mrf.mxu0
      %v484 = vadd.f32 0.0, %v483
      %v485 = vpop.f32.mrf.mxu0
      %486 = vmatprep.mubr.bf16.mxu0 0
      %487 = vmatmul.mubr.bf16.gmra.mxu0 %v332
      %v488 = vpop.f32.mrf.mxu0
      %v489 = vadd.f32 0.0, %v488
      %v490 = vpop.f32.mrf.mxu0
      %v491 = vpop.f32.mrf.mxu0
      %v492 = vadd.f32 0.0, %v491
      %v493 = vpop.f32.mrf.mxu0
      %494 = vmatprep.mubr.bf16.mxu0 0
      %495 = vmatmul.mubr.bf16.gmra.mxu0 %v333
      %v496 = vpop.f32.mrf.mxu0
      %v497 = vadd.f32 0.0, %v496
      %v498 = vpop.f32.mrf.mxu0
      %v499 = vpop.f32.mrf.mxu0
      %v500 = vadd.f32 0.0, %v499
      %v501 = vpop.f32.mrf.mxu0
      %502 = vmatprep.mubr.bf16.mxu0 0
      %503 = vmatmul.mubr.bf16.gmra.mxu0 %v334
      %v504 = vpop.f32.mrf.mxu0
      %v505 = vadd.f32 0.0, %v504
      %v506 = vpop.f32.mrf.mxu0
      %v507 = vpop.f32.mrf.mxu0
      %v508 = vadd.f32 0.0, %v507
      %v509 = vpop.f32.mrf.mxu0
      %510 = vmatprep.mubr.bf16.mxu0 0
      %511 = vmatmul.mubr.bf16.gmra.mxu0 %v335
      %v512 = vpop.f32.mrf.mxu0
      %v513 = vadd.f32 0.0, %v512
      %v514 = vpop.f32.mrf.mxu0
      %v515 = vpop.f32.mrf.mxu0
      %v516 = vadd.f32 0.0, %v515
      %v517 = vpop.f32.mrf.mxu0
      %518 = vmatprep.mubr.bf16.mxu0 0
      %519 = vmatmul.mubr.bf16.gmra.mxu0 %v336
      %v520 = vpop.f32.mrf.mxu0
      %v521 = vadd.f32 0.0, %v520
      %v522 = vpop.f32.mrf.mxu0
      %v523 = vpop.f32.mrf.mxu0
      %v524 = vadd.f32 0.0, %v523
      %v525 = vpop.f32.mrf.mxu0
      %526 = vmatprep.mubr.bf16.mxu0 0
      %527 = vmatmul.mubr.bf16.gmra.mxu0 %v337
      %v528 = vpop.f32.mrf.mxu0
      %v529 = vadd.f32 0.0, %v528
      %v530 = vpop.f32.mrf.mxu0
      %v531 = vpop.f32.mrf.mxu0
      %v532 = vadd.f32 0.0, %v531
      %v533 = vpop.f32.mrf.mxu0
      %534 = vmatprep.mubr.bf16.mxu0 0
      %535 = vmatmul.mubr.bf16.gmra.mxu0 %v338
      %v536 = vpop.f32.mrf.mxu0
      %v537 = vadd.f32 0.0, %v536
      %v538 = vpop.f32.mrf.mxu0
      %v539 = vpop.f32.mrf.mxu0
      %v540 = vadd.f32 0.0, %v539
      %v541 = vpop.f32.mrf.mxu0
      %542 = vmatprep.mubr.bf16.mxu0 0
      %543 = vmatmul.mubr.bf16.gmra.mxu0 %v339
      %v544 = vpop.f32.mrf.mxu0
      %v545 = vadd.f32 0.0, %v544
      %v546 = vpop.f32.mrf.mxu0
      %v547 = vpop.f32.mrf.mxu0
      %v548 = vadd.f32 0.0, %v547
      %v549 = vpop.f32.mrf.mxu0
      %550 = vmatprep.mubr.bf16.mxu0 0
      %551 = vmatmul.mubr.bf16.gmra.mxu0 %v340
      %v552 = vpop.f32.mrf.mxu0
      %v553 = vadd.f32 0.0, %v552
      %v554 = vpop.f32.mrf.mxu0
      %v555 = vpop.f32.mrf.mxu0
      %v556 = vadd.f32 0.0, %v555
      %v557 = vpop.f32.mrf.mxu0
      %558 = vmatprep.mubr.bf16.mxu0 0
      %559 = vmatmul.mubr.bf16.gmra.mxu0 %v341
      %v560 = vpop.f32.mrf.mxu0
      %v561 = vadd.f32 0.0, %v560
      %v562 = vpop.f32.mrf.mxu0
      %v563 = vpop.f32.mrf.mxu0
      %v564 = vadd.f32 0.0, %v563
      %v565 = vpop.f32.mrf.mxu0
      %566 = vdwg.mxu0
      %p567 = scmp.eq.s32.totalorder %s19, 0
      %p568 = scmp.eq.s32.totalorder %s20, 0
      %p569 = pnand %p567, %p568
      %p570 = pneg %p569
      // Predicated region
      $region37: #{discriminator_forward.4} parent=35 // pred_check
        _
      $region38: #{discriminator_forward.4} parent=35 // pred_check_branch
        %572 = sbr.rel (%p569) target = $region40
      $region39: #{discriminator_forward.4} parent=35 // pred_region
        %573 = vst [vmem:[#allocation2] sm:$0x1] 0.0
        %574 = vst [vmem:[#allocation3] sm:$0x1] 0.0
      $region40: #{discriminator_forward.4} parent=35 // pred_fallthru
        _
      // Predicated region
      $region41: #{discriminator_forward.4} parent=35 // pred_check
        %p575 = pneg %p567
      $region42: #{discriminator_forward.4} parent=35 // pred_check_branch
        %577 = sbr.rel (%p575) target = $region44
      $region43: #{discriminator_forward.4} parent=35 // pred_region
        %v578 = vld [vmem:[#allocation2] sm:$0x1]
        %v579 = vadd.f32 %v441, %v444
        %v580 = vadd.f32 %v579, %v449
        %v581 = vadd.f32 %v580, %v452
        %v582 = vadd.f32 %v581, %v457
        %v583 = vadd.f32 %v582, %v460
        %v584 = vadd.f32 %v583, %v465
        %v585 = vadd.f32 %v584, %v468
        %v586 = vadd.f32 %v585, %v473
        %v587 = vadd.f32 %v586, %v476
        %v588 = vadd.f32 %v587, %v481
        %v589 = vadd.f32 %v588, %v484
        %v590 = vadd.f32 %v589, %v489
        %v591 = vadd.f32 %v590, %v492
        %v592 = vadd.f32 %v591, %v497
        %v593 = vadd.f32 %v592, %v500
        %v594 = vadd.f32 %v593, %v505
        %v595 = vadd.f32 %v594, %v508
        %v596 = vadd.f32 %v595, %v513
        %v597 = vadd.f32 %v596, %v516
        %v598 = vadd.f32 %v597, %v521
        %v599 = vadd.f32 %v598, %v524
        %v600 = vadd.f32 %v599, %v529
        %v601 = vadd.f32 %v600, %v532
        %v602 = vadd.f32 %v601, %v537
        %v603 = vadd.f32 %v602, %v540
        %v604 = vadd.f32 %v603, %v545
        %v605 = vadd.f32 %v604, %v548
        %v606 = vadd.f32 %v605, %v553
        %v607 = vadd.f32 %v606, %v556
        %v608 = vadd.f32 %v607, %v561
        %v609 = vadd.f32 %v608, %v564
        %v610 = vrot.slane %v609, 4
        %v611 = vadd.f32 %v609, %v610
        %v612 = vrot.slane %v611, 2
        %v613 = vadd.f32 %v611, %v612
        %v614 = vrot.slane %v613, 1
        %v615 = vadd.f32 %v613, %v614
        %v616 = vadd.f32 %v578, %v615
        %617 = vst [vmem:[#allocation2] sm:$0x1] %v616
        %v618 = vld [vmem:[#allocation3] sm:$0x1]
        %v619 = vmul.f32 %v441, %v441
        %v620 = vmul.f32 %v444, %v444
        %v621 = vmul.f32 %v449, %v449
        %v622 = vmul.f32 %v452, %v452
        %v623 = vmul.f32 %v457, %v457
        %v624 = vmul.f32 %v460, %v460
        %v625 = vmul.f32 %v465, %v465
        %v626 = vmul.f32 %v468, %v468
        %v627 = vmul.f32 %v473, %v473
        %v628 = vmul.f32 %v476, %v476
        %v629 = vmul.f32 %v481, %v481
        %v630 = vmul.f32 %v484, %v484
        %v631 = vmul.f32 %v489, %v489
        %v632 = vmul.f32 %v492, %v492
        %v633 = vmul.f32 %v497, %v497
        %v634 = vmul.f32 %v500, %v500
        %v635 = vmul.f32 %v505, %v505
        %v636 = vmul.f32 %v508, %v508
        %v637 = vmul.f32 %v513, %v513
        %v638 = vmul.f32 %v516, %v516
        %v639 = vmul.f32 %v521, %v521
        %v640 = vmul.f32 %v524, %v524
        %v641 = vmul.f32 %v529, %v529
        %v642 = vmul.f32 %v532, %v532
        %v643 = vmul.f32 %v537, %v537
        %v644 = vmul.f32 %v540, %v540
        %v645 = vmul.f32 %v545, %v545
        %v646 = vmul.f32 %v548, %v548
        %v647 = vmul.f32 %v553, %v553
        %v648 = vmul.f32 %v556, %v556
        %v649 = vmul.f32 %v561, %v561
        %v650 = vmul.f32 %v564, %v564
        %v651 = vadd.f32 %v619, %v620
        %v652 = vadd.f32 %v651, %v621
        %v653 = vadd.f32 %v652, %v622
        %v654 = vadd.f32 %v653, %v623
        %v655 = vadd.f32 %v654, %v624
        %v656 = vadd.f32 %v655, %v625
        %v657 = vadd.f32 %v656, %v626
        %v658 = vadd.f32 %v657, %v627
        %v659 = vadd.f32 %v658, %v628
        %v660 = vadd.f32 %v659, %v629
        %v661 = vadd.f32 %v660, %v630
        %v662 = vadd.f32 %v661, %v631
        %v663 = vadd.f32 %v662, %v632
        %v664 = vadd.f32 %v663, %v633
        %v665 = vadd.f32 %v664, %v634
        %v666 = vadd.f32 %v665, %v635
        %v667 = vadd.f32 %v666, %v636
        %v668 = vadd.f32 %v667, %v637
        %v669 = vadd.f32 %v668, %v638
        %v670 = vadd.f32 %v669, %v639
        %v671 = vadd.f32 %v670, %v640
        %v672 = vadd.f32 %v671, %v641
        %v673 = vadd.f32 %v672, %v642
        %v674 = vadd.f32 %v673, %v643
        %v675 = vadd.f32 %v674, %v644
        %v676 = vadd.f32 %v675, %v645
        %v677 = vadd.f32 %v676, %v646
        %v678 = vadd.f32 %v677, %v647
        %v679 = vadd.f32 %v678, %v648
        %v680 = vadd.f32 %v679, %v649
        %v681 = vadd.f32 %v680, %v650
        %v682 = vrot.slane %v681, 4
        %v683 = vadd.f32 %v681, %v682
        %v684 = vrot.slane %v683, 2
        %v685 = vadd.f32 %v683, %v684
        %v686 = vrot.slane %v685, 1
        %v687 = vadd.f32 %v685, %v686
        %v688 = vadd.f32 %v618, %v687
        %689 = vst [vmem:[#allocation3] sm:$0x1] %v688
        %690 = vst [vmem:[%s211] sm:$0xf] 0
        %691 = vst [vmem:[%s211 + $0x4] sm:$0xf] 0
        %692 = vst [vmem:[%s211 + $0x8] sm:$0xf] 0
        %693 = vst [vmem:[%s211 + $0xc] sm:$0xf] 0
        %694 = vst [vmem:[%s211 + $0x10] sm:$0xf] 0
        %695 = vst [vmem:[%s211 + $0x14] sm:$0xf] 0
        %696 = vst [vmem:[%s211 + $0x18] sm:$0xf] 0
        %697 = vst [vmem:[%s211 + $0x1c] sm:$0xf] 0
        %698 = vst [vmem:[%s211 + $0x20] sm:$0xf] 0
        %699 = vst [vmem:[%s211 + $0x24] sm:$0xf] 0
        %700 = vst [vmem:[%s211 + $0x28] sm:$0xf] 0
        %701 = vst [vmem:[%s211 + $0x2c] sm:$0xf] 0
        %702 = vst [vmem:[%s211 + $0x30] sm:$0xf] 0
        %703 = vst [vmem:[%s211 + $0x34] sm:$0xf] 0
        %704 = vst [vmem:[%s211 + $0x38] sm:$0xf] 0
        %705 = vst [vmem:[%s211 + $0x3c] sm:$0xf] 0
        %706 = vst [vmem:[%s211 + $0x40] sm:$0xf] 0
        %707 = vst [vmem:[%s211 + $0x44] sm:$0xf] 0
        %708 = vst [vmem:[%s211 + $0x48] sm:$0xf] 0
        %709 = vst [vmem:[%s211 + $0x4c] sm:$0xf] 0
        %710 = vst [vmem:[%s211 + $0x50] sm:$0xf] 0
        %711 = vst [vmem:[%s211 + $0x54] sm:$0xf] 0
        %712 = vst [vmem:[%s211 + $0x58] sm:$0xf] 0
        %713 = vst [vmem:[%s211 + $0x5c] sm:$0xf] 0
        %714 = vst [vmem:[%s211 + $0x60] sm:$0xf] 0
        %715 = vst [vmem:[%s211 + $0x64] sm:$0xf] 0
        %716 = vst [vmem:[%s211 + $0x68] sm:$0xf] 0
        %717 = vst [vmem:[%s211 + $0x6c] sm:$0xf] 0
        %718 = vst [vmem:[%s211 + $0x70] sm:$0xf] 0
        %719 = vst [vmem:[%s211 + $0x74] sm:$0xf] 0
        %720 = vst [vmem:[%s211 + $0x78] sm:$0xf] 0
        %721 = vst [vmem:[%s211 + $0x7c] sm:$0xf] 0
      $region44: #{discriminator_forward.4} parent=35 // pred_fallthru
        _
      %p722 = scmp.eq.s32.totalorder %s19, 1
      // Predicated region
      $region45: #{discriminator_forward.4} parent=35 // pred_check
        %p723 = pneg %p722
      $region46: #{discriminator_forward.4} parent=35 // pred_check_branch
        %725 = sbr.rel (%p723) target = $region48
      $region47: #{discriminator_forward.4} parent=35 // pred_region
        %v726 = vld [vmem:[#allocation2] sm:$0x1]
        %v727 = vmul.f32 %v726, 0.001953125
        %v728 = vld [vmem:[#allocation3] sm:$0x1]
        %v729 = vmul.f32 %v728, 0.001953125
        %v730 = vmul.f32 %v727, %v727
        %v731 = vsub.f32 %v729, %v730
        %v732 = vmax.f32 %v731, 0.0
        %v734 = vlaneseq
        %v735 = vshrl.u32 %v734, 7
        %v736 = vsub.s32 0, %v735
        %v737 = vrot.slane %v727, %v736
        %v739 = vsub.f32 %v441, %v737
        %v740 = vsub.f32 %v444, %v737
        %v741 = vsub.f32 %v449, %v737
        %v742 = vsub.f32 %v452, %v737
        %v743 = vsub.f32 %v457, %v737
        %v744 = vsub.f32 %v460, %v737
        %v745 = vsub.f32 %v465, %v737
        %v746 = vsub.f32 %v468, %v737
        %v747 = vsub.f32 %v473, %v737
        %v748 = vsub.f32 %v476, %v737
        %v749 = vsub.f32 %v481, %v737
        %v750 = vsub.f32 %v484, %v737
        %v751 = vsub.f32 %v489, %v737
        %v752 = vsub.f32 %v492, %v737
        %v753 = vsub.f32 %v497, %v737
        %v754 = vsub.f32 %v500, %v737
        %v755 = vsub.f32 %v505, %v737
        %v756 = vsub.f32 %v508, %v737
        %v757 = vsub.f32 %v513, %v737
        %v758 = vsub.f32 %v516, %v737
        %v759 = vsub.f32 %v521, %v737
        %v760 = vsub.f32 %v524, %v737
        %v761 = vsub.f32 %v529, %v737
        %v762 = vsub.f32 %v532, %v737
        %v763 = vsub.f32 %v537, %v737
        %v764 = vsub.f32 %v540, %v737
        %v765 = vsub.f32 %v545, %v737
        %v766 = vsub.f32 %v548, %v737
        %v767 = vsub.f32 %v553, %v737
        %v768 = vsub.f32 %v556, %v737
        %v769 = vsub.f32 %v561, %v737
        %v770 = vsub.f32 %v564, %v737
        %v771 = vadd.f32 %v732, 1e-05
        %v772 = vrsqrt.pop %v771
        %v774 = vlaneseq
        %v775 = vshrl.u32 %v774, 7
        %v776 = vsub.s32 0, %v775
        %v777 = vrot.slane %v772, %v776
        %v779 = vmul.f32 %v739, %v777
        %v780 = vmul.f32 %v740, %v777
        %v781 = vmul.f32 %v741, %v777
        %v782 = vmul.f32 %v742, %v777
        %v783 = vmul.f32 %v743, %v777
        %v784 = vmul.f32 %v744, %v777
        %v785 = vmul.f32 %v745, %v777
        %v786 = vmul.f32 %v746, %v777
        %v787 = vmul.f32 %v747, %v777
        %v788 = vmul.f32 %v748, %v777
        %v789 = vmul.f32 %v749, %v777
        %v790 = vmul.f32 %v750, %v777
        %v791 = vmul.f32 %v751, %v777
        %v792 = vmul.f32 %v752, %v777
        %v793 = vmul.f32 %v753, %v777
        %v794 = vmul.f32 %v754, %v777
        %v795 = vmul.f32 %v755, %v777
        %v796 = vmul.f32 %v756, %v777
        %v797 = vmul.f32 %v757, %v777
        %v798 = vmul.f32 %v758, %v777
        %v799 = vmul.f32 %v759, %v777
        %v800 = vmul.f32 %v760, %v777
        %v801 = vmul.f32 %v761, %v777
        %v802 = vmul.f32 %v762, %v777
        %v803 = vmul.f32 %v763, %v777
        %v804 = vmul.f32 %v764, %v777
        %v805 = vmul.f32 %v765, %v777
        %v806 = vmul.f32 %v766, %v777
        %v807 = vmul.f32 %v767, %v777
        %v808 = vmul.f32 %v768, %v777
        %v809 = vmul.f32 %v769, %v777
        %v810 = vmul.f32 %v770, %v777
        %v811 = vld [vmem:[%s2] sm:$0x1]
        %v813 = vlaneseq
        %v814 = vshrl.u32 %v813, 7
        %v815 = vsub.s32 0, %v814
        %v816 = vrot.slane %v811, %v815
        %v818 = vmul.f32 %v779, %v816
        %v819 = vmul.f32 %v780, %v816
        %v820 = vmul.f32 %v781, %v816
        %v821 = vmul.f32 %v782, %v816
        %v822 = vmul.f32 %v783, %v816
        %v823 = vmul.f32 %v784, %v816
        %v824 = vmul.f32 %v785, %v816
        %v825 = vmul.f32 %v786, %v816
        %v826 = vmul.f32 %v787, %v816
        %v827 = vmul.f32 %v788, %v816
        %v828 = vmul.f32 %v789, %v816
        %v829 = vmul.f32 %v790, %v816
        %v830 = vmul.f32 %v791, %v816
        %v831 = vmul.f32 %v792, %v816
        %v832 = vmul.f32 %v793, %v816
        %v833 = vmul.f32 %v794, %v816
        %v834 = vmul.f32 %v795, %v816
        %v835 = vmul.f32 %v796, %v816
        %v836 = vmul.f32 %v797, %v816
        %v837 = vmul.f32 %v798, %v816
        %v838 = vmul.f32 %v799, %v816
        %v839 = vmul.f32 %v800, %v816
        %v840 = vmul.f32 %v801, %v816
        %v841 = vmul.f32 %v802, %v816
        %v842 = vmul.f32 %v803, %v816
        %v843 = vmul.f32 %v804, %v816
        %v844 = vmul.f32 %v805, %v816
        %v845 = vmul.f32 %v806, %v816
        %v846 = vmul.f32 %v807, %v816
        %v847 = vmul.f32 %v808, %v816
        %v848 = vmul.f32 %v809, %v816
        %v849 = vmul.f32 %v810, %v816
        %v850 = vld [vmem:[%s3] sm:$0x1]
        %v852 = vlaneseq
        %v853 = vshrl.u32 %v852, 7
        %v854 = vsub.s32 0, %v853
        %v855 = vrot.slane %v850, %v854
        %v857 = vadd.f32 %v818, %v855
        %v858 = vadd.f32 %v819, %v855
        %v859 = vadd.f32 %v820, %v855
        %v860 = vadd.f32 %v821, %v855
        %v861 = vadd.f32 %v822, %v855
        %v862 = vadd.f32 %v823, %v855
        %v863 = vadd.f32 %v824, %v855
        %v864 = vadd.f32 %v825, %v855
        %v865 = vadd.f32 %v826, %v855
        %v866 = vadd.f32 %v827, %v855
        %v867 = vadd.f32 %v828, %v855
        %v868 = vadd.f32 %v829, %v855
        %v869 = vadd.f32 %v830, %v855
        %v870 = vadd.f32 %v831, %v855
        %v871 = vadd.f32 %v832, %v855
        %v872 = vadd.f32 %v833, %v855
        %v873 = vadd.f32 %v834, %v855
        %v874 = vadd.f32 %v835, %v855
        %v875 = vadd.f32 %v836, %v855
        %v876 = vadd.f32 %v837, %v855
        %v877 = vadd.f32 %v838, %v855
        %v878 = vadd.f32 %v839, %v855
        %v879 = vadd.f32 %v840, %v855
        %v880 = vadd.f32 %v841, %v855
        %v881 = vadd.f32 %v842, %v855
        %v882 = vadd.f32 %v843, %v855
        %v883 = vadd.f32 %v844, %v855
        %v884 = vadd.f32 %v845, %v855
        %v885 = vadd.f32 %v846, %v855
        %v886 = vadd.f32 %v847, %v855
        %v887 = vadd.f32 %v848, %v855
        %v888 = vadd.f32 %v849, %v855
        %vm889 = vcmp.gt.f32.partialorder %v857, 0.0
        %vm890 = vcmp.gt.f32.partialorder %v858, 0.0
        %vm891 = vcmp.gt.f32.partialorder %v859, 0.0
        %vm892 = vcmp.gt.f32.partialorder %v860, 0.0
        %vm893 = vcmp.gt.f32.partialorder %v861, 0.0
        %vm894 = vcmp.gt.f32.partialorder %v862, 0.0
        %vm895 = vcmp.gt.f32.partialorder %v863, 0.0
        %vm896 = vcmp.gt.f32.partialorder %v864, 0.0
        %vm897 = vcmp.gt.f32.partialorder %v865, 0.0
        %vm898 = vcmp.gt.f32.partialorder %v866, 0.0
        %vm899 = vcmp.gt.f32.partialorder %v867, 0.0
        %vm900 = vcmp.gt.f32.partialorder %v868, 0.0
        %vm901 = vcmp.gt.f32.partialorder %v869, 0.0
        %vm902 = vcmp.gt.f32.partialorder %v870, 0.0
        %vm903 = vcmp.gt.f32.partialorder %v871, 0.0
        %vm904 = vcmp.gt.f32.partialorder %v872, 0.0
        %vm905 = vcmp.gt.f32.partialorder %v873, 0.0
        %vm906 = vcmp.gt.f32.partialorder %v874, 0.0
        %vm907 = vcmp.gt.f32.partialorder %v875, 0.0
        %vm908 = vcmp.gt.f32.partialorder %v876, 0.0
        %vm909 = vcmp.gt.f32.partialorder %v877, 0.0
        %vm910 = vcmp.gt.f32.partialorder %v878, 0.0
        %vm911 = vcmp.gt.f32.partialorder %v879, 0.0
        %vm912 = vcmp.gt.f32.partialorder %v880, 0.0
        %vm913 = vcmp.gt.f32.partialorder %v881, 0.0
        %vm914 = vcmp.gt.f32.partialorder %v882, 0.0
        %vm915 = vcmp.gt.f32.partialorder %v883, 0.0
        %vm916 = vcmp.gt.f32.partialorder %v884, 0.0
        %vm917 = vcmp.gt.f32.partialorder %v885, 0.0
        %vm918 = vcmp.gt.f32.partialorder %v886, 0.0
        %vm919 = vcmp.gt.f32.partialorder %v887, 0.0
        %vm920 = vcmp.gt.f32.partialorder %v888, 0.0
        %v921 = vmul.f32 %v857, 0.2
        %v922 = vmul.f32 %v858, 0.2
        %v923 = vmul.f32 %v859, 0.2
        %v924 = vmul.f32 %v860, 0.2
        %v925 = vmul.f32 %v861, 0.2
        %v926 = vmul.f32 %v862, 0.2
        %v927 = vmul.f32 %v863, 0.2
        %v928 = vmul.f32 %v864, 0.2
        %v929 = vmul.f32 %v865, 0.2
        %v930 = vmul.f32 %v866, 0.2
        %v931 = vmul.f32 %v867, 0.2
        %v932 = vmul.f32 %v868, 0.2
        %v933 = vmul.f32 %v869, 0.2
        %v934 = vmul.f32 %v870, 0.2
        %v935 = vmul.f32 %v871, 0.2
        %v936 = vmul.f32 %v872, 0.2
        %v937 = vmul.f32 %v873, 0.2
        %v938 = vmul.f32 %v874, 0.2
        %v939 = vmul.f32 %v875, 0.2
        %v940 = vmul.f32 %v876, 0.2
        %v941 = vmul.f32 %v877, 0.2
        %v942 = vmul.f32 %v878, 0.2
        %v943 = vmul.f32 %v879, 0.2
        %v944 = vmul.f32 %v880, 0.2
        %v945 = vmul.f32 %v881, 0.2
        %v946 = vmul.f32 %v882, 0.2
        %v947 = vmul.f32 %v883, 0.2
        %v948 = vmul.f32 %v884, 0.2
        %v949 = vmul.f32 %v885, 0.2
        %v950 = vmul.f32 %v886, 0.2
        %v951 = vmul.f32 %v887, 0.2
        %v952 = vmul.f32 %v888, 0.2
        %v953 = vsel %vm889, %v857, %v921
        %v954 = vsel %vm890, %v858, %v922
        %v955 = vsel %vm891, %v859, %v923
        %v956 = vsel %vm892, %v860, %v924
        %v957 = vsel %vm893, %v861, %v925
        %v958 = vsel %vm894, %v862, %v926
        %v959 = vsel %vm895, %v863, %v927
        %v960 = vsel %vm896, %v864, %v928
        %v961 = vsel %vm897, %v865, %v929
        %v962 = vsel %vm898, %v866, %v930
        %v963 = vsel %vm899, %v867, %v931
        %v964 = vsel %vm900, %v868, %v932
        %v965 = vsel %vm901, %v869, %v933
        %v966 = vsel %vm902, %v870, %v934
        %v967 = vsel %vm903, %v871, %v935
        %v968 = vsel %vm904, %v872, %v936
        %v969 = vsel %vm905, %v873, %v937
        %v970 = vsel %vm906, %v874, %v938
        %v971 = vsel %vm907, %v875, %v939
        %v972 = vsel %vm908, %v876, %v940
        %v973 = vsel %vm909, %v877, %v941
        %v974 = vsel %vm910, %v878, %v942
        %v975 = vsel %vm911, %v879, %v943
        %v976 = vsel %vm912, %v880, %v944
        %v977 = vsel %vm913, %v881, %v945
        %v978 = vsel %vm914, %v882, %v946
        %v979 = vsel %vm915, %v883, %v947
        %v980 = vsel %vm916, %v884, %v948
        %v981 = vsel %vm917, %v885, %v949
        %v982 = vsel %vm918, %v886, %v950
        %v983 = vsel %vm919, %v887, %v951
        %v984 = vsel %vm920, %v888, %v952
        %v985 = vpack.c.bf16 %v954, %v953
        %v986 = vpack.c.bf16 %v956, %v955
        %v987 = vpack.c.bf16 %v958, %v957
        %v988 = vpack.c.bf16 %v960, %v959
        %v989 = vpack.c.bf16 %v962, %v961
        %v990 = vpack.c.bf16 %v964, %v963
        %v991 = vpack.c.bf16 %v966, %v965
        %v992 = vpack.c.bf16 %v968, %v967
        %v993 = vpack.c.bf16 %v970, %v969
        %v994 = vpack.c.bf16 %v972, %v971
        %v995 = vpack.c.bf16 %v974, %v973
        %v996 = vpack.c.bf16 %v976, %v975
        %v997 = vpack.c.bf16 %v978, %v977
        %v998 = vpack.c.bf16 %v980, %v979
        %v999 = vpack.c.bf16 %v982, %v981
        %v1000 = vpack.c.bf16 %v984, %v983
        %v1017 = vunpack.c.l.b16 %v985
        %v1018 = vunpack.c.h.b16 %v985
        %v1019 = vunpack.c.l.b16 %v986
        %v1020 = vunpack.c.h.b16 %v986
        %v1021 = vunpack.c.l.b16 %v987
        %v1022 = vunpack.c.h.b16 %v987
        %v1023 = vunpack.c.l.b16 %v988
        %v1024 = vunpack.c.h.b16 %v988
        %v1025 = vunpack.c.l.b16 %v989
        %v1026 = vunpack.c.h.b16 %v989
        %v1027 = vunpack.c.l.b16 %v990
        %v1028 = vunpack.c.h.b16 %v990
        %v1029 = vunpack.c.l.b16 %v991
        %v1030 = vunpack.c.h.b16 %v991
        %v1031 = vunpack.c.l.b16 %v992
        %v1032 = vunpack.c.h.b16 %v992
        %v1033 = vunpack.c.l.b16 %v993
        %v1034 = vunpack.c.h.b16 %v993
        %v1035 = vunpack.c.l.b16 %v994
        %v1036 = vunpack.c.h.b16 %v994
        %v1037 = vunpack.c.l.b16 %v995
        %v1038 = vunpack.c.h.b16 %v995
        %v1039 = vunpack.c.l.b16 %v996
        %v1040 = vunpack.c.h.b16 %v996
        %v1041 = vunpack.c.l.b16 %v997
        %v1042 = vunpack.c.h.b16 %v997
        %v1043 = vunpack.c.l.b16 %v998
        %v1044 = vunpack.c.h.b16 %v998
        %v1045 = vunpack.c.l.b16 %v999
        %v1046 = vunpack.c.h.b16 %v999
        %v1047 = vunpack.c.l.b16 %v1000
        %v1048 = vunpack.c.h.b16 %v1000
        %v1049 = vpack.c.b16 %v1017, %v1017
        %v1050 = vpack.c.b16 %v1018, %v1018
        %v1051 = vpack.c.b16 %v1019, %v1019
        %v1052 = vpack.c.b16 %v1020, %v1020
        %v1053 = vpack.c.b16 %v1021, %v1021
        %v1054 = vpack.c.b16 %v1022, %v1022
        %v1055 = vpack.c.b16 %v1023, %v1023
        %v1056 = vpack.c.b16 %v1024, %v1024
        %v1057 = vpack.c.b16 %v1025, %v1025
        %v1058 = vpack.c.b16 %v1026, %v1026
        %v1059 = vpack.c.b16 %v1027, %v1027
        %v1060 = vpack.c.b16 %v1028, %v1028
        %v1061 = vpack.c.b16 %v1029, %v1029
        %v1062 = vpack.c.b16 %v1030, %v1030
        %v1063 = vpack.c.b16 %v1031, %v1031
        %v1064 = vpack.c.b16 %v1032, %v1032
        %v1065 = vpack.c.b16 %v1033, %v1033
        %v1066 = vpack.c.b16 %v1034, %v1034
        %v1067 = vpack.c.b16 %v1035, %v1035
        %v1068 = vpack.c.b16 %v1036, %v1036
        %v1069 = vpack.c.b16 %v1037, %v1037
        %v1070 = vpack.c.b16 %v1038, %v1038
        %v1071 = vpack.c.b16 %v1039, %v1039
        %v1072 = vpack.c.b16 %v1040, %v1040
        %v1073 = vpack.c.b16 %v1041, %v1041
        %v1074 = vpack.c.b16 %v1042, %v1042
        %v1075 = vpack.c.b16 %v1043, %v1043
        %v1076 = vpack.c.b16 %v1044, %v1044
        %v1077 = vpack.c.b16 %v1045, %v1045
        %v1078 = vpack.c.b16 %v1046, %v1046
        %v1079 = vpack.c.b16 %v1047, %v1047
        %v1080 = vpack.c.b16 %v1048, %v1048
        %1113 = vst [vmem:[%s211] sm:$0xf] %v1049
        %1114 = vst [vmem:[%s211 + $0x4] sm:$0xf] %v1050
        %1115 = vst [vmem:[%s211 + $0x8] sm:$0xf] %v1051
        %1116 = vst [vmem:[%s211 + $0xc] sm:$0xf] %v1052
        %1117 = vst [vmem:[%s211 + $0x10] sm:$0xf] %v1053
        %1118 = vst [vmem:[%s211 + $0x14] sm:$0xf] %v1054
        %1119 = vst [vmem:[%s211 + $0x18] sm:$0xf] %v1055
        %1120 = vst [vmem:[%s211 + $0x1c] sm:$0xf] %v1056
        %1121 = vst [vmem:[%s211 + $0x20] sm:$0xf] %v1057
        %1122 = vst [vmem:[%s211 + $0x24] sm:$0xf] %v1058
        %1123 = vst [vmem:[%s211 + $0x28] sm:$0xf] %v1059
        %1124 = vst [vmem:[%s211 + $0x2c] sm:$0xf] %v1060
        %1125 = vst [vmem:[%s211 + $0x30] sm:$0xf] %v1061
        %1126 = vst [vmem:[%s211 + $0x34] sm:$0xf] %v1062
        %1127 = vst [vmem:[%s211 + $0x38] sm:$0xf] %v1063
        %1128 = vst [vmem:[%s211 + $0x3c] sm:$0xf] %v1064
        %1129 = vst [vmem:[%s211 + $0x40] sm:$0xf] %v1065
        %1130 = vst [vmem:[%s211 + $0x44] sm:$0xf] %v1066
        %1131 = vst [vmem:[%s211 + $0x48] sm:$0xf] %v1067
        %1132 = vst [vmem:[%s211 + $0x4c] sm:$0xf] %v1068
        %1133 = vst [vmem:[%s211 + $0x50] sm:$0xf] %v1069
        %1134 = vst [vmem:[%s211 + $0x54] sm:$0xf] %v1070
        %1135 = vst [vmem:[%s211 + $0x58] sm:$0xf] %v1071
        %1136 = vst [vmem:[%s211 + $0x5c] sm:$0xf] %v1072
        %1137 = vst [vmem:[%s211 + $0x60] sm:$0xf] %v1073
        %1138 = vst [vmem:[%s211 + $0x64] sm:$0xf] %v1074
        %1139 = vst [vmem:[%s211 + $0x68] sm:$0xf] %v1075
        %1140 = vst [vmem:[%s211 + $0x6c] sm:$0xf] %v1076
        %1141 = vst [vmem:[%s211 + $0x70] sm:$0xf] %v1077
        %1142 = vst [vmem:[%s211 + $0x74] sm:$0xf] %v1078
        %1143 = vst [vmem:[%s211 + $0x78] sm:$0xf] %v1079
        %1144 = vst [vmem:[%s211 + $0x7c] sm:$0xf] %v1080
      $region48: #{discriminator_forward.4} parent=35 // pred_fallthru
        _
      %s1145 = smul.u32 32, %s20
      %p1146 = scmp.lt.s32.totalorder %s1145, 63
      %s1147 = scalar_select %p1146, %s1145, 63
      %s1148 = smul.addr %s1147, 4
      %s1149 = scalar_lea.vmem %s4, %s1148
      // Predicated region
      $region49: #{discriminator_forward.4} parent=35 // pred_check
        %p1150 = pneg %p134
      $region50: #{discriminator_forward.4} parent=35 // pred_check_branch
        %1152 = sbr.rel (%p1150) target = $region52
      $region51: #{discriminator_forward.4} parent=35 // pred_region
        %s1153 = smul.u32 32, %s20
      $region52: #{discriminator_forward.4} parent=35 // pred_fallthru
        _
    $region36: #{discriminator_forward.4} parent=5 // pred_fallthru
      _
    %p1154 = scmp.le.s32.totalorder 2, %s10
    // Predicated region
    $region53: #{discriminator_forward.4} parent=5 // pred_check
      %p1155 = pneg %p1154
    $region54: #{discriminator_forward.4} parent=5 // pred_check_branch
      %1157 = sbr.rel (%p1155) target = $region56
    $region55: #{discriminator_forward.4} parent=5 // pred_region
      %s1158 = ssub.s32 %s10, 2
      // Predicated region
      $region57: #{discriminator_forward.4} parent=55 // pred_check
        %p1159 = pneg %p140
      $region58: #{discriminator_forward.4} parent=55 // pred_check_branch
        %1161 = sbr.rel (%p1159) target = $region60
      $region59: #{discriminator_forward.4} parent=55 // pred_region
        %s1162 = smul.u32 32, %s22
        %p1163 = scmp.lt.s32.totalorder %s1162, 63
        %s1164 = scalar_select %p1163, %s1162, 63
        %s1165 = smul.addr %s1164, 4
        %s1166 = scalar_lea.vmem %s4, %s1165
      $region60: #{discriminator_forward.4} parent=55 // pred_fallthru
        _
    $region56: #{discriminator_forward.4} parent=5 // pred_fallthru
      _
  $region6: #{discriminator_forward.4} parent=0 // loop_footer
    %s14 = sadd.s32 1, %s10
  $region7: #{discriminator_forward.4} parent=0 // loop_footer_branch
    %9 = sbr.rel target = $region3
  $region8: #{discriminator_forward.4} parent=0 // loop_exit
    _

// kernel: discriminator_forward.5
$region0: #{discriminator_forward.5}
  #allocation0 [shape = 'u32[]', space=smem, size = 0x4, offset = 0x4, fixed_abs, tag = 'smem constant byte address 0x4 - core index']
  #allocation1 [shape = 'u32[144,128]{1,0:T(1,128)}', space=vmem, size = 0x12000, scoped, tag = 'internal scratch']
  %s0 = inlined_call_operand.vmem [shape: bf16[128,256], index: 0, kind: input, shape index: {}]
  %s1 = inlined_call_operand.vmem [shape: bf16[256,128], index: 1, kind: input, shape index: {}]
  %s2 = inlined_call_operand.vmem [shape: f32[1,128], index: 2, kind: input, shape index: {}]
  %s3 = inlined_call_operand.vmem [shape: f32[1,128], index: 3, kind: input, shape index: {}]
  %s4 = inlined_call_operand.vmem [shape: bf16[512,128], index: 4, kind: input, shape index: {}]
  %s5 = inlined_call_operand.vmem [shape: bf16[16,128,128], index: 5, kind: input, shape index: {}]
  %s6 = inlined_call_operand.vmem [shape: f32[1,128], index: 6, kind: input, shape index: {}]
  %s7 = inlined_call_operand.vmem [shape: f32[1,128], index: 7, kind: input, shape index: {}]
  %s8 = inlined_call_operand.vmem [shape: f32[32,128], index: 8, kind: input, shape index: {}]
  %s9 = inlined_call_operand.vmem [shape: f32[2,32], index: 9, kind: input, shape index: {}]
  %s10 = inlined_call_operand.vmem [shape: f32[2,1], index: 10, kind: output, shape index: {}]
  %s11 = sld [smem:[#allocation0]]
  $region50: #{discriminator_forward.5} parent=0
    _
  %s13 = ssub.s32 1, %s11
  %s14 = scalar_select 0, %s13, %s11
  // Predicated region
  $region2: #{discriminator_forward.5} parent=0 // pred_check
    _
  $region3: #{discriminator_forward.5} parent=0 // pred_check_branch
    %16 = sbr.rel (0) target = $region5
  $region4: #{discriminator_forward.5} parent=0 // pred_region
    _
  $region5: #{discriminator_forward.5} parent=0 // pred_fallthru
    _
  // Predicated region
  $region6: #{discriminator_forward.5} parent=0 // pred_check
    _
  $region7: #{discriminator_forward.5} parent=0 // pred_check_branch
    %18 = sbr.rel (0) target = $region9
  $region8: #{discriminator_forward.5} parent=0 // pred_region
    _
  $region9: #{discriminator_forward.5} parent=0 // pred_fallthru
    _
  // Predicated region
  $region10: #{discriminator_forward.5} parent=0 // pred_check
    _
  $region11: #{discriminator_forward.5} parent=0 // pred_check_branch
    %20 = sbr.rel (0) target = $region13
  $region12: #{discriminator_forward.5} parent=0 // pred_region
    _
  $region13: #{discriminator_forward.5} parent=0 // pred_fallthru
    _
  // Predicated region
  $region14: #{discriminator_forward.5} parent=0 // pred_check
    _
  $region15: #{discriminator_forward.5} parent=0 // pred_check_branch
    %22 = sbr.rel (0) target = $region17
  $region16: #{discriminator_forward.5} parent=0 // pred_region
    _
  $region17: #{discriminator_forward.5} parent=0 // pred_fallthru
    _
  // Predicated region
  $region18: #{discriminator_forward.5} parent=0 // pred_check
    _
  $region19: #{discriminator_forward.5} parent=0 // pred_check_branch
    %24 = sbr.rel (0) target = $region21
  $region20: #{discriminator_forward.5} parent=0 // pred_region
    _
  $region21: #{discriminator_forward.5} parent=0 // pred_fallthru
    _
  // Predicated region
  $region22: #{discriminator_forward.5} parent=0 // pred_check
    _
  $region23: #{discriminator_forward.5} parent=0 // pred_check_branch
    %26 = sbr.rel (0) target = $region25
  $region24: #{discriminator_forward.5} parent=0 // pred_region
    _
  $region25: #{discriminator_forward.5} parent=0 // pred_fallthru
    _
  // Predicated region
  $region26: #{discriminator_forward.5} parent=0 // pred_check
    _
  $region27: #{discriminator_forward.5} parent=0 // pred_check_branch
    %28 = sbr.rel (0) target = $region29
  $region28: #{discriminator_forward.5} parent=0 // pred_region
    _
  $region29: #{discriminator_forward.5} parent=0 // pred_fallthru
    _
  // Predicated region
  $region30: #{discriminator_forward.5} parent=0 // pred_check
    _
  $region31: #{discriminator_forward.5} parent=0 // pred_check_branch
    %30 = sbr.rel (0) target = $region33
  $region32: #{discriminator_forward.5} parent=0 // pred_region
    _
  $region33: #{discriminator_forward.5} parent=0 // pred_fallthru
    _
  // Predicated region
  $region34: #{discriminator_forward.5} parent=0 // pred_check
    _
  $region35: #{discriminator_forward.5} parent=0 // pred_check_branch
    %32 = sbr.rel (0) target = $region37
  $region36: #{discriminator_forward.5} parent=0 // pred_region
    _
  $region37: #{discriminator_forward.5} parent=0 // pred_fallthru
    _
  // Predicated region
  $region38: #{discriminator_forward.5} parent=0 // pred_check
    _
  $region39: #{discriminator_forward.5} parent=0 // pred_check_branch
    %34 = sbr.rel (0) target = $region41
  $region40: #{discriminator_forward.5} parent=0 // pred_region
    _
  $region41: #{discriminator_forward.5} parent=0 // pred_fallthru
    _
  %v36 = vld [vmem:[%s0] sm:$0xff]
  %v37 = vld [vmem:[%s0 + $0x8] sm:$0xff]
  %v38 = vld [vmem:[%s0 + $0x10] sm:$0xff]
  %v39 = vld [vmem:[%s0 + $0x18] sm:$0xff]
  %v40 = vld [vmem:[%s0 + $0x20] sm:$0xff]
  %v41 = vld [vmem:[%s0 + $0x28] sm:$0xff]
  %v42 = vld [vmem:[%s0 + $0x30] sm:$0xff]
  %v43 = vld [vmem:[%s0 + $0x38] sm:$0xff]
  %v44 = vld [vmem:[%s0 + $0x40] sm:$0xff]
  %v45 = vld [vmem:[%s0 + $0x48] sm:$0xff]
  %v46 = vld [vmem:[%s0 + $0x50] sm:$0xff]
  %v47 = vld [vmem:[%s0 + $0x58] sm:$0xff]
  %v48 = vld [vmem:[%s0 + $0x60] sm:$0xff]
  %v49 = vld [vmem:[%s0 + $0x68] sm:$0xff]
  %v50 = vld [vmem:[%s0 + $0x70] sm:$0xff]
  %v51 = vld [vmem:[%s0 + $0x78] sm:$0xff]
  %v52 = vld [vmem:[%s1] sm:$0xf]
  %v53 = vld [vmem:[%s1 + $0x4] sm:$0xf]
  %v54 = vld [vmem:[%s1 + $0x8] sm:$0xf]
  %v55 = vld [vmem:[%s1 + $0xc] sm:$0xf]
  %v56 = vld [vmem:[%s1 + $0x10] sm:$0xf]
  %v57 = vld [vmem:[%s1 + $0x14] sm:$0xf]
  %v58 = vld [vmem:[%s1 + $0x18] sm:$0xf]
  %v59 = vld [vmem:[%s1 + $0x1c] sm:$0xf]
  %v60 = vld [vmem:[%s1 + $0x20] sm:$0xf]
  %v61 = vld [vmem:[%s1 + $0x24] sm:$0xf]
  %v62 = vld [vmem:[%s1 + $0x28] sm:$0xf]
  %v63 = vld [vmem:[%s1 + $0x2c] sm:$0xf]
  %v64 = vld [vmem:[%s1 + $0x30] sm:$0xf]
  %v65 = vld [vmem:[%s1 + $0x34] sm:$0xf]
  %v66 = vld [vmem:[%s1 + $0x38] sm:$0xf]
  %v67 = vld [vmem:[%s1 + $0x3c] sm:$0xf]
  %v68 = vld [vmem:[%s1 + $0x40] sm:$0xf]
  %v69 = vld [vmem:[%s1 + $0x44] sm:$0xf]
  %v70 = vld [vmem:[%s1 + $0x48] sm:$0xf]
  %v71 = vld [vmem:[%s1 + $0x4c] sm:$0xf]
  %v72 = vld [vmem:[%s1 + $0x50] sm:$0xf]
  %v73 = vld [vmem:[%s1 + $0x54] sm:$0xf]
  %v74 = vld [vmem:[%s1 + $0x58] sm:$0xf]
  %v75 = vld [vmem:[%s1 + $0x5c] sm:$0xf]
  %v76 = vld [vmem:[%s1 + $0x60] sm:$0xf]
  %v77 = vld [vmem:[%s1 + $0x64] sm:$0xf]
  %v78 = vld [vmem:[%s1 + $0x68] sm:$0xf]
  %v79 = vld [vmem:[%s1 + $0x6c] sm:$0xf]
  %v80 = vld [vmem:[%s1 + $0x70] sm:$0xf]
  %v81 = vld [vmem:[%s1 + $0x74] sm:$0xf]
  %v82 = vld [vmem:[%s1 + $0x78] sm:$0xf]
  %v83 = vld [vmem:[%s1 + $0x7c] sm:$0xf]
  %v100 = vunpack.c.l.b16 %v36
  %v101 = vunpack.c.h.b16 %v36
  %v102 = vunpack.c.l.b16 %v37
  %v103 = vunpack.c.h.b16 %v37
  %v104 = vunpack.c.l.b16 %v38
  %v105 = vunpack.c.h.b16 %v38
  %v106 = vunpack.c.l.b16 %v39
  %v107 = vunpack.c.h.b16 %v39
  %v108 = vunpack.c.l.b16 %v40
  %v109 = vunpack.c.h.b16 %v40
  %v110 = vunpack.c.l.b16 %v41
  %v111 = vunpack.c.h.b16 %v41
  %v112 = vunpack.c.l.b16 %v42
  %v113 = vunpack.c.h.b16 %v42
  %v114 = vunpack.c.l.b16 %v43
  %v115 = vunpack.c.h.b16 %v43
  %v116 = vunpack.c.l.b16 %v44
  %v117 = vunpack.c.h.b16 %v44
  %v118 = vunpack.c.l.b16 %v45
  %v119 = vunpack.c.h.b16 %v45
  %v120 = vunpack.c.l.b16 %v46
  %v121 = vunpack.c.h.b16 %v46
  %v122 = vunpack.c.l.b16 %v47
  %v123 = vunpack.c.h.b16 %v47
  %v124 = vunpack.c.l.b16 %v48
  %v125 = vunpack.c.h.b16 %v48
  %v126 = vunpack.c.l.b16 %v49
  %v127 = vunpack.c.h.b16 %v49
  %v128 = vunpack.c.l.b16 %v50
  %v129 = vunpack.c.h.b16 %v50
  %v130 = vunpack.c.l.b16 %v51
  %v131 = vunpack.c.h.b16 %v51
  %v132 = vpack.c.b16 %v102, %v100
  %v133 = vpack.c.b16 %v103, %v101
  %v134 = vpack.c.b16 %v106, %v104
  %v135 = vpack.c.b16 %v107, %v105
  %v136 = vpack.c.b16 %v110, %v108
  %v137 = vpack.c.b16 %v111, %v109
  %v138 = vpack.c.b16 %v114, %v112
  %v139 = vpack.c.b16 %v115, %v113
  %v140 = vpack.c.b16 %v118, %v116
  %v141 = vpack.c.b16 %v119, %v117
  %v142 = vpack.c.b16 %v122, %v120
  %v143 = vpack.c.b16 %v123, %v121
  %v144 = vpack.c.b16 %v126, %v124
  %v145 = vpack.c.b16 %v127, %v125
  %v146 = vpack.c.b16 %v130, %v128
  %v147 = vpack.c.b16 %v131, %v129
  %v196 = vunpack.c.l.b16 %v52
  %v197 = vunpack.c.l.b16 %v53
  %v198 = vunpack.c.l.b16 %v54
  %v199 = vunpack.c.l.b16 %v55
  %v200 = vunpack.c.l.b16 %v56
  %v201 = vunpack.c.l.b16 %v57
  %v202 = vunpack.c.l.b16 %v58
  %v203 = vunpack.c.l.b16 %v59
  %v204 = vunpack.c.l.b16 %v60
  %v205 = vunpack.c.l.b16 %v61
  %v206 = vunpack.c.l.b16 %v62
  %v207 = vunpack.c.l.b16 %v63
  %v208 = vunpack.c.l.b16 %v64
  %v209 = vunpack.c.l.b16 %v65
  %v210 = vunpack.c.l.b16 %v66
  %v211 = vunpack.c.l.b16 %v67
  %v212 = vunpack.c.l.b16 %v68
  %v213 = vunpack.c.l.b16 %v69
  %v214 = vunpack.c.l.b16 %v70
  %v215 = vunpack.c.l.b16 %v71
  %v216 = vunpack.c.l.b16 %v72
  %v217 = vunpack.c.l.b16 %v73
  %v218 = vunpack.c.l.b16 %v74
  %v219 = vunpack.c.l.b16 %v75
  %v220 = vunpack.c.l.b16 %v76
  %v221 = vunpack.c.l.b16 %v77
  %v222 = vunpack.c.l.b16 %v78
  %v223 = vunpack.c.l.b16 %v79
  %v224 = vunpack.c.l.b16 %v80
  %v225 = vunpack.c.l.b16 %v81
  %v226 = vunpack.c.l.b16 %v82
  %v227 = vunpack.c.l.b16 %v83
  %v228 = vpack.c.b16 %v197, %v196
  %v229 = vpack.c.b16 %v199, %v198
  %v230 = vpack.c.b16 %v201, %v200
  %v231 = vpack.c.b16 %v203, %v202
  %v232 = vpack.c.b16 %v205, %v204
  %v233 = vpack.c.b16 %v207, %v206
  %v234 = vpack.c.b16 %v209, %v208
  %v235 = vpack.c.b16 %v211, %v210
  %v236 = vpack.c.b16 %v213, %v212
  %v237 = vpack.c.b16 %v215, %v214
  %v238 = vpack.c.b16 %v217, %v216
  %v239 = vpack.c.b16 %v219, %v218
  %v240 = vpack.c.b16 %v221, %v220
  %v241 = vpack.c.b16 %v223, %v222
  %v242 = vpack.c.b16 %v225, %v224
  %v243 = vpack.c.b16 %v227, %v226
  %260 = vmatprep.subr.bf16.mxu0 0
  %261 = vmatpush1.bf16.msra.mxu0 %v235
  %262 = vmatprep.subr.bf16.mxu0 0
  %263 = vmatpush1.bf16.msra.mxu0 %v234
  %264 = vmatprep.subr.bf16.mxu0 0
  %265 = vmatpush1.bf16.msra.mxu0 %v233
  %266 = vmatprep.subr.bf16.mxu0 0
  %267 = vmatpush1.bf16.msra.mxu0 %v232
  %268 = vmatprep.subr.bf16.mxu0 0
  %269 = vmatpush1.bf16.msra.mxu0 %v231
  %270 = vmatprep.subr.bf16.mxu0 0
  %271 = vmatpush1.bf16.msra.mxu0 %v230
  %272 = vmatprep.subr.bf16.mxu0 0
  %273 = vmatpush1.bf16.msra.mxu0 %v229
  %274 = vmatprep.subr.bf16.mxu0 0
  %275 = vmatpush1.bf16.msra.mxu0 %v228
  %276 = vmatprep.subr.bf16.mxu0 0
  %277 = vmatpush2.bf16.msra.mxu0 %v243
  %278 = vmatprep.subr.bf16.mxu0 0
  %279 = vmatpush2.bf16.msra.mxu0 %v242
  %280 = vmatprep.subr.bf16.mxu0 0
  %281 = vmatpush2.bf16.msra.mxu0 %v241
  %282 = vmatprep.subr.bf16.mxu0 0
  %283 = vmatpush2.bf16.msra.mxu0 %v240
  %284 = vmatprep.subr.bf16.mxu0 0
  %285 = vmatpush2.bf16.msra.mxu0 %v239
  %286 = vmatprep.subr.bf16.mxu0 0
  %287 = vmatpush2.bf16.msra.mxu0 %v238
  %288 = vmatprep.subr.bf16.mxu0 0
  %289 = vmatpush2.bf16.msra.mxu0 %v237
  %290 = vmatprep.subr.bf16.mxu0 0
  %291 = vmatpush2.bf16.msra.mxu0 %v236
  %292 = vmatprep.mubr.bf16.mxu0 %v133
  %293 = vmatmul.mubr.bf16.gmra.mxu0 %v132
  %v294 = vpop.f32.mrf.mxu0
  %v295 = vadd.f32 0.0, %v294
  %v296 = vpop.f32.mrf.mxu0
  %v297 = vpop.f32.mrf.mxu0
  %v298 = vadd.f32 0.0, %v297
  %v299 = vpop.f32.mrf.mxu0
  %300 = vmatprep.mubr.bf16.mxu0 %v135
  %301 = vmatmul.mubr.bf16.gmra.mxu0 %v134
  %v302 = vpop.f32.mrf.mxu0
  %v303 = vadd.f32 0.0, %v302
  %v304 = vpop.f32.mrf.mxu0
  %v305 = vpop.f32.mrf.mxu0
  %v306 = vadd.f32 0.0, %v305
  %v307 = vpop.f32.mrf.mxu0
  %308 = vmatprep.mubr.bf16.mxu0 %v137
  %309 = vmatmul.mubr.bf16.gmra.mxu0 %v136
  %v310 = vpop.f32.mrf.mxu0
  %v311 = vadd.f32 0.0, %v310
  %v312 = vpop.f32.mrf.mxu0
  %v313 = vpop.f32.mrf.mxu0
  %v314 = vadd.f32 0.0, %v313
  %v315 = vpop.f32.mrf.mxu0
  %316 = vmatprep.mubr.bf16.mxu0 %v139
  %317 = vmatmul.mubr.bf16.gmra.mxu0 %v138
  %v318 = vpop.f32.mrf.mxu0
  %v319 = vadd.f32 0.0, %v318
  %v320 = vpop.f32.mrf.mxu0
  %v321 = vpop.f32.mrf.mxu0
  %v322 = vadd.f32 0.0, %v321
  %v323 = vpop.f32.mrf.mxu0
  %324 = vmatprep.mubr.bf16.mxu0 %v141
  %325 = vmatmul.mubr.bf16.gmra.mxu0 %v140
  %v326 = vpop.f32.mrf.mxu0
  %v327 = vadd.f32 0.0, %v326
  %v328 = vpop.f32.mrf.mxu0
  %v329 = vpop.f32.mrf.mxu0
  %v330 = vadd.f32 0.0, %v329
  %v331 = vpop.f32.mrf.mxu0
  %332 = vmatprep.mubr.bf16.mxu0 %v143
  %333 = vmatmul.mubr.bf16.gmra.mxu0 %v142
  %v334 = vpop.f32.mrf.mxu0
  %v335 = vadd.f32 0.0, %v334
  %v336 = vpop.f32.mrf.mxu0
  %v337 = vpop.f32.mrf.mxu0
  %v338 = vadd.f32 0.0, %v337
  %v339 = vpop.f32.mrf.mxu0
  %340 = vmatprep.mubr.bf16.mxu0 %v145
  %341 = vmatmul.mubr.bf16.gmra.mxu0 %v144
  %v342 = vpop.f32.mrf.mxu0
  %v343 = vadd.f32 0.0, %v342
  %v344 = vpop.f32.mrf.mxu0
  %v345 = vpop.f32.mrf.mxu0
  %v346 = vadd.f32 0.0, %v345
  %v347 = vpop.f32.mrf.mxu0
  %348 = vmatprep.mubr.bf16.mxu0 %v147
  %349 = vmatmul.mubr.bf16.gmra.mxu0 %v146
  %v350 = vpop.f32.mrf.mxu0
  %v351 = vadd.f32 0.0, %v350
  %v352 = vpop.f32.mrf.mxu0
  %v353 = vpop.f32.mrf.mxu0
  %v354 = vadd.f32 0.0, %v353
  %v355 = vpop.f32.mrf.mxu0
  %356 = vdwg.mxu0
  %v357 = vld [vmem:[%s2] sm:$0x1]
  %v358 = vld [vmem:[%s3] sm:$0x1]
  %v359 = vadd.f32 %v295, %v298
  %v360 = vadd.f32 %v359, %v303
  %v361 = vadd.f32 %v360, %v306
  %v362 = vadd.f32 %v361, %v311
  %v363 = vadd.f32 %v362, %v314
  %v364 = vadd.f32 %v363, %v319
  %v365 = vadd.f32 %v364, %v322
  %v366 = vadd.f32 %v365, %v327
  %v367 = vadd.f32 %v366, %v330
  %v368 = vadd.f32 %v367, %v335
  %v369 = vadd.f32 %v368, %v338
  %v370 = vadd.f32 %v369, %v343
  %v371 = vadd.f32 %v370, %v346
  %v372 = vadd.f32 %v371, %v351
  %v373 = vadd.f32 %v372, %v354
  %v374 = vrot.slane %v373, 4
  %v375 = vadd.f32 %v373, %v374
  %v376 = vrot.slane %v375, 2
  %v377 = vadd.f32 %v375, %v376
  %v378 = vrot.slane %v377, 1
  %v379 = vadd.f32 %v377, %v378
  %v380 = vmul.f32 %v295, %v295
  %v381 = vmul.f32 %v298, %v298
  %v382 = vmul.f32 %v303, %v303
  %v383 = vmul.f32 %v306, %v306
  %v384 = vmul.f32 %v311, %v311
  %v385 = vmul.f32 %v314, %v314
  %v386 = vmul.f32 %v319, %v319
  %v387 = vmul.f32 %v322, %v322
  %v388 = vmul.f32 %v327, %v327
  %v389 = vmul.f32 %v330, %v330
  %v390 = vmul.f32 %v335, %v335
  %v391 = vmul.f32 %v338, %v338
  %v392 = vmul.f32 %v343, %v343
  %v393 = vmul.f32 %v346, %v346
  %v394 = vmul.f32 %v351, %v351
  %v395 = vmul.f32 %v354, %v354
  %v396 = vadd.f32 %v380, %v381
  %v397 = vadd.f32 %v396, %v382
  %v398 = vadd.f32 %v397, %v383
  %v399 = vadd.f32 %v398, %v384
  %v400 = vadd.f32 %v399, %v385
  %v401 = vadd.f32 %v400, %v386
  %v402 = vadd.f32 %v401, %v387
  %v403 = vadd.f32 %v402, %v388
  %v404 = vadd.f32 %v403, %v389
  %v405 = vadd.f32 %v404, %v390
  %v406 = vadd.f32 %v405, %v391
  %v407 = vadd.f32 %v406, %v392
  %v408 = vadd.f32 %v407, %v393
  %v409 = vadd.f32 %v408, %v394
  %v410 = vadd.f32 %v409, %v395
  %v411 = vrot.slane %v410, 4
  %v412 = vadd.f32 %v410, %v411
  %v413 = vrot.slane %v412, 2
  %v414 = vadd.f32 %v412, %v413
  %v415 = vrot.slane %v414, 1
  %v416 = vadd.f32 %v414, %v415
  %v417 = vmul.f32 %v379, 0.0078125
  %v418 = vmul.f32 %v416, 0.0078125
  %v419 = vmul.f32 %v417, %v417
  %v420 = vsub.f32 %v418, %v419
  %v421 = vmax.f32 %v420, 0.0
  %v422 = vsub.f32 %v295, %v417
  %v423 = vsub.f32 %v298, %v417
  %v424 = vsub.f32 %v303, %v417
  %v425 = vsub.f32 %v306, %v417
  %v426 = vsub.f32 %v311, %v417
  %v427 = vsub.f32 %v314, %v417
  %v428 = vsub.f32 %v319, %v417
  %v429 = vsub.f32 %v322, %v417
  %v430 = vsub.f32 %v327, %v417
  %v431 = vsub.f32 %v330, %v417
  %v432 = vsub.f32 %v335, %v417
  %v433 = vsub.f32 %v338, %v417
  %v434 = vsub.f32 %v343, %v417
  %v435 = vsub.f32 %v346, %v417
  %v436 = vsub.f32 %v351, %v417
  %v437 = vsub.f32 %v354, %v417
  %v438 = vadd.f32 %v421, 1e-05
  %v439 = vrsqrt.pop %v438
  %v440 = vmul.f32 %v422, %v439
  %v441 = vmul.f32 %v423, %v439
  %v442 = vmul.f32 %v424, %v439
  %v443 = vmul.f32 %v425, %v439
  %v444 = vmul.f32 %v426, %v439
  %v445 = vmul.f32 %v427, %v439
  %v446 = vmul.f32 %v428, %v439
  %v447 = vmul.f32 %v429, %v439
  %v448 = vmul.f32 %v430, %v439
  %v449 = vmul.f32 %v431, %v439
  %v450 = vmul.f32 %v432, %v439
  %v451 = vmul.f32 %v433, %v439
  %v452 = vmul.f32 %v434, %v439
  %v453 = vmul.f32 %v435, %v439
  %v454 = vmul.f32 %v436, %v439
  %v455 = vmul.f32 %v437, %v439
  %v457 = vlaneseq
  %v458 = vshrl.u32 %v457, 7
  %v459 = vsub.s32 0, %v458
  %v460 = vrot.slane %v357, %v459
  %v462 = vmul.f32 %v440, %v460
  %v463 = vmul.f32 %v441, %v460
  %v464 = vmul.f32 %v442, %v460
  %v465 = vmul.f32 %v443, %v460
  %v466 = vmul.f32 %v444, %v460
  %v467 = vmul.f32 %v445, %v460
  %v468 = vmul.f32 %v446, %v460
  %v469 = vmul.f32 %v447, %v460
  %v470 = vmul.f32 %v448, %v460
  %v471 = vmul.f32 %v449, %v460
  %v472 = vmul.f32 %v450, %v460
  %v473 = vmul.f32 %v451, %v460
  %v474 = vmul.f32 %v452, %v460
  %v475 = vmul.f32 %v453, %v460
  %v476 = vmul.f32 %v454, %v460
  %v477 = vmul.f32 %v455, %v460
  %v479 = vlaneseq
  %v480 = vshrl.u32 %v479, 7
  %v481 = vsub.s32 0, %v480
  %v482 = vrot.slane %v358, %v481
  %v484 = vadd.f32 %v462, %v482
  %v485 = vadd.f32 %v463, %v482
  %v486 = vadd.f32 %v464, %v482
  %v487 = vadd.f32 %v465, %v482
  %v488 = vadd.f32 %v466, %v482
  %v489 = vadd.f32 %v467, %v482
  %v490 = vadd.f32 %v468, %v482
  %v491 = vadd.f32 %v469, %v482
  %v492 = vadd.f32 %v470, %v482
  %v493 = vadd.f32 %v471, %v482
  %v494 = vadd.f32 %v472, %v482
  %v495 = vadd.f32 %v473, %v482
  %v496 = vadd.f32 %v474, %v482
  %v497 = vadd.f32 %v475, %v482
  %v498 = vadd.f32 %v476, %v482
  %v499 = vadd.f32 %v477, %v482
  %vm500 = vcmp.gt.f32.partialorder %v484, 0.0
  %vm501 = vcmp.gt.f32.partialorder %v485, 0.0
  %vm502 = vcmp.gt.f32.partialorder %v486, 0.0
  %vm503 = vcmp.gt.f32.partialorder %v487, 0.0
  %vm504 = vcmp.gt.f32.partialorder %v488, 0.0
  %vm505 = vcmp.gt.f32.partialorder %v489, 0.0
  %vm506 = vcmp.gt.f32.partialorder %v490, 0.0
  %vm507 = vcmp.gt.f32.partialorder %v491, 0.0
  %vm508 = vcmp.gt.f32.partialorder %v492, 0.0
  %vm509 = vcmp.gt.f32.partialorder %v493, 0.0
  %vm510 = vcmp.gt.f32.partialorder %v494, 0.0
  %vm511 = vcmp.gt.f32.partialorder %v495, 0.0
  %vm512 = vcmp.gt.f32.partialorder %v496, 0.0
  %vm513 = vcmp.gt.f32.partialorder %v497, 0.0
  %vm514 = vcmp.gt.f32.partialorder %v498, 0.0
  %vm515 = vcmp.gt.f32.partialorder %v499, 0.0
  %v516 = vmul.f32 %v484, 0.2
  %v517 = vmul.f32 %v485, 0.2
  %v518 = vmul.f32 %v486, 0.2
  %v519 = vmul.f32 %v487, 0.2
  %v520 = vmul.f32 %v488, 0.2
  %v521 = vmul.f32 %v489, 0.2
  %v522 = vmul.f32 %v490, 0.2
  %v523 = vmul.f32 %v491, 0.2
  %v524 = vmul.f32 %v492, 0.2
  %v525 = vmul.f32 %v493, 0.2
  %v526 = vmul.f32 %v494, 0.2
  %v527 = vmul.f32 %v495, 0.2
  %v528 = vmul.f32 %v496, 0.2
  %v529 = vmul.f32 %v497, 0.2
  %v530 = vmul.f32 %v498, 0.2
  %v531 = vmul.f32 %v499, 0.2
  %v532 = vsel %vm500, %v484, %v516
  %v533 = vsel %vm501, %v485, %v517
  %v534 = vsel %vm502, %v486, %v518
  %v535 = vsel %vm503, %v487, %v519
  %v536 = vsel %vm504, %v488, %v520
  %v537 = vsel %vm505, %v489, %v521
  %v538 = vsel %vm506, %v490, %v522
  %v539 = vsel %vm507, %v491, %v523
  %v540 = vsel %vm508, %v492, %v524
  %v541 = vsel %vm509, %v493, %v525
  %v542 = vsel %vm510, %v494, %v526
  %v543 = vsel %vm511, %v495, %v527
  %v544 = vsel %vm512, %v496, %v528
  %v545 = vsel %vm513, %v497, %v529
  %v546 = vsel %vm514, %v498, %v530
  %v547 = vsel %vm515, %v499, %v531
  %v548 = vpack.c.bf16 %v533, %v532
  %v549 = vpack.c.bf16 %v535, %v534
  %v550 = vpack.c.bf16 %v537, %v536
  %v551 = vpack.c.bf16 %v539, %v538
  %v552 = vpack.c.bf16 %v541, %v540
  %v553 = vpack.c.bf16 %v543, %v542
  %v554 = vpack.c.bf16 %v545, %v544
  %v555 = vpack.c.bf16 %v547, %v546
  %v556 = vld [vmem:[%s4] sm:$0xf]
  %v557 = vld [vmem:[%s4 + $0x4] sm:$0xf]
  %v558 = vld [vmem:[%s4 + $0x8] sm:$0xf]
  %v559 = vld [vmem:[%s4 + $0xc] sm:$0xf]
  %v560 = vld [vmem:[%s4 + $0x10] sm:$0xf]
  %v561 = vld [vmem:[%s4 + $0x14] sm:$0xf]
  %v562 = vld [vmem:[%s4 + $0x18] sm:$0xf]
  %v563 = vld [vmem:[%s4 + $0x1c] sm:$0xf]
  %v564 = vld [vmem:[%s4 + $0x20] sm:$0xf]
  %v565 = vld [vmem:[%s4 + $0x24] sm:$0xf]
  %v566 = vld [vmem:[%s4 + $0x28] sm:$0xf]
  %v567 = vld [vmem:[%s4 + $0x2c] sm:$0xf]
  %v568 = vld [vmem:[%s4 + $0x30] sm:$0xf]
  %v569 = vld [vmem:[%s4 + $0x34] sm:$0xf]
  %v570 = vld [vmem:[%s4 + $0x38] sm:$0xf]
  %v571 = vld [vmem:[%s4 + $0x3c] sm:$0xf]
  %v572 = vld [vmem:[%s4 + $0x40] sm:$0xf]
  %v573 = vld [vmem:[%s4 + $0x44] sm:$0xf]
  %v574 = vld [vmem:[%s4 + $0x48] sm:$0xf]
  %v575 = vld [vmem:[%s4 + $0x4c] sm:$0xf]
  %v576 = vld [vmem:[%s4 + $0x50] sm:$0xf]
  %v577 = vld [vmem:[%s4 + $0x54] sm:$0xf]
  %v578 = vld [vmem:[%s4 + $0x58] sm:$0xf]
  %v579 = vld [vmem:[%s4 + $0x5c] sm:$0xf]
  %v580 = vld [vmem:[%s4 + $0x60] sm:$0xf]
  %v581 = vld [vmem:[%s4 + $0x64] sm:$0xf]
  %v582 = vld [vmem:[%s4 + $0x68] sm:$0xf]
  %v583 = vld [vmem:[%s4 + $0x6c] sm:$0xf]
  %v584 = vld [vmem:[%s4 + $0x70] sm:$0xf]
  %v585 = vld [vmem:[%s4 + $0x74] sm:$0xf]
  %v586 = vld [vmem:[%s4 + $0x78] sm:$0xf]
  %v587 = vld [vmem:[%s4 + $0x7c] sm:$0xf]
  %v588 = vld [vmem:[%s4 + $0x80] sm:$0xf]
  %v589 = vld [vmem:[%s4 + $0x84] sm:$0xf]
  %v590 = vld [vmem:[%s4 + $0x88] sm:$0xf]
  %v591 = vld [vmem:[%s4 + $0x8c] sm:$0xf]
  %v592 = vld [vmem:[%s4 + $0x90] sm:$0xf]
  %v593 = vld [vmem:[%s4 + $0x94] sm:$0xf]
  %v594 = vld [vmem:[%s4 + $0x98] sm:$0xf]
  %v595 = vld [vmem:[%s4 + $0x9c] sm:$0xf]
  %v596 = vld [vmem:[%s4 + $0xa0] sm:$0xf]
  %v597 = vld [vmem:[%s4 + $0xa4] sm:$0xf]
  %v598 = vld [vmem:[%s4 + $0xa8] sm:$0xf]
  %v599 = vld [vmem:[%s4 + $0xac] sm:$0xf]
  %v600 = vld [vmem:[%s4 + $0xb0] sm:$0xf]
  %v601 = vld [vmem:[%s4 + $0xb4] sm:$0xf]
  %v602 = vld [vmem:[%s4 + $0xb8] sm:$0xf]
  %v603 = vld [vmem:[%s4 + $0xbc] sm:$0xf]
  %v604 = vld [vmem:[%s4 + $0xc0] sm:$0xf]
  %v605 = vld [vmem:[%s4 + $0xc4] sm:$0xf]
  %v606 = vld [vmem:[%s4 + $0xc8] sm:$0xf]
  %v607 = vld [vmem:[%s4 + $0xcc] sm:$0xf]
  %v608 = vld [vmem:[%s4 + $0xd0] sm:$0xf]
  %v609 = vld [vmem:[%s4 + $0xd4] sm:$0xf]
  %v610 = vld [vmem:[%s4 + $0xd8] sm:$0xf]
  %v611 = vld [vmem:[%s4 + $0xdc] sm:$0xf]
  %v612 = vld [vmem:[%s4 + $0xe0] sm:$0xf]
  %v613 = vld [vmem:[%s4 + $0xe4] sm:$0xf]
  %v614 = vld [vmem:[%s4 + $0xe8] sm:$0xf]
  %v615 = vld [vmem:[%s4 + $0xec] sm:$0xf]
  %v616 = vld [vmem:[%s4 + $0xf0] sm:$0xf]
  %v617 = vld [vmem:[%s4 + $0xf4] sm:$0xf]
  %v618 = vld [vmem:[%s4 + $0xf8] sm:$0xf]
  %v619 = vld [vmem:[%s4 + $0xfc] sm:$0xf]
  %v684 = vunpack.c.l.b16 %v556
  %v685 = vunpack.c.l.b16 %v557
  %v686 = vunpack.c.l.b16 %v558
  %v687 = vunpack.c.l.b16 %v559
  %v688 = vunpack.c.l.b16 %v560
  %v689 = vunpack.c.l.b16 %v561
  %v690 = vunpack.c.l.b16 %v562
  %v691 = vunpack.c.l.b16 %v563
  %v692 = vunpack.c.l.b16 %v564
  %v693 = vunpack.c.l.b16 %v565
  %v694 = vunpack.c.l.b16 %v566
  %v695 = vunpack.c.l.b16 %v567
  %v696 = vunpack.c.l.b16 %v568
  %v697 = vunpack.c.l.b16 %v569
  %v698 = vunpack.c.l.b16 %v570
  %v699 = vunpack.c.l.b16 %v571
  %v700 = vunpack.c.l.b16 %v572
  %v701 = vunpack.c.l.b16 %v573
  %v702 = vunpack.c.l.b16 %v574
  %v703 = vunpack.c.l.b16 %v575
  %v704 = vunpack.c.l.b16 %v576
  %v705 = vunpack.c.l.b16 %v577
  %v706 = vunpack.c.l.b16 %v578
  %v707 = vunpack.c.l.b16 %v579
  %v708 = vunpack.c.l.b16 %v580
  %v709 = vunpack.c.l.b16 %v581
  %v710 = vunpack.c.l.b16 %v582
  %v711 = vunpack.c.l.b16 %v583
  %v712 = vunpack.c.l.b16 %v584
  %v713 = vunpack.c.l.b16 %v585
  %v714 = vunpack.c.l.b16 %v586
  %v715 = vunpack.c.l.b16 %v587
  %v716 = vunpack.c.l.b16 %v588
  %v717 = vunpack.c.l.b16 %v589
  %v718 = vunpack.c.l.b16 %v590
  %v719 = vunpack.c.l.b16 %v591
  %v720 = vunpack.c.l.b16 %v592
  %v721 = vunpack.c.l.b16 %v593
  %v722 = vunpack.c.l.b16 %v594
  %v723 = vunpack.c.l.b16 %v595
  %v724 = vunpack.c.l.b16 %v596
  %v725 = vunpack.c.l.b16 %v597
  %v726 = vunpack.c.l.b16 %v598
  %v727 = vunpack.c.l.b16 %v599
  %v728 = vunpack.c.l.b16 %v600
  %v729 = vunpack.c.l.b16 %v601
  %v730 = vunpack.c.l.b16 %v602
  %v731 = vunpack.c.l.b16 %v603
  %v732 = vunpack.c.l.b16 %v604
  %v733 = vunpack.c.l.b16 %v605
  %v734 = vunpack.c.l.b16 %v606
  %v735 = vunpack.c.l.b16 %v607
  %v736 = vunpack.c.l.b16 %v608
  %v737 = vunpack.c.l.b16 %v609
  %v738 = vunpack.c.l.b16 %v610
  %v739 = vunpack.c.l.b16 %v611
  %v740 = vunpack.c.l.b16 %v612
  %v741 = vunpack.c.l.b16 %v613
  %v742 = vunpack.c.l.b16 %v614
  %v743 = vunpack.c.l.b16 %v615
  %v744 = vunpack.c.l.b16 %v616
  %v745 = vunpack.c.l.b16 %v617
  %v746 = vunpack.c.l.b16 %v618
  %v747 = vunpack.c.l.b16 %v619
  %v748 = vpack.c.b16 %v685, %v684
  %v749 = vpack.c.b16 %v687, %v686
  %v750 = vpack.c.b16 %v689, %v688
  %v751 = vpack.c.b16 %v691, %v690
  %v752 = vpack.c.b16 %v693, %v692
  %v753 = vpack.c.b16 %v695, %v694
  %v754 = vpack.c.b16 %v697, %v696
  %v755 = vpack.c.b16 %v699, %v698
  %v756 = vpack.c.b16 %v701, %v700
  %v757 = vpack.c.b16 %v703, %v702
  %v758 = vpack.c.b16 %v705, %v704
  %v759 = vpack.c.b16 %v707, %v706
  %v760 = vpack.c.b16 %v709, %v708
  %v761 = vpack.c.b16 %v711, %v710
  %v762 = vpack.c.b16 %v713, %v712
  %v763 = vpack.c.b16 %v715, %v714
  %v764 = vpack.c.b16 %v717, %v716
  %v765 = vpack.c.b16 %v719, %v718
  %v766 = vpack.c.b16 %v721, %v720
  %v767 = vpack.c.b16 %v723, %v722
  %v768 = vpack.c.b16 %v725, %v724
  %v769 = vpack.c.b16 %v727, %v726
  %v770 = vpack.c.b16 %v729, %v728
  %v771 = vpack.c.b16 %v731, %v730
  %v772 = vpack.c.b16 %v733, %v732
  %v773 = vpack.c.b16 %v735, %v734
  %v774 = vpack.c.b16 %v737, %v736
  %v775 = vpack.c.b16 %v739, %v738
  %v776 = vpack.c.b16 %v741, %v740
  %v777 = vpack.c.b16 %v743, %v742
  %v778 = vpack.c.b16 %v745, %v744
  %v779 = vpack.c.b16 %v747, %v746
  %812 = vmatprep.subr.bf16.mxu0 0
  %813 = vmatpush1.bf16.msra.mxu0 %v555
  %814 = vmatprep.subr.bf16.mxu0 0
  %815 = vmatpush1.bf16.msra.mxu0 %v554
  %816 = vmatprep.subr.bf16.mxu0 0
  %817 = vmatpush1.bf16.msra.mxu0 %v553
  %818 = vmatprep.subr.bf16.mxu0 0
  %819 = vmatpush1.bf16.msra.mxu0 %v552
  %820 = vmatprep.subr.bf16.mxu0 0
  %821 = vmatpush1.bf16.msra.mxu0 %v551
  %822 = vmatprep.subr.bf16.mxu0 0
  %823 = vmatpush1.bf16.msra.mxu0 %v550
  %824 = vmatprep.subr.bf16.mxu0 0
  %825 = vmatpush1.bf16.msra.mxu0 %v549
  %826 = vmatprep.subr.bf16.mxu0 0
  %827 = vmatpush1.bf16.msra.mxu0 %v548
  %828 = vmatprep.subr.bf16.mxu0 0
  %829 = vmatpush2.bf16.msra.mxu0 0
  %830 = vmatprep.subr.bf16.mxu0 0
  %831 = vmatpush2.bf16.msra.mxu0 0
  %832 = vmatprep.subr.bf16.mxu0 0
  %833 = vmatpush2.bf16.msra.mxu0 0
  %834 = vmatprep.subr.bf16.mxu0 0
  %835 = vmatpush2.bf16.msra.mxu0 0
  %836 = vmatprep.subr.bf16.mxu0 0
  %837 = vmatpush2.bf16.msra.mxu0 0
  %838 = vmatprep.subr.bf16.mxu0 0
  %839 = vmatpush2.bf16.msra.mxu0 0
  %840 = vmatprep.subr.bf16.mxu0 0
  %841 = vmatpush2.bf16.msra.mxu0 0
  %842 = vmatprep.subr.bf16.mxu0 0
  %843 = vmatpush2.bf16.msra.mxu0 0
  %844 = vmatprep.mubr.bf16.mxu0 0
  %845 = vmatmul.mubr.bf16.gmra.mxu0 %v748
  %v846 = vpop.f32.mrf.mxu0
  %v847 = vadd.f32 0.0, %v846
  %v848 = vpop.f32.mrf.mxu0
  %v849 = vpop.f32.mrf.mxu0
  %v850 = vadd.f32 0.0, %v849
  %v851 = vpop.f32.mrf.mxu0
  %852 = vmatprep.mubr.bf16.mxu0 0
  %853 = vmatmul.mubr.bf16.gmra.mxu0 %v749
  %v854 = vpop.f32.mrf.mxu0
  %v855 = vadd.f32 0.0, %v854
  %v856 = vpop.f32.mrf.mxu0
  %v857 = vpop.f32.mrf.mxu0
  %v858 = vadd.f32 0.0, %v857
  %v859 = vpop.f32.mrf.mxu0
  %860 = vmatprep.mubr.bf16.mxu0 0
  %861 = vmatmul.mubr.bf16.gmra.mxu0 %v750
  %v862 = vpop.f32.mrf.mxu0
  %v863 = vadd.f32 0.0, %v862
  %v864 = vpop.f32.mrf.mxu0
  %v865 = vpop.f32.mrf.mxu0
  %v866 = vadd.f32 0.0, %v865
  %v867 = vpop.f32.mrf.mxu0
  %868 = vmatprep.mubr.bf16.mxu0 0
  %869 = vmatmul.mubr.bf16.gmra.mxu0 %v751
  %v870 = vpop.f32.mrf.mxu0
  %v871 = vadd.f32 0.0, %v870
  %v872 = vpop.f32.mrf.mxu0
  %v873 = vpop.f32.mrf.mxu0
  %v874 = vadd.f32 0.0, %v873
  %v875 = vpop.f32.mrf.mxu0
  %876 = vmatprep.mubr.bf16.mxu0 0
  %877 = vmatmul.mubr.bf16.gmra.mxu0 %v752
  %v878 = vpop.f32.mrf.mxu0
  %v879 = vadd.f32 0.0, %v878
  %v880 = vpop.f32.mrf.mxu0
  %v881 = vpop.f32.mrf.mxu0
  %v882 = vadd.f32 0.0, %v881
  %v883 = vpop.f32.mrf.mxu0
  %884 = vmatprep.mubr.bf16.mxu0 0
  %885 = vmatmul.mubr.bf16.gmra.mxu0 %v753
  %v886 = vpop.f32.mrf.mxu0
  %v887 = vadd.f32 0.0, %v886
  %v888 = vpop.f32.mrf.mxu0
  %v889 = vpop.f32.mrf.mxu0
  %v890 = vadd.f32 0.0, %v889
  %v891 = vpop.f32.mrf.mxu0
  %892 = vmatprep.mubr.bf16.mxu0 0
  %893 = vmatmul.mubr.bf16.gmra.mxu0 %v754
  %v894 = vpop.f32.mrf.mxu0
  %v895 = vadd.f32 0.0, %v894
  %v896 = vpop.f32.mrf.mxu0
  %v897 = vpop.f32.mrf.mxu0
  %v898 = vadd.f32 0.0, %v897
  %v899 = vpop.f32.mrf.mxu0
  %900 = vmatprep.mubr.bf16.mxu0 0
  %901 = vmatmul.mubr.bf16.gmra.mxu0 %v755
  %v902 = vpop.f32.mrf.mxu0
  %v903 = vadd.f32 0.0, %v902
  %v904 = vpop.f32.mrf.mxu0
  %v905 = vpop.f32.mrf.mxu0
  %v906 = vadd.f32 0.0, %v905
  %v907 = vpop.f32.mrf.mxu0
  %908 = vmatprep.mubr.bf16.mxu0 0
  %909 = vmatmul.mubr.bf16.gmra.mxu0 %v756
  %v910 = vpop.f32.mrf.mxu0
  %v911 = vadd.f32 0.0, %v910
  %v912 = vpop.f32.mrf.mxu0
  %v913 = vpop.f32.mrf.mxu0
  %v914 = vadd.f32 0.0, %v913
  %v915 = vpop.f32.mrf.mxu0
  %916 = vmatprep.mubr.bf16.mxu0 0
  %917 = vmatmul.mubr.bf16.gmra.mxu0 %v757
  %v918 = vpop.f32.mrf.mxu0
  %v919 = vadd.f32 0.0, %v918
  %v920 = vpop.f32.mrf.mxu0
  %v921 = vpop.f32.mrf.mxu0
  %v922 = vadd.f32 0.0, %v921
  %v923 = vpop.f32.mrf.mxu0
  %924 = vmatprep.mubr.bf16.mxu0 0
  %925 = vmatmul.mubr.bf16.gmra.mxu0 %v758
  %v926 = vpop.f32.mrf.mxu0
  %v927 = vadd.f32 0.0, %v926
  %v928 = vpop.f32.mrf.mxu0
  %v929 = vpop.f32.mrf.mxu0
  %v930 = vadd.f32 0.0, %v929
  %v931 = vpop.f32.mrf.mxu0
  %932 = vmatprep.mubr.bf16.mxu0 0
  %933 = vmatmul.mubr.bf16.gmra.mxu0 %v759
  %v934 = vpop.f32.mrf.mxu0
  %v935 = vadd.f32 0.0, %v934
  %v936 = vpop.f32.mrf.mxu0
  %v937 = vpop.f32.mrf.mxu0
  %v938 = vadd.f32 0.0, %v937
  %v939 = vpop.f32.mrf.mxu0
  %940 = vmatprep.mubr.bf16.mxu0 0
  %941 = vmatmul.mubr.bf16.gmra.mxu0 %v760
  %v942 = vpop.f32.mrf.mxu0
  %v943 = vadd.f32 0.0, %v942
  %v944 = vpop.f32.mrf.mxu0
  %v945 = vpop.f32.mrf.mxu0
  %v946 = vadd.f32 0.0, %v945
  %v947 = vpop.f32.mrf.mxu0
  %948 = vmatprep.mubr.bf16.mxu0 0
  %949 = vmatmul.mubr.bf16.gmra.mxu0 %v761
  %v950 = vpop.f32.mrf.mxu0
  %v951 = vadd.f32 0.0, %v950
  %v952 = vpop.f32.mrf.mxu0
  %v953 = vpop.f32.mrf.mxu0
  %v954 = vadd.f32 0.0, %v953
  %v955 = vpop.f32.mrf.mxu0
  %956 = vmatprep.mubr.bf16.mxu0 0
  %957 = vmatmul.mubr.bf16.gmra.mxu0 %v762
  %v958 = vpop.f32.mrf.mxu0
  %v959 = vadd.f32 0.0, %v958
  %v960 = vpop.f32.mrf.mxu0
  %v961 = vpop.f32.mrf.mxu0
  %v962 = vadd.f32 0.0, %v961
  %v963 = vpop.f32.mrf.mxu0
  %964 = vmatprep.mubr.bf16.mxu0 0
  %965 = vmatmul.mubr.bf16.gmra.mxu0 %v763
  %v966 = vpop.f32.mrf.mxu0
  %v967 = vadd.f32 0.0, %v966
  %v968 = vpop.f32.mrf.mxu0
  %v969 = vpop.f32.mrf.mxu0
  %v970 = vadd.f32 0.0, %v969
  %v971 = vpop.f32.mrf.mxu0
  %972 = vmatprep.mubr.bf16.mxu0 0
  %973 = vmatmul.mubr.bf16.gmra.mxu0 %v764
  %v974 = vpop.f32.mrf.mxu0
  %v975 = vadd.f32 0.0, %v974
  %v976 = vpop.f32.mrf.mxu0
  %v977 = vpop.f32.mrf.mxu0
  %v978 = vadd.f32 0.0, %v977
  %v979 = vpop.f32.mrf.mxu0
  %980 = vmatprep.mubr.bf16.mxu0 0
  %981 = vmatmul.mubr.bf16.gmra.mxu0 %v765
  %v982 = vpop.f32.mrf.mxu0
  %v983 = vadd.f32 0.0, %v982
  %v984 = vpop.f32.mrf.mxu0
  %v985 = vpop.f32.mrf.mxu0
  %v986 = vadd.f32 0.0, %v985
  %v987 = vpop.f32.mrf.mxu0
  %988 = vmatprep.mubr.bf16.mxu0 0
  %989 = vmatmul.mubr.bf16.gmra.mxu0 %v766
  %v990 = vpop.f32.mrf.mxu0
  %v991 = vadd.f32 0.0, %v990
  %v992 = vpop.f32.mrf.mxu0
  %v993 = vpop.f32.mrf.mxu0
  %v994 = vadd.f32 0.0, %v993
  %v995 = vpop.f32.mrf.mxu0
  %996 = vmatprep.mubr.bf16.mxu0 0
  %997 = vmatmul.mubr.bf16.gmra.mxu0 %v767
  %v998 = vpop.f32.mrf.mxu0
  %v999 = vadd.f32 0.0, %v998
  %v1000 = vpop.f32.mrf.mxu0
  %v1001 = vpop.f32.mrf.mxu0
  %v1002 = vadd.f32 0.0, %v1001
  %v1003 = vpop.f32.mrf.mxu0
  %1004 = vmatprep.mubr.bf16.mxu0 0
  %1005 = vmatmul.mubr.bf16.gmra.mxu0 %v768
  %v1006 = vpop.f32.mrf.mxu0
  %v1007 = vadd.f32 0.0, %v1006
  %v1008 = vpop.f32.mrf.mxu0
  %v1009 = vpop.f32.mrf.mxu0
  %v1010 = vadd.f32 0.0, %v1009
  %v1011 = vpop.f32.mrf.mxu0
  %1012 = vmatprep.mubr.bf16.mxu0 0
  %1013 = vmatmul.mubr.bf16.gmra.mxu0 %v769
  %v1014 = vpop.f32.mrf.mxu0
  %v1015 = vadd.f32 0.0, %v1014
  %v1016 = vpop.f32.mrf.mxu0
  %v1017 = vpop.f32.mrf.mxu0
  %v1018 = vadd.f32 0.0, %v1017
  %v1019 = vpop.f32.mrf.mxu0
  %1020 = vmatprep.mubr.bf16.mxu0 0
  %1021 = vmatmul.mubr.bf16.gmra.mxu0 %v770
  %v1022 = vpop.f32.mrf.mxu0
  %v1023 = vadd.f32 0.0, %v1022
  %v1024 = vpop.f32.mrf.mxu0
  %v1025 = vpop.f32.mrf.mxu0
  %v1026 = vadd.f32 0.0, %v1025
  %v1027 = vpop.f32.mrf.mxu0
  %1028 = vmatprep.mubr.bf16.mxu0 0
  %1029 = vmatmul.mubr.bf16.gmra.mxu0 %v771
  %v1030 = vpop.f32.mrf.mxu0
  %v1031 = vadd.f32 0.0, %v1030
  %v1032 = vpop.f32.mrf.mxu0
  %v1033 = vpop.f32.mrf.mxu0
  %v1034 = vadd.f32 0.0, %v1033
  %v1035 = vpop.f32.mrf.mxu0
  %1036 = vmatprep.mubr.bf16.mxu0 0
  %1037 = vmatmul.mubr.bf16.gmra.mxu0 %v772
  %v1038 = vpop.f32.mrf.mxu0
  %v1039 = vadd.f32 0.0, %v1038
  %v1040 = vpop.f32.mrf.mxu0
  %v1041 = vpop.f32.mrf.mxu0
  %v1042 = vadd.f32 0.0, %v1041
  %v1043 = vpop.f32.mrf.mxu0
  %1044 = vmatprep.mubr.bf16.mxu0 0
  %1045 = vmatmul.mubr.bf16.gmra.mxu0 %v773
  %v1046 = vpop.f32.mrf.mxu0
  %v1047 = vadd.f32 0.0, %v1046
  %v1048 = vpop.f32.mrf.mxu0
  %v1049 = vpop.f32.mrf.mxu0
  %v1050 = vadd.f32 0.0, %v1049
  %v1051 = vpop.f32.mrf.mxu0
  %1052 = vmatprep.mubr.bf16.mxu0 0
  %1053 = vmatmul.mubr.bf16.gmra.mxu0 %v774
  %v1054 = vpop.f32.mrf.mxu0
  %v1055 = vadd.f32 0.0, %v1054
  %v1056 = vpop.f32.mrf.mxu0
  %v1057 = vpop.f32.mrf.mxu0
  %v1058 = vadd.f32 0.0, %v1057
  %v1059 = vpop.f32.mrf.mxu0
  %1060 = vmatprep.mubr.bf16.mxu0 0
  %1061 = vmatmul.mubr.bf16.gmra.mxu0 %v775
  %v1062 = vpop.f32.mrf.mxu0
  %v1063 = vadd.f32 0.0, %v1062
  %v1064 = vpop.f32.mrf.mxu0
  %v1065 = vpop.f32.mrf.mxu0
  %v1066 = vadd.f32 0.0, %v1065
  %v1067 = vpop.f32.mrf.mxu0
  %1068 = vmatprep.mubr.bf16.mxu0 0
  %1069 = vmatmul.mubr.bf16.gmra.mxu0 %v776
  %v1070 = vpop.f32.mrf.mxu0
  %v1071 = vadd.f32 0.0, %v1070
  %v1072 = vpop.f32.mrf.mxu0
  %v1073 = vpop.f32.mrf.mxu0
  %v1074 = vadd.f32 0.0, %v1073
  %v1075 = vpop.f32.mrf.mxu0
  %1076 = vmatprep.mubr.bf16.mxu0 0
  %1077 = vmatmul.mubr.bf16.gmra.mxu0 %v777
  %v1078 = vpop.f32.mrf.mxu0
  %v1079 = vadd.f32 0.0, %v1078
  %v1080 = vpop.f32.mrf.mxu0
  %v1081 = vpop.f32.mrf.mxu0
  %v1082 = vadd.f32 0.0, %v1081
  %v1083 = vpop.f32.mrf.mxu0
  %1084 = vmatprep.mubr.bf16.mxu0 0
  %1085 = vmatmul.mubr.bf16.gmra.mxu0 %v778
  %v1086 = vpop.f32.mrf.mxu0
  %v1087 = vadd.f32 0.0, %v1086
  %v1088 = vpop.f32.mrf.mxu0
  %v1089 = vpop.f32.mrf.mxu0
  %v1090 = vadd.f32 0.0, %v1089
  %v1091 = vpop.f32.mrf.mxu0
  %1092 = vmatprep.mubr.bf16.mxu0 0
  %1093 = vmatmul.mubr.bf16.gmra.mxu0 %v779
  %v1094 = vpop.f32.mrf.mxu0
  %v1095 = vadd.f32 0.0, %v1094
  %v1096 = vpop.f32.mrf.mxu0
  %v1097 = vpop.f32.mrf.mxu0
  %v1098 = vadd.f32 0.0, %v1097
  %v1099 = vpop.f32.mrf.mxu0
  %1100 = vdwg.mxu0
  %v1101 = vpack.c.bf16 %v850, %v847
  %v1102 = vpack.c.bf16 %v858, %v855
  %v1103 = vpack.c.bf16 %v866, %v863
  %v1104 = vpack.c.bf16 %v874, %v871
  %v1105 = vpack.c.bf16 %v882, %v879
  %v1106 = vpack.c.bf16 %v890, %v887
  %v1107 = vpack.c.bf16 %v898, %v895
  %v1108 = vpack.c.bf16 %v906, %v903
  %v1109 = vpack.c.bf16 %v914, %v911
  %v1110 = vpack.c.bf16 %v922, %v919
  %v1111 = vpack.c.bf16 %v930, %v927
  %v1112 = vpack.c.bf16 %v938, %v935
  %v1113 = vpack.c.bf16 %v946, %v943
  %v1114 = vpack.c.bf16 %v954, %v951
  %v1115 = vpack.c.bf16 %v962, %v959
  %v1116 = vpack.c.bf16 %v970, %v967
  %v1117 = vpack.c.bf16 %v978, %v975
  %v1118 = vpack.c.bf16 %v986, %v983
  %v1119 = vpack.c.bf16 %v994, %v991
  %v1120 = vpack.c.bf16 %v1002, %v999
  %v1121 = vpack.c.bf16 %v1010, %v1007
  %v1122 = vpack.c.bf16 %v1018, %v1015
  %v1123 = vpack.c.bf16 %v1026, %v1023
  %v1124 = vpack.c.bf16 %v1034, %v1031
  %v1125 = vpack.c.bf16 %v1042, %v1039
  %v1126 = vpack.c.bf16 %v1050, %v1047
  %v1127 = vpack.c.bf16 %v1058, %v1055
  %v1128 = vpack.c.bf16 %v1066, %v1063
  %v1129 = vpack.c.bf16 %v1074, %v1071
  %v1130 = vpack.c.bf16 %v1082, %v1079
  %v1131 = vpack.c.bf16 %v1090, %v1087
  %v1132 = vpack.c.bf16 %v1098, %v1095
  %v1133 = vld [vmem:[%s5] sm:$0xf]
  %v1134 = vld [vmem:[%s5 + $0x4] sm:$0xf]
  %v1135 = vld [vmem:[%s5 + $0x8] sm:$0xf]
  %v1136 = vld [vmem:[%s5 + $0xc] sm:$0xf]
  %v1137 = vld [vmem:[%s5 + $0x10] sm:$0xf]
  %v1138 = vld [vmem:[%s5 + $0x14] sm:$0xf]
  %v1139 = vld [vmem:[%s5 + $0x18] sm:$0xf]
  %v1140 = vld [vmem:[%s5 + $0x1c] sm:$0xf]
  %v1141 = vld [vmem:[%s5 + $0x20] sm:$0xf]
  %v1142 = vld [vmem:[%s5 + $0x24] sm:$0xf]
  %v1143 = vld [vmem:[%s5 + $0x28] sm:$0xf]
  %v1144 = vld [vmem:[%s5 + $0x2c] sm:$0xf]
  %v1145 = vld [vmem:[%s5 + $0x30] sm:$0xf]
  %v1146 = vld [vmem:[%s5 + $0x34] sm:$0xf]
  %v1147 = vld [vmem:[%s5 + $0x38] sm:$0xf]
  %v1148 = vld [vmem:[%s5 + $0x3c] sm:$0xf]
  %s1149 = scalar_lea.vmem %s5, 64
  %v1150 = vld [vmem:[%s1149] sm:$0xf]
  %v1151 = vld [vmem:[%s1149 + $0x4] sm:$0xf]
  %v1152 = vld [vmem:[%s1149 + $0x8] sm:$0xf]
  %v1153 = vld [vmem:[%s1149 + $0xc] sm:$0xf]
  %v1154 = vld [vmem:[%s1149 + $0x10] sm:$0xf]
  %v1155 = vld [vmem:[%s1149 + $0x14] sm:$0xf]
  %v1156 = vld [vmem:[%s1149 + $0x18] sm:$0xf]
  %v1157 = vld [vmem:[%s1149 + $0x1c] sm:$0xf]
  %v1158 = vld [vmem:[%s1149 + $0x20] sm:$0xf]
  %v1159 = vld [vmem:[%s1149 + $0x24] sm:$0xf]
  %v1160 = vld [vmem:[%s1149 + $0x28] sm:$0xf]
  %v1161 = vld [vmem:[%s1149 + $0x2c] sm:$0xf]
  %v1162 = vld [vmem:[%s1149 + $0x30] sm:$0xf]
  %v1163 = vld [vmem:[%s1149 + $0x34] sm:$0xf]
  %v1164 = vld [vmem:[%s1149 + $0x38] sm:$0xf]
  %v1165 = vld [vmem:[%s1149 + $0x3c] sm:$0xf]
  %v1182 = vunpack.c.l.b16 %v1150
  %v1183 = vunpack.c.l.b16 %v1151
  %v1184 = vunpack.c.l.b16 %v1152
  %v1185 = vunpack.c.l.b16 %v1153
  %v1186 = vunpack.c.l.b16 %v1154
  %v1187 = vunpack.c.l.b16 %v1155
  %v1188 = vunpack.c.l.b16 %v1156
  %v1189 = vunpack.c.l.b16 %v1157
  %v1190 = vunpack.c.l.b16 %v1158
  %v1191 = vunpack.c.l.b16 %v1159
  %v1192 = vunpack.c.l.b16 %v1160
  %v1193 = vunpack.c.l.b16 %v1161
  %v1194 = vunpack.c.l.b16 %v1162
  %v1195 = vunpack.c.l.b16 %v1163
  %v1196 = vunpack.c.l.b16 %v1164
  %v1197 = vunpack.c.l.b16 %v1165
  %v1198 = vpack.c.b16 %v1183, %v1182
  %v1199 = vpack.c.b16 %v1185, %v1184
  %v1200 = vpack.c.b16 %v1187, %v1186
  %v1201 = vpack.c.b16 %v1189, %v1188
  %v1202 = vpack.c.b16 %v1191, %v1190
  %v1203 = vpack.c.b16 %v1193, %v1192
  %v1204 = vpack.c.b16 %v1195, %v1194
  %v1205 = vpack.c.b16 %v1197, %v1196
  %1214 = vmatprep.subr.bf16.mxu0 0
  %1215 = vmatpush1.bf16.msra.mxu0 %v1205
  %1216 = vmatprep.subr.bf16.mxu0 0
  %1217 = vmatpush1.bf16.msra.mxu0 %v1204
  %1218 = vmatprep.subr.bf16.mxu0 0
  %1219 = vmatpush1.bf16.msra.mxu0 %v1203
  %1220 = vmatprep.subr.bf16.mxu0 0
  %1221 = vmatpush1.bf16.msra.mxu0 %v1202
  %1222 = vmatprep.subr.bf16.mxu0 0
  %1223 = vmatpush1.bf16.msra.mxu0 %v1201
  %1224 = vmatprep.subr.bf16.mxu0 0
  %1225 = vmatpush1.bf16.msra.mxu0 %v1200
  %1226 = vmatprep.subr.bf16.mxu0 0
  %1227 = vmatpush1.bf16.msra.mxu0 %v1199
  %1228 = vmatprep.subr.bf16.mxu0 0
  %1229 = vmatpush1.bf16.msra.mxu0 %v1198
  %1230 = vmatprep.subr.bf16.mxu0 0
  %1231 = vmatpush2.bf16.msra.mxu0 0
  %1232 = vmatprep.subr.bf16.mxu0 0
  %1233 = vmatpush2.bf16.msra.mxu0 0
  %1234 = vmatprep.subr.bf16.mxu0 0
  %1235 = vmatpush2.bf16.msra.mxu0 0
  %1236 = vmatprep.subr.bf16.mxu0 0
  %1237 = vmatpush2.bf16.msra.mxu0 0
  %1238 = vmatprep.subr.bf16.mxu0 0
  %1239 = vmatpush2.bf16.msra.mxu0 0
  %1240 = vmatprep.subr.bf16.mxu0 0
  %1241 = vmatpush2.bf16.msra.mxu0 0
  %1242 = vmatprep.subr.bf16.mxu0 0
  %1243 = vmatpush2.bf16.msra.mxu0 0
  %1244 = vmatprep.subr.bf16.mxu0 0
  %1245 = vmatpush2.bf16.msra.mxu0 0
  %1246 = vmatprep.mubr.bf16.mxu0 0
  %1247 = vmatmul.mubr.bf16.gmra.mxu0 %v1103
  %v1248 = vpop.f32.mrf.mxu0
  %v1249 = vadd.f32 0.0, %v1248
  %v1250 = vpop.f32.mrf.mxu0
  %v1251 = vpop.f32.mrf.mxu0
  %v1252 = vadd.f32 0.0, %v1251
  %v1253 = vpop.f32.mrf.mxu0
  %1254 = vmatprep.mubr.bf16.mxu0 0
  %1255 = vmatmul.mubr.bf16.gmra.mxu0 %v1104
  %v1256 = vpop.f32.mrf.mxu0
  %v1257 = vadd.f32 0.0, %v1256
  %v1258 = vpop.f32.mrf.mxu0
  %v1259 = vpop.f32.mrf.mxu0
  %v1260 = vadd.f32 0.0, %v1259
  %v1261 = vpop.f32.mrf.mxu0
  %1262 = vdwg.mxu0
  %v1279 = vunpack.c.l.b16 %v1133
  %v1280 = vunpack.c.l.b16 %v1134
  %v1281 = vunpack.c.l.b16 %v1135
  %v1282 = vunpack.c.l.b16 %v1136
  %v1283 = vunpack.c.l.b16 %v1137
  %v1284 = vunpack.c.l.b16 %v1138
  %v1285 = vunpack.c.l.b16 %v1139
  %v1286 = vunpack.c.l.b16 %v1140
  %v1287 = vunpack.c.l.b16 %v1141
  %v1288 = vunpack.c.l.b16 %v1142
  %v1289 = vunpack.c.l.b16 %v1143
  %v1290 = vunpack.c.l.b16 %v1144
  %v1291 = vunpack.c.l.b16 %v1145
  %v1292 = vunpack.c.l.b16 %v1146
  %v1293 = vunpack.c.l.b16 %v1147
  %v1294 = vunpack.c.l.b16 %v1148
  %v1295 = vpack.c.b16 %v1280, %v1279
  %v1296 = vpack.c.b16 %v1282, %v1281
  %v1297 = vpack.c.b16 %v1284, %v1283
  %v1298 = vpack.c.b16 %v1286, %v1285
  %v1299 = vpack.c.b16 %v1288, %v1287
  %v1300 = vpack.c.b16 %v1290, %v1289
  %v1301 = vpack.c.b16 %v1292, %v1291
  %v1302 = vpack.c.b16 %v1294, %v1293
  %1311 = vmatprep.subr.bf16.mxu0 0
  %1312 = vmatpush1.bf16.msra.mxu0 %v1302
  %1313 = vmatprep.subr.bf16.mxu0 0
  %1314 = vmatpush1.bf16.msra.mxu0 %v1301
  %1315 = vmatprep.subr.bf16.mxu0 0
  %1316 = vmatpush1.bf16.msra.mxu0 %v1300
  %1317 = vmatprep.subr.bf16.mxu0 0
  %1318 = vmatpush1.bf16.msra.mxu0 %v1299
  %1319 = vmatprep.subr.bf16.mxu0 0
  %1320 = vmatpush1.bf16.msra.mxu0 %v1298
  %1321 = vmatprep.subr.bf16.mxu0 0
  %1322 = vmatpush1.bf16.msra.mxu0 %v1297
  %1323 = vmatprep.subr.bf16.mxu0 0
  %1324 = vmatpush1.bf16.msra.mxu0 %v1296
  %1325 = vmatprep.subr.bf16.mxu0 0
  %1326 = vmatpush1.bf16.msra.mxu0 %v1295
  %1327 = vmatprep.subr.bf16.mxu0 0
  %1328 = vmatpush2.bf16.msra.mxu0 0
  %1329 = vmatprep.subr.bf16.mxu0 0
  %1330 = vmatpush2.bf16.msra.mxu0 0
  %1331 = vmatprep.subr.bf16.mxu0 0
  %1332 = vmatpush2.bf16.msra.mxu0 0
  %1333 = vmatprep.subr.bf16.mxu0 0
  %1334 = vmatpush2.bf16.msra.mxu0 0
  %1335 = vmatprep.subr.bf16.mxu0 0
  %1336 = vmatpush2.bf16.msra.mxu0 0
  %1337 = vmatprep.subr.bf16.mxu0 0
  %1338 = vmatpush2.bf16.msra.mxu0 0
  %1339 = vmatprep.subr.bf16.mxu0 0
  %1340 = vmatpush2.bf16.msra.mxu0 0
  %1341 = vmatprep.subr.bf16.mxu0 0
  %1342 = vmatpush2.bf16.msra.mxu0 0
  %1343 = vmatprep.mubr.bf16.mxu0 0
  %1344 = vmatmul.mubr.bf16.gmra.mxu0 %v1101
  %v1345 = vpop.f32.mrf.mxu0
  %v1346 = vadd.f32 %v1249, %v1345
  %v1347 = vpop.f32.mrf.mxu0
  %v1348 = vpop.f32.mrf.mxu0
  %v1349 = vadd.f32 %v1252, %v1348
  %v1350 = vpop.f32.mrf.mxu0
  %1351 = vmatprep.mubr.bf16.mxu0 0
  %1352 = vmatmul.mubr.bf16.gmra.mxu0 %v1102
  %v1353 = vpop.f32.mrf.mxu0
  %v1354 = vadd.f32 %v1257, %v1353
  %v1355 = vpop.f32.mrf.mxu0
  %v1356 = vpop.f32.mrf.mxu0
  %v1357 = vadd.f32 %v1260, %v1356
  %v1358 = vpop.f32.mrf.mxu0
  %1359 = vdwg.mxu0
  %s1360 = scalar_lea.vmem %s5, 128
  %v1361 = vld [vmem:[%s1360] sm:$0xf]
  %v1362 = vld [vmem:[%s1360 + $0x4] sm:$0xf]
  %v1363 = vld [vmem:[%s1360 + $0x8] sm:$0xf]
  %v1364 = vld [vmem:[%s1360 + $0xc] sm:$0xf]
  %v1365 = vld [vmem:[%s1360 + $0x10] sm:$0xf]
  %v1366 = vld [vmem:[%s1360 + $0x14] sm:$0xf]
  %v1367 = vld [vmem:[%s1360 + $0x18] sm:$0xf]
  %v1368 = vld [vmem:[%s1360 + $0x1c] sm:$0xf]
  %v1369 = vld [vmem:[%s1360 + $0x20] sm:$0xf]
  %v1370 = vld [vmem:[%s1360 + $0x24] sm:$0xf]
  %v1371 = vld [vmem:[%s1360 + $0x28] sm:$0xf]
  %v1372 = vld [vmem:[%s1360 + $0x2c] sm:$0xf]
  %v1373 = vld [vmem:[%s1360 + $0x30] sm:$0xf]
  %v1374 = vld [vmem:[%s1360 + $0x34] sm:$0xf]
  %v1375 = vld [vmem:[%s1360 + $0x38] sm:$0xf]
  %v1376 = vld [vmem:[%s1360 + $0x3c] sm:$0xf]
  %v1393 = vunpack.c.l.b16 %v1361
  %v1394 = vunpack.c.l.b16 %v1362
  %v1395 = vunpack.c.l.b16 %v1363
  %v1396 = vunpack.c.l.b16 %v1364
  %v1397 = vunpack.c.l.b16 %v1365
  %v1398 = vunpack.c.l.b16 %v1366
  %v1399 = vunpack.c.l.b16 %v1367
  %v1400 = vunpack.c.l.b16 %v1368
  %v1401 = vunpack.c.l.b16 %v1369
  %v1402 = vunpack.c.l.b16 %v1370
  %v1403 = vunpack.c.l.b16 %v1371
  %v1404 = vunpack.c.l.b16 %v1372
  %v1405 = vunpack.c.l.b16 %v1373
  %v1406 = vunpack.c.l.b16 %v1374
  %v1407 = vunpack.c.l.b16 %v1375
  %v1408 = vunpack.c.l.b16 %v1376
  %v1409 = vpack.c.b16 %v1394, %v1393
  %v1410 = vpack.c.b16 %v1396, %v1395
  %v1411 = vpack.c.b16 %v1398, %v1397
  %v1412 = vpack.c.b16 %v1400, %v1399
  %v1413 = vpack.c.b16 %v1402, %v1401
  %v1414 = vpack.c.b16 %v1404, %v1403
  %v1415 = vpack.c.b16 %v1406, %v1405
  %v1416 = vpack.c.b16 %v1408, %v1407
  %1425 = vmatprep.subr.bf16.mxu0 0
  %1426 = vmatpush1.bf16.msra.mxu0 %v1416
  %1427 = vmatprep.subr.bf16.mxu0 0
  %1428 = vmatpush1.bf16.msra.mxu0 %v1415
  %1429 = vmatprep.subr.bf16.mxu0 0
  %1430 = vmatpush1.bf16.msra.mxu0 %v1414
  %1431 = vmatprep.subr.bf16.mxu0 0
  %1432 = vmatpush1.bf16.msra.mxu0 %v1413
  %1433 = vmatprep.subr.bf16.mxu0 0
  %1434 = vmatpush1.bf16.msra.mxu0 %v1412
  %1435 = vmatprep.subr.bf16.mxu0 0
  %1436 = vmatpush1.bf16.msra.mxu0 %v1411
  %1437 = vmatprep.subr.bf16.mxu0 0
  %1438 = vmatpush1.bf16.msra.mxu0 %v1410
  %1439 = vmatprep.subr.bf16.mxu0 0
  %1440 = vmatpush1.bf16.msra.mxu0 %v1409
  %1441 = vmatprep.subr.bf16.mxu0 0
  %1442 = vmatpush2.bf16.msra.mxu0 0
  %1443 = vmatprep.subr.bf16.mxu0 0
  %1444 = vmatpush2.bf16.msra.mxu0 0
  %1445 = vmatprep.subr.bf16.mxu0 0
  %1446 = vmatpush2.bf16.msra.mxu0 0
  %1447 = vmatprep.subr.bf16.mxu0 0
  %1448 = vmatpush2.bf16.msra.mxu0 0
  %1449 = vmatprep.subr.bf16.mxu0 0
  %1450 = vmatpush2.bf16.msra.mxu0 0
  %1451 = vmatprep.subr.bf16.mxu0 0
  %1452 = vmatpush2.bf16.msra.mxu0 0
  %1453 = vmatprep.subr.bf16.mxu0 0
  %1454 = vmatpush2.bf16.msra.mxu0 0
  %1455 = vmatprep.subr.bf16.mxu0 0
  %1456 = vmatpush2.bf16.msra.mxu0 0
  %1457 = vmatprep.mubr.bf16.mxu0 0
  %1458 = vmatmul.mubr.bf16.gmra.mxu0 %v1105
  %v1459 = vpop.f32.mrf.mxu0
  %v1460 = vadd.f32 0.0, %v1459
  %v1461 = vpop.f32.mrf.mxu0
  %v1462 = vpop.f32.mrf.mxu0
  %v1463 = vadd.f32 0.0, %v1462
  %v1464 = vpop.f32.mrf.mxu0
  %1465 = vmatprep.mubr.bf16.mxu0 0
  %1466 = vmatmul.mubr.bf16.gmra.mxu0 %v1106
  %v1467 = vpop.f32.mrf.mxu0
  %v1468 = vadd.f32 0.0, %v1467
  %v1469 = vpop.f32.mrf.mxu0
  %v1470 = vpop.f32.mrf.mxu0
  %v1471 = vadd.f32 0.0, %v1470
  %v1472 = vpop.f32.mrf.mxu0
  %1473 = vdwg.mxu0
  %v1474 = vadd.f32 %v1346, %v1460
  %v1475 = vadd.f32 %v1349, %v1463
  %v1476 = vadd.f32 %v1354, %v1468
  %v1477 = vadd.f32 %v1357, %v1471
  %s1478 = scalar_lea.vmem %s5, 192
  %v1479 = vld [vmem:[%s1478] sm:$0xf]
  %v1480 = vld [vmem:[%s1478 + $0x4] sm:$0xf]
  %v1481 = vld [vmem:[%s1478 + $0x8] sm:$0xf]
  %v1482 = vld [vmem:[%s1478 + $0xc] sm:$0xf]
  %v1483 = vld [vmem:[%s1478 + $0x10] sm:$0xf]
  %v1484 = vld [vmem:[%s1478 + $0x14] sm:$0xf]
  %v1485 = vld [vmem:[%s1478 + $0x18] sm:$0xf]
  %v1486 = vld [vmem:[%s1478 + $0x1c] sm:$0xf]
  %v1487 = vld [vmem:[%s1478 + $0x20] sm:$0xf]
  %v1488 = vld [vmem:[%s1478 + $0x24] sm:$0xf]
  %v1489 = vld [vmem:[%s1478 + $0x28] sm:$0xf]
  %v1490 = vld [vmem:[%s1478 + $0x2c] sm:$0xf]
  %v1491 = vld [vmem:[%s1478 + $0x30] sm:$0xf]
  %v1492 = vld [vmem:[%s1478 + $0x34] sm:$0xf]
  %v1493 = vld [vmem:[%s1478 + $0x38] sm:$0xf]
  %v1494 = vld [vmem:[%s1478 + $0x3c] sm:$0xf]
  %v1511 = vunpack.c.l.b16 %v1479
  %v1512 = vunpack.c.l.b16 %v1480
  %v1513 = vunpack.c.l.b16 %v1481
  %v1514 = vunpack.c.l.b16 %v1482
  %v1515 = vunpack.c.l.b16 %v1483
  %v1516 = vunpack.c.l.b16 %v1484
  %v1517 = vunpack.c.l.b16 %v1485
  %v1518 = vunpack.c.l.b16 %v1486
  %v1519 = vunpack.c.l.b16 %v1487
  %v1520 = vunpack.c.l.b16 %v1488
  %v1521 = vunpack.c.l.b16 %v1489
  %v1522 = vunpack.c.l.b16 %v1490
  %v1523 = vunpack.c.l.b16 %v1491
  %v1524 = vunpack.c.l.b16 %v1492
  %v1525 = vunpack.c.l.b16 %v1493
  %v1526 = vunpack.c.l.b16 %v1494
  %v1527 = vpack.c.b16 %v1512, %v1511
  %v1528 = vpack.c.b16 %v1514, %v1513
  %v1529 = vpack.c.b16 %v1516, %v1515
  %v1530 = vpack.c.b16 %v1518, %v1517
  %v1531 = vpack.c.b16 %v1520, %v1519
  %v1532 = vpack.c.b16 %v1522, %v1521
  %v1533 = vpack.c.b16 %v1524, %v1523
  %v1534 = vpack.c.b16 %v1526, %v1525
  %1543 = vmatprep.subr.bf16.mxu0 0
  %1544 = vmatpush1.bf16.msra.mxu0 %v1534
  %1545 = vmatprep.subr.bf16.mxu0 0
  %1546 = vmatpush1.bf16.msra.mxu0 %v1533
  %1547 = vmatprep.subr.bf16.mxu0 0
  %1548 = vmatpush1.bf16.msra.mxu0 %v1532
  %1549 = vmatprep.subr.bf16.mxu0 0
  %1550 = vmatpush1.bf16.msra.mxu0 %v1531
  %1551 = vmatprep.subr.bf16.mxu0 0
  %1552 = vmatpush1.bf16.msra.mxu0 %v1530
  %1553 = vmatprep.subr.bf16.mxu0 0
  %1554 = vmatpush1.bf16.msra.mxu0 %v1529
  %1555 = vmatprep.subr.bf16.mxu0 0
  %1556 = vmatpush1.bf16.msra.mxu0 %v1528
  %1557 = vmatprep.subr.bf16.mxu0 0
  %1558 = vmatpush1.bf16.msra.mxu0 %v1527
  %1559 = vmatprep.subr.bf16.mxu0 0
  %1560 = vmatpush2.bf16.msra.mxu0 0
  %1561 = vmatprep.subr.bf16.mxu0 0
  %1562 = vmatpush2.bf16.msra.mxu0 0
  %1563 = vmatprep.subr.bf16.mxu0 0
  %1564 = vmatpush2.bf16.msra.mxu0 0
  %1565 = vmatprep.subr.bf16.mxu0 0
  %1566 = vmatpush2.bf16.msra.mxu0 0
  %1567 = vmatprep.subr.bf16.mxu0 0
  %1568 = vmatpush2.bf16.msra.mxu0 0
  %1569 = vmatprep.subr.bf16.mxu0 0
  %1570 = vmatpush2.bf16.msra.mxu0 0
  %1571 = vmatprep.subr.bf16.mxu0 0
  %1572 = vmatpush2.bf16.msra.mxu0 0
  %1573 = vmatprep.subr.bf16.mxu0 0
  %1574 = vmatpush2.bf16.msra.mxu0 0
  %1575 = vmatprep.mubr.bf16.mxu0 0
  %1576 = vmatmul.mubr.bf16.gmra.mxu0 %v1107
  %v1577 = vpop.f32.mrf.mxu0
  %v1578 = vadd.f32 0.0, %v1577
  %v1579 = vpop.f32.mrf.mxu0
  %v1580 = vpop.f32.mrf.mxu0
  %v1581 = vadd.f32 0.0, %v1580
  %v1582 = vpop.f32.mrf.mxu0
  %1583 = vmatprep.mubr.bf16.mxu0 0
  %1584 = vmatmul.mubr.bf16.gmra.mxu0 %v1108
  %v1585 = vpop.f32.mrf.mxu0
  %v1586 = vadd.f32 0.0, %v1585
  %v1587 = vpop.f32.mrf.mxu0
  %v1588 = vpop.f32.mrf.mxu0
  %v1589 = vadd.f32 0.0, %v1588
  %v1590 = vpop.f32.mrf.mxu0
  %1591 = vdwg.mxu0
  %v1592 = vadd.f32 %v1474, %v1578
  %v1593 = vadd.f32 %v1475, %v1581
  %v1594 = vadd.f32 %v1476, %v1586
  %v1595 = vadd.f32 %v1477, %v1589
  %s1596 = scalar_lea.vmem %s5, 256
  %v1597 = vld [vmem:[%s1596] sm:$0xf]
  %v1598 = vld [vmem:[%s1596 + $0x4] sm:$0xf]
  %v1599 = vld [vmem:[%s1596 + $0x8] sm:$0xf]
  %v1600 = vld [vmem:[%s1596 + $0xc] sm:$0xf]
  %v1601 = vld [vmem:[%s1596 + $0x10] sm:$0xf]
  %v1602 = vld [vmem:[%s1596 + $0x14] sm:$0xf]
  %v1603 = vld [vmem:[%s1596 + $0x18] sm:$0xf]
  %v1604 = vld [vmem:[%s1596 + $0x1c] sm:$0xf]
  %v1605 = vld [vmem:[%s1596 + $0x20] sm:$0xf]
  %v1606 = vld [vmem:[%s1596 + $0x24] sm:$0xf]
  %v1607 = vld [vmem:[%s1596 + $0x28] sm:$0xf]
  %v1608 = vld [vmem:[%s1596 + $0x2c] sm:$0xf]
  %v1609 = vld [vmem:[%s1596 + $0x30] sm:$0xf]
  %v1610 = vld [vmem:[%s1596 + $0x34] sm:$0xf]
  %v1611 = vld [vmem:[%s1596 + $0x38] sm:$0xf]
  %v1612 = vld [vmem:[%s1596 + $0x3c] sm:$0xf]
  %v1629 = vunpack.c.l.b16 %v1597
  %v1630 = vunpack.c.l.b16 %v1598
  %v1631 = vunpack.c.l.b16 %v1599
  %v1632 = vunpack.c.l.b16 %v1600
  %v1633 = vunpack.c.l.b16 %v1601
  %v1634 = vunpack.c.l.b16 %v1602
  %v1635 = vunpack.c.l.b16 %v1603
  %v1636 = vunpack.c.l.b16 %v1604
  %v1637 = vunpack.c.l.b16 %v1605
  %v1638 = vunpack.c.l.b16 %v1606
  %v1639 = vunpack.c.l.b16 %v1607
  %v1640 = vunpack.c.l.b16 %v1608
  %v1641 = vunpack.c.l.b16 %v1609
  %v1642 = vunpack.c.l.b16 %v1610
  %v1643 = vunpack.c.l.b16 %v1611
  %v1644 = vunpack.c.l.b16 %v1612
  %v1645 = vpack.c.b16 %v1630, %v1629
  %v1646 = vpack.c.b16 %v1632, %v1631
  %v1647 = vpack.c.b16 %v1634, %v1633
  %v1648 = vpack.c.b16 %v1636, %v1635
  %v1649 = vpack.c.b16 %v1638, %v1637
  %v1650 = vpack.c.b16 %v1640, %v1639
  %v1651 = vpack.c.b16 %v1642, %v1641
  %v1652 = vpack.c.b16 %v1644, %v1643
  %1661 = vmatprep.subr.bf16.mxu0 0
  %1662 = vmatpush1.bf16.msra.mxu0 %v1652
  %1663 = vmatprep.subr.bf16.mxu0 0
  %1664 = vmatpush1.bf16.msra.mxu0 %v1651
  %1665 = vmatprep.subr.bf16.mxu0 0
  %1666 = vmatpush1.bf16.msra.mxu0 %v1650
  %1667 = vmatprep.subr.bf16.mxu0 0
  %1668 = vmatpush1.bf16.msra.mxu0 %v1649
  %1669 = vmatprep.subr.bf16.mxu0 0
  %1670 = vmatpush1.bf16.msra.mxu0 %v1648
  %1671 = vmatprep.subr.bf16.mxu0 0
  %1672 = vmatpush1.bf16.msra.mxu0 %v1647
  %1673 = vmatprep.subr.bf16.mxu0 0
  %1674 = vmatpush1.bf16.msra.mxu0 %v1646
  %1675 = vmatprep.subr.bf16.mxu0 0
  %1676 = vmatpush1.bf16.msra.mxu0 %v1645
  %1677 = vmatprep.subr.bf16.mxu0 0
  %1678 = vmatpush2.bf16.msra.mxu0 0
  %1679 = vmatprep.subr.bf16.mxu0 0
  %1680 = vmatpush2.bf16.msra.mxu0 0
  %1681 = vmatprep.subr.bf16.mxu0 0
  %1682 = vmatpush2.bf16.msra.mxu0 0
  %1683 = vmatprep.subr.bf16.mxu0 0
  %1684 = vmatpush2.bf16.msra.mxu0 0
  %1685 = vmatprep.subr.bf16.mxu0 0
  %1686 = vmatpush2.bf16.msra.mxu0 0
  %1687 = vmatprep.subr.bf16.mxu0 0
  %1688 = vmatpush2.bf16.msra.mxu0 0
  %1689 = vmatprep.subr.bf16.mxu0 0
  %1690 = vmatpush2.bf16.msra.mxu0 0
  %1691 = vmatprep.subr.bf16.mxu0 0
  %1692 = vmatpush2.bf16.msra.mxu0 0
  %1693 = vmatprep.mubr.bf16.mxu0 0
  %1694 = vmatmul.mubr.bf16.gmra.mxu0 %v1109
  %v1695 = vpop.f32.mrf.mxu0
  %v1696 = vadd.f32 0.0, %v1695
  %v1697 = vpop.f32.mrf.mxu0
  %v1698 = vpop.f32.mrf.mxu0
  %v1699 = vadd.f32 0.0, %v1698
  %v1700 = vpop.f32.mrf.mxu0
  %1701 = vmatprep.mubr.bf16.mxu0 0
  %1702 = vmatmul.mubr.bf16.gmra.mxu0 %v1110
  %v1703 = vpop.f32.mrf.mxu0
  %v1704 = vadd.f32 0.0, %v1703
  %v1705 = vpop.f32.mrf.mxu0
  %v1706 = vpop.f32.mrf.mxu0
  %v1707 = vadd.f32 0.0, %v1706
  %v1708 = vpop.f32.mrf.mxu0
  %1709 = vdwg.mxu0
  %v1710 = vadd.f32 %v1592, %v1696
  %v1711 = vadd.f32 %v1593, %v1699
  %v1712 = vadd.f32 %v1594, %v1704
  %v1713 = vadd.f32 %v1595, %v1707
  %s1714 = scalar_lea.vmem %s5, 320
  %v1715 = vld [vmem:[%s1714] sm:$0xf]
  %v1716 = vld [vmem:[%s1714 + $0x4] sm:$0xf]
  %v1717 = vld [vmem:[%s1714 + $0x8] sm:$0xf]
  %v1718 = vld [vmem:[%s1714 + $0xc] sm:$0xf]
  %v1719 = vld [vmem:[%s1714 + $0x10] sm:$0xf]
  %v1720 = vld [vmem:[%s1714 + $0x14] sm:$0xf]
  %v1721 = vld [vmem:[%s1714 + $0x18] sm:$0xf]
  %v1722 = vld [vmem:[%s1714 + $0x1c] sm:$0xf]
  %v1723 = vld [vmem:[%s1714 + $0x20] sm:$0xf]
  %v1724 = vld [vmem:[%s1714 + $0x24] sm:$0xf]
  %v1725 = vld [vmem:[%s1714 + $0x28] sm:$0xf]
  %v1726 = vld [vmem:[%s1714 + $0x2c] sm:$0xf]
  %v1727 = vld [vmem:[%s1714 + $0x30] sm:$0xf]
  %v1728 = vld [vmem:[%s1714 + $0x34] sm:$0xf]
  %v1729 = vld [vmem:[%s1714 + $0x38] sm:$0xf]
  %v1730 = vld [vmem:[%s1714 + $0x3c] sm:$0xf]
  %v1747 = vunpack.c.l.b16 %v1715
  %v1748 = vunpack.c.l.b16 %v1716
  %v1749 = vunpack.c.l.b16 %v1717
  %v1750 = vunpack.c.l.b16 %v1718
  %v1751 = vunpack.c.l.b16 %v1719
  %v1752 = vunpack.c.l.b16 %v1720
  %v1753 = vunpack.c.l.b16 %v1721
  %v1754 = vunpack.c.l.b16 %v1722
  %v1755 = vunpack.c.l.b16 %v1723
  %v1756 = vunpack.c.l.b16 %v1724
  %v1757 = vunpack.c.l.b16 %v1725
  %v1758 = vunpack.c.l.b16 %v1726
  %v1759 = vunpack.c.l.b16 %v1727
  %v1760 = vunpack.c.l.b16 %v1728
  %v1761 = vunpack.c.l.b16 %v1729
  %v1762 = vunpack.c.l.b16 %v1730
  %v1763 = vpack.c.b16 %v1748, %v1747
  %v1764 = vpack.c.b16 %v1750, %v1749
  %v1765 = vpack.c.b16 %v1752, %v1751
  %v1766 = vpack.c.b16 %v1754, %v1753
  %v1767 = vpack.c.b16 %v1756, %v1755
  %v1768 = vpack.c.b16 %v1758, %v1757
  %v1769 = vpack.c.b16 %v1760, %v1759
  %v1770 = vpack.c.b16 %v1762, %v1761
  %1779 = vmatprep.subr.bf16.mxu0 0
  %1780 = vmatpush1.bf16.msra.mxu0 %v1770
  %1781 = vmatprep.subr.bf16.mxu0 0
  %1782 = vmatpush1.bf16.msra.mxu0 %v1769
  %1783 = vmatprep.subr.bf16.mxu0 0
  %1784 = vmatpush1.bf16.msra.mxu0 %v1768
  %1785 = vmatprep.subr.bf16.mxu0 0
  %1786 = vmatpush1.bf16.msra.mxu0 %v1767
  %1787 = vmatprep.subr.bf16.mxu0 0
  %1788 = vmatpush1.bf16.msra.mxu0 %v1766
  %1789 = vmatprep.subr.bf16.mxu0 0
  %1790 = vmatpush1.bf16.msra.mxu0 %v1765
  %1791 = vmatprep.subr.bf16.mxu0 0
  %1792 = vmatpush1.bf16.msra.mxu0 %v1764
  %1793 = vmatprep.subr.bf16.mxu0 0
  %1794 = vmatpush1.bf16.msra.mxu0 %v1763
  %1795 = vmatprep.subr.bf16.mxu0 0
  %1796 = vmatpush2.bf16.msra.mxu0 0
  %1797 = vmatprep.subr.bf16.mxu0 0
  %1798 = vmatpush2.bf16.msra.mxu0 0
  %1799 = vmatprep.subr.bf16.mxu0 0
  %1800 = vmatpush2.bf16.msra.mxu0 0
  %1801 = vmatprep.subr.bf16.mxu0 0
  %1802 = vmatpush2.bf16.msra.mxu0 0
  %1803 = vmatprep.subr.bf16.mxu0 0
  %1804 = vmatpush2.bf16.msra.mxu0 0
  %1805 = vmatprep.subr.bf16.mxu0 0
  %1806 = vmatpush2.bf16.msra.mxu0 0
  %1807 = vmatprep.subr.bf16.mxu0 0
  %1808 = vmatpush2.bf16.msra.mxu0 0
  %1809 = vmatprep.subr.bf16.mxu0 0
  %1810 = vmatpush2.bf16.msra.mxu0 0
  %1811 = vmatprep.mubr.bf16.mxu0 0
  %1812 = vmatmul.mubr.bf16.gmra.mxu0 %v1111
  %v1813 = vpop.f32.mrf.mxu0
  %v1814 = vadd.f32 0.0, %v1813
  %v1815 = vpop.f32.mrf.mxu0
  %v1816 = vpop.f32.mrf.mxu0
  %v1817 = vadd.f32 0.0, %v1816
  %v1818 = vpop.f32.mrf.mxu0
  %1819 = vmatprep.mubr.bf16.mxu0 0
  %1820 = vmatmul.mubr.bf16.gmra.mxu0 %v1112
  %v1821 = vpop.f32.mrf.mxu0
  %v1822 = vadd.f32 0.0, %v1821
  %v1823 = vpop.f32.mrf.mxu0
  %v1824 = vpop.f32.mrf.mxu0
  %v1825 = vadd.f32 0.0, %v1824
  %v1826 = vpop.f32.mrf.mxu0
  %1827 = vdwg.mxu0
  %v1828 = vadd.f32 %v1710, %v1814
  %v1829 = vadd.f32 %v1711, %v1817
  %v1830 = vadd.f32 %v1712, %v1822
  %v1831 = vadd.f32 %v1713, %v1825
  %s1832 = scalar_lea.vmem %s5, 384
  %v1833 = vld [vmem:[%s1832] sm:$0xf]
  %v1834 = vld [vmem:[%s1832 + $0x4] sm:$0xf]
  %v1835 = vld [vmem:[%s1832 + $0x8] sm:$0xf]
  %v1836 = vld [vmem:[%s1832 + $0xc] sm:$0xf]
  %v1837 = vld [vmem:[%s1832 + $0x10] sm:$0xf]
  %v1838 = vld [vmem:[%s1832 + $0x14] sm:$0xf]
  %v1839 = vld [vmem:[%s1832 + $0x18] sm:$0xf]
  %v1840 = vld [vmem:[%s1832 + $0x1c] sm:$0xf]
  %v1841 = vld [vmem:[%s1832 + $0x20] sm:$0xf]
  %v1842 = vld [vmem:[%s1832 + $0x24] sm:$0xf]
  %v1843 = vld [vmem:[%s1832 + $0x28] sm:$0xf]
  %v1844 = vld [vmem:[%s1832 + $0x2c] sm:$0xf]
  %v1845 = vld [vmem:[%s1832 + $0x30] sm:$0xf]
  %v1846 = vld [vmem:[%s1832 + $0x34] sm:$0xf]
  %v1847 = vld [vmem:[%s1832 + $0x38] sm:$0xf]
  %v1848 = vld [vmem:[%s1832 + $0x3c] sm:$0xf]
  %v1865 = vunpack.c.l.b16 %v1833
  %v1866 = vunpack.c.l.b16 %v1834
  %v1867 = vunpack.c.l.b16 %v1835
  %v1868 = vunpack.c.l.b16 %v1836
  %v1869 = vunpack.c.l.b16 %v1837
  %v1870 = vunpack.c.l.b16 %v1838
  %v1871 = vunpack.c.l.b16 %v1839
  %v1872 = vunpack.c.l.b16 %v1840
  %v1873 = vunpack.c.l.b16 %v1841
  %v1874 = vunpack.c.l.b16 %v1842
  %v1875 = vunpack.c.l.b16 %v1843
  %v1876 = vunpack.c.l.b16 %v1844
  %v1877 = vunpack.c.l.b16 %v1845
  %v1878 = vunpack.c.l.b16 %v1846
  %v1879 = vunpack.c.l.b16 %v1847
  %v1880 = vunpack.c.l.b16 %v1848
  %v1881 = vpack.c.b16 %v1866, %v1865
  %v1882 = vpack.c.b16 %v1868, %v1867
  %v1883 = vpack.c.b16 %v1870, %v1869
  %v1884 = vpack.c.b16 %v1872, %v1871
  %v1885 = vpack.c.b16 %v1874, %v1873
  %v1886 = vpack.c.b16 %v1876, %v1875
  %v1887 = vpack.c.b16 %v1878, %v1877
  %v1888 = vpack.c.b16 %v1880, %v1879
  %1897 = vmatprep.subr.bf16.mxu0 0
  %1898 = vmatpush1.bf16.msra.mxu0 %v1888
  %1899 = vmatprep.subr.bf16.mxu0 0
  %1900 = vmatpush1.bf16.msra.mxu0 %v1887
  %1901 = vmatprep.subr.bf16.mxu0 0
  %1902 = vmatpush1.bf16.msra.mxu0 %v1886
  %1903 = vmatprep.subr.bf16.mxu0 0
  %1904 = vmatpush1.bf16.msra.mxu0 %v1885
  %1905 = vmatprep.subr.bf16.mxu0 0
  %1906 = vmatpush1.bf16.msra.mxu0 %v1884
  %1907 = vmatprep.subr.bf16.mxu0 0
  %1908 = vmatpush1.bf16.msra.mxu0 %v1883
  %1909 = vmatprep.subr.bf16.mxu0 0
  %1910 = vmatpush1.bf16.msra.mxu0 %v1882
  %1911 = vmatprep.subr.bf16.mxu0 0
  %1912 = vmatpush1.bf16.msra.mxu0 %v1881
  %1913 = vmatprep.subr.bf16.mxu0 0
  %1914 = vmatpush2.bf16.msra.mxu0 0
  %1915 = vmatprep.subr.bf16.mxu0 0
  %1916 = vmatpush2.bf16.msra.mxu0 0
  %1917 = vmatprep.subr.bf16.mxu0 0
  %1918 = vmatpush2.bf16.msra.mxu0 0
  %1919 = vmatprep.subr.bf16.mxu0 0
  %1920 = vmatpush2.bf16.msra.mxu0 0
  %1921 = vmatprep.subr.bf16.mxu0 0
  %1922 = vmatpush2.bf16.msra.mxu0 0
  %1923 = vmatprep.subr.bf16.mxu0 0
  %1924 = vmatpush2.bf16.msra.mxu0 0
  %1925 = vmatprep.subr.bf16.mxu0 0
  %1926 = vmatpush2.bf16.msra.mxu0 0
  %1927 = vmatprep.subr.bf16.mxu0 0
  %1928 = vmatpush2.bf16.msra.mxu0 0
  %1929 = vmatprep.mubr.bf16.mxu0 0
  %1930 = vmatmul.mubr.bf16.gmra.mxu0 %v1113
  %v1931 = vpop.f32.mrf.mxu0
  %v1932 = vadd.f32 0.0, %v1931
  %v1933 = vpop.f32.mrf.mxu0
  %v1934 = vpop.f32.mrf.mxu0
  %v1935 = vadd.f32 0.0, %v1934
  %v1936 = vpop.f32.mrf.mxu0
  %1937 = vmatprep.mubr.bf16.mxu0 0
  %1938 = vmatmul.mubr.bf16.gmra.mxu0 %v1114
  %v1939 = vpop.f32.mrf.mxu0
  %v1940 = vadd.f32 0.0, %v1939
  %v1941 = vpop.f32.mrf.mxu0
  %v1942 = vpop.f32.mrf.mxu0
  %v1943 = vadd.f32 0.0, %v1942
  %v1944 = vpop.f32.mrf.mxu0
  %1945 = vdwg.mxu0
  %v1946 = vadd.f32 %v1828, %v1932
  %v1947 = vadd.f32 %v1829, %v1935
  %v1948 = vadd.f32 %v1830, %v1940
  %v1949 = vadd.f32 %v1831, %v1943
  %s1950 = scalar_lea.vmem %s5, 448
  %v1951 = vld [vmem:[%s1950] sm:$0xf]
  %v1952 = vld [vmem:[%s1950 + $0x4] sm:$0xf]
  %v1953 = vld [vmem:[%s1950 + $0x8] sm:$0xf]
  %v1954 = vld [vmem:[%s1950 + $0xc] sm:$0xf]
  %v1955 = vld [vmem:[%s1950 + $0x10] sm:$0xf]
  %v1956 = vld [vmem:[%s1950 + $0x14] sm:$0xf]
  %v1957 = vld [vmem:[%s1950 + $0x18] sm:$0xf]
  %v1958 = vld [vmem:[%s1950 + $0x1c] sm:$0xf]
  %v1959 = vld [vmem:[%s1950 + $0x20] sm:$0xf]
  %v1960 = vld [vmem:[%s1950 + $0x24] sm:$0xf]
  %v1961 = vld [vmem:[%s1950 + $0x28] sm:$0xf]
  %v1962 = vld [vmem:[%s1950 + $0x2c] sm:$0xf]
  %v1963 = vld [vmem:[%s1950 + $0x30] sm:$0xf]
  %v1964 = vld [vmem:[%s1950 + $0x34] sm:$0xf]
  %v1965 = vld [vmem:[%s1950 + $0x38] sm:$0xf]
  %v1966 = vld [vmem:[%s1950 + $0x3c] sm:$0xf]
  %v1983 = vunpack.c.l.b16 %v1951
  %v1984 = vunpack.c.l.b16 %v1952
  %v1985 = vunpack.c.l.b16 %v1953
  %v1986 = vunpack.c.l.b16 %v1954
  %v1987 = vunpack.c.l.b16 %v1955
  %v1988 = vunpack.c.l.b16 %v1956
  %v1989 = vunpack.c.l.b16 %v1957
  %v1990 = vunpack.c.l.b16 %v1958
  %v1991 = vunpack.c.l.b16 %v1959
  %v1992 = vunpack.c.l.b16 %v1960
  %v1993 = vunpack.c.l.b16 %v1961
  %v1994 = vunpack.c.l.b16 %v1962
  %v1995 = vunpack.c.l.b16 %v1963
  %v1996 = vunpack.c.l.b16 %v1964
  %v1997 = vunpack.c.l.b16 %v1965
  %v1998 = vunpack.c.l.b16 %v1966
  %v1999 = vpack.c.b16 %v1984, %v1983
  %v2000 = vpack.c.b16 %v1986, %v1985
  %v2001 = vpack.c.b16 %v1988, %v1987
  %v2002 = vpack.c.b16 %v1990, %v1989
  %v2003 = vpack.c.b16 %v1992, %v1991
  %v2004 = vpack.c.b16 %v1994, %v1993
  %v2005 = vpack.c.b16 %v1996, %v1995
  %v2006 = vpack.c.b16 %v1998, %v1997
  %2015 = vmatprep.subr.bf16.mxu0 0
  %2016 = vmatpush1.bf16.msra.mxu0 %v2006
  %2017 = vmatprep.subr.bf16.mxu0 0
  %2018 = vmatpush1.bf16.msra.mxu0 %v2005
  %2019 = vmatprep.subr.bf16.mxu0 0
  %2020 = vmatpush1.bf16.msra.mxu0 %v2004
  %2021 = vmatprep.subr.bf16.mxu0 0
  %2022 = vmatpush1.bf16.msra.mxu0 %v2003
  %2023 = vmatprep.subr.bf16.mxu0 0
  %2024 = vmatpush1.bf16.msra.mxu0 %v2002
  %2025 = vmatprep.subr.bf16.mxu0 0
  %2026 = vmatpush1.bf16.msra.mxu0 %v2001
  %2027 = vmatprep.subr.bf16.mxu0 0
  %2028 = vmatpush1.bf16.msra.mxu0 %v2000
  %2029 = vmatprep.subr.bf16.mxu0 0
  %2030 = vmatpush1.bf16.msra.mxu0 %v1999
  %2031 = vmatprep.subr.bf16.mxu0 0
  %2032 = vmatpush2.bf16.msra.mxu0 0
  %2033 = vmatprep.subr.bf16.mxu0 0
  %2034 = vmatpush2.bf16.msra.mxu0 0
  %2035 = vmatprep.subr.bf16.mxu0 0
  %2036 = vmatpush2.bf16.msra.mxu0 0
  %2037 = vmatprep.subr.bf16.mxu0 0
  %2038 = vmatpush2.bf16.msra.mxu0 0
  %2039 = vmatprep.subr.bf16.mxu0 0
  %2040 = vmatpush2.bf16.msra.mxu0 0
  %2041 = vmatprep.subr.bf16.mxu0 0
  %2042 = vmatpush2.bf16.msra.mxu0 0
  %2043 = vmatprep.subr.bf16.mxu0 0
  %2044 = vmatpush2.bf16.msra.mxu0 0
  %2045 = vmatprep.subr.bf16.mxu0 0
  %2046 = vmatpush2.bf16.msra.mxu0 0
  %2047 = vmatprep.mubr.bf16.mxu0 0
  %2048 = vmatmul.mubr.bf16.gmra.mxu0 %v1115
  %v2049 = vpop.f32.mrf.mxu0
  %v2050 = vadd.f32 0.0, %v2049
  %v2051 = vpop.f32.mrf.mxu0
  %v2052 = vpop.f32.mrf.mxu0
  %v2053 = vadd.f32 0.0, %v2052
  %v2054 = vpop.f32.mrf.mxu0
  %2055 = vmatprep.mubr.bf16.mxu0 0
  %2056 = vmatmul.mubr.bf16.gmra.mxu0 %v1116
  %v2057 = vpop.f32.mrf.mxu0
  %v2058 = vadd.f32 0.0, %v2057
  %v2059 = vpop.f32.mrf.mxu0
  %v2060 = vpop.f32.mrf.mxu0
  %v2061 = vadd.f32 0.0, %v2060
  %v2062 = vpop.f32.mrf.mxu0
  %2063 = vdwg.mxu0
  %v2064 = vadd.f32 %v1946, %v2050
  %v2065 = vadd.f32 %v1947, %v2053
  %v2066 = vadd.f32 %v1948, %v2058
  %v2067 = vadd.f32 %v1949, %v2061
  %s2068 = scalar_lea.vmem %s5, 512
  %v2069 = vld [vmem:[%s2068] sm:$0xf]
  %v2070 = vld [vmem:[%s2068 + $0x4] sm:$0xf]
  %v2071 = vld [vmem:[%s2068 + $0x8] sm:$0xf]
  %v2072 = vld [vmem:[%s2068 + $0xc] sm:$0xf]
  %v2073 = vld [vmem:[%s2068 + $0x10] sm:$0xf]
  %v2074 = vld [vmem:[%s2068 + $0x14] sm:$0xf]
  %v2075 = vld [vmem:[%s2068 + $0x18] sm:$0xf]
  %v2076 = vld [vmem:[%s2068 + $0x1c] sm:$0xf]
  %v2077 = vld [vmem:[%s2068 + $0x20] sm:$0xf]
  %v2078 = vld [vmem:[%s2068 + $0x24] sm:$0xf]
  %v2079 = vld [vmem:[%s2068 + $0x28] sm:$0xf]
  %v2080 = vld [vmem:[%s2068 + $0x2c] sm:$0xf]
  %v2081 = vld [vmem:[%s2068 + $0x30] sm:$0xf]
  %v2082 = vld [vmem:[%s2068 + $0x34] sm:$0xf]
  %v2083 = vld [vmem:[%s2068 + $0x38] sm:$0xf]
  %v2084 = vld [vmem:[%s2068 + $0x3c] sm:$0xf]
  %v2101 = vunpack.c.l.b16 %v2069
  %v2102 = vunpack.c.l.b16 %v2070
  %v2103 = vunpack.c.l.b16 %v2071
  %v2104 = vunpack.c.l.b16 %v2072
  %v2105 = vunpack.c.l.b16 %v2073
  %v2106 = vunpack.c.l.b16 %v2074
  %v2107 = vunpack.c.l.b16 %v2075
  %v2108 = vunpack.c.l.b16 %v2076
  %v2109 = vunpack.c.l.b16 %v2077
  %v2110 = vunpack.c.l.b16 %v2078
  %v2111 = vunpack.c.l.b16 %v2079
  %v2112 = vunpack.c.l.b16 %v2080
  %v2113 = vunpack.c.l.b16 %v2081
  %v2114 = vunpack.c.l.b16 %v2082
  %v2115 = vunpack.c.l.b16 %v2083
  %v2116 = vunpack.c.l.b16 %v2084
  %v2117 = vpack.c.b16 %v2102, %v2101
  %v2118 = vpack.c.b16 %v2104, %v2103
  %v2119 = vpack.c.b16 %v2106, %v2105
  %v2120 = vpack.c.b16 %v2108, %v2107
  %v2121 = vpack.c.b16 %v2110, %v2109
  %v2122 = vpack.c.b16 %v2112, %v2111
  %v2123 = vpack.c.b16 %v2114, %v2113
  %v2124 = vpack.c.b16 %v2116, %v2115
  %2133 = vmatprep.subr.bf16.mxu0 0
  %2134 = vmatpush1.bf16.msra.mxu0 %v2124
  %2135 = vmatprep.subr.bf16.mxu0 0
  %2136 = vmatpush1.bf16.msra.mxu0 %v2123
  %2137 = vmatprep.subr.bf16.mxu0 0
  %2138 = vmatpush1.bf16.msra.mxu0 %v2122
  %2139 = vmatprep.subr.bf16.mxu0 0
  %2140 = vmatpush1.bf16.msra.mxu0 %v2121
  %2141 = vmatprep.subr.bf16.mxu0 0
  %2142 = vmatpush1.bf16.msra.mxu0 %v2120
  %2143 = vmatprep.subr.bf16.mxu0 0
  %2144 = vmatpush1.bf16.msra.mxu0 %v2119
  %2145 = vmatprep.subr.bf16.mxu0 0
  %2146 = vmatpush1.bf16.msra.mxu0 %v2118
  %2147 = vmatprep.subr.bf16.mxu0 0
  %2148 = vmatpush1.bf16.msra.mxu0 %v2117
  %2149 = vmatprep.subr.bf16.mxu0 0
  %2150 = vmatpush2.bf16.msra.mxu0 0
  %2151 = vmatprep.subr.bf16.mxu0 0
  %2152 = vmatpush2.bf16.msra.mxu0 0
  %2153 = vmatprep.subr.bf16.mxu0 0
  %2154 = vmatpush2.bf16.msra.mxu0 0
  %2155 = vmatprep.subr.bf16.mxu0 0
  %2156 = vmatpush2.bf16.msra.mxu0 0
  %2157 = vmatprep.subr.bf16.mxu0 0
  %2158 = vmatpush2.bf16.msra.mxu0 0
  %2159 = vmatprep.subr.bf16.mxu0 0
  %2160 = vmatpush2.bf16.msra.mxu0 0
  %2161 = vmatprep.subr.bf16.mxu0 0
  %2162 = vmatpush2.bf16.msra.mxu0 0
  %2163 = vmatprep.subr.bf16.mxu0 0
  %2164 = vmatpush2.bf16.msra.mxu0 0
  %2165 = vmatprep.mubr.bf16.mxu0 0
  %2166 = vmatmul.mubr.bf16.gmra.mxu0 %v1117
  %v2167 = vpop.f32.mrf.mxu0
  %v2168 = vadd.f32 0.0, %v2167
  %v2169 = vpop.f32.mrf.mxu0
  %v2170 = vpop.f32.mrf.mxu0
  %v2171 = vadd.f32 0.0, %v2170
  %v2172 = vpop.f32.mrf.mxu0
  %2173 = vmatprep.mubr.bf16.mxu0 0
  %2174 = vmatmul.mubr.bf16.gmra.mxu0 %v1118
  %v2175 = vpop.f32.mrf.mxu0
  %v2176 = vadd.f32 0.0, %v2175
  %v2177 = vpop.f32.mrf.mxu0
  %v2178 = vpop.f32.mrf.mxu0
  %v2179 = vadd.f32 0.0, %v2178
  %v2180 = vpop.f32.mrf.mxu0
  %2181 = vdwg.mxu0
  %v2182 = vadd.f32 %v2064, %v2168
  %v2183 = vadd.f32 %v2065, %v2171
  %v2184 = vadd.f32 %v2066, %v2176
  %v2185 = vadd.f32 %v2067, %v2179
  %s2186 = scalar_lea.vmem %s5, 576
  %v2187 = vld [vmem:[%s2186] sm:$0xf]
  %v2188 = vld [vmem:[%s2186 + $0x4] sm:$0xf]
  %v2189 = vld [vmem:[%s2186 + $0x8] sm:$0xf]
  %v2190 = vld [vmem:[%s2186 + $0xc] sm:$0xf]
  %v2191 = vld [vmem:[%s2186 + $0x10] sm:$0xf]
  %v2192 = vld [vmem:[%s2186 + $0x14] sm:$0xf]
  %v2193 = vld [vmem:[%s2186 + $0x18] sm:$0xf]
  %v2194 = vld [vmem:[%s2186 + $0x1c] sm:$0xf]
  %v2195 = vld [vmem:[%s2186 + $0x20] sm:$0xf]
  %v2196 = vld [vmem:[%s2186 + $0x24] sm:$0xf]
  %v2197 = vld [vmem:[%s2186 + $0x28] sm:$0xf]
  %v2198 = vld [vmem:[%s2186 + $0x2c] sm:$0xf]
  %v2199 = vld [vmem:[%s2186 + $0x30] sm:$0xf]
  %v2200 = vld [vmem:[%s2186 + $0x34] sm:$0xf]
  %v2201 = vld [vmem:[%s2186 + $0x38] sm:$0xf]
  %v2202 = vld [vmem:[%s2186 + $0x3c] sm:$0xf]
  %v2219 = vunpack.c.l.b16 %v2187
  %v2220 = vunpack.c.l.b16 %v2188
  %v2221 = vunpack.c.l.b16 %v2189
  %v2222 = vunpack.c.l.b16 %v2190
  %v2223 = vunpack.c.l.b16 %v2191
  %v2224 = vunpack.c.l.b16 %v2192
  %v2225 = vunpack.c.l.b16 %v2193
  %v2226 = vunpack.c.l.b16 %v2194
  %v2227 = vunpack.c.l.b16 %v2195
  %v2228 = vunpack.c.l.b16 %v2196
  %v2229 = vunpack.c.l.b16 %v2197
  %v2230 = vunpack.c.l.b16 %v2198
  %v2231 = vunpack.c.l.b16 %v2199
  %v2232 = vunpack.c.l.b16 %v2200
  %v2233 = vunpack.c.l.b16 %v2201
  %v2234 = vunpack.c.l.b16 %v2202
  %v2235 = vpack.c.b16 %v2220, %v2219
  %v2236 = vpack.c.b16 %v2222, %v2221
  %v2237 = vpack.c.b16 %v2224, %v2223
  %v2238 = vpack.c.b16 %v2226, %v2225
  %v2239 = vpack.c.b16 %v2228, %v2227
  %v2240 = vpack.c.b16 %v2230, %v2229
  %v2241 = vpack.c.b16 %v2232, %v2231
  %v2242 = vpack.c.b16 %v2234, %v2233
  %2251 = vmatprep.subr.bf16.mxu0 0
  %2252 = vmatpush1.bf16.msra.mxu0 %v2242
  %2253 = vmatprep.subr.bf16.mxu0 0
  %2254 = vmatpush1.bf16.msra.mxu0 %v2241
  %2255 = vmatprep.subr.bf16.mxu0 0
  %2256 = vmatpush1.bf16.msra.mxu0 %v2240
  %2257 = vmatprep.subr.bf16.mxu0 0
  %2258 = vmatpush1.bf16.msra.mxu0 %v2239
  %2259 = vmatprep.subr.bf16.mxu0 0
  %2260 = vmatpush1.bf16.msra.mxu0 %v2238
  %2261 = vmatprep.subr.bf16.mxu0 0
  %2262 = vmatpush1.bf16.msra.mxu0 %v2237
  %2263 = vmatprep.subr.bf16.mxu0 0
  %2264 = vmatpush1.bf16.msra.mxu0 %v2236
  %2265 = vmatprep.subr.bf16.mxu0 0
  %2266 = vmatpush1.bf16.msra.mxu0 %v2235
  %2267 = vmatprep.subr.bf16.mxu0 0
  %2268 = vmatpush2.bf16.msra.mxu0 0
  %2269 = vmatprep.subr.bf16.mxu0 0
  %2270 = vmatpush2.bf16.msra.mxu0 0
  %2271 = vmatprep.subr.bf16.mxu0 0
  %2272 = vmatpush2.bf16.msra.mxu0 0
  %2273 = vmatprep.subr.bf16.mxu0 0
  %2274 = vmatpush2.bf16.msra.mxu0 0
  %2275 = vmatprep.subr.bf16.mxu0 0
  %2276 = vmatpush2.bf16.msra.mxu0 0
  %2277 = vmatprep.subr.bf16.mxu0 0
  %2278 = vmatpush2.bf16.msra.mxu0 0
  %2279 = vmatprep.subr.bf16.mxu0 0
  %2280 = vmatpush2.bf16.msra.mxu0 0
  %2281 = vmatprep.subr.bf16.mxu0 0
  %2282 = vmatpush2.bf16.msra.mxu0 0
  %2283 = vmatprep.mubr.bf16.mxu0 0
  %2284 = vmatmul.mubr.bf16.gmra.mxu0 %v1119
  %v2285 = vpop.f32.mrf.mxu0
  %v2286 = vadd.f32 0.0, %v2285
  %v2287 = vpop.f32.mrf.mxu0
  %v2288 = vpop.f32.mrf.mxu0
  %v2289 = vadd.f32 0.0, %v2288
  %v2290 = vpop.f32.mrf.mxu0
  %2291 = vmatprep.mubr.bf16.mxu0 0
  %2292 = vmatmul.mubr.bf16.gmra.mxu0 %v1120
  %v2293 = vpop.f32.mrf.mxu0
  %v2294 = vadd.f32 0.0, %v2293
  %v2295 = vpop.f32.mrf.mxu0
  %v2296 = vpop.f32.mrf.mxu0
  %v2297 = vadd.f32 0.0, %v2296
  %v2298 = vpop.f32.mrf.mxu0
  %2299 = vdwg.mxu0
  %v2300 = vadd.f32 %v2182, %v2286
  %v2301 = vadd.f32 %v2183, %v2289
  %v2302 = vadd.f32 %v2184, %v2294
  %v2303 = vadd.f32 %v2185, %v2297
  %s2304 = scalar_lea.vmem %s5, 640
  %v2305 = vld [vmem:[%s2304] sm:$0xf]
  %v2306 = vld [vmem:[%s2304 + $0x4] sm:$0xf]
  %v2307 = vld [vmem:[%s2304 + $0x8] sm:$0xf]
  %v2308 = vld [vmem:[%s2304 + $0xc] sm:$0xf]
  %v2309 = vld [vmem:[%s2304 + $0x10] sm:$0xf]
  %v2310 = vld [vmem:[%s2304 + $0x14] sm:$0xf]
  %v2311 = vld [vmem:[%s2304 + $0x18] sm:$0xf]
  %v2312 = vld [vmem:[%s2304 + $0x1c] sm:$0xf]
  %v2313 = vld [vmem:[%s2304 + $0x20] sm:$0xf]
  %v2314 = vld [vmem:[%s2304 + $0x24] sm:$0xf]
  %v2315 = vld [vmem:[%s2304 + $0x28] sm:$0xf]
  %v2316 = vld [vmem:[%s2304 + $0x2c] sm:$0xf]
  %v2317 = vld [vmem:[%s2304 + $0x30] sm:$0xf]
  %v2318 = vld [vmem:[%s2304 + $0x34] sm:$0xf]
  %v2319 = vld [vmem:[%s2304 + $0x38] sm:$0xf]
  %v2320 = vld [vmem:[%s2304 + $0x3c] sm:$0xf]
  %v2337 = vunpack.c.l.b16 %v2305
  %v2338 = vunpack.c.l.b16 %v2306
  %v2339 = vunpack.c.l.b16 %v2307
  %v2340 = vunpack.c.l.b16 %v2308
  %v2341 = vunpack.c.l.b16 %v2309
  %v2342 = vunpack.c.l.b16 %v2310
  %v2343 = vunpack.c.l.b16 %v2311
  %v2344 = vunpack.c.l.b16 %v2312
  %v2345 = vunpack.c.l.b16 %v2313
  %v2346 = vunpack.c.l.b16 %v2314
  %v2347 = vunpack.c.l.b16 %v2315
  %v2348 = vunpack.c.l.b16 %v2316
  %v2349 = vunpack.c.l.b16 %v2317
  %v2350 = vunpack.c.l.b16 %v2318
  %v2351 = vunpack.c.l.b16 %v2319
  %v2352 = vunpack.c.l.b16 %v2320
  %v2353 = vpack.c.b16 %v2338, %v2337
  %v2354 = vpack.c.b16 %v2340, %v2339
  %v2355 = vpack.c.b16 %v2342, %v2341
  %v2356 = vpack.c.b16 %v2344, %v2343
  %v2357 = vpack.c.b16 %v2346, %v2345
  %v2358 = vpack.c.b16 %v2348, %v2347
  %v2359 = vpack.c.b16 %v2350, %v2349
  %v2360 = vpack.c.b16 %v2352, %v2351
  %2369 = vmatprep.subr.bf16.mxu0 0
  %2370 = vmatpush1.bf16.msra.mxu0 %v2360
  %2371 = vmatprep.subr.bf16.mxu0 0
  %2372 = vmatpush1.bf16.msra.mxu0 %v2359
  %2373 = vmatprep.subr.bf16.mxu0 0
  %2374 = vmatpush1.bf16.msra.mxu0 %v2358
  %2375 = vmatprep.subr.bf16.mxu0 0
  %2376 = vmatpush1.bf16.msra.mxu0 %v2357
  %2377 = vmatprep.subr.bf16.mxu0 0
  %2378 = vmatpush1.bf16.msra.mxu0 %v2356
  %2379 = vmatprep.subr.bf16.mxu0 0
  %2380 = vmatpush1.bf16.msra.mxu0 %v2355
  %2381 = vmatprep.subr.bf16.mxu0 0
  %2382 = vmatpush1.bf16.msra.mxu0 %v2354
  %2383 = vmatprep.subr.bf16.mxu0 0
  %2384 = vmatpush1.bf16.msra.mxu0 %v2353
  %2385 = vmatprep.subr.bf16.mxu0 0
  %2386 = vmatpush2.bf16.msra.mxu0 0
  %2387 = vmatprep.subr.bf16.mxu0 0
  %2388 = vmatpush2.bf16.msra.mxu0 0
  %2389 = vmatprep.subr.bf16.mxu0 0
  %2390 = vmatpush2.bf16.msra.mxu0 0
  %2391 = vmatprep.subr.bf16.mxu0 0
  %2392 = vmatpush2.bf16.msra.mxu0 0
  %2393 = vmatprep.subr.bf16.mxu0 0
  %2394 = vmatpush2.bf16.msra.mxu0 0
  %2395 = vmatprep.subr.bf16.mxu0 0
  %2396 = vmatpush2.bf16.msra.mxu0 0
  %2397 = vmatprep.subr.bf16.mxu0 0
  %2398 = vmatpush2.bf16.msra.mxu0 0
  %2399 = vmatprep.subr.bf16.mxu0 0
  %2400 = vmatpush2.bf16.msra.mxu0 0
  %2401 = vmatprep.mubr.bf16.mxu0 0
  %2402 = vmatmul.mubr.bf16.gmra.mxu0 %v1121
  %v2403 = vpop.f32.mrf.mxu0
  %v2404 = vadd.f32 0.0, %v2403
  %v2405 = vpop.f32.mrf.mxu0
  %v2406 = vpop.f32.mrf.mxu0
  %v2407 = vadd.f32 0.0, %v2406
  %v2408 = vpop.f32.mrf.mxu0
  %2409 = vmatprep.mubr.bf16.mxu0 0
  %2410 = vmatmul.mubr.bf16.gmra.mxu0 %v1122
  %v2411 = vpop.f32.mrf.mxu0
  %v2412 = vadd.f32 0.0, %v2411
  %v2413 = vpop.f32.mrf.mxu0
  %v2414 = vpop.f32.mrf.mxu0
  %v2415 = vadd.f32 0.0, %v2414
  %v2416 = vpop.f32.mrf.mxu0
  %2417 = vdwg.mxu0
  %v2418 = vadd.f32 %v2300, %v2404
  %v2419 = vadd.f32 %v2301, %v2407
  %v2420 = vadd.f32 %v2302, %v2412
  %v2421 = vadd.f32 %v2303, %v2415
  %s2422 = scalar_lea.vmem %s5, 704
  %v2423 = vld [vmem:[%s2422] sm:$0xf]
  %v2424 = vld [vmem:[%s2422 + $0x4] sm:$0xf]
  %v2425 = vld [vmem:[%s2422 + $0x8] sm:$0xf]
  %v2426 = vld [vmem:[%s2422 + $0xc] sm:$0xf]
  %v2427 = vld [vmem:[%s2422 + $0x10] sm:$0xf]
  %v2428 = vld [vmem:[%s2422 + $0x14] sm:$0xf]
  %v2429 = vld [vmem:[%s2422 + $0x18] sm:$0xf]
  %v2430 = vld [vmem:[%s2422 + $0x1c] sm:$0xf]
  %v2431 = vld [vmem:[%s2422 + $0x20] sm:$0xf]
  %v2432 = vld [vmem:[%s2422 + $0x24] sm:$0xf]
  %v2433 = vld [vmem:[%s2422 + $0x28] sm:$0xf]
  %v2434 = vld [vmem:[%s2422 + $0x2c] sm:$0xf]
  %v2435 = vld [vmem:[%s2422 + $0x30] sm:$0xf]
  %v2436 = vld [vmem:[%s2422 + $0x34] sm:$0xf]
  %v2437 = vld [vmem:[%s2422 + $0x38] sm:$0xf]
  %v2438 = vld [vmem:[%s2422 + $0x3c] sm:$0xf]
  %v2455 = vunpack.c.l.b16 %v2423
  %v2456 = vunpack.c.l.b16 %v2424
  %v2457 = vunpack.c.l.b16 %v2425
  %v2458 = vunpack.c.l.b16 %v2426
  %v2459 = vunpack.c.l.b16 %v2427
  %v2460 = vunpack.c.l.b16 %v2428
  %v2461 = vunpack.c.l.b16 %v2429
  %v2462 = vunpack.c.l.b16 %v2430
  %v2463 = vunpack.c.l.b16 %v2431
  %v2464 = vunpack.c.l.b16 %v2432
  %v2465 = vunpack.c.l.b16 %v2433
  %v2466 = vunpack.c.l.b16 %v2434
  %v2467 = vunpack.c.l.b16 %v2435
  %v2468 = vunpack.c.l.b16 %v2436
  %v2469 = vunpack.c.l.b16 %v2437
  %v2470 = vunpack.c.l.b16 %v2438
  %v2471 = vpack.c.b16 %v2456, %v2455
  %v2472 = vpack.c.b16 %v2458, %v2457
  %v2473 = vpack.c.b16 %v2460, %v2459
  %v2474 = vpack.c.b16 %v2462, %v2461
  %v2475 = vpack.c.b16 %v2464, %v2463
  %v2476 = vpack.c.b16 %v2466, %v2465
  %v2477 = vpack.c.b16 %v2468, %v2467
  %v2478 = vpack.c.b16 %v2470, %v2469
  %2487 = vmatprep.subr.bf16.mxu0 0
  %2488 = vmatpush1.bf16.msra.mxu0 %v2478
  %2489 = vmatprep.subr.bf16.mxu0 0
  %2490 = vmatpush1.bf16.msra.mxu0 %v2477
  %2491 = vmatprep.subr.bf16.mxu0 0
  %2492 = vmatpush1.bf16.msra.mxu0 %v2476
  %2493 = vmatprep.subr.bf16.mxu0 0
  %2494 = vmatpush1.bf16.msra.mxu0 %v2475
  %2495 = vmatprep.subr.bf16.mxu0 0
  %2496 = vmatpush1.bf16.msra.mxu0 %v2474
  %2497 = vmatprep.subr.bf16.mxu0 0
  %2498 = vmatpush1.bf16.msra.mxu0 %v2473
  %2499 = vmatprep.subr.bf16.mxu0 0
  %2500 = vmatpush1.bf16.msra.mxu0 %v2472
  %2501 = vmatprep.subr.bf16.mxu0 0
  %2502 = vmatpush1.bf16.msra.mxu0 %v2471
  %2503 = vmatprep.subr.bf16.mxu0 0
  %2504 = vmatpush2.bf16.msra.mxu0 0
  %2505 = vmatprep.subr.bf16.mxu0 0
  %2506 = vmatpush2.bf16.msra.mxu0 0
  %2507 = vmatprep.subr.bf16.mxu0 0
  %2508 = vmatpush2.bf16.msra.mxu0 0
  %2509 = vmatprep.subr.bf16.mxu0 0
  %2510 = vmatpush2.bf16.msra.mxu0 0
  %2511 = vmatprep.subr.bf16.mxu0 0
  %2512 = vmatpush2.bf16.msra.mxu0 0
  %2513 = vmatprep.subr.bf16.mxu0 0
  %2514 = vmatpush2.bf16.msra.mxu0 0
  %2515 = vmatprep.subr.bf16.mxu0 0
  %2516 = vmatpush2.bf16.msra.mxu0 0
  %2517 = vmatprep.subr.bf16.mxu0 0
  %2518 = vmatpush2.bf16.msra.mxu0 0
  %2519 = vmatprep.mubr.bf16.mxu0 0
  %2520 = vmatmul.mubr.bf16.gmra.mxu0 %v1123
  %v2521 = vpop.f32.mrf.mxu0
  %v2522 = vadd.f32 0.0, %v2521
  %v2523 = vpop.f32.mrf.mxu0
  %v2524 = vpop.f32.mrf.mxu0
  %v2525 = vadd.f32 0.0, %v2524
  %v2526 = vpop.f32.mrf.mxu0
  %2527 = vmatprep.mubr.bf16.mxu0 0
  %2528 = vmatmul.mubr.bf16.gmra.mxu0 %v1124
  %v2529 = vpop.f32.mrf.mxu0
  %v2530 = vadd.f32 0.0, %v2529
  %v2531 = vpop.f32.mrf.mxu0
  %v2532 = vpop.f32.mrf.mxu0
  %v2533 = vadd.f32 0.0, %v2532
  %v2534 = vpop.f32.mrf.mxu0
  %2535 = vdwg.mxu0
  %v2536 = vadd.f32 %v2418, %v2522
  %v2537 = vadd.f32 %v2419, %v2525
  %v2538 = vadd.f32 %v2420, %v2530
  %v2539 = vadd.f32 %v2421, %v2533
  %s2540 = scalar_lea.vmem %s5, 768
  %v2541 = vld [vmem:[%s2540] sm:$0xf]
  %v2542 = vld [vmem:[%s2540 + $0x4] sm:$0xf]
  %v2543 = vld [vmem:[%s2540 + $0x8] sm:$0xf]
  %v2544 = vld [vmem:[%s2540 + $0xc] sm:$0xf]
  %v2545 = vld [vmem:[%s2540 + $0x10] sm:$0xf]
  %v2546 = vld [vmem:[%s2540 + $0x14] sm:$0xf]
  %v2547 = vld [vmem:[%s2540 + $0x18] sm:$0xf]
  %v2548 = vld [vmem:[%s2540 + $0x1c] sm:$0xf]
  %v2549 = vld [vmem:[%s2540 + $0x20] sm:$0xf]
  %v2550 = vld [vmem:[%s2540 + $0x24] sm:$0xf]
  %v2551 = vld [vmem:[%s2540 + $0x28] sm:$0xf]
  %v2552 = vld [vmem:[%s2540 + $0x2c] sm:$0xf]
  %v2553 = vld [vmem:[%s2540 + $0x30] sm:$0xf]
  %v2554 = vld [vmem:[%s2540 + $0x34] sm:$0xf]
  %v2555 = vld [vmem:[%s2540 + $0x38] sm:$0xf]
  %v2556 = vld [vmem:[%s2540 + $0x3c] sm:$0xf]
  %v2573 = vunpack.c.l.b16 %v2541
  %v2574 = vunpack.c.l.b16 %v2542
  %v2575 = vunpack.c.l.b16 %v2543
  %v2576 = vunpack.c.l.b16 %v2544
  %v2577 = vunpack.c.l.b16 %v2545
  %v2578 = vunpack.c.l.b16 %v2546
  %v2579 = vunpack.c.l.b16 %v2547
  %v2580 = vunpack.c.l.b16 %v2548
  %v2581 = vunpack.c.l.b16 %v2549
  %v2582 = vunpack.c.l.b16 %v2550
  %v2583 = vunpack.c.l.b16 %v2551
  %v2584 = vunpack.c.l.b16 %v2552
  %v2585 = vunpack.c.l.b16 %v2553
  %v2586 = vunpack.c.l.b16 %v2554
  %v2587 = vunpack.c.l.b16 %v2555
  %v2588 = vunpack.c.l.b16 %v2556
  %v2589 = vpack.c.b16 %v2574, %v2573
  %v2590 = vpack.c.b16 %v2576, %v2575
  %v2591 = vpack.c.b16 %v2578, %v2577
  %v2592 = vpack.c.b16 %v2580, %v2579
  %v2593 = vpack.c.b16 %v2582, %v2581
  %v2594 = vpack.c.b16 %v2584, %v2583
  %v2595 = vpack.c.b16 %v2586, %v2585
  %v2596 = vpack.c.b16 %v2588, %v2587
  %2605 = vmatprep.subr.bf16.mxu0 0
  %2606 = vmatpush1.bf16.msra.mxu0 %v2596
  %2607 = vmatprep.subr.bf16.mxu0 0
  %2608 = vmatpush1.bf16.msra.mxu0 %v2595
  %2609 = vmatprep.subr.bf16.mxu0 0
  %2610 = vmatpush1.bf16.msra.mxu0 %v2594
  %2611 = vmatprep.subr.bf16.mxu0 0
  %2612 = vmatpush1.bf16.msra.mxu0 %v2593
  %2613 = vmatprep.subr.bf16.mxu0 0
  %2614 = vmatpush1.bf16.msra.mxu0 %v2592
  %2615 = vmatprep.subr.bf16.mxu0 0
  %2616 = vmatpush1.bf16.msra.mxu0 %v2591
  %2617 = vmatprep.subr.bf16.mxu0 0
  %2618 = vmatpush1.bf16.msra.mxu0 %v2590
  %2619 = vmatprep.subr.bf16.mxu0 0
  %2620 = vmatpush1.bf16.msra.mxu0 %v2589
  %2621 = vmatprep.subr.bf16.mxu0 0
  %2622 = vmatpush2.bf16.msra.mxu0 0
  %2623 = vmatprep.subr.bf16.mxu0 0
  %2624 = vmatpush2.bf16.msra.mxu0 0
  %2625 = vmatprep.subr.bf16.mxu0 0
  %2626 = vmatpush2.bf16.msra.mxu0 0
  %2627 = vmatprep.subr.bf16.mxu0 0
  %2628 = vmatpush2.bf16.msra.mxu0 0
  %2629 = vmatprep.subr.bf16.mxu0 0
  %2630 = vmatpush2.bf16.msra.mxu0 0
  %2631 = vmatprep.subr.bf16.mxu0 0
  %2632 = vmatpush2.bf16.msra.mxu0 0
  %2633 = vmatprep.subr.bf16.mxu0 0
  %2634 = vmatpush2.bf16.msra.mxu0 0
  %2635 = vmatprep.subr.bf16.mxu0 0
  %2636 = vmatpush2.bf16.msra.mxu0 0
  %2637 = vmatprep.mubr.bf16.mxu0 0
  %2638 = vmatmul.mubr.bf16.gmra.mxu0 %v1125
  %v2639 = vpop.f32.mrf.mxu0
  %v2640 = vadd.f32 0.0, %v2639
  %v2641 = vpop.f32.mrf.mxu0
  %v2642 = vpop.f32.mrf.mxu0
  %v2643 = vadd.f32 0.0, %v2642
  %v2644 = vpop.f32.mrf.mxu0
  %2645 = vmatprep.mubr.bf16.mxu0 0
  %2646 = vmatmul.mubr.bf16.gmra.mxu0 %v1126
  %v2647 = vpop.f32.mrf.mxu0
  %v2648 = vadd.f32 0.0, %v2647
  %v2649 = vpop.f32.mrf.mxu0
  %v2650 = vpop.f32.mrf.mxu0
  %v2651 = vadd.f32 0.0, %v2650
  %v2652 = vpop.f32.mrf.mxu0
  %2653 = vdwg.mxu0
  %v2654 = vadd.f32 %v2536, %v2640
  %v2655 = vadd.f32 %v2537, %v2643
  %v2656 = vadd.f32 %v2538, %v2648
  %v2657 = vadd.f32 %v2539, %v2651
  %s2658 = scalar_lea.vmem %s5, 832
  %v2659 = vld [vmem:[%s2658] sm:$0xf]
  %v2660 = vld [vmem:[%s2658 + $0x4] sm:$0xf]
  %v2661 = vld [vmem:[%s2658 + $0x8] sm:$0xf]
  %v2662 = vld [vmem:[%s2658 + $0xc] sm:$0xf]
  %v2663 = vld [vmem:[%s2658 + $0x10] sm:$0xf]
  %v2664 = vld [vmem:[%s2658 + $0x14] sm:$0xf]
  %v2665 = vld [vmem:[%s2658 + $0x18] sm:$0xf]
  %v2666 = vld [vmem:[%s2658 + $0x1c] sm:$0xf]
  %v2667 = vld [vmem:[%s2658 + $0x20] sm:$0xf]
  %v2668 = vld [vmem:[%s2658 + $0x24] sm:$0xf]
  %v2669 = vld [vmem:[%s2658 + $0x28] sm:$0xf]
  %v2670 = vld [vmem:[%s2658 + $0x2c] sm:$0xf]
  %v2671 = vld [vmem:[%s2658 + $0x30] sm:$0xf]
  %v2672 = vld [vmem:[%s2658 + $0x34] sm:$0xf]
  %v2673 = vld [vmem:[%s2658 + $0x38] sm:$0xf]
  %v2674 = vld [vmem:[%s2658 + $0x3c] sm:$0xf]
  %v2691 = vunpack.c.l.b16 %v2659
  %v2692 = vunpack.c.l.b16 %v2660
  %v2693 = vunpack.c.l.b16 %v2661
  %v2694 = vunpack.c.l.b16 %v2662
  %v2695 = vunpack.c.l.b16 %v2663
  %v2696 = vunpack.c.l.b16 %v2664
  %v2697 = vunpack.c.l.b16 %v2665
  %v2698 = vunpack.c.l.b16 %v2666
  %v2699 = vunpack.c.l.b16 %v2667
  %v2700 = vunpack.c.l.b16 %v2668
  %v2701 = vunpack.c.l.b16 %v2669
  %v2702 = vunpack.c.l.b16 %v2670
  %v2703 = vunpack.c.l.b16 %v2671
  %v2704 = vunpack.c.l.b16 %v2672
  %v2705 = vunpack.c.l.b16 %v2673
  %v2706 = vunpack.c.l.b16 %v2674
  %v2707 = vpack.c.b16 %v2692, %v2691
  %v2708 = vpack.c.b16 %v2694, %v2693
  %v2709 = vpack.c.b16 %v2696, %v2695
  %v2710 = vpack.c.b16 %v2698, %v2697
  %v2711 = vpack.c.b16 %v2700, %v2699
  %v2712 = vpack.c.b16 %v2702, %v2701
  %v2713 = vpack.c.b16 %v2704, %v2703
  %v2714 = vpack.c.b16 %v2706, %v2705
  %2723 = vmatprep.subr.bf16.mxu0 0
  %2724 = vmatpush1.bf16.msra.mxu0 %v2714
  %2725 = vmatprep.subr.bf16.mxu0 0
  %2726 = vmatpush1.bf16.msra.mxu0 %v2713
  %2727 = vmatprep.subr.bf16.mxu0 0
  %2728 = vmatpush1.bf16.msra.mxu0 %v2712
  %2729 = vmatprep.subr.bf16.mxu0 0
  %2730 = vmatpush1.bf16.msra.mxu0 %v2711
  %2731 = vmatprep.subr.bf16.mxu0 0
  %2732 = vmatpush1.bf16.msra.mxu0 %v2710
  %2733 = vmatprep.subr.bf16.mxu0 0
  %2734 = vmatpush1.bf16.msra.mxu0 %v2709
  %2735 = vmatprep.subr.bf16.mxu0 0
  %2736 = vmatpush1.bf16.msra.mxu0 %v2708
  %2737 = vmatprep.subr.bf16.mxu0 0
  %2738 = vmatpush1.bf16.msra.mxu0 %v2707
  %2739 = vmatprep.subr.bf16.mxu0 0
  %2740 = vmatpush2.bf16.msra.mxu0 0
  %2741 = vmatprep.subr.bf16.mxu0 0
  %2742 = vmatpush2.bf16.msra.mxu0 0
  %2743 = vmatprep.subr.bf16.mxu0 0
  %2744 = vmatpush2.bf16.msra.mxu0 0
  %2745 = vmatprep.subr.bf16.mxu0 0
  %2746 = vmatpush2.bf16.msra.mxu0 0
  %2747 = vmatprep.subr.bf16.mxu0 0
  %2748 = vmatpush2.bf16.msra.mxu0 0
  %2749 = vmatprep.subr.bf16.mxu0 0
  %2750 = vmatpush2.bf16.msra.mxu0 0
  %2751 = vmatprep.subr.bf16.mxu0 0
  %2752 = vmatpush2.bf16.msra.mxu0 0
  %2753 = vmatprep.subr.bf16.mxu0 0
  %2754 = vmatpush2.bf16.msra.mxu0 0
  %2755 = vmatprep.mubr.bf16.mxu0 0
  %2756 = vmatmul.mubr.bf16.gmra.mxu0 %v1127
  %v2757 = vpop.f32.mrf.mxu0
  %v2758 = vadd.f32 0.0, %v2757
  %v2759 = vpop.f32.mrf.mxu0
  %v2760 = vpop.f32.mrf.mxu0
  %v2761 = vadd.f32 0.0, %v2760
  %v2762 = vpop.f32.mrf.mxu0
  %2763 = vmatprep.mubr.bf16.mxu0 0
  %2764 = vmatmul.mubr.bf16.gmra.mxu0 %v1128
  %v2765 = vpop.f32.mrf.mxu0
  %v2766 = vadd.f32 0.0, %v2765
  %v2767 = vpop.f32.mrf.mxu0
  %v2768 = vpop.f32.mrf.mxu0
  %v2769 = vadd.f32 0.0, %v2768
  %v2770 = vpop.f32.mrf.mxu0
  %2771 = vdwg.mxu0
  %v2772 = vadd.f32 %v2654, %v2758
  %v2773 = vadd.f32 %v2655, %v2761
  %v2774 = vadd.f32 %v2656, %v2766
  %v2775 = vadd.f32 %v2657, %v2769
  %s2776 = scalar_lea.vmem %s5, 896
  %v2777 = vld [vmem:[%s2776] sm:$0xf]
  %v2778 = vld [vmem:[%s2776 + $0x4] sm:$0xf]
  %v2779 = vld [vmem:[%s2776 + $0x8] sm:$0xf]
  %v2780 = vld [vmem:[%s2776 + $0xc] sm:$0xf]
  %v2781 = vld [vmem:[%s2776 + $0x10] sm:$0xf]
  %v2782 = vld [vmem:[%s2776 + $0x14] sm:$0xf]
  %v2783 = vld [vmem:[%s2776 + $0x18] sm:$0xf]
  %v2784 = vld [vmem:[%s2776 + $0x1c] sm:$0xf]
  %v2785 = vld [vmem:[%s2776 + $0x20] sm:$0xf]
  %v2786 = vld [vmem:[%s2776 + $0x24] sm:$0xf]
  %v2787 = vld [vmem:[%s2776 + $0x28] sm:$0xf]
  %v2788 = vld [vmem:[%s2776 + $0x2c] sm:$0xf]
  %v2789 = vld [vmem:[%s2776 + $0x30] sm:$0xf]
  %v2790 = vld [vmem:[%s2776 + $0x34] sm:$0xf]
  %v2791 = vld [vmem:[%s2776 + $0x38] sm:$0xf]
  %v2792 = vld [vmem:[%s2776 + $0x3c] sm:$0xf]
  %v2809 = vunpack.c.l.b16 %v2777
  %v2810 = vunpack.c.l.b16 %v2778
  %v2811 = vunpack.c.l.b16 %v2779
  %v2812 = vunpack.c.l.b16 %v2780
  %v2813 = vunpack.c.l.b16 %v2781
  %v2814 = vunpack.c.l.b16 %v2782
  %v2815 = vunpack.c.l.b16 %v2783
  %v2816 = vunpack.c.l.b16 %v2784
  %v2817 = vunpack.c.l.b16 %v2785
  %v2818 = vunpack.c.l.b16 %v2786
  %v2819 = vunpack.c.l.b16 %v2787
  %v2820 = vunpack.c.l.b16 %v2788
  %v2821 = vunpack.c.l.b16 %v2789
  %v2822 = vunpack.c.l.b16 %v2790
  %v2823 = vunpack.c.l.b16 %v2791
  %v2824 = vunpack.c.l.b16 %v2792
  %v2825 = vpack.c.b16 %v2810, %v2809
  %v2826 = vpack.c.b16 %v2812, %v2811
  %v2827 = vpack.c.b16 %v2814, %v2813
  %v2828 = vpack.c.b16 %v2816, %v2815
  %v2829 = vpack.c.b16 %v2818, %v2817
  %v2830 = vpack.c.b16 %v2820, %v2819
  %v2831 = vpack.c.b16 %v2822, %v2821
  %v2832 = vpack.c.b16 %v2824, %v2823
  %2841 = vmatprep.subr.bf16.mxu0 0
  %2842 = vmatpush1.bf16.msra.mxu0 %v2832
  %2843 = vmatprep.subr.bf16.mxu0 0
  %2844 = vmatpush1.bf16.msra.mxu0 %v2831
  %2845 = vmatprep.subr.bf16.mxu0 0
  %2846 = vmatpush1.bf16.msra.mxu0 %v2830
  %2847 = vmatprep.subr.bf16.mxu0 0
  %2848 = vmatpush1.bf16.msra.mxu0 %v2829
  %2849 = vmatprep.subr.bf16.mxu0 0
  %2850 = vmatpush1.bf16.msra.mxu0 %v2828
  %2851 = vmatprep.subr.bf16.mxu0 0
  %2852 = vmatpush1.bf16.msra.mxu0 %v2827
  %2853 = vmatprep.subr.bf16.mxu0 0
  %2854 = vmatpush1.bf16.msra.mxu0 %v2826
  %2855 = vmatprep.subr.bf16.mxu0 0
  %2856 = vmatpush1.bf16.msra.mxu0 %v2825
  %2857 = vmatprep.subr.bf16.mxu0 0
  %2858 = vmatpush2.bf16.msra.mxu0 0
  %2859 = vmatprep.subr.bf16.mxu0 0
  %2860 = vmatpush2.bf16.msra.mxu0 0
  %2861 = vmatprep.subr.bf16.mxu0 0
  %2862 = vmatpush2.bf16.msra.mxu0 0
  %2863 = vmatprep.subr.bf16.mxu0 0
  %2864 = vmatpush2.bf16.msra.mxu0 0
  %2865 = vmatprep.subr.bf16.mxu0 0
  %2866 = vmatpush2.bf16.msra.mxu0 0
  %2867 = vmatprep.subr.bf16.mxu0 0
  %2868 = vmatpush2.bf16.msra.mxu0 0
  %2869 = vmatprep.subr.bf16.mxu0 0
  %2870 = vmatpush2.bf16.msra.mxu0 0
  %2871 = vmatprep.subr.bf16.mxu0 0
  %2872 = vmatpush2.bf16.msra.mxu0 0
  %2873 = vmatprep.mubr.bf16.mxu0 0
  %2874 = vmatmul.mubr.bf16.gmra.mxu0 %v1129
  %v2875 = vpop.f32.mrf.mxu0
  %v2876 = vadd.f32 0.0, %v2875
  %v2877 = vpop.f32.mrf.mxu0
  %v2878 = vpop.f32.mrf.mxu0
  %v2879 = vadd.f32 0.0, %v2878
  %v2880 = vpop.f32.mrf.mxu0
  %2881 = vmatprep.mubr.bf16.mxu0 0
  %2882 = vmatmul.mubr.bf16.gmra.mxu0 %v1130
  %v2883 = vpop.f32.mrf.mxu0
  %v2884 = vadd.f32 0.0, %v2883
  %v2885 = vpop.f32.mrf.mxu0
  %v2886 = vpop.f32.mrf.mxu0
  %v2887 = vadd.f32 0.0, %v2886
  %v2888 = vpop.f32.mrf.mxu0
  %2889 = vdwg.mxu0
  %v2890 = vadd.f32 %v2772, %v2876
  %v2891 = vadd.f32 %v2773, %v2879
  %v2892 = vadd.f32 %v2774, %v2884
  %v2893 = vadd.f32 %v2775, %v2887
  %s2894 = scalar_lea.vmem %s5, 960
  %v2895 = vld [vmem:[%s2894] sm:$0xf]
  %v2896 = vld [vmem:[%s2894 + $0x4] sm:$0xf]
  %v2897 = vld [vmem:[%s2894 + $0x8] sm:$0xf]
  %v2898 = vld [vmem:[%s2894 + $0xc] sm:$0xf]
  %v2899 = vld [vmem:[%s2894 + $0x10] sm:$0xf]
  %v2900 = vld [vmem:[%s2894 + $0x14] sm:$0xf]
  %v2901 = vld [vmem:[%s2894 + $0x18] sm:$0xf]
  %v2902 = vld [vmem:[%s2894 + $0x1c] sm:$0xf]
  %v2903 = vld [vmem:[%s2894 + $0x20] sm:$0xf]
  %v2904 = vld [vmem:[%s2894 + $0x24] sm:$0xf]
  %v2905 = vld [vmem:[%s2894 + $0x28] sm:$0xf]
  %v2906 = vld [vmem:[%s2894 + $0x2c] sm:$0xf]
  %v2907 = vld [vmem:[%s2894 + $0x30] sm:$0xf]
  %v2908 = vld [vmem:[%s2894 + $0x34] sm:$0xf]
  %v2909 = vld [vmem:[%s2894 + $0x38] sm:$0xf]
  %v2910 = vld [vmem:[%s2894 + $0x3c] sm:$0xf]
  %v2927 = vunpack.c.l.b16 %v2895
  %v2928 = vunpack.c.l.b16 %v2896
  %v2929 = vunpack.c.l.b16 %v2897
  %v2930 = vunpack.c.l.b16 %v2898
  %v2931 = vunpack.c.l.b16 %v2899
  %v2932 = vunpack.c.l.b16 %v2900
  %v2933 = vunpack.c.l.b16 %v2901
  %v2934 = vunpack.c.l.b16 %v2902
  %v2935 = vunpack.c.l.b16 %v2903
  %v2936 = vunpack.c.l.b16 %v2904
  %v2937 = vunpack.c.l.b16 %v2905
  %v2938 = vunpack.c.l.b16 %v2906
  %v2939 = vunpack.c.l.b16 %v2907
  %v2940 = vunpack.c.l.b16 %v2908
  %v2941 = vunpack.c.l.b16 %v2909
  %v2942 = vunpack.c.l.b16 %v2910
  %v2943 = vpack.c.b16 %v2928, %v2927
  %v2944 = vpack.c.b16 %v2930, %v2929
  %v2945 = vpack.c.b16 %v2932, %v2931
  %v2946 = vpack.c.b16 %v2934, %v2933
  %v2947 = vpack.c.b16 %v2936, %v2935
  %v2948 = vpack.c.b16 %v2938, %v2937
  %v2949 = vpack.c.b16 %v2940, %v2939
  %v2950 = vpack.c.b16 %v2942, %v2941
  %2959 = vmatprep.subr.bf16.mxu0 0
  %2960 = vmatpush1.bf16.msra.mxu0 %v2950
  %2961 = vmatprep.subr.bf16.mxu0 0
  %2962 = vmatpush1.bf16.msra.mxu0 %v2949
  %2963 = vmatprep.subr.bf16.mxu0 0
  %2964 = vmatpush1.bf16.msra.mxu0 %v2948
  %2965 = vmatprep.subr.bf16.mxu0 0
  %2966 = vmatpush1.bf16.msra.mxu0 %v2947
  %2967 = vmatprep.subr.bf16.mxu0 0
  %2968 = vmatpush1.bf16.msra.mxu0 %v2946
  %2969 = vmatprep.subr.bf16.mxu0 0
  %2970 = vmatpush1.bf16.msra.mxu0 %v2945
  %2971 = vmatprep.subr.bf16.mxu0 0
  %2972 = vmatpush1.bf16.msra.mxu0 %v2944
  %2973 = vmatprep.subr.bf16.mxu0 0
  %2974 = vmatpush1.bf16.msra.mxu0 %v2943
  %2975 = vmatprep.subr.bf16.mxu0 0
  %2976 = vmatpush2.bf16.msra.mxu0 0
  %2977 = vmatprep.subr.bf16.mxu0 0
  %2978 = vmatpush2.bf16.msra.mxu0 0
  %2979 = vmatprep.subr.bf16.mxu0 0
  %2980 = vmatpush2.bf16.msra.mxu0 0
  %2981 = vmatprep.subr.bf16.mxu0 0
  %2982 = vmatpush2.bf16.msra.mxu0 0
  %2983 = vmatprep.subr.bf16.mxu0 0
  %2984 = vmatpush2.bf16.msra.mxu0 0
  %2985 = vmatprep.subr.bf16.mxu0 0
  %2986 = vmatpush2.bf16.msra.mxu0 0
  %2987 = vmatprep.subr.bf16.mxu0 0
  %2988 = vmatpush2.bf16.msra.mxu0 0
  %2989 = vmatprep.subr.bf16.mxu0 0
  %2990 = vmatpush2.bf16.msra.mxu0 0
  %2991 = vmatprep.mubr.bf16.mxu0 0
  %2992 = vmatmul.mubr.bf16.gmra.mxu0 %v1131
  %v2993 = vpop.f32.mrf.mxu0
  %v2994 = vadd.f32 0.0, %v2993
  %v2995 = vpop.f32.mrf.mxu0
  %v2996 = vpop.f32.mrf.mxu0
  %v2997 = vadd.f32 0.0, %v2996
  %v2998 = vpop.f32.mrf.mxu0
  %2999 = vmatprep.mubr.bf16.mxu0 0
  %3000 = vmatmul.mubr.bf16.gmra.mxu0 %v1132
  %v3001 = vpop.f32.mrf.mxu0
  %v3002 = vadd.f32 0.0, %v3001
  %v3003 = vpop.f32.mrf.mxu0
  %v3004 = vpop.f32.mrf.mxu0
  %v3005 = vadd.f32 0.0, %v3004
  %v3006 = vpop.f32.mrf.mxu0
  %3007 = vdwg.mxu0
  %v3008 = vadd.f32 %v2890, %v2994
  %v3009 = vadd.f32 %v2891, %v2997
  %v3010 = vadd.f32 %v2892, %v3002
  %v3011 = vadd.f32 %v2893, %v3005
  %v3012 = vld [vmem:[%s6] sm:$0x1]
  %v3013 = vld [vmem:[%s7] sm:$0x1]
  %v3014 = vadd.f32 %v3008, %v3009
  %v3015 = vadd.f32 %v3014, %v3010
  %v3016 = vadd.f32 %v3015, %v3011
  %v3017 = vrot.slane %v3016, 4
  %v3018 = vadd.f32 %v3016, %v3017
  %v3019 = vrot.slane %v3018, 2
  %v3020 = vadd.f32 %v3018, %v3019
  %v3021 = vrot.slane %v3020, 1
  %v3022 = vadd.f32 %v3020, %v3021
  %v3023 = vmul.f32 %v3008, %v3008
  %v3024 = vmul.f32 %v3009, %v3009
  %v3025 = vmul.f32 %v3010, %v3010
  %v3026 = vmul.f32 %v3011, %v3011
  %v3027 = vadd.f32 %v3023, %v3024
  %v3028 = vadd.f32 %v3027, %v3025
  %v3029 = vadd.f32 %v3028, %v3026
  %v3030 = vrot.slane %v3029, 4
  %v3031 = vadd.f32 %v3029, %v3030
  %v3032 = vrot.slane %v3031, 2
  %v3033 = vadd.f32 %v3031, %v3032
  %v3034 = vrot.slane %v3033, 1
  %v3035 = vadd.f32 %v3033, %v3034
  %v3036 = vmul.f32 %v3022, 0.03125
  %v3037 = vmul.f32 %v3035, 0.03125
  %v3038 = vmul.f32 %v3036, %v3036
  %v3039 = vsub.f32 %v3037, %v3038
  %v3040 = vmax.f32 %v3039, 0.0
  %v3041 = vsub.f32 %v3008, %v3036
  %v3042 = vsub.f32 %v3009, %v3036
  %v3043 = vsub.f32 %v3010, %v3036
  %v3044 = vsub.f32 %v3011, %v3036
  %v3045 = vadd.f32 %v3040, 1e-05
  %v3046 = vrsqrt.pop %v3045
  %v3047 = vmul.f32 %v3041, %v3046
  %v3048 = vmul.f32 %v3042, %v3046
  %v3049 = vmul.f32 %v3043, %v3046
  %v3050 = vmul.f32 %v3044, %v3046
  %v3052 = vlaneseq
  %v3053 = vshrl.u32 %v3052, 7
  %v3054 = vsub.s32 0, %v3053
  %v3055 = vrot.slane %v3012, %v3054
  %v3057 = vmul.f32 %v3047, %v3055
  %v3058 = vmul.f32 %v3048, %v3055
  %v3059 = vmul.f32 %v3049, %v3055
  %v3060 = vmul.f32 %v3050, %v3055
  %v3062 = vlaneseq
  %v3063 = vshrl.u32 %v3062, 7
  %v3064 = vsub.s32 0, %v3063
  %v3065 = vrot.slane %v3013, %v3064
  %v3067 = vadd.f32 %v3057, %v3065
  %v3068 = vadd.f32 %v3058, %v3065
  %v3069 = vadd.f32 %v3059, %v3065
  %v3070 = vadd.f32 %v3060, %v3065
  %vm3071 = vcmp.gt.f32.partialorder %v3067, 0.0
  %vm3072 = vcmp.gt.f32.partialorder %v3068, 0.0
  %vm3073 = vcmp.gt.f32.partialorder %v3069, 0.0
  %vm3074 = vcmp.gt.f32.partialorder %v3070, 0.0
  %v3075 = vmul.f32 %v3067, 0.2
  %v3076 = vmul.f32 %v3068, 0.2
  %v3077 = vmul.f32 %v3069, 0.2
  %v3078 = vmul.f32 %v3070, 0.2
  %v3079 = vsel %vm3071, %v3067, %v3075
  %v3080 = vsel %vm3072, %v3068, %v3076
  %v3081 = vsel %vm3073, %v3069, %v3077
  %v3082 = vsel %vm3074, %v3070, %v3078
  %v3083 = vld [vmem:[%s9] sm:$0x3]
  %v3084 = vld [vmem:[%s8] sm:$0xff]
  %v3085 = vld [vmem:[%s8 + $0x8] sm:$0xff]
  %v3086 = vld [vmem:[%s8 + $0x10] sm:$0xff]
  %v3087 = vld [vmem:[%s8 + $0x18] sm:$0xff]
  %v3088 = vmul.f32 %v3079, %v3084
  %v3089 = vmul.f32 %v3080, %v3085
  %v3090 = vmul.f32 %v3081, %v3086
  %v3091 = vmul.f32 %v3082, %v3087
  %vm3092 = vcmask 261120
  %v3094 = vsel %vm3092, %v3083, 0
  %3096 = vmatprep.subr.mxu0 0.0
  %3097 = vmatpush1.msra.mxu0 0.0
  %3098 = vmatprep.subr.mxu0 0.0
  %3099 = vmatpush1.msra.mxu0 0.0
  %3100 = vmatprep.subr.mxu0 0.0
  %3101 = vmatpush1.msra.mxu0 0.0
  %3102 = vmatprep.subr.mxu0 0.0
  %3103 = vmatpush1.msra.mxu0 0.0
  %3104 = vmatprep.subr.mxu0 0.0
  %3105 = vmatpush1.msra.mxu0 0.0
  %3106 = vmatprep.subr.mxu0 0.0
  %3107 = vmatpush1.msra.mxu0 0.0
  %3108 = vmatprep.subr.mxu0 0.0
  %3109 = vmatpush1.msra.mxu0 0.0
  %3110 = vmatprep.subr.mxu0 0.0
  %3111 = vmatpush1.msra.mxu0 0.0
  %3112 = vmatprep.subr.mxu0 0.0
  %3113 = vmatpush1.msra.mxu0 0.0
  %3114 = vmatprep.subr.mxu0 0.0
  %3115 = vmatpush1.msra.mxu0 0.0
  %3116 = vmatprep.subr.mxu0 0.0
  %3117 = vmatpush1.msra.mxu0 0.0
  %3118 = vmatprep.subr.mxu0 0.0
  %3119 = vmatpush1.msra.mxu0 0.0
  %3120 = vmatprep.subr.mxu0 0.0
  %3121 = vmatpush1.msra.mxu0 %v3091
  %3122 = vmatprep.subr.mxu0 0.0
  %3123 = vmatpush1.msra.mxu0 %v3090
  %3124 = vmatprep.subr.mxu0 0.0
  %3125 = vmatpush1.msra.mxu0 %v3089
  %3126 = vmatprep.subr.mxu0 0.0
  %3127 = vmatpush1.msra.mxu0 %v3088
  %3128 = vmatprep.subr.mxu0 0.0
  %3129 = vmatpush2.msra.mxu0 0.0
  %3130 = vmatprep.subr.mxu0 0.0
  %3131 = vmatpush2.msra.mxu0 0.0
  %3132 = vmatprep.subr.mxu0 0.0
  %3133 = vmatpush2.msra.mxu0 0.0
  %3134 = vmatprep.subr.mxu0 0.0
  %3135 = vmatpush2.msra.mxu0 0.0
  %3136 = vmatprep.subr.mxu0 0.0
  %3137 = vmatpush2.msra.mxu0 0.0
  %3138 = vmatprep.subr.mxu0 0.0
  %3139 = vmatpush2.msra.mxu0 0.0
  %3140 = vmatprep.subr.mxu0 0.0
  %3141 = vmatpush2.msra.mxu0 0.0
  %3142 = vmatprep.subr.mxu0 0.0
  %3143 = vmatpush2.msra.mxu0 0.0
  %3144 = vmatprep.subr.mxu0 0.0
  %3145 = vmatpush2.msra.mxu0 0.0
  %3146 = vmatprep.subr.mxu0 0.0
  %3147 = vmatpush2.msra.mxu0 0.0
  %3148 = vmatprep.subr.mxu0 0.0
  %3149 = vmatpush2.msra.mxu0 0.0
  %3150 = vmatprep.subr.mxu0 0.0
  %3151 = vmatpush2.msra.mxu0 0.0
  %3152 = vmatprep.subr.mxu0 0.0
  %3153 = vmatpush2.msra.mxu0 0.0
  %3154 = vmatprep.subr.mxu0 0.0
  %3155 = vmatpush2.msra.mxu0 0.0
  %3156 = vmatprep.subr.mxu0 0.0
  %3157 = vmatpush2.msra.mxu0 0.0
  %3158 = vmatprep.subr.mxu0 0.0
  %3159 = vmatpush2.msra.mxu0 0.0
  %3160 = vmatprep.mubr.f32.mxu0 0.0
  %3161 = vmatmul.mubr.f32.gmra.mxu0 %v3094
  %v3162 = vpop.f32.mrf.mxu0
  %v3163 = vadd.f32 0.0, %v3162
  %v3164 = vpop.f32.mrf.mxu0
  %3165 = vdwg.mxu0
  %vm3166 = vcmask 1041408
  %v3167 = vsel %vm3166, %v3163, 0.0
  %3168 = vadd.xlane.f32.xlu0 %v3167
  %v3169 = vpop.xlane.xlu0 %3168
  %vm3170 = vcmask 1024
  %3171 = vst.msk [vmem:[%s10] sm:$0x3] %vm3170, %v3169
  // Predicated region
  $region42: #{discriminator_forward.5} parent=0 // pred_check
    _
  $region43: #{discriminator_forward.5} parent=0 // pred_check_branch
    %3173 = sbr.rel (0) target = $region45
  $region44: #{discriminator_forward.5} parent=0 // pred_region
    _
  $region45: #{discriminator_forward.5} parent=0 // pred_fallthru
    _
  // Predicated region
  $region46: #{discriminator_forward.5} parent=0 // pred_check
    _
  $region47: #{discriminator_forward.5} parent=0 // pred_check_branch
    %3175 = sbr.rel (0) target = $region49
  $region48: #{discriminator_forward.5} parent=0 // pred_region
    _
  $region49: #{discriminator_forward.5} parent=0 // pred_fallthru
    _

</llo_original>
